<compile_context>
chip_gen: v5e
topology: v5e:2x2
jax: 0.10.0
libtpu: 0.0.40
codegen_flags: <defaults>
</compile_context>

<pallas_src>
import functools

import jax
import jax.numpy as jnp
import numpy as np
from jax import lax
from jax.experimental import pallas as pl
from jax.experimental.pallas import tpu as pltpu


# Static dimensions implied by the PyTorch module (28x28 input, 64*7*7 FC-in).
H = W = 28
C1_OUT = 32
C2_OUT = 64
P1 = 14                      # spatial size after the first 2x2 pool
P2 = 7                       # spatial size after the second 2x2 pool
FC_HID = 128
HALF = 512                   # lanes per pool-col-offset half (448 valid + 64 pad)
K1 = 128                     # conv1 banded contraction: 90 data + bias lane + pad
K2 = 3 * HALF                # 1536 = conv2 banded contraction (kh, padded col, ci)
KFC1 = P2 * HALF             # 3584 = FC1 contraction (uo, padded (vo, co))
BIAS_LANE = 90               # constant-1.0 lane of the conv1 LHS


# ------------------------------- the kernel ---------------------------------


def convnet_fused_kernel(x1_ref, c1_ref, c2_ref, b2_ref, w1p_ref, fc1b_ref,
                         w2t_ref, fc2b_ref, o_ref, p1_ref, fc1_ref):
    """Whole ConvNet forward for one batch tile of B images, entirely in VMEM.

    x1_ref : (32B, 128) bf16  banded conv1 LHS.  Row ((2*par + a)*8 + w)*B + n
                              = im2col band of conv1 output row i = 2*(p-1)+a,
                              p = 2w + par, image n; lane 90 is a constant 1.0
                              (bias lane); the rows with p in {0, 15} are zero.
    c1_ref : (128, 1024) bf16 banded conv1 RHS; col = b*512 + q*32 + c, row 90
                              holds the conv1 bias, cols with q in {0,15} are 0.
    c2_ref : (1536, 1024) bf16 banded conv2 RHS; row = kh*512 + q*32 + ci,
                              col = b*512 + vo*64 + co (vo=7 block is zero).
    b2_ref : (1, 1024) f32    conv2 bias in the conv2 output column layout.
    w1p_ref: (3584, 128) bf16 FC1 weight permuted to lane = uo*512 + vo*64 + co.
    w2t_ref: (128, NC) bf16   FC2 weight transposed, zero-padded to NC lanes.
    o_ref  : (B, NC) f32      logits (first num_classes lanes valid).
    p1_ref : (16B, 512) f32   scratch: zero-padded pooled1, row par*8B + w*B + n.
    fc1_ref: (B, 3584) bf16   scratch: FC1 LHS.
    """
    B = o_ref.shape[0]

    # -------- conv1 (+ bias via the constant lane) as one MXU matmul --------
    r1 = jnp.dot(x1_ref[...], c1_ref[...],
                 preferred_element_type=jnp.float32)                 # (32B, 1024)

    # ReLU + 2x2 maxpool.  The two pool-row operands are the aligned 8B-row
    # "a" blocks of each parity section; the two pool-col operands are the
    # aligned 512-lane halves.  The result lands directly in conv2's
    # zero-padded (p, q) coordinates (p1_ref rows p=0/15 and lanes q=0/15
    # stay exactly zero because both the LHS pad rows and RHS pad cols are 0).
    for par in range(2):
        a0 = r1[(2 * par + 0) * 8 * B:(2 * par + 1) * 8 * B, :]
        a1 = r1[(2 * par + 1) * 8 * B:(2 * par + 2) * 8 * B, :]
        m = jnp.maximum(a0, a1)
        hm = jnp.maximum(m[:, 0:HALF], m[:, HALF:2 * HALF])
        p1_ref[par * 8 * B:(par + 1) * 8 * B, :] = jnp.maximum(hm, 0.0)

    # -------- conv2 + bias + ReLU + 2x2 maxpool ------------------------------
    # Lane block kh of conv2-LHS row (a, uo, n) is padded-pooled1 row
    # p = 2*uo + (a + kh); for fixed (a, kh) that is ONE contiguous, aligned
    # 7B-row slice of p1_ref.
    def p1_block(s):                       # s = a + kh in [0, 3]
        start = (s % 2) * 8 * B + (s // 2) * B
        return p1_ref[start:start + 7 * B, :]

    l2 = jnp.concatenate(
        [jnp.concatenate([p1_block(kh), p1_block(kh + 1)], axis=0)
         for kh in range(3)], axis=1).astype(jnp.bfloat16)            # (14B, 1536)

    r2 = (jnp.dot(l2, c2_ref[...], preferred_element_type=jnp.float32)
          + b2_ref[...])                                              # (14B, 1024)
    m2 = jnp.maximum(r2[0:7 * B, :], r2[7 * B:14 * B, :])             # pool rows
    p2 = jnp.maximum(jnp.maximum(m2[:, 0:HALF], m2[:, HALF:2 * HALF]),
                     0.0)                                             # (7B, 512)

    # -------- FC1 + ReLU + Dropout(eval) + FC2 -------------------------------
    # Lane-concatenate the 7 pooled rows of each image -> ONE big K=3584 dot.
    for uo in range(P2):
        fc1_ref[:, uo * HALF:(uo + 1) * HALF] = (
            p2[uo * B:(uo + 1) * B, :].astype(jnp.bfloat16))

    h = jnp.dot(fc1_ref[...], w1p_ref[...], preferred_element_type=jnp.float32)
    h = jnp.maximum(h + fc1b_ref[...], 0.0)
    # TODO(synk): nn.Dropout(0.5) only acts in training mode; eval() = identity.
    out = (jnp.dot(h.astype(jnp.bfloat16), w2t_ref[...],
                   preferred_element_type=jnp.float32) + fc2b_ref[...])
    o_ref[...] = out.astype(o_ref.dtype)


# --------------------------- one-time weight prep ----------------------------


def prepare_params(params):
    """Pack PyTorch-layout weights into the kernel layouts (call once)."""
    f32, bf16 = jnp.float32, jnp.bfloat16
    w1 = params["conv1_w"].astype(f32)      # (32, 1, 3, 3)   OIHW
    b1 = params["conv1_b"].astype(f32)
    w2 = params["conv2_w"].astype(f32)      # (64, 32, 3, 3)  OIHW
    b2 = params["conv2_b"].astype(f32)
    fc1_w = params["fc1_w"].astype(f32)     # (128, 3136)
    fc1_b = params["fc1_b"].astype(f32)
    fc2_w = params["fc2_w"].astype(f32)     # (C, 128)
    fc2_b = params["fc2_b"].astype(f32)
    num_classes = fc2_w.shape[0]
    ncols = max(128, ((num_classes + 127) // 128) * 128)

    q = jnp.arange(16)                      # zero-padded pooled1 column
    bcol = jnp.arange(2)                    # pool-column offset
    qvalid = (q >= 1) & (q <= 14)

    # Banded conv1 RHS: c1[kh*30+m, b*512+q*32+c] = w1[c,0,kh, m - (2(q-1)+b)]
    m = jnp.arange(30)
    kw = m[None, None, :] - (2 * (q[None, :] - 1) + bcol[:, None])[:, :, None]
    valid = (kw >= 0) & (kw <= 2) & qvalid[None, :, None]             # (2,16,30)
    w1_k = jnp.transpose(w1[:, 0], (1, 2, 0))                         # (kh,kw,c)
    c1 = jnp.where(valid[None, ..., None],
                   w1_k[:, jnp.clip(kw, 0, 2), :], 0.0)               # (3,2,16,30,32)
    c1 = jnp.transpose(c1, (0, 3, 1, 2, 4)).reshape(90, 1024)
    bias1 = jnp.broadcast_to(jnp.where(qvalid[None, :, None],
                                       b1[None, None, :], 0.0),
                             (2, 16, 32)).reshape(1, 1024)
    c1_full = (jnp.zeros((K1, 1024), f32)
               .at[0:90].set(c1).at[BIAS_LANE:BIAS_LANE + 1].set(bias1))

    # Banded conv2 RHS: c2[kh*512+q*32+ci, b*512+vo*64+co] = w2[co,ci,kh, q-2vo-b]
    vo = jnp.arange(P2)
    kw2 = q[None, None, :] - (2 * vo[None, :] + bcol[:, None])[:, :, None]
    valid2 = (kw2 >= 0) & (kw2 <= 2)                                  # (2,7,16)
    w2_k = jnp.transpose(w2, (2, 3, 1, 0))                            # (kh,kw,ci,co)
    c2 = jnp.where(valid2[None, ..., None, None],
                   w2_k[:, jnp.clip(kw2, 0, 2)], 0.0)                 # (3,2,7,16,32,64)
    c2 = jnp.transpose(c2, (0, 3, 4, 1, 2, 5))                        # (kh,q,ci,b,vo,co)
    c2 = jnp.pad(c2, ((0, 0),) * 4 + ((0, 1), (0, 0))).reshape(K2, 1024)
    bias2 = jnp.pad(jnp.broadcast_to(b2[None, None, :], (2, P2, C2_OUT)),
                    ((0, 0), (0, 1), (0, 0))).reshape(1, 1024)

    # FC1 weight permuted to the in-kernel lane order uo*512 + vo*64 + co,
    # which reproduces PyTorch's NCHW flatten (feature = co*49 + uo*7 + vo);
    # the 64 pad lanes per uo-block get zero rows.
    w1p = jnp.transpose(fc1_w.reshape(FC_HID, C2_OUT, P2, P2), (2, 3, 1, 0))
    w1p = jnp.pad(w1p, ((0, 0), (0, 1), (0, 0), (0, 0))).reshape(KFC1, FC_HID)

    # FC2 transposed and zero-padded to a 128-lane-dense output.
    w2t = jnp.zeros((FC_HID, ncols), f32).at[:, :num_classes].set(fc2_w.T)
    fc2_b_row = jnp.zeros((1, ncols), f32).at[:, :num_classes].set(fc2_b[None, :])

    return {
        "c1": c1_full.astype(bf16),
        "c2": c2.astype(bf16),
        "b2_row": bias2.astype(f32),
        "w1p": w1p.astype(bf16),
        "fc1_b_row": fc1_b[None, :].astype(f32),
        "w2t": w2t.astype(bf16),
        "fc2_b_row": fc2_b_row.astype(f32),
    }


# ------------------------------- forward pass --------------------------------


def _conv1_row_dest():
    """Destination row (within the 32-row per-image block) for conv row i."""
    i = np.arange(28)
    par = np.where(i % 4 >= 2, 0, 1)
    a = np.where(par == 0, (i + 2) % 4, i % 4)
    w = np.where(par == 0, (i + 2) // 4, i // 4)
    return (par * 2 + a) * 8 + w            # rows {0, 8, 23, 31} stay zero pads


_CONV1_DEST = _conv1_row_dest()


def _pick_batch_tile(n):
    # conv2's matmul M = 14*B: B>=24 fills a 256-wide MXU (v6e/v7x), B>=16
    # fills 128 (v5e).  B is kept a multiple of 8 so every pool / assembly
    # slice is 8-sublane aligned.  VMEM stays well under 32 MiB even at B=32.
    for bt in (32, 24, 16, 8):
        if n >= bt:
            return bt
    return 8


def _vmem_limit_bytes(b_tile):
    # Resident bf16 weights (assume double-buffered by the pipeline) +
    # per-tile activations/scratch, with slack for compiler temporaries.
    weights = 2 * 2 * (K1 * 1024 + K2 * 1024 + KFC1 * FC_HID + FC_HID * 128)
    acts = b_tile * (32 * 128 * 2 * 2      # x1 block (double-buffered, bf16)
                     + 32 * 1024 * 4       # r1
                     + 16 * 512 * 4        # pooled1 scratch
                     + 14 * 1536 * 2       # conv2 LHS
                     + 14 * 1024 * 4       # r2
                     + 14 * 512 * 4        # pool temporaries
                     + 7 * 512 * 2         # FC1 LHS scratch
                     + 4 * 128 * 4)        # h / logits
    est = weights + 3 * acts + (16 << 20)
    return int(min(max(est, 32 << 20), 48 << 20))


@functools.partial(jax.jit, static_argnames=("num_classes",))
def convnet_forward(x_nchw, prep, *, num_classes):
    """x_nchw: (N, 1, 28, 28); prep = prepare_params(params) (computed once)."""
    n = x_nchw.shape[0]
    assert x_nchw.shape[1:] == (1, H, W), x_nchw.shape
    ncols = prep["w2t"].shape[1]

    b_tile = _pick_batch_tile(n)
    n_pad = ((n + b_tile - 1) // b_tile) * b_tile
    g = n_pad // b_tile

    # ---- wrapper-side im2col / layout plumbing (plain XLA, once per batch) ----
    # Zero-pad images (padding=1), build the 90-lane conv1 band per output row,
    # add the constant bias lane, pad lanes to 128, and scatter rows into the
    # (parity, pool-row-offset, row-block) order the kernel's pooling expects.
    x = jnp.pad(x_nchw[:, 0, :, :], ((0, n_pad - n), (1, 1), (1, 1)))  # (n_pad,30,30)
    band = jnp.stack([x[:, i:i + 3, :].reshape(n_pad, 90) for i in range(28)],
                     axis=1)                                           # (n_pad,28,90)
    band = jnp.concatenate(
        [band, jnp.ones((n_pad, 28, 1), band.dtype),
         jnp.zeros((n_pad, 28, K1 - BIAS_LANE - 1), band.dtype)], axis=2)
    x32 = jnp.zeros((n_pad, 32, K1), band.dtype).at[:, _CONV1_DEST, :].set(band)
    x1 = (x32.reshape(g, b_tile, 32, K1).transpose(0, 2, 1, 3)
             .reshape(g, 32 * b_tile, K1).astype(jnp.bfloat16))

    out = pl.pallas_call(
        convnet_fused_kernel,
        out_shape=jax.ShapeDtypeStruct((g, b_tile, ncols), jnp.float32),
        grid_spec=pltpu.PrefetchScalarGridSpec(
            num_scalar_prefetch=0,
            grid=(g,),
            in_specs=[
                pl.BlockSpec((None, 32 * b_tile, K1), lambda i: (i, 0, 0)),
                pl.BlockSpec((K1, 1024), lambda i: (0, 0)),
                pl.BlockSpec((K2, 1024), lambda i: (0, 0)),
                pl.BlockSpec((1, 1024), lambda i: (0, 0)),
                pl.BlockSpec((KFC1, FC_HID), lambda i: (0, 0)),
                pl.BlockSpec((1, FC_HID), lambda i: (0, 0)),
                pl.BlockSpec((FC_HID, ncols), lambda i: (0, 0)),
                pl.BlockSpec((1, ncols), lambda i: (0, 0)),
            ],
            out_specs=pl.BlockSpec((None, b_tile, ncols), lambda i: (i, 0, 0)),
            scratch_shapes=[
                pltpu.VMEM((16 * b_tile, HALF), jnp.float32),    # padded pooled1
                pltpu.VMEM((b_tile, KFC1), jnp.bfloat16),        # FC1 LHS
            ],
        ),
        compiler_params=pltpu.CompilerParams(
            dimension_semantics=("parallel",),
            vmem_limit_bytes=_vmem_limit_bytes(b_tile),
        ),
    )(x1, prep["c1"], prep["c2"], prep["b2_row"], prep["w1p"],
      prep["fc1_b_row"], prep["w2t"], prep["fc2_b_row"])
    return out.reshape(n_pad, ncols)[:n, :num_classes]


# --------------------------- params & XLA reference --------------------------


def init_params(key, num_classes):
    ks = jax.random.split(key, 8)

    def init(k, shape, scale):
        return (scale * jax.random.normal(k, shape)).astype(jnp.float32)

    return {
        "conv1_w": init(ks[0], (32, 1, 3, 3), 0.1),        # OIHW, as in PyTorch
        "conv1_b": init(ks[1], (32,), 0.1),
        "conv2_w": init(ks[2], (64, 32, 3, 3), 0.05),
        "conv2_b": init(ks[3], (64,), 0.05),
        "fc1_w": init(ks[4], (128, 64 * 7 * 7), 0.02),     # (out, in), as in PyTorch
        "fc1_b": init(ks[5], (128,), 0.02),
        "fc2_w": init(ks[6], (num_classes, 128), 0.05),
        "fc2_b": init(ks[7], (num_classes,), 0.05),
    }


def reference_forward(x_nchw, params):
    """Pure-JAX/XLA reference matching the PyTorch forward exactly (eval mode)."""
    hp = lax.Precision.HIGHEST

    def conv_block(x, w, b):
        y = lax.conv_general_dilated(
            x, w, window_strides=(1, 1), padding=((1, 1), (1, 1)),
            dimension_numbers=("NCHW", "OIHW", "NCHW"), precision=hp)
        y = jnp.maximum(y + b[None, :, None, None], 0.0)
        return lax.reduce_window(y, -jnp.inf, lax.max,
                                 (1, 1, 2, 2), (1, 1, 2, 2), "VALID")

    y = conv_block(x_nchw, params["conv1_w"], params["conv1_b"])
    y = conv_block(y, params["conv2_w"], params["conv2_b"])
    f = y.reshape(y.shape[0], -1)                                    # NCHW flatten
    h = jnp.maximum(jnp.dot(f, params["fc1_w"].T, precision=hp) + params["fc1_b"], 0.0)
    return jnp.dot(h, params["fc2_w"].T, precision=hp) + params["fc2_b"]


if __name__ == "__main__":
    num_classes = 10
    key = jax.random.PRNGKey(0)
    k_params, k_x = jax.random.split(key)
    params = init_params(k_params, num_classes)
    prep = prepare_params(params)          # one-time weight repacking (hoisted)

    # 28x28 spatial size is implied by the fc layer (64 * 7 * 7); batch = 2.
    x = jax.random.normal(k_x, (2, 1, 28, 28), dtype=jnp.float32)

    out = convnet_forward(x, prep, num_classes=num_classes)
    out = jax.block_until_ready(out)
    assert out.shape == (2, num_classes), out.shape

    ref = reference_forward(x, params)
    max_err = float(jnp.max(jnp.abs(out - ref)))
    # bf16 matmul operands (f32 accumulation): tolerance loosened accordingly.
    assert max_err < 3e-2, f"kernel/reference mismatch: {max_err}"

    print("KERNEL_OK")
</pallas_src>

<mosaic_0001>
module attributes {stable_mosaic.version = 11 : i64} {
  func.func @convnet_fused_kernel(%arg0: i32, %arg1: memref<1x256x128xbf16, #tpu.memory_space<vmem>>, %arg2: memref<128x1024xbf16, #tpu.memory_space<vmem>>, %arg3: memref<1536x1024xbf16, #tpu.memory_space<vmem>>, %arg4: memref<1x1024xf32, #tpu.memory_space<vmem>>, %arg5: memref<3584x128xbf16, #tpu.memory_space<vmem>>, %arg6: memref<1x128xf32, #tpu.memory_space<vmem>>, %arg7: memref<128x128xbf16, #tpu.memory_space<vmem>>, %arg8: memref<1x128xf32, #tpu.memory_space<vmem>>, %arg9: memref<1x8x128xf32, #tpu.memory_space<vmem>>, %arg10: memref<128x512xf32, #tpu.memory_space<vmem>>, %arg11: memref<8x3584xbf16, #tpu.memory_space<vmem>>) attributes {dimension_semantics = [#tpu.dimension_semantics<parallel>], iteration_bounds = array<i64: 1>, scalar_prefetch = 0 : i64, scratch_operands = 2 : i64, tpu.core_type = #tpu.core_type<tc>, window_params = [{transform_indices = @transform_0, window_bounds = array<i64: 1, 256, 128>}, {pipeline_mode = #tpu.pipeline_mode<synchronous>, transform_indices = @transform_1, window_bounds = array<i64: 128, 1024>}, {pipeline_mode = #tpu.pipeline_mode<synchronous>, transform_indices = @transform_2, window_bounds = array<i64: 1536, 1024>}, {pipeline_mode = #tpu.pipeline_mode<synchronous>, transform_indices = @transform_3, window_bounds = array<i64: 1, 1024>}, {pipeline_mode = #tpu.pipeline_mode<synchronous>, transform_indices = @transform_4, window_bounds = array<i64: 3584, 128>}, {pipeline_mode = #tpu.pipeline_mode<synchronous>, transform_indices = @transform_5, window_bounds = array<i64: 1, 128>}, {pipeline_mode = #tpu.pipeline_mode<synchronous>, transform_indices = @transform_6, window_bounds = array<i64: 128, 128>}, {pipeline_mode = #tpu.pipeline_mode<synchronous>, transform_indices = @transform_7, window_bounds = array<i64: 1, 128>}, {transform_indices = @transform_8, window_bounds = array<i64: 1, 8, 128>}]} {
    %c0 = arith.constant 0 : index
    %c0_0 = arith.constant 0 : index
    %c0_1 = arith.constant 0 : index
    %0 = vector.load %arg1[%c0, %c0_0, %c0_1] : memref<1x256x128xbf16, #tpu.memory_space<vmem>>, vector<1x256x128xbf16>
    %1 = vector.shape_cast %0 : vector<1x256x128xbf16> to vector<256x128xbf16>
    %c0_2 = arith.constant 0 : index
    %c0_3 = arith.constant 0 : index
    %2 = vector.load %arg2[%c0_2, %c0_3] : memref<128x1024xbf16, #tpu.memory_space<vmem>>, vector<128x1024xbf16>
    %cst = arith.constant dense<0.000000e+00> : vector<256x1024xf32>
    %3 = tpu.matmul %1, %2, %cst {dimension_numbers = #tpu.dot_dimension_numbers<[1], [0], [0], [1], [0, 0, 1, 1], [], []>} : vector<256x128xbf16>, vector<128x1024xbf16>, vector<256x1024xf32> -> vector<256x1024xf32>
    %4 = vector.extract_strided_slice %3 {offsets = [0, 0], sizes = [64, 1024], strides = [1, 1]} : vector<256x1024xf32> to vector<64x1024xf32>
    %5 = vector.extract_strided_slice %3 {offsets = [64, 0], sizes = [64, 1024], strides = [1, 1]} : vector<256x1024xf32> to vector<64x1024xf32>
    %6 = arith.maximumf %4, %5 : vector<64x1024xf32>
    %7 = vector.extract_strided_slice %6 {offsets = [0, 0], sizes = [64, 512], strides = [1, 1]} : vector<64x1024xf32> to vector<64x512xf32>
    %8 = vector.extract_strided_slice %6 {offsets = [0, 512], sizes = [64, 512], strides = [1, 1]} : vector<64x1024xf32> to vector<64x512xf32>
    %9 = arith.maximumf %7, %8 : vector<64x512xf32>
    %cst_4 = arith.constant 0.000000e+00 : f32
    %10 = vector.broadcast %cst_4 : f32 to vector<64x512xf32>
    %11 = arith.maximumf %9, %10 : vector<64x512xf32>
    %c0_5 = arith.constant 0 : index
    %c0_6 = arith.constant 0 : index
    %12 = vector.load %arg10[%c0_5, %c0_6] : memref<128x512xf32, #tpu.memory_space<vmem>>, vector<64x512xf32>
    tpu.vector_store %arg10[%c0_5, %c0_6], %11 {strides = array<i32>} : memref<128x512xf32, #tpu.memory_space<vmem>>, vector<64x512xf32>,
    %13 = vector.extract_strided_slice %3 {offsets = [128, 0], sizes = [64, 1024], strides = [1, 1]} : vector<256x1024xf32> to vector<64x1024xf32>
    %14 = vector.extract_strided_slice %3 {offsets = [192, 0], sizes = [64, 1024], strides = [1, 1]} : vector<256x1024xf32> to vector<64x1024xf32>
    %15 = arith.maximumf %13, %14 : vector<64x1024xf32>
    %16 = vector.extract_strided_slice %15 {offsets = [0, 0], sizes = [64, 512], strides = [1, 1]} : vector<64x1024xf32> to vector<64x512xf32>
    %17 = vector.extract_strided_slice %15 {offsets = [0, 512], sizes = [64, 512], strides = [1, 1]} : vector<64x1024xf32> to vector<64x512xf32>
    %18 = arith.maximumf %16, %17 : vector<64x512xf32>
    %cst_7 = arith.constant 0.000000e+00 : f32
    %19 = vector.broadcast %cst_7 : f32 to vector<64x512xf32>
    %20 = arith.maximumf %18, %19 : vector<64x512xf32>
    %c64 = arith.constant 64 : index
    %c0_8 = arith.constant 0 : index
    %21 = vector.load %arg10[%c64, %c0_8] : memref<128x512xf32, #tpu.memory_space<vmem>>, vector<64x512xf32>
    tpu.vector_store %arg10[%c64, %c0_8], %20 {strides = array<i32>} : memref<128x512xf32, #tpu.memory_space<vmem>>, vector<64x512xf32>,
    %c0_9 = arith.constant 0 : index
    %c0_10 = arith.constant 0 : index
    %22 = vector.load %arg10[%c0_9, %c0_10] : memref<128x512xf32, #tpu.memory_space<vmem>>, vector<56x512xf32>
    %c64_11 = arith.constant 64 : index
    %c0_12 = arith.constant 0 : index
    %23 = vector.load %arg10[%c64_11, %c0_12] : memref<128x512xf32, #tpu.memory_space<vmem>>, vector<56x512xf32>
    %24 = tpu.concatenate %22, %23 in 0 : vector<56x512xf32>, vector<56x512xf32> -> vector<112x512xf32>
    %c64_13 = arith.constant 64 : index
    %c0_14 = arith.constant 0 : index
    %25 = vector.load %arg10[%c64_13, %c0_14] : memref<128x512xf32, #tpu.memory_space<vmem>>, vector<56x512xf32>
    %c8 = arith.constant 8 : index
    %c0_15 = arith.constant 0 : index
    %26 = vector.load %arg10[%c8, %c0_15] : memref<128x512xf32, #tpu.memory_space<vmem>>, vector<56x512xf32>
    %27 = tpu.concatenate %25, %26 in 0 : vector<56x512xf32>, vector<56x512xf32> -> vector<112x512xf32>
    %c8_16 = arith.constant 8 : index
    %c0_17 = arith.constant 0 : index
    %28 = vector.load %arg10[%c8_16, %c0_17] : memref<128x512xf32, #tpu.memory_space<vmem>>, vector<56x512xf32>
    %c72 = arith.constant 72 : index
    %c0_18 = arith.constant 0 : index
    %29 = vector.load %arg10[%c72, %c0_18] : memref<128x512xf32, #tpu.memory_space<vmem>>, vector<56x512xf32>
    %30 = tpu.concatenate %28, %29 in 0 : vector<56x512xf32>, vector<56x512xf32> -> vector<112x512xf32>
    %31 = tpu.concatenate %24, %27, %30 in 1 : vector<112x512xf32>, vector<112x512xf32>, vector<112x512xf32> -> vector<112x1536xf32>
    %32 = arith.truncf %31 : vector<112x1536xf32> to vector<112x1536xbf16>
    %c0_19 = arith.constant 0 : index
    %c0_20 = arith.constant 0 : index
    %33 = vector.load %arg3[%c0_19, %c0_20] : memref<1536x1024xbf16, #tpu.memory_space<vmem>>, vector<1536x1024xbf16>
    %cst_21 = arith.constant dense<0.000000e+00> : vector<112x1024xf32>
    %34 = tpu.matmul %32, %33, %cst_21 {dimension_numbers = #tpu.dot_dimension_numbers<[1], [0], [0], [1], [0, 0, 1, 1], [], []>} : vector<112x1536xbf16>, vector<1536x1024xbf16>, vector<112x1024xf32> -> vector<112x1024xf32>
    %c0_22 = arith.constant 0 : index
    %c0_23 = arith.constant 0 : index
    %35 = vector.load %arg4[%c0_22, %c0_23] : memref<1x1024xf32, #tpu.memory_space<vmem>>, vector<1x1024xf32>
    %36 = vector.broadcast %35 : vector<1x1024xf32> to vector<112x1024xf32>
    %37 = arith.addf %34, %36 : vector<112x1024xf32>
    %38 = vector.extract_strided_slice %37 {offsets = [0, 0], sizes = [56, 1024], strides = [1, 1]} : vector<112x1024xf32> to vector<56x1024xf32>
    %39 = vector.extract_strided_slice %37 {offsets = [56, 0], sizes = [56, 1024], strides = [1, 1]} : vector<112x1024xf32> to vector<56x1024xf32>
    %40 = arith.maximumf %38, %39 : vector<56x1024xf32>
    %41 = vector.extract_strided_slice %40 {offsets = [0, 0], sizes = [56, 512], strides = [1, 1]} : vector<56x1024xf32> to vector<56x512xf32>
    %42 = vector.extract_strided_slice %40 {offsets = [0, 512], sizes = [56, 512], strides = [1, 1]} : vector<56x1024xf32> to vector<56x512xf32>
    %43 = arith.maximumf %41, %42 : vector<56x512xf32>
    %cst_24 = arith.constant 0.000000e+00 : f32
    %44 = vector.broadcast %cst_24 : f32 to vector<56x512xf32>
    %45 = arith.maximumf %43, %44 : vector<56x512xf32>
    %46 = vector.extract_strided_slice %45 {offsets = [0, 0], sizes = [8, 512], strides = [1, 1]} : vector<56x512xf32> to vector<8x512xf32>
    %47 = arith.truncf %46 : vector<8x512xf32> to vector<8x512xbf16>
    %c0_25 = arith.constant 0 : index
    %c0_26 = arith.constant 0 : index
    %48 = vector.load %arg11[%c0_25, %c0_26] : memref<8x3584xbf16, #tpu.memory_space<vmem>>, vector<8x512xbf16>
    tpu.vector_store %arg11[%c0_25, %c0_26], %47 {strides = array<i32>} : memref<8x3584xbf16, #tpu.memory_space<vmem>>, vector<8x512xbf16>,
    %49 = vector.extract_strided_slice %45 {offsets = [8, 0], sizes = [8, 512], strides = [1, 1]} : vector<56x512xf32> to vector<8x512xf32>
    %50 = arith.truncf %49 : vector<8x512xf32> to vector<8x512xbf16>
    %c0_27 = arith.constant 0 : index
    %c512 = arith.constant 512 : index
    %51 = vector.load %arg11[%c0_27, %c512] : memref<8x3584xbf16, #tpu.memory_space<vmem>>, vector<8x512xbf16>
    tpu.vector_store %arg11[%c0_27, %c512], %50 {strides = array<i32>} : memref<8x3584xbf16, #tpu.memory_space<vmem>>, vector<8x512xbf16>,
    %52 = vector.extract_strided_slice %45 {offsets = [16, 0], sizes = [8, 512], strides = [1, 1]} : vector<56x512xf32> to vector<8x512xf32>
    %53 = arith.truncf %52 : vector<8x512xf32> to vector<8x512xbf16>
    %c0_28 = arith.constant 0 : index
    %c1024 = arith.constant 1024 : index
    %54 = vector.load %arg11[%c0_28, %c1024] : memref<8x3584xbf16, #tpu.memory_space<vmem>>, vector<8x512xbf16>
    tpu.vector_store %arg11[%c0_28, %c1024], %53 {strides = array<i32>} : memref<8x3584xbf16, #tpu.memory_space<vmem>>, vector<8x512xbf16>,
    %55 = vector.extract_strided_slice %45 {offsets = [24, 0], sizes = [8, 512], strides = [1, 1]} : vector<56x512xf32> to vector<8x512xf32>
    %56 = arith.truncf %55 : vector<8x512xf32> to vector<8x512xbf16>
    %c0_29 = arith.constant 0 : index
    %c1536 = arith.constant 1536 : index
    %57 = vector.load %arg11[%c0_29, %c1536] : memref<8x3584xbf16, #tpu.memory_space<vmem>>, vector<8x512xbf16>
    tpu.vector_store %arg11[%c0_29, %c1536], %56 {strides = array<i32>} : memref<8x3584xbf16, #tpu.memory_space<vmem>>, vector<8x512xbf16>,
    %58 = vector.extract_strided_slice %45 {offsets = [32, 0], sizes = [8, 512], strides = [1, 1]} : vector<56x512xf32> to vector<8x512xf32>
    %59 = arith.truncf %58 : vector<8x512xf32> to vector<8x512xbf16>
    %c0_30 = arith.constant 0 : index
    %c2048 = arith.constant 2048 : index
    %60 = vector.load %arg11[%c0_30, %c2048] : memref<8x3584xbf16, #tpu.memory_space<vmem>>, vector<8x512xbf16>
    tpu.vector_store %arg11[%c0_30, %c2048], %59 {strides = array<i32>} : memref<8x3584xbf16, #tpu.memory_space<vmem>>, vector<8x512xbf16>,
    %61 = vector.extract_strided_slice %45 {offsets = [40, 0], sizes = [8, 512], strides = [1, 1]} : vector<56x512xf32> to vector<8x512xf32>
    %62 = arith.truncf %61 : vector<8x512xf32> to vector<8x512xbf16>
    %c0_31 = arith.constant 0 : index
    %c2560 = arith.constant 2560 : index
    %63 = vector.load %arg11[%c0_31, %c2560] : memref<8x3584xbf16, #tpu.memory_space<vmem>>, vector<8x512xbf16>
    tpu.vector_store %arg11[%c0_31, %c2560], %62 {strides = array<i32>} : memref<8x3584xbf16, #tpu.memory_space<vmem>>, vector<8x512xbf16>,
    %64 = vector.extract_strided_slice %45 {offsets = [48, 0], sizes = [8, 512], strides = [1, 1]} : vector<56x512xf32> to vector<8x512xf32>
    %65 = arith.truncf %64 : vector<8x512xf32> to vector<8x512xbf16>
    %c0_32 = arith.constant 0 : index
    %c3072 = arith.constant 3072 : index
    %66 = vector.load %arg11[%c0_32, %c3072] : memref<8x3584xbf16, #tpu.memory_space<vmem>>, vector<8x512xbf16>
    tpu.vector_store %arg11[%c0_32, %c3072], %65 {strides = array<i32>} : memref<8x3584xbf16, #tpu.memory_space<vmem>>, vector<8x512xbf16>,
    %c0_33 = arith.constant 0 : index
    %c0_34 = arith.constant 0 : index
    %67 = vector.load %arg11[%c0_33, %c0_34] : memref<8x3584xbf16, #tpu.memory_space<vmem>>, vector<8x3584xbf16>
    %c0_35 = arith.constant 0 : index
    %c0_36 = arith.constant 0 : index
    %68 = vector.load %arg5[%c0_35, %c0_36] : memref<3584x128xbf16, #tpu.memory_space<vmem>>, vector<3584x128xbf16>
    %cst_37 = arith.constant dense<0.000000e+00> : vector<8x128xf32>
    %69 = tpu.matmul %67, %68, %cst_37 {dimension_numbers = #tpu.dot_dimension_numbers<[1], [0], [0], [1], [0, 0, 1, 1], [], []>} : vector<8x3584xbf16>, vector<3584x128xbf16>, vector<8x128xf32> -> vector<8x128xf32>
    %c0_38 = arith.constant 0 : index
    %c0_39 = arith.constant 0 : index
    %70 = vector.load %arg6[%c0_38, %c0_39] : memref<1x128xf32, #tpu.memory_space<vmem>>, vector<1x128xf32>
    %71 = vector.broadcast %70 : vector<1x128xf32> to vector<8x128xf32>
    %72 = arith.addf %69, %71 : vector<8x128xf32>
    %cst_40 = arith.constant 0.000000e+00 : f32
    %73 = vector.broadcast %cst_40 : f32 to vector<8x128xf32>
    %74 = arith.maximumf %72, %73 : vector<8x128xf32>
    %75 = arith.truncf %74 : vector<8x128xf32> to vector<8x128xbf16>
    %c0_41 = arith.constant 0 : index
    %c0_42 = arith.constant 0 : index
    %76 = vector.load %arg7[%c0_41, %c0_42] : memref<128x128xbf16, #tpu.memory_space<vmem>>, vector<128x128xbf16>
    %cst_43 = arith.constant dense<0.000000e+00> : vector<8x128xf32>
    %77 = tpu.matmul %75, %76, %cst_43 {dimension_numbers = #tpu.dot_dimension_numbers<[1], [0], [0], [1], [0, 0, 1, 1], [], []>} : vector<8x128xbf16>, vector<128x128xbf16>, vector<8x128xf32> -> vector<8x128xf32>
    %c0_44 = arith.constant 0 : index
    %c0_45 = arith.constant 0 : index
    %78 = vector.load %arg8[%c0_44, %c0_45] : memref<1x128xf32, #tpu.memory_space<vmem>>, vector<1x128xf32>
    %79 = vector.broadcast %78 : vector<1x128xf32> to vector<8x128xf32>
    %80 = arith.addf %77, %79 : vector<8x128xf32>
    %c0_46 = arith.constant 0 : index
    %c0_47 = arith.constant 0 : index
    %c0_48 = arith.constant 0 : index
    %81 = vector.load %arg9[%c0_46, %c0_47, %c0_48] : memref<1x8x128xf32, #tpu.memory_space<vmem>>, vector<1x8x128xf32>
    %82 = vector.shape_cast %81 : vector<1x8x128xf32> to vector<8x128xf32>
    %83 = vector.shape_cast %80 : vector<8x128xf32> to vector<1x8x128xf32>
    tpu.vector_store %arg9[%c0_46, %c0_47, %c0_48], %83 {strides = array<i32>} : memref<1x8x128xf32, #tpu.memory_space<vmem>>, vector<1x8x128xf32>,
    return
  }
  func.func @transform_0(%arg0: i32) -> (i32, i32, i32) {
    %c0_i32 = arith.constant 0 : i32
    %c0_i32_0 = arith.constant 0 : i32
    %c0_i32_1 = arith.constant 0 : i32
    return %arg0, %c0_i32, %c0_i32_0 : i32, i32, i32
  }
  func.func @transform_1(%arg0: i32) -> (i32, i32) {
    %c0_i32 = arith.constant 0 : i32
    %c0_i32_0 = arith.constant 0 : i32
    %c0_i32_1 = arith.constant 0 : i32
    return %c0_i32, %c0_i32_0 : i32, i32
  }
  func.func @transform_2(%arg0: i32) -> (i32, i32) {
    %c0_i32 = arith.constant 0 : i32
    %c0_i32_0 = arith.constant 0 : i32
    %c0_i32_1 = arith.constant 0 : i32
    return %c0_i32, %c0_i32_0 : i32, i32
  }
  func.func @transform_3(%arg0: i32) -> (i32, i32) {
    %c0_i32 = arith.constant 0 : i32
    %c0_i32_0 = arith.constant 0 : i32
    %c0_i32_1 = arith.constant 0 : i32
    return %c0_i32, %c0_i32_0 : i32, i32
  }
  func.func @transform_4(%arg0: i32) -> (i32, i32) {
    %c0_i32 = arith.constant 0 : i32
    %c0_i32_0 = arith.constant 0 : i32
    %c0_i32_1 = arith.constant 0 : i32
    return %c0_i32, %c0_i32_0 : i32, i32
  }
  func.func @transform_5(%arg0: i32) -> (i32, i32) {
    %c0_i32 = arith.constant 0 : i32
    %c0_i32_0 = arith.constant 0 : i32
    %c0_i32_1 = arith.constant 0 : i32
    return %c0_i32, %c0_i32_0 : i32, i32
  }
  func.func @transform_6(%arg0: i32) -> (i32, i32) {
    %c0_i32 = arith.constant 0 : i32
    %c0_i32_0 = arith.constant 0 : i32
    %c0_i32_1 = arith.constant 0 : i32
    return %c0_i32, %c0_i32_0 : i32, i32
  }
  func.func @transform_7(%arg0: i32) -> (i32, i32) {
    %c0_i32 = arith.constant 0 : i32
    %c0_i32_0 = arith.constant 0 : i32
    %c0_i32_1 = arith.constant 0 : i32
    return %c0_i32, %c0_i32_0 : i32, i32
  }
  func.func @transform_8(%arg0: i32) -> (i32, i32, i32) {
    %c0_i32 = arith.constant 0 : i32
    %c0_i32_0 = arith.constant 0 : i32
    %c0_i32_1 = arith.constant 0 : i32
    return %arg0, %c0_i32, %c0_i32_0 : i32, i32, i32
  }
}

</mosaic_0001>

<llo_original>
// kernel: convnet_forward.1
$region0: #{convnet_forward.1}
  #allocation0 [shape = 'u32[]', space=smem, size = 0x4, offset = 0x4, fixed_abs, tag = 'smem constant byte address 0x4 - core index']
  #allocation1 [shape = 'u32[72,128]{1,0:T(1,128)}', space=vmem, size = 0x9000, scoped, tag = 'internal scratch']
  #allocation2 [shape = 'f32[128,512]{1,0:T(8,128)}', space=vmem, size = 0x40000, scoped, tag = 'scratch operand']
  #allocation3 [shape = 'bf16[8,3584]{1,0:T(8,128)(2,1)}', space=vmem, size = 0xe000, scoped, tag = 'scratch operand']
  %s0 = inlined_call_operand.vmem [shape: bf16[1,256,128], index: 0, kind: input, shape index: {}]
  %s1 = inlined_call_operand.hbm [shape: bf16[128,1024], index: 1, kind: input, shape index: {}]
  %s2 = inlined_call_operand.hbm [shape: bf16[1536,1024], index: 2, kind: input, shape index: {}]
  %s3 = inlined_call_operand.hbm [shape: f32[1,1024], index: 3, kind: input, shape index: {}]
  %s4 = inlined_call_operand.hbm [shape: bf16[3584,128], index: 4, kind: input, shape index: {}]
  %s5 = inlined_call_operand.hbm [shape: f32[1,128], index: 5, kind: input, shape index: {}]
  %s6 = inlined_call_operand.hbm [shape: bf16[128,128], index: 6, kind: input, shape index: {}]
  %s7 = inlined_call_operand.hbm [shape: f32[1,128], index: 7, kind: input, shape index: {}]
  %s8 = inlined_call_operand.vmem [shape: f32[1,8,128], index: 8, kind: output, shape index: {}]
  %s9 = sld [smem:[#allocation0]]
  $region70: #{convnet_forward.1} parent=0
    _
  %s11 = ssub.s32 1, %s9
  %s12 = scalar_select 0, %s11, %s9
  $region1: #{convnet_forward.1} parent=0
    #allocation4 [shape = 'u8[262144]{0}', space=vmem, size = 0x40000, scoped, tag = 'input window, operand 1, single buffered']
    #allocation5 [shape = 's32[1]{0}', space=sflag, size = 0x4, scoped, tag = 'scoped memory for convnet_forward.1']
    #allocation6 [shape = 'u8[3145728]{0}', space=vmem, size = 0x300000, scoped, tag = 'input window, operand 2, single buffered']
    #allocation7 [shape = 's32[1]{0}', space=sflag, size = 0x4, scoped, tag = 'scoped memory for convnet_forward.1']
    #allocation8 [shape = 'u8[4096]{0}', space=vmem, size = 0x1000, scoped, tag = 'input window, operand 3, single buffered']
    #allocation9 [shape = 'u8[917504]{0}', space=vmem, size = 0xe0000, scoped, tag = 'input window, operand 4, single buffered']
    #allocation10 [shape = 's32[1]{0}', space=sflag, size = 0x4, scoped, tag = 'scoped memory for convnet_forward.1']
    #allocation11 [shape = 'u8[512]{0}', space=vmem, size = 0x400, scoped, tag = 'input window, operand 5, single buffered']
    #allocation12 [shape = 'u8[32768]{0}', space=vmem, size = 0x8000, scoped, tag = 'input window, operand 6, single buffered']
    #allocation13 [shape = 's32[1]{0}', space=sflag, size = 0x4, scoped, tag = 'scoped memory for convnet_forward.1']
    #allocation14 [shape = 'u8[512]{0}', space=vmem, size = 0x400, scoped, tag = 'input window, operand 7, single buffered']
    %13 = vsyncpa [#allocation5], 0
    %14 = vsyncpa [#allocation7], 0
    %15 = vsyncpa [#allocation10], 0
    %16 = vsyncpa [#allocation13], 0
    // Predicated region
    $region2: #{convnet_forward.1} parent=1 // pred_check
      _
    $region3: #{convnet_forward.1} parent=1 // pred_check_branch
      %18 = sbr.rel (0) target = $region5
    $region4: #{convnet_forward.1} parent=1 // pred_region
      _
    $region5: #{convnet_forward.1} parent=1 // pred_fallthru
      _
    // Predicated region
    $region6: #{convnet_forward.1} parent=1 // pred_check
      _
    $region7: #{convnet_forward.1} parent=1 // pred_check_branch
      %20 = sbr.rel (0) target = $region9
    $region8: #{convnet_forward.1} parent=1 // pred_region
      %22 = vsyncadd [#allocation5], 0
      %s23 = sshll.u32 %s1, 4
      %s24 = int_to_ptr.hbm [resolvable:$true] %s23
      %s25 = sshll.u32 [#allocation4], 4
      %s26 = int_to_ptr.vmem [resolvable:$true] %s25
      %31 = dma.hbm_to_vmem [thread:$0]  %s24, 8192, %s26, [#allocation5], 512, 512, 32
    $region9: #{convnet_forward.1} parent=1 // pred_fallthru
      _
    // Predicated region
    $region10: #{convnet_forward.1} parent=1 // pred_check
      _
    $region11: #{convnet_forward.1} parent=1 // pred_check_branch
      %33 = sbr.rel (0) target = $region13
    $region12: #{convnet_forward.1} parent=1 // pred_region
      %35 = vsyncadd [#allocation7], 0
      %s36 = sshll.u32 %s2, 4
      %s37 = int_to_ptr.hbm [resolvable:$true] %s36
      %s38 = sshll.u32 [#allocation6], 4
      %s39 = int_to_ptr.vmem [resolvable:$true] %s38
      %44 = dma.hbm_to_vmem [thread:$0]  %s37, 98304, %s39, [#allocation7], 512, 512, 32
    $region13: #{convnet_forward.1} parent=1 // pred_fallthru
      _
    // Predicated region
    $region14: #{convnet_forward.1} parent=1 // pred_check
      _
    $region15: #{convnet_forward.1} parent=1 // pred_check_branch
      %46 = sbr.rel (0) target = $region17
    $region16: #{convnet_forward.1} parent=1 // pred_region
      %48 = vsyncadd [#allocation7], 0
      %s50 = sshll.u32 %s3, 4
      %s51 = int_to_ptr.hbm [resolvable:$true] %s50
      %s52 = sshll.u32 [#allocation8], 4
      %s53 = int_to_ptr.vmem [resolvable:$true] %s52
      %55 = dma.hbm_to_vmem [thread:$0]  %s51, 128, %s53, [#allocation7]
    $region17: #{convnet_forward.1} parent=1 // pred_fallthru
      _
    // Predicated region
    $region18: #{convnet_forward.1} parent=1 // pred_check
      _
    $region19: #{convnet_forward.1} parent=1 // pred_check_branch
      %57 = sbr.rel (0) target = $region21
    $region20: #{convnet_forward.1} parent=1 // pred_region
      %59 = vsyncadd [#allocation10], 0
      %s60 = sshll.u32 %s4, 4
      %s61 = int_to_ptr.hbm [resolvable:$true] %s60
      %s62 = sshll.u32 [#allocation9], 4
      %s63 = int_to_ptr.vmem [resolvable:$true] %s62
      %68 = dma.hbm_to_vmem [thread:$0]  %s61, 28672, %s63, [#allocation10], 64, 64, 4
    $region21: #{convnet_forward.1} parent=1 // pred_fallthru
      _
    // Predicated region
    $region22: #{convnet_forward.1} parent=1 // pred_check
      _
    $region23: #{convnet_forward.1} parent=1 // pred_check_branch
      %70 = sbr.rel (0) target = $region25
    $region24: #{convnet_forward.1} parent=1 // pred_region
      %72 = vsyncadd [#allocation10], 0
      %s74 = sshll.u32 %s5, 4
      %s75 = int_to_ptr.hbm [resolvable:$true] %s74
      %s76 = sshll.u32 [#allocation11], 4
      %s77 = int_to_ptr.vmem [resolvable:$true] %s76
      %79 = dma.hbm_to_vmem [thread:$0]  %s75, 16, %s77, [#allocation10]
    $region25: #{convnet_forward.1} parent=1 // pred_fallthru
      _
    // Predicated region
    $region26: #{convnet_forward.1} parent=1 // pred_check
      _
    $region27: #{convnet_forward.1} parent=1 // pred_check_branch
      %81 = sbr.rel (0) target = $region29
    $region28: #{convnet_forward.1} parent=1 // pred_region
      %83 = vsyncadd [#allocation13], 0
      %s84 = sshll.u32 %s6, 4
      %s85 = int_to_ptr.hbm [resolvable:$true] %s84
      %s86 = sshll.u32 [#allocation12], 4
      %s87 = int_to_ptr.vmem [resolvable:$true] %s86
      %92 = dma.hbm_to_vmem [thread:$0]  %s85, 1024, %s87, [#allocation13], 64, 64, 4
    $region29: #{convnet_forward.1} parent=1 // pred_fallthru
      _
    // Predicated region
    $region30: #{convnet_forward.1} parent=1 // pred_check
      _
    $region31: #{convnet_forward.1} parent=1 // pred_check_branch
      %94 = sbr.rel (0) target = $region33
    $region32: #{convnet_forward.1} parent=1 // pred_region
      %96 = vsyncadd [#allocation13], 0
      %s98 = sshll.u32 %s7, 4
      %s99 = int_to_ptr.hbm [resolvable:$true] %s98
      %s100 = sshll.u32 [#allocation14], 4
      %s101 = int_to_ptr.vmem [resolvable:$true] %s100
      %103 = dma.hbm_to_vmem [thread:$0]  %s99, 16, %s101, [#allocation13]
    $region33: #{convnet_forward.1} parent=1 // pred_fallthru
      _
    // Predicated region
    $region34: #{convnet_forward.1} parent=1 // pred_check
      _
    $region35: #{convnet_forward.1} parent=1 // pred_check_branch
      %105 = sbr.rel (0) target = $region37
    $region36: #{convnet_forward.1} parent=1 // pred_region
      %107 = dma.done [#allocation5], 8192
    $region37: #{convnet_forward.1} parent=1 // pred_fallthru
      _
    // Predicated region
    $region38: #{convnet_forward.1} parent=1 // pred_check
      _
    $region39: #{convnet_forward.1} parent=1 // pred_check_branch
      %109 = sbr.rel (0) target = $region41
    $region40: #{convnet_forward.1} parent=1 // pred_region
      %111 = dma.done [#allocation7], 98304
    $region41: #{convnet_forward.1} parent=1 // pred_fallthru
      _
    // Predicated region
    $region42: #{convnet_forward.1} parent=1 // pred_check
      _
    $region43: #{convnet_forward.1} parent=1 // pred_check_branch
      %113 = sbr.rel (0) target = $region45
    $region44: #{convnet_forward.1} parent=1 // pred_region
      %115 = dma.done [#allocation7], 128
    $region45: #{convnet_forward.1} parent=1 // pred_fallthru
      _
    // Predicated region
    $region46: #{convnet_forward.1} parent=1 // pred_check
      _
    $region47: #{convnet_forward.1} parent=1 // pred_check_branch
      %117 = sbr.rel (0) target = $region49
    $region48: #{convnet_forward.1} parent=1 // pred_region
      %119 = dma.done [#allocation10], 28672
    $region49: #{convnet_forward.1} parent=1 // pred_fallthru
      _
    // Predicated region
    $region50: #{convnet_forward.1} parent=1 // pred_check
      _
    $region51: #{convnet_forward.1} parent=1 // pred_check_branch
      %121 = sbr.rel (0) target = $region53
    $region52: #{convnet_forward.1} parent=1 // pred_region
      %123 = dma.done [#allocation10], 16
    $region53: #{convnet_forward.1} parent=1 // pred_fallthru
      _
    // Predicated region
    $region54: #{convnet_forward.1} parent=1 // pred_check
      _
    $region55: #{convnet_forward.1} parent=1 // pred_check_branch
      %125 = sbr.rel (0) target = $region57
    $region56: #{convnet_forward.1} parent=1 // pred_region
      %127 = dma.done [#allocation13], 1024
    $region57: #{convnet_forward.1} parent=1 // pred_fallthru
      _
    // Predicated region
    $region58: #{convnet_forward.1} parent=1 // pred_check
      _
    $region59: #{convnet_forward.1} parent=1 // pred_check_branch
      %129 = sbr.rel (0) target = $region61
    $region60: #{convnet_forward.1} parent=1 // pred_region
      %131 = dma.done [#allocation13], 16
    $region61: #{convnet_forward.1} parent=1 // pred_fallthru
      _
    %v132 = vld [vmem:[%s0] sm:$0xf]
    %v133 = vld [vmem:[%s0 + $0x4] sm:$0xf]
    %v134 = vld [vmem:[%s0 + $0x8] sm:$0xf]
    %v135 = vld [vmem:[%s0 + $0xc] sm:$0xf]
    %v136 = vld [vmem:[%s0 + $0x10] sm:$0xf]
    %v137 = vld [vmem:[%s0 + $0x14] sm:$0xf]
    %v138 = vld [vmem:[%s0 + $0x18] sm:$0xf]
    %v139 = vld [vmem:[%s0 + $0x1c] sm:$0xf]
    %v140 = vld [vmem:[%s0 + $0x20] sm:$0xf]
    %v141 = vld [vmem:[%s0 + $0x24] sm:$0xf]
    %v142 = vld [vmem:[%s0 + $0x28] sm:$0xf]
    %v143 = vld [vmem:[%s0 + $0x2c] sm:$0xf]
    %v144 = vld [vmem:[%s0 + $0x30] sm:$0xf]
    %v145 = vld [vmem:[%s0 + $0x34] sm:$0xf]
    %v146 = vld [vmem:[%s0 + $0x38] sm:$0xf]
    %v147 = vld [vmem:[%s0 + $0x3c] sm:$0xf]
    %v148 = vld [vmem:[%s0 + $0x40] sm:$0xf]
    %v149 = vld [vmem:[%s0 + $0x44] sm:$0xf]
    %v150 = vld [vmem:[%s0 + $0x48] sm:$0xf]
    %v151 = vld [vmem:[%s0 + $0x4c] sm:$0xf]
    %v152 = vld [vmem:[%s0 + $0x50] sm:$0xf]
    %v153 = vld [vmem:[%s0 + $0x54] sm:$0xf]
    %v154 = vld [vmem:[%s0 + $0x58] sm:$0xf]
    %v155 = vld [vmem:[%s0 + $0x5c] sm:$0xf]
    %v156 = vld [vmem:[%s0 + $0x60] sm:$0xf]
    %v157 = vld [vmem:[%s0 + $0x64] sm:$0xf]
    %v158 = vld [vmem:[%s0 + $0x68] sm:$0xf]
    %v159 = vld [vmem:[%s0 + $0x6c] sm:$0xf]
    %v160 = vld [vmem:[%s0 + $0x70] sm:$0xf]
    %v161 = vld [vmem:[%s0 + $0x74] sm:$0xf]
    %v162 = vld [vmem:[%s0 + $0x78] sm:$0xf]
    %v163 = vld [vmem:[%s0 + $0x7c] sm:$0xf]
    %v164 = vld [vmem:[#allocation4] sm:$0xff]
    %v165 = vld [vmem:[#allocation4 + $0x8] sm:$0xff]
    %v166 = vld [vmem:[#allocation4 + $0x10] sm:$0xff]
    %v167 = vld [vmem:[#allocation4 + $0x18] sm:$0xff]
    %v168 = vld [vmem:[#allocation4 + $0x20] sm:$0xff]
    %v169 = vld [vmem:[#allocation4 + $0x28] sm:$0xff]
    %v170 = vld [vmem:[#allocation4 + $0x30] sm:$0xff]
    %v171 = vld [vmem:[#allocation4 + $0x38] sm:$0xff]
    %v172 = vld [vmem:[#allocation4 + $0x40] sm:$0xff]
    %v173 = vld [vmem:[#allocation4 + $0x48] sm:$0xff]
    %v174 = vld [vmem:[#allocation4 + $0x50] sm:$0xff]
    %v175 = vld [vmem:[#allocation4 + $0x58] sm:$0xff]
    %v176 = vld [vmem:[#allocation4 + $0x60] sm:$0xff]
    %v177 = vld [vmem:[#allocation4 + $0x68] sm:$0xff]
    %v178 = vld [vmem:[#allocation4 + $0x70] sm:$0xff]
    %v179 = vld [vmem:[#allocation4 + $0x78] sm:$0xff]
    %v180 = vld [vmem:[#allocation4 + $0x80] sm:$0xff]
    %v181 = vld [vmem:[#allocation4 + $0x88] sm:$0xff]
    %v182 = vld [vmem:[#allocation4 + $0x90] sm:$0xff]
    %v183 = vld [vmem:[#allocation4 + $0x98] sm:$0xff]
    %v184 = vld [vmem:[#allocation4 + $0xa0] sm:$0xff]
    %v185 = vld [vmem:[#allocation4 + $0xa8] sm:$0xff]
    %v186 = vld [vmem:[#allocation4 + $0xb0] sm:$0xff]
    %v187 = vld [vmem:[#allocation4 + $0xb8] sm:$0xff]
    %v188 = vld [vmem:[#allocation4 + $0xc0] sm:$0xff]
    %v189 = vld [vmem:[#allocation4 + $0xc8] sm:$0xff]
    %v190 = vld [vmem:[#allocation4 + $0xd0] sm:$0xff]
    %v191 = vld [vmem:[#allocation4 + $0xd8] sm:$0xff]
    %v192 = vld [vmem:[#allocation4 + $0xe0] sm:$0xff]
    %v193 = vld [vmem:[#allocation4 + $0xe8] sm:$0xff]
    %v194 = vld [vmem:[#allocation4 + $0xf0] sm:$0xff]
    %v195 = vld [vmem:[#allocation4 + $0xf8] sm:$0xff]
    %v196 = vld [vmem:[#allocation4 + $0x100] sm:$0xff]
    %v197 = vld [vmem:[#allocation4 + $0x108] sm:$0xff]
    %v198 = vld [vmem:[#allocation4 + $0x110] sm:$0xff]
    %v199 = vld [vmem:[#allocation4 + $0x118] sm:$0xff]
    %v200 = vld [vmem:[#allocation4 + $0x120] sm:$0xff]
    %v201 = vld [vmem:[#allocation4 + $0x128] sm:$0xff]
    %v202 = vld [vmem:[#allocation4 + $0x130] sm:$0xff]
    %v203 = vld [vmem:[#allocation4 + $0x138] sm:$0xff]
    %v204 = vld [vmem:[#allocation4 + $0x140] sm:$0xff]
    %v205 = vld [vmem:[#allocation4 + $0x148] sm:$0xff]
    %v206 = vld [vmem:[#allocation4 + $0x150] sm:$0xff]
    %v207 = vld [vmem:[#allocation4 + $0x158] sm:$0xff]
    %v208 = vld [vmem:[#allocation4 + $0x160] sm:$0xff]
    %v209 = vld [vmem:[#allocation4 + $0x168] sm:$0xff]
    %v210 = vld [vmem:[#allocation4 + $0x170] sm:$0xff]
    %v211 = vld [vmem:[#allocation4 + $0x178] sm:$0xff]
    %v212 = vld [vmem:[#allocation4 + $0x180] sm:$0xff]
    %v213 = vld [vmem:[#allocation4 + $0x188] sm:$0xff]
    %v214 = vld [vmem:[#allocation4 + $0x190] sm:$0xff]
    %v215 = vld [vmem:[#allocation4 + $0x198] sm:$0xff]
    %v216 = vld [vmem:[#allocation4 + $0x1a0] sm:$0xff]
    %v217 = vld [vmem:[#allocation4 + $0x1a8] sm:$0xff]
    %v218 = vld [vmem:[#allocation4 + $0x1b0] sm:$0xff]
    %v219 = vld [vmem:[#allocation4 + $0x1b8] sm:$0xff]
    %v220 = vld [vmem:[#allocation4 + $0x1c0] sm:$0xff]
    %v221 = vld [vmem:[#allocation4 + $0x1c8] sm:$0xff]
    %v222 = vld [vmem:[#allocation4 + $0x1d0] sm:$0xff]
    %v223 = vld [vmem:[#allocation4 + $0x1d8] sm:$0xff]
    %v224 = vld [vmem:[#allocation4 + $0x1e0] sm:$0xff]
    %v225 = vld [vmem:[#allocation4 + $0x1e8] sm:$0xff]
    %v226 = vld [vmem:[#allocation4 + $0x1f0] sm:$0xff]
    %v227 = vld [vmem:[#allocation4 + $0x1f8] sm:$0xff]
    %v260 = vunpack.c.l.b16 %v132
    %v261 = vunpack.c.l.b16 %v133
    %v262 = vunpack.c.l.b16 %v134
    %v263 = vunpack.c.l.b16 %v135
    %v264 = vunpack.c.l.b16 %v136
    %v265 = vunpack.c.l.b16 %v137
    %v266 = vunpack.c.l.b16 %v138
    %v267 = vunpack.c.l.b16 %v139
    %v268 = vunpack.c.l.b16 %v140
    %v269 = vunpack.c.l.b16 %v141
    %v270 = vunpack.c.l.b16 %v142
    %v271 = vunpack.c.l.b16 %v143
    %v272 = vunpack.c.l.b16 %v144
    %v273 = vunpack.c.l.b16 %v145
    %v274 = vunpack.c.l.b16 %v146
    %v275 = vunpack.c.l.b16 %v147
    %v276 = vunpack.c.l.b16 %v148
    %v277 = vunpack.c.l.b16 %v149
    %v278 = vunpack.c.l.b16 %v150
    %v279 = vunpack.c.l.b16 %v151
    %v280 = vunpack.c.l.b16 %v152
    %v281 = vunpack.c.l.b16 %v153
    %v282 = vunpack.c.l.b16 %v154
    %v283 = vunpack.c.l.b16 %v155
    %v284 = vunpack.c.l.b16 %v156
    %v285 = vunpack.c.l.b16 %v157
    %v286 = vunpack.c.l.b16 %v158
    %v287 = vunpack.c.l.b16 %v159
    %v288 = vunpack.c.l.b16 %v160
    %v289 = vunpack.c.l.b16 %v161
    %v290 = vunpack.c.l.b16 %v162
    %v291 = vunpack.c.l.b16 %v163
    %v292 = vpack.c.b16 %v261, %v260
    %v293 = vpack.c.b16 %v263, %v262
    %v294 = vpack.c.b16 %v265, %v264
    %v295 = vpack.c.b16 %v267, %v266
    %v296 = vpack.c.b16 %v269, %v268
    %v297 = vpack.c.b16 %v271, %v270
    %v298 = vpack.c.b16 %v273, %v272
    %v299 = vpack.c.b16 %v275, %v274
    %v300 = vpack.c.b16 %v277, %v276
    %v301 = vpack.c.b16 %v279, %v278
    %v302 = vpack.c.b16 %v281, %v280
    %v303 = vpack.c.b16 %v283, %v282
    %v304 = vpack.c.b16 %v285, %v284
    %v305 = vpack.c.b16 %v287, %v286
    %v306 = vpack.c.b16 %v289, %v288
    %v307 = vpack.c.b16 %v291, %v290
    %v388 = vunpack.c.l.b16 %v164
    %v389 = vunpack.c.h.b16 %v164
    %v390 = vunpack.c.l.b16 %v165
    %v391 = vunpack.c.h.b16 %v165
    %v392 = vunpack.c.l.b16 %v166
    %v393 = vunpack.c.h.b16 %v166
    %v394 = vunpack.c.l.b16 %v167
    %v395 = vunpack.c.h.b16 %v167
    %v396 = vunpack.c.l.b16 %v168
    %v397 = vunpack.c.h.b16 %v168
    %v398 = vunpack.c.l.b16 %v169
    %v399 = vunpack.c.h.b16 %v169
    %v400 = vunpack.c.l.b16 %v170
    %v401 = vunpack.c.h.b16 %v170
    %v402 = vunpack.c.l.b16 %v171
    %v403 = vunpack.c.h.b16 %v171
    %v404 = vunpack.c.l.b16 %v172
    %v405 = vunpack.c.h.b16 %v172
    %v406 = vunpack.c.l.b16 %v173
    %v407 = vunpack.c.h.b16 %v173
    %v408 = vunpack.c.l.b16 %v174
    %v409 = vunpack.c.h.b16 %v174
    %v410 = vunpack.c.l.b16 %v175
    %v411 = vunpack.c.h.b16 %v175
    %v412 = vunpack.c.l.b16 %v176
    %v413 = vunpack.c.h.b16 %v176
    %v414 = vunpack.c.l.b16 %v177
    %v415 = vunpack.c.h.b16 %v177
    %v416 = vunpack.c.l.b16 %v178
    %v417 = vunpack.c.h.b16 %v178
    %v418 = vunpack.c.l.b16 %v179
    %v419 = vunpack.c.h.b16 %v179
    %v420 = vunpack.c.l.b16 %v180
    %v421 = vunpack.c.h.b16 %v180
    %v422 = vunpack.c.l.b16 %v181
    %v423 = vunpack.c.h.b16 %v181
    %v424 = vunpack.c.l.b16 %v182
    %v425 = vunpack.c.h.b16 %v182
    %v426 = vunpack.c.l.b16 %v183
    %v427 = vunpack.c.h.b16 %v183
    %v428 = vunpack.c.l.b16 %v184
    %v429 = vunpack.c.h.b16 %v184
    %v430 = vunpack.c.l.b16 %v185
    %v431 = vunpack.c.h.b16 %v185
    %v432 = vunpack.c.l.b16 %v186
    %v433 = vunpack.c.h.b16 %v186
    %v434 = vunpack.c.l.b16 %v187
    %v435 = vunpack.c.h.b16 %v187
    %v436 = vunpack.c.l.b16 %v188
    %v437 = vunpack.c.h.b16 %v188
    %v438 = vunpack.c.l.b16 %v189
    %v439 = vunpack.c.h.b16 %v189
    %v440 = vunpack.c.l.b16 %v190
    %v441 = vunpack.c.h.b16 %v190
    %v442 = vunpack.c.l.b16 %v191
    %v443 = vunpack.c.h.b16 %v191
    %v444 = vunpack.c.l.b16 %v192
    %v445 = vunpack.c.h.b16 %v192
    %v446 = vunpack.c.l.b16 %v193
    %v447 = vunpack.c.h.b16 %v193
    %v448 = vunpack.c.l.b16 %v194
    %v449 = vunpack.c.h.b16 %v194
    %v450 = vunpack.c.l.b16 %v195
    %v451 = vunpack.c.h.b16 %v195
    %v452 = vunpack.c.l.b16 %v196
    %v453 = vunpack.c.h.b16 %v196
    %v454 = vunpack.c.l.b16 %v197
    %v455 = vunpack.c.h.b16 %v197
    %v456 = vunpack.c.l.b16 %v198
    %v457 = vunpack.c.h.b16 %v198
    %v458 = vunpack.c.l.b16 %v199
    %v459 = vunpack.c.h.b16 %v199
    %v460 = vunpack.c.l.b16 %v200
    %v461 = vunpack.c.h.b16 %v200
    %v462 = vunpack.c.l.b16 %v201
    %v463 = vunpack.c.h.b16 %v201
    %v464 = vunpack.c.l.b16 %v202
    %v465 = vunpack.c.h.b16 %v202
    %v466 = vunpack.c.l.b16 %v203
    %v467 = vunpack.c.h.b16 %v203
    %v468 = vunpack.c.l.b16 %v204
    %v469 = vunpack.c.h.b16 %v204
    %v470 = vunpack.c.l.b16 %v205
    %v471 = vunpack.c.h.b16 %v205
    %v472 = vunpack.c.l.b16 %v206
    %v473 = vunpack.c.h.b16 %v206
    %v474 = vunpack.c.l.b16 %v207
    %v475 = vunpack.c.h.b16 %v207
    %v476 = vunpack.c.l.b16 %v208
    %v477 = vunpack.c.h.b16 %v208
    %v478 = vunpack.c.l.b16 %v209
    %v479 = vunpack.c.h.b16 %v209
    %v480 = vunpack.c.l.b16 %v210
    %v481 = vunpack.c.h.b16 %v210
    %v482 = vunpack.c.l.b16 %v211
    %v483 = vunpack.c.h.b16 %v211
    %v484 = vunpack.c.l.b16 %v212
    %v485 = vunpack.c.h.b16 %v212
    %v486 = vunpack.c.l.b16 %v213
    %v487 = vunpack.c.h.b16 %v213
    %v488 = vunpack.c.l.b16 %v214
    %v489 = vunpack.c.h.b16 %v214
    %v490 = vunpack.c.l.b16 %v215
    %v491 = vunpack.c.h.b16 %v215
    %v492 = vunpack.c.l.b16 %v216
    %v493 = vunpack.c.h.b16 %v216
    %v494 = vunpack.c.l.b16 %v217
    %v495 = vunpack.c.h.b16 %v217
    %v496 = vunpack.c.l.b16 %v218
    %v497 = vunpack.c.h.b16 %v218
    %v498 = vunpack.c.l.b16 %v219
    %v499 = vunpack.c.h.b16 %v219
    %v500 = vunpack.c.l.b16 %v220
    %v501 = vunpack.c.h.b16 %v220
    %v502 = vunpack.c.l.b16 %v221
    %v503 = vunpack.c.h.b16 %v221
    %v504 = vunpack.c.l.b16 %v222
    %v505 = vunpack.c.h.b16 %v222
    %v506 = vunpack.c.l.b16 %v223
    %v507 = vunpack.c.h.b16 %v223
    %v508 = vunpack.c.l.b16 %v224
    %v509 = vunpack.c.h.b16 %v224
    %v510 = vunpack.c.l.b16 %v225
    %v511 = vunpack.c.h.b16 %v225
    %v512 = vunpack.c.l.b16 %v226
    %v513 = vunpack.c.h.b16 %v226
    %v514 = vunpack.c.l.b16 %v227
    %v515 = vunpack.c.h.b16 %v227
    %v516 = vpack.c.b16 %v396, %v388
    %v517 = vpack.c.b16 %v397, %v389
    %v518 = vpack.c.b16 %v398, %v390
    %v519 = vpack.c.b16 %v399, %v391
    %v520 = vpack.c.b16 %v400, %v392
    %v521 = vpack.c.b16 %v401, %v393
    %v522 = vpack.c.b16 %v402, %v394
    %v523 = vpack.c.b16 %v403, %v395
    %v524 = vpack.c.b16 %v412, %v404
    %v525 = vpack.c.b16 %v413, %v405
    %v526 = vpack.c.b16 %v414, %v406
    %v527 = vpack.c.b16 %v415, %v407
    %v528 = vpack.c.b16 %v416, %v408
    %v529 = vpack.c.b16 %v417, %v409
    %v530 = vpack.c.b16 %v418, %v410
    %v531 = vpack.c.b16 %v419, %v411
    %v532 = vpack.c.b16 %v428, %v420
    %v533 = vpack.c.b16 %v429, %v421
    %v534 = vpack.c.b16 %v430, %v422
    %v535 = vpack.c.b16 %v431, %v423
    %v536 = vpack.c.b16 %v432, %v424
    %v537 = vpack.c.b16 %v433, %v425
    %v538 = vpack.c.b16 %v434, %v426
    %v539 = vpack.c.b16 %v435, %v427
    %v540 = vpack.c.b16 %v444, %v436
    %v541 = vpack.c.b16 %v445, %v437
    %v542 = vpack.c.b16 %v446, %v438
    %v543 = vpack.c.b16 %v447, %v439
    %v544 = vpack.c.b16 %v448, %v440
    %v545 = vpack.c.b16 %v449, %v441
    %v546 = vpack.c.b16 %v450, %v442
    %v547 = vpack.c.b16 %v451, %v443
    %v548 = vpack.c.b16 %v460, %v452
    %v549 = vpack.c.b16 %v461, %v453
    %v550 = vpack.c.b16 %v462, %v454
    %v551 = vpack.c.b16 %v463, %v455
    %v552 = vpack.c.b16 %v464, %v456
    %v553 = vpack.c.b16 %v465, %v457
    %v554 = vpack.c.b16 %v466, %v458
    %v555 = vpack.c.b16 %v467, %v459
    %v556 = vpack.c.b16 %v476, %v468
    %v557 = vpack.c.b16 %v477, %v469
    %v558 = vpack.c.b16 %v478, %v470
    %v559 = vpack.c.b16 %v479, %v471
    %v560 = vpack.c.b16 %v480, %v472
    %v561 = vpack.c.b16 %v481, %v473
    %v562 = vpack.c.b16 %v482, %v474
    %v563 = vpack.c.b16 %v483, %v475
    %v564 = vpack.c.b16 %v492, %v484
    %v565 = vpack.c.b16 %v493, %v485
    %v566 = vpack.c.b16 %v494, %v486
    %v567 = vpack.c.b16 %v495, %v487
    %v568 = vpack.c.b16 %v496, %v488
    %v569 = vpack.c.b16 %v497, %v489
    %v570 = vpack.c.b16 %v498, %v490
    %v571 = vpack.c.b16 %v499, %v491
    %v572 = vpack.c.b16 %v508, %v500
    %v573 = vpack.c.b16 %v509, %v501
    %v574 = vpack.c.b16 %v510, %v502
    %v575 = vpack.c.b16 %v511, %v503
    %v576 = vpack.c.b16 %v512, %v504
    %v577 = vpack.c.b16 %v513, %v505
    %v578 = vpack.c.b16 %v514, %v506
    %v579 = vpack.c.b16 %v515, %v507
    %644 = vmatpush.bf16.msra.mxu0 %v572
    %645 = vmatpush.bf16.msra.mxu0 %v564
    %646 = vmatpush.bf16.msra.mxu0 %v556
    %647 = vmatpush.bf16.msra.mxu0 %v548
    %648 = vmatpush.bf16.msra.mxu0 %v540
    %649 = vmatpush.bf16.msra.mxu0 %v532
    %650 = vmatpush.bf16.msra.mxu0 %v524
    %651 = vmatpush.bf16.msra.mxu0 %v516
    %652 = vmatmul.bf16.gmra.mxu0 %v292
    %v653 = vpop.f32.mrf.mxu0
    %v654 = vadd.f32 0.0, %v653
    %v655 = vpop.f32.mrf.mxu0
    %v656 = vadd.f32 0.0, %v655
    %657 = vmatmul.bf16.gmra.mxu0 %v293
    %v658 = vpop.f32.mrf.mxu0
    %v659 = vadd.f32 0.0, %v658
    %v660 = vpop.f32.mrf.mxu0
    %v661 = vadd.f32 0.0, %v660
    %662 = vmatmul.bf16.gmra.mxu0 %v294
    %v663 = vpop.f32.mrf.mxu0
    %v664 = vadd.f32 0.0, %v663
    %v665 = vpop.f32.mrf.mxu0
    %v666 = vadd.f32 0.0, %v665
    %667 = vmatmul.bf16.gmra.mxu0 %v295
    %v668 = vpop.f32.mrf.mxu0
    %v669 = vadd.f32 0.0, %v668
    %v670 = vpop.f32.mrf.mxu0
    %v671 = vadd.f32 0.0, %v670
    %672 = vmatmul.bf16.gmra.mxu0 %v296
    %v673 = vpop.f32.mrf.mxu0
    %v674 = vadd.f32 0.0, %v673
    %v675 = vpop.f32.mrf.mxu0
    %v676 = vadd.f32 0.0, %v675
    %677 = vmatmul.bf16.gmra.mxu0 %v297
    %v678 = vpop.f32.mrf.mxu0
    %v679 = vadd.f32 0.0, %v678
    %v680 = vpop.f32.mrf.mxu0
    %v681 = vadd.f32 0.0, %v680
    %682 = vmatmul.bf16.gmra.mxu0 %v298
    %v683 = vpop.f32.mrf.mxu0
    %v684 = vadd.f32 0.0, %v683
    %v685 = vpop.f32.mrf.mxu0
    %v686 = vadd.f32 0.0, %v685
    %687 = vmatmul.bf16.gmra.mxu0 %v299
    %v688 = vpop.f32.mrf.mxu0
    %v689 = vadd.f32 0.0, %v688
    %v690 = vpop.f32.mrf.mxu0
    %v691 = vadd.f32 0.0, %v690
    %692 = vmatmul.bf16.gmra.mxu0 %v300
    %v693 = vpop.f32.mrf.mxu0
    %v694 = vadd.f32 0.0, %v693
    %v695 = vpop.f32.mrf.mxu0
    %v696 = vadd.f32 0.0, %v695
    %697 = vmatmul.bf16.gmra.mxu0 %v301
    %v698 = vpop.f32.mrf.mxu0
    %v699 = vadd.f32 0.0, %v698
    %v700 = vpop.f32.mrf.mxu0
    %v701 = vadd.f32 0.0, %v700
    %702 = vmatmul.bf16.gmra.mxu0 %v302
    %v703 = vpop.f32.mrf.mxu0
    %v704 = vadd.f32 0.0, %v703
    %v705 = vpop.f32.mrf.mxu0
    %v706 = vadd.f32 0.0, %v705
    %707 = vmatmul.bf16.gmra.mxu0 %v303
    %v708 = vpop.f32.mrf.mxu0
    %v709 = vadd.f32 0.0, %v708
    %v710 = vpop.f32.mrf.mxu0
    %v711 = vadd.f32 0.0, %v710
    %712 = vmatmul.bf16.gmra.mxu0 %v304
    %v713 = vpop.f32.mrf.mxu0
    %v714 = vadd.f32 0.0, %v713
    %v715 = vpop.f32.mrf.mxu0
    %v716 = vadd.f32 0.0, %v715
    %717 = vmatmul.bf16.gmra.mxu0 %v305
    %v718 = vpop.f32.mrf.mxu0
    %v719 = vadd.f32 0.0, %v718
    %v720 = vpop.f32.mrf.mxu0
    %v721 = vadd.f32 0.0, %v720
    %722 = vmatmul.bf16.gmra.mxu0 %v306
    %v723 = vpop.f32.mrf.mxu0
    %v724 = vadd.f32 0.0, %v723
    %v725 = vpop.f32.mrf.mxu0
    %v726 = vadd.f32 0.0, %v725
    %727 = vmatmul.bf16.gmra.mxu0 %v307
    %v728 = vpop.f32.mrf.mxu0
    %v729 = vadd.f32 0.0, %v728
    %v730 = vpop.f32.mrf.mxu0
    %v731 = vadd.f32 0.0, %v730
    %732 = vdwg.mxu0
    %733 = vmatpush.bf16.msra.mxu0 %v573
    %734 = vmatpush.bf16.msra.mxu0 %v565
    %735 = vmatpush.bf16.msra.mxu0 %v557
    %736 = vmatpush.bf16.msra.mxu0 %v549
    %737 = vmatpush.bf16.msra.mxu0 %v541
    %738 = vmatpush.bf16.msra.mxu0 %v533
    %739 = vmatpush.bf16.msra.mxu0 %v525
    %740 = vmatpush.bf16.msra.mxu0 %v517
    %741 = vmatmul.bf16.gmra.mxu0 %v292
    %v742 = vpop.f32.mrf.mxu0
    %v743 = vadd.f32 0.0, %v742
    %v744 = vpop.f32.mrf.mxu0
    %v745 = vadd.f32 0.0, %v744
    %746 = vmatmul.bf16.gmra.mxu0 %v293
    %v747 = vpop.f32.mrf.mxu0
    %v748 = vadd.f32 0.0, %v747
    %v749 = vpop.f32.mrf.mxu0
    %v750 = vadd.f32 0.0, %v749
    %751 = vmatmul.bf16.gmra.mxu0 %v294
    %v752 = vpop.f32.mrf.mxu0
    %v753 = vadd.f32 0.0, %v752
    %v754 = vpop.f32.mrf.mxu0
    %v755 = vadd.f32 0.0, %v754
    %756 = vmatmul.bf16.gmra.mxu0 %v295
    %v757 = vpop.f32.mrf.mxu0
    %v758 = vadd.f32 0.0, %v757
    %v759 = vpop.f32.mrf.mxu0
    %v760 = vadd.f32 0.0, %v759
    %761 = vmatmul.bf16.gmra.mxu0 %v296
    %v762 = vpop.f32.mrf.mxu0
    %v763 = vadd.f32 0.0, %v762
    %v764 = vpop.f32.mrf.mxu0
    %v765 = vadd.f32 0.0, %v764
    %766 = vmatmul.bf16.gmra.mxu0 %v297
    %v767 = vpop.f32.mrf.mxu0
    %v768 = vadd.f32 0.0, %v767
    %v769 = vpop.f32.mrf.mxu0
    %v770 = vadd.f32 0.0, %v769
    %771 = vmatmul.bf16.gmra.mxu0 %v298
    %v772 = vpop.f32.mrf.mxu0
    %v773 = vadd.f32 0.0, %v772
    %v774 = vpop.f32.mrf.mxu0
    %v775 = vadd.f32 0.0, %v774
    %776 = vmatmul.bf16.gmra.mxu0 %v299
    %v777 = vpop.f32.mrf.mxu0
    %v778 = vadd.f32 0.0, %v777
    %v779 = vpop.f32.mrf.mxu0
    %v780 = vadd.f32 0.0, %v779
    %781 = vmatmul.bf16.gmra.mxu0 %v300
    %v782 = vpop.f32.mrf.mxu0
    %v783 = vadd.f32 0.0, %v782
    %v784 = vpop.f32.mrf.mxu0
    %v785 = vadd.f32 0.0, %v784
    %786 = vmatmul.bf16.gmra.mxu0 %v301
    %v787 = vpop.f32.mrf.mxu0
    %v788 = vadd.f32 0.0, %v787
    %v789 = vpop.f32.mrf.mxu0
    %v790 = vadd.f32 0.0, %v789
    %791 = vmatmul.bf16.gmra.mxu0 %v302
    %v792 = vpop.f32.mrf.mxu0
    %v793 = vadd.f32 0.0, %v792
    %v794 = vpop.f32.mrf.mxu0
    %v795 = vadd.f32 0.0, %v794
    %796 = vmatmul.bf16.gmra.mxu0 %v303
    %v797 = vpop.f32.mrf.mxu0
    %v798 = vadd.f32 0.0, %v797
    %v799 = vpop.f32.mrf.mxu0
    %v800 = vadd.f32 0.0, %v799
    %801 = vmatmul.bf16.gmra.mxu0 %v304
    %v802 = vpop.f32.mrf.mxu0
    %v803 = vadd.f32 0.0, %v802
    %v804 = vpop.f32.mrf.mxu0
    %v805 = vadd.f32 0.0, %v804
    %806 = vmatmul.bf16.gmra.mxu0 %v305
    %v807 = vpop.f32.mrf.mxu0
    %v808 = vadd.f32 0.0, %v807
    %v809 = vpop.f32.mrf.mxu0
    %v810 = vadd.f32 0.0, %v809
    %811 = vmatmul.bf16.gmra.mxu0 %v306
    %v812 = vpop.f32.mrf.mxu0
    %v813 = vadd.f32 0.0, %v812
    %v814 = vpop.f32.mrf.mxu0
    %v815 = vadd.f32 0.0, %v814
    %816 = vmatmul.bf16.gmra.mxu0 %v307
    %v817 = vpop.f32.mrf.mxu0
    %v818 = vadd.f32 0.0, %v817
    %v819 = vpop.f32.mrf.mxu0
    %v820 = vadd.f32 0.0, %v819
    %821 = vdwg.mxu0
    %822 = vmatpush.bf16.msra.mxu0 %v574
    %823 = vmatpush.bf16.msra.mxu0 %v566
    %824 = vmatpush.bf16.msra.mxu0 %v558
    %825 = vmatpush.bf16.msra.mxu0 %v550
    %826 = vmatpush.bf16.msra.mxu0 %v542
    %827 = vmatpush.bf16.msra.mxu0 %v534
    %828 = vmatpush.bf16.msra.mxu0 %v526
    %829 = vmatpush.bf16.msra.mxu0 %v518
    %830 = vmatmul.bf16.gmra.mxu0 %v292
    %v831 = vpop.f32.mrf.mxu0
    %v832 = vadd.f32 0.0, %v831
    %v833 = vpop.f32.mrf.mxu0
    %v834 = vadd.f32 0.0, %v833
    %835 = vmatmul.bf16.gmra.mxu0 %v293
    %v836 = vpop.f32.mrf.mxu0
    %v837 = vadd.f32 0.0, %v836
    %v838 = vpop.f32.mrf.mxu0
    %v839 = vadd.f32 0.0, %v838
    %840 = vmatmul.bf16.gmra.mxu0 %v294
    %v841 = vpop.f32.mrf.mxu0
    %v842 = vadd.f32 0.0, %v841
    %v843 = vpop.f32.mrf.mxu0
    %v844 = vadd.f32 0.0, %v843
    %845 = vmatmul.bf16.gmra.mxu0 %v295
    %v846 = vpop.f32.mrf.mxu0
    %v847 = vadd.f32 0.0, %v846
    %v848 = vpop.f32.mrf.mxu0
    %v849 = vadd.f32 0.0, %v848
    %850 = vmatmul.bf16.gmra.mxu0 %v296
    %v851 = vpop.f32.mrf.mxu0
    %v852 = vadd.f32 0.0, %v851
    %v853 = vpop.f32.mrf.mxu0
    %v854 = vadd.f32 0.0, %v853
    %855 = vmatmul.bf16.gmra.mxu0 %v297
    %v856 = vpop.f32.mrf.mxu0
    %v857 = vadd.f32 0.0, %v856
    %v858 = vpop.f32.mrf.mxu0
    %v859 = vadd.f32 0.0, %v858
    %860 = vmatmul.bf16.gmra.mxu0 %v298
    %v861 = vpop.f32.mrf.mxu0
    %v862 = vadd.f32 0.0, %v861
    %v863 = vpop.f32.mrf.mxu0
    %v864 = vadd.f32 0.0, %v863
    %865 = vmatmul.bf16.gmra.mxu0 %v299
    %v866 = vpop.f32.mrf.mxu0
    %v867 = vadd.f32 0.0, %v866
    %v868 = vpop.f32.mrf.mxu0
    %v869 = vadd.f32 0.0, %v868
    %870 = vmatmul.bf16.gmra.mxu0 %v300
    %v871 = vpop.f32.mrf.mxu0
    %v872 = vadd.f32 0.0, %v871
    %v873 = vpop.f32.mrf.mxu0
    %v874 = vadd.f32 0.0, %v873
    %875 = vmatmul.bf16.gmra.mxu0 %v301
    %v876 = vpop.f32.mrf.mxu0
    %v877 = vadd.f32 0.0, %v876
    %v878 = vpop.f32.mrf.mxu0
    %v879 = vadd.f32 0.0, %v878
    %880 = vmatmul.bf16.gmra.mxu0 %v302
    %v881 = vpop.f32.mrf.mxu0
    %v882 = vadd.f32 0.0, %v881
    %v883 = vpop.f32.mrf.mxu0
    %v884 = vadd.f32 0.0, %v883
    %885 = vmatmul.bf16.gmra.mxu0 %v303
    %v886 = vpop.f32.mrf.mxu0
    %v887 = vadd.f32 0.0, %v886
    %v888 = vpop.f32.mrf.mxu0
    %v889 = vadd.f32 0.0, %v888
    %890 = vmatmul.bf16.gmra.mxu0 %v304
    %v891 = vpop.f32.mrf.mxu0
    %v892 = vadd.f32 0.0, %v891
    %v893 = vpop.f32.mrf.mxu0
    %v894 = vadd.f32 0.0, %v893
    %895 = vmatmul.bf16.gmra.mxu0 %v305
    %v896 = vpop.f32.mrf.mxu0
    %v897 = vadd.f32 0.0, %v896
    %v898 = vpop.f32.mrf.mxu0
    %v899 = vadd.f32 0.0, %v898
    %900 = vmatmul.bf16.gmra.mxu0 %v306
    %v901 = vpop.f32.mrf.mxu0
    %v902 = vadd.f32 0.0, %v901
    %v903 = vpop.f32.mrf.mxu0
    %v904 = vadd.f32 0.0, %v903
    %905 = vmatmul.bf16.gmra.mxu0 %v307
    %v906 = vpop.f32.mrf.mxu0
    %v907 = vadd.f32 0.0, %v906
    %v908 = vpop.f32.mrf.mxu0
    %v909 = vadd.f32 0.0, %v908
    %910 = vdwg.mxu0
    %911 = vmatpush.bf16.msra.mxu0 %v575
    %912 = vmatpush.bf16.msra.mxu0 %v567
    %913 = vmatpush.bf16.msra.mxu0 %v559
    %914 = vmatpush.bf16.msra.mxu0 %v551
    %915 = vmatpush.bf16.msra.mxu0 %v543
    %916 = vmatpush.bf16.msra.mxu0 %v535
    %917 = vmatpush.bf16.msra.mxu0 %v527
    %918 = vmatpush.bf16.msra.mxu0 %v519
    %919 = vmatmul.bf16.gmra.mxu0 %v292
    %v920 = vpop.f32.mrf.mxu0
    %v921 = vadd.f32 0.0, %v920
    %v922 = vpop.f32.mrf.mxu0
    %v923 = vadd.f32 0.0, %v922
    %924 = vmatmul.bf16.gmra.mxu0 %v293
    %v925 = vpop.f32.mrf.mxu0
    %v926 = vadd.f32 0.0, %v925
    %v927 = vpop.f32.mrf.mxu0
    %v928 = vadd.f32 0.0, %v927
    %929 = vmatmul.bf16.gmra.mxu0 %v294
    %v930 = vpop.f32.mrf.mxu0
    %v931 = vadd.f32 0.0, %v930
    %v932 = vpop.f32.mrf.mxu0
    %v933 = vadd.f32 0.0, %v932
    %934 = vmatmul.bf16.gmra.mxu0 %v295
    %v935 = vpop.f32.mrf.mxu0
    %v936 = vadd.f32 0.0, %v935
    %v937 = vpop.f32.mrf.mxu0
    %v938 = vadd.f32 0.0, %v937
    %939 = vmatmul.bf16.gmra.mxu0 %v296
    %v940 = vpop.f32.mrf.mxu0
    %v941 = vadd.f32 0.0, %v940
    %v942 = vpop.f32.mrf.mxu0
    %v943 = vadd.f32 0.0, %v942
    %944 = vmatmul.bf16.gmra.mxu0 %v297
    %v945 = vpop.f32.mrf.mxu0
    %v946 = vadd.f32 0.0, %v945
    %v947 = vpop.f32.mrf.mxu0
    %v948 = vadd.f32 0.0, %v947
    %949 = vmatmul.bf16.gmra.mxu0 %v298
    %v950 = vpop.f32.mrf.mxu0
    %v951 = vadd.f32 0.0, %v950
    %v952 = vpop.f32.mrf.mxu0
    %v953 = vadd.f32 0.0, %v952
    %954 = vmatmul.bf16.gmra.mxu0 %v299
    %v955 = vpop.f32.mrf.mxu0
    %v956 = vadd.f32 0.0, %v955
    %v957 = vpop.f32.mrf.mxu0
    %v958 = vadd.f32 0.0, %v957
    %959 = vmatmul.bf16.gmra.mxu0 %v300
    %v960 = vpop.f32.mrf.mxu0
    %v961 = vadd.f32 0.0, %v960
    %v962 = vpop.f32.mrf.mxu0
    %v963 = vadd.f32 0.0, %v962
    %964 = vmatmul.bf16.gmra.mxu0 %v301
    %v965 = vpop.f32.mrf.mxu0
    %v966 = vadd.f32 0.0, %v965
    %v967 = vpop.f32.mrf.mxu0
    %v968 = vadd.f32 0.0, %v967
    %969 = vmatmul.bf16.gmra.mxu0 %v302
    %v970 = vpop.f32.mrf.mxu0
    %v971 = vadd.f32 0.0, %v970
    %v972 = vpop.f32.mrf.mxu0
    %v973 = vadd.f32 0.0, %v972
    %974 = vmatmul.bf16.gmra.mxu0 %v303
    %v975 = vpop.f32.mrf.mxu0
    %v976 = vadd.f32 0.0, %v975
    %v977 = vpop.f32.mrf.mxu0
    %v978 = vadd.f32 0.0, %v977
    %979 = vmatmul.bf16.gmra.mxu0 %v304
    %v980 = vpop.f32.mrf.mxu0
    %v981 = vadd.f32 0.0, %v980
    %v982 = vpop.f32.mrf.mxu0
    %v983 = vadd.f32 0.0, %v982
    %984 = vmatmul.bf16.gmra.mxu0 %v305
    %v985 = vpop.f32.mrf.mxu0
    %v986 = vadd.f32 0.0, %v985
    %v987 = vpop.f32.mrf.mxu0
    %v988 = vadd.f32 0.0, %v987
    %989 = vmatmul.bf16.gmra.mxu0 %v306
    %v990 = vpop.f32.mrf.mxu0
    %v991 = vadd.f32 0.0, %v990
    %v992 = vpop.f32.mrf.mxu0
    %v993 = vadd.f32 0.0, %v992
    %994 = vmatmul.bf16.gmra.mxu0 %v307
    %v995 = vpop.f32.mrf.mxu0
    %v996 = vadd.f32 0.0, %v995
    %v997 = vpop.f32.mrf.mxu0
    %v998 = vadd.f32 0.0, %v997
    %999 = vdwg.mxu0
    %1000 = vmatpush.bf16.msra.mxu0 %v576
    %1001 = vmatpush.bf16.msra.mxu0 %v568
    %1002 = vmatpush.bf16.msra.mxu0 %v560
    %1003 = vmatpush.bf16.msra.mxu0 %v552
    %1004 = vmatpush.bf16.msra.mxu0 %v544
    %1005 = vmatpush.bf16.msra.mxu0 %v536
    %1006 = vmatpush.bf16.msra.mxu0 %v528
    %1007 = vmatpush.bf16.msra.mxu0 %v520
    %1008 = vmatmul.bf16.gmra.mxu0 %v292
    %v1009 = vpop.f32.mrf.mxu0
    %v1010 = vadd.f32 0.0, %v1009
    %v1011 = vpop.f32.mrf.mxu0
    %v1012 = vadd.f32 0.0, %v1011
    %1013 = vmatmul.bf16.gmra.mxu0 %v293
    %v1014 = vpop.f32.mrf.mxu0
    %v1015 = vadd.f32 0.0, %v1014
    %v1016 = vpop.f32.mrf.mxu0
    %v1017 = vadd.f32 0.0, %v1016
    %1018 = vmatmul.bf16.gmra.mxu0 %v294
    %v1019 = vpop.f32.mrf.mxu0
    %v1020 = vadd.f32 0.0, %v1019
    %v1021 = vpop.f32.mrf.mxu0
    %v1022 = vadd.f32 0.0, %v1021
    %1023 = vmatmul.bf16.gmra.mxu0 %v295
    %v1024 = vpop.f32.mrf.mxu0
    %v1025 = vadd.f32 0.0, %v1024
    %v1026 = vpop.f32.mrf.mxu0
    %v1027 = vadd.f32 0.0, %v1026
    %1028 = vmatmul.bf16.gmra.mxu0 %v296
    %v1029 = vpop.f32.mrf.mxu0
    %v1030 = vadd.f32 0.0, %v1029
    %v1031 = vpop.f32.mrf.mxu0
    %v1032 = vadd.f32 0.0, %v1031
    %1033 = vmatmul.bf16.gmra.mxu0 %v297
    %v1034 = vpop.f32.mrf.mxu0
    %v1035 = vadd.f32 0.0, %v1034
    %v1036 = vpop.f32.mrf.mxu0
    %v1037 = vadd.f32 0.0, %v1036
    %1038 = vmatmul.bf16.gmra.mxu0 %v298
    %v1039 = vpop.f32.mrf.mxu0
    %v1040 = vadd.f32 0.0, %v1039
    %v1041 = vpop.f32.mrf.mxu0
    %v1042 = vadd.f32 0.0, %v1041
    %1043 = vmatmul.bf16.gmra.mxu0 %v299
    %v1044 = vpop.f32.mrf.mxu0
    %v1045 = vadd.f32 0.0, %v1044
    %v1046 = vpop.f32.mrf.mxu0
    %v1047 = vadd.f32 0.0, %v1046
    %1048 = vmatmul.bf16.gmra.mxu0 %v300
    %v1049 = vpop.f32.mrf.mxu0
    %v1050 = vadd.f32 0.0, %v1049
    %v1051 = vpop.f32.mrf.mxu0
    %v1052 = vadd.f32 0.0, %v1051
    %1053 = vmatmul.bf16.gmra.mxu0 %v301
    %v1054 = vpop.f32.mrf.mxu0
    %v1055 = vadd.f32 0.0, %v1054
    %v1056 = vpop.f32.mrf.mxu0
    %v1057 = vadd.f32 0.0, %v1056
    %1058 = vmatmul.bf16.gmra.mxu0 %v302
    %v1059 = vpop.f32.mrf.mxu0
    %v1060 = vadd.f32 0.0, %v1059
    %v1061 = vpop.f32.mrf.mxu0
    %v1062 = vadd.f32 0.0, %v1061
    %1063 = vmatmul.bf16.gmra.mxu0 %v303
    %v1064 = vpop.f32.mrf.mxu0
    %v1065 = vadd.f32 0.0, %v1064
    %v1066 = vpop.f32.mrf.mxu0
    %v1067 = vadd.f32 0.0, %v1066
    %1068 = vmatmul.bf16.gmra.mxu0 %v304
    %v1069 = vpop.f32.mrf.mxu0
    %v1070 = vadd.f32 0.0, %v1069
    %v1071 = vpop.f32.mrf.mxu0
    %v1072 = vadd.f32 0.0, %v1071
    %1073 = vmatmul.bf16.gmra.mxu0 %v305
    %v1074 = vpop.f32.mrf.mxu0
    %v1075 = vadd.f32 0.0, %v1074
    %v1076 = vpop.f32.mrf.mxu0
    %v1077 = vadd.f32 0.0, %v1076
    %1078 = vmatmul.bf16.gmra.mxu0 %v306
    %v1079 = vpop.f32.mrf.mxu0
    %v1080 = vadd.f32 0.0, %v1079
    %v1081 = vpop.f32.mrf.mxu0
    %v1082 = vadd.f32 0.0, %v1081
    %1083 = vmatmul.bf16.gmra.mxu0 %v307
    %v1084 = vpop.f32.mrf.mxu0
    %v1085 = vadd.f32 0.0, %v1084
    %v1086 = vpop.f32.mrf.mxu0
    %v1087 = vadd.f32 0.0, %v1086
    %1088 = vdwg.mxu0
    %1089 = vmatpush.bf16.msra.mxu0 %v577
    %1090 = vmatpush.bf16.msra.mxu0 %v569
    %1091 = vmatpush.bf16.msra.mxu0 %v561
    %1092 = vmatpush.bf16.msra.mxu0 %v553
    %1093 = vmatpush.bf16.msra.mxu0 %v545
    %1094 = vmatpush.bf16.msra.mxu0 %v537
    %1095 = vmatpush.bf16.msra.mxu0 %v529
    %1096 = vmatpush.bf16.msra.mxu0 %v521
    %1097 = vmatmul.bf16.gmra.mxu0 %v292
    %v1098 = vpop.f32.mrf.mxu0
    %v1099 = vadd.f32 0.0, %v1098
    %v1100 = vpop.f32.mrf.mxu0
    %v1101 = vadd.f32 0.0, %v1100
    %1102 = vmatmul.bf16.gmra.mxu0 %v293
    %v1103 = vpop.f32.mrf.mxu0
    %v1104 = vadd.f32 0.0, %v1103
    %v1105 = vpop.f32.mrf.mxu0
    %v1106 = vadd.f32 0.0, %v1105
    %1107 = vmatmul.bf16.gmra.mxu0 %v294
    %v1108 = vpop.f32.mrf.mxu0
    %v1109 = vadd.f32 0.0, %v1108
    %v1110 = vpop.f32.mrf.mxu0
    %v1111 = vadd.f32 0.0, %v1110
    %1112 = vmatmul.bf16.gmra.mxu0 %v295
    %v1113 = vpop.f32.mrf.mxu0
    %v1114 = vadd.f32 0.0, %v1113
    %v1115 = vpop.f32.mrf.mxu0
    %v1116 = vadd.f32 0.0, %v1115
    %1117 = vmatmul.bf16.gmra.mxu0 %v296
    %v1118 = vpop.f32.mrf.mxu0
    %v1119 = vadd.f32 0.0, %v1118
    %v1120 = vpop.f32.mrf.mxu0
    %v1121 = vadd.f32 0.0, %v1120
    %1122 = vmatmul.bf16.gmra.mxu0 %v297
    %v1123 = vpop.f32.mrf.mxu0
    %v1124 = vadd.f32 0.0, %v1123
    %v1125 = vpop.f32.mrf.mxu0
    %v1126 = vadd.f32 0.0, %v1125
    %1127 = vmatmul.bf16.gmra.mxu0 %v298
    %v1128 = vpop.f32.mrf.mxu0
    %v1129 = vadd.f32 0.0, %v1128
    %v1130 = vpop.f32.mrf.mxu0
    %v1131 = vadd.f32 0.0, %v1130
    %1132 = vmatmul.bf16.gmra.mxu0 %v299
    %v1133 = vpop.f32.mrf.mxu0
    %v1134 = vadd.f32 0.0, %v1133
    %v1135 = vpop.f32.mrf.mxu0
    %v1136 = vadd.f32 0.0, %v1135
    %1137 = vmatmul.bf16.gmra.mxu0 %v300
    %v1138 = vpop.f32.mrf.mxu0
    %v1139 = vadd.f32 0.0, %v1138
    %v1140 = vpop.f32.mrf.mxu0
    %v1141 = vadd.f32 0.0, %v1140
    %1142 = vmatmul.bf16.gmra.mxu0 %v301
    %v1143 = vpop.f32.mrf.mxu0
    %v1144 = vadd.f32 0.0, %v1143
    %v1145 = vpop.f32.mrf.mxu0
    %v1146 = vadd.f32 0.0, %v1145
    %1147 = vmatmul.bf16.gmra.mxu0 %v302
    %v1148 = vpop.f32.mrf.mxu0
    %v1149 = vadd.f32 0.0, %v1148
    %v1150 = vpop.f32.mrf.mxu0
    %v1151 = vadd.f32 0.0, %v1150
    %1152 = vmatmul.bf16.gmra.mxu0 %v303
    %v1153 = vpop.f32.mrf.mxu0
    %v1154 = vadd.f32 0.0, %v1153
    %v1155 = vpop.f32.mrf.mxu0
    %v1156 = vadd.f32 0.0, %v1155
    %1157 = vmatmul.bf16.gmra.mxu0 %v304
    %v1158 = vpop.f32.mrf.mxu0
    %v1159 = vadd.f32 0.0, %v1158
    %v1160 = vpop.f32.mrf.mxu0
    %v1161 = vadd.f32 0.0, %v1160
    %1162 = vmatmul.bf16.gmra.mxu0 %v305
    %v1163 = vpop.f32.mrf.mxu0
    %v1164 = vadd.f32 0.0, %v1163
    %v1165 = vpop.f32.mrf.mxu0
    %v1166 = vadd.f32 0.0, %v1165
    %1167 = vmatmul.bf16.gmra.mxu0 %v306
    %v1168 = vpop.f32.mrf.mxu0
    %v1169 = vadd.f32 0.0, %v1168
    %v1170 = vpop.f32.mrf.mxu0
    %v1171 = vadd.f32 0.0, %v1170
    %1172 = vmatmul.bf16.gmra.mxu0 %v307
    %v1173 = vpop.f32.mrf.mxu0
    %v1174 = vadd.f32 0.0, %v1173
    %v1175 = vpop.f32.mrf.mxu0
    %v1176 = vadd.f32 0.0, %v1175
    %1177 = vdwg.mxu0
    %1178 = vmatpush.bf16.msra.mxu0 %v578
    %1179 = vmatpush.bf16.msra.mxu0 %v570
    %1180 = vmatpush.bf16.msra.mxu0 %v562
    %1181 = vmatpush.bf16.msra.mxu0 %v554
    %1182 = vmatpush.bf16.msra.mxu0 %v546
    %1183 = vmatpush.bf16.msra.mxu0 %v538
    %1184 = vmatpush.bf16.msra.mxu0 %v530
    %1185 = vmatpush.bf16.msra.mxu0 %v522
    %1186 = vmatmul.bf16.gmra.mxu0 %v292
    %v1187 = vpop.f32.mrf.mxu0
    %v1188 = vadd.f32 0.0, %v1187
    %v1189 = vpop.f32.mrf.mxu0
    %v1190 = vadd.f32 0.0, %v1189
    %1191 = vmatmul.bf16.gmra.mxu0 %v293
    %v1192 = vpop.f32.mrf.mxu0
    %v1193 = vadd.f32 0.0, %v1192
    %v1194 = vpop.f32.mrf.mxu0
    %v1195 = vadd.f32 0.0, %v1194
    %1196 = vmatmul.bf16.gmra.mxu0 %v294
    %v1197 = vpop.f32.mrf.mxu0
    %v1198 = vadd.f32 0.0, %v1197
    %v1199 = vpop.f32.mrf.mxu0
    %v1200 = vadd.f32 0.0, %v1199
    %1201 = vmatmul.bf16.gmra.mxu0 %v295
    %v1202 = vpop.f32.mrf.mxu0
    %v1203 = vadd.f32 0.0, %v1202
    %v1204 = vpop.f32.mrf.mxu0
    %v1205 = vadd.f32 0.0, %v1204
    %1206 = vmatmul.bf16.gmra.mxu0 %v296
    %v1207 = vpop.f32.mrf.mxu0
    %v1208 = vadd.f32 0.0, %v1207
    %v1209 = vpop.f32.mrf.mxu0
    %v1210 = vadd.f32 0.0, %v1209
    %1211 = vmatmul.bf16.gmra.mxu0 %v297
    %v1212 = vpop.f32.mrf.mxu0
    %v1213 = vadd.f32 0.0, %v1212
    %v1214 = vpop.f32.mrf.mxu0
    %v1215 = vadd.f32 0.0, %v1214
    %1216 = vmatmul.bf16.gmra.mxu0 %v298
    %v1217 = vpop.f32.mrf.mxu0
    %v1218 = vadd.f32 0.0, %v1217
    %v1219 = vpop.f32.mrf.mxu0
    %v1220 = vadd.f32 0.0, %v1219
    %1221 = vmatmul.bf16.gmra.mxu0 %v299
    %v1222 = vpop.f32.mrf.mxu0
    %v1223 = vadd.f32 0.0, %v1222
    %v1224 = vpop.f32.mrf.mxu0
    %v1225 = vadd.f32 0.0, %v1224
    %1226 = vmatmul.bf16.gmra.mxu0 %v300
    %v1227 = vpop.f32.mrf.mxu0
    %v1228 = vadd.f32 0.0, %v1227
    %v1229 = vpop.f32.mrf.mxu0
    %v1230 = vadd.f32 0.0, %v1229
    %1231 = vmatmul.bf16.gmra.mxu0 %v301
    %v1232 = vpop.f32.mrf.mxu0
    %v1233 = vadd.f32 0.0, %v1232
    %v1234 = vpop.f32.mrf.mxu0
    %v1235 = vadd.f32 0.0, %v1234
    %1236 = vmatmul.bf16.gmra.mxu0 %v302
    %v1237 = vpop.f32.mrf.mxu0
    %v1238 = vadd.f32 0.0, %v1237
    %v1239 = vpop.f32.mrf.mxu0
    %v1240 = vadd.f32 0.0, %v1239
    %1241 = vmatmul.bf16.gmra.mxu0 %v303
    %v1242 = vpop.f32.mrf.mxu0
    %v1243 = vadd.f32 0.0, %v1242
    %v1244 = vpop.f32.mrf.mxu0
    %v1245 = vadd.f32 0.0, %v1244
    %1246 = vmatmul.bf16.gmra.mxu0 %v304
    %v1247 = vpop.f32.mrf.mxu0
    %v1248 = vadd.f32 0.0, %v1247
    %v1249 = vpop.f32.mrf.mxu0
    %v1250 = vadd.f32 0.0, %v1249
    %1251 = vmatmul.bf16.gmra.mxu0 %v305
    %v1252 = vpop.f32.mrf.mxu0
    %v1253 = vadd.f32 0.0, %v1252
    %v1254 = vpop.f32.mrf.mxu0
    %v1255 = vadd.f32 0.0, %v1254
    %1256 = vmatmul.bf16.gmra.mxu0 %v306
    %v1257 = vpop.f32.mrf.mxu0
    %v1258 = vadd.f32 0.0, %v1257
    %v1259 = vpop.f32.mrf.mxu0
    %v1260 = vadd.f32 0.0, %v1259
    %1261 = vmatmul.bf16.gmra.mxu0 %v307
    %v1262 = vpop.f32.mrf.mxu0
    %v1263 = vadd.f32 0.0, %v1262
    %v1264 = vpop.f32.mrf.mxu0
    %v1265 = vadd.f32 0.0, %v1264
    %1266 = vdwg.mxu0
    %1267 = vmatpush.bf16.msra.mxu0 %v579
    %1268 = vmatpush.bf16.msra.mxu0 %v571
    %1269 = vmatpush.bf16.msra.mxu0 %v563
    %1270 = vmatpush.bf16.msra.mxu0 %v555
    %1271 = vmatpush.bf16.msra.mxu0 %v547
    %1272 = vmatpush.bf16.msra.mxu0 %v539
    %1273 = vmatpush.bf16.msra.mxu0 %v531
    %1274 = vmatpush.bf16.msra.mxu0 %v523
    %1275 = vmatmul.bf16.gmra.mxu0 %v292
    %v1276 = vpop.f32.mrf.mxu0
    %v1277 = vadd.f32 0.0, %v1276
    %v1278 = vpop.f32.mrf.mxu0
    %v1279 = vadd.f32 0.0, %v1278
    %1280 = vmatmul.bf16.gmra.mxu0 %v293
    %v1281 = vpop.f32.mrf.mxu0
    %v1282 = vadd.f32 0.0, %v1281
    %v1283 = vpop.f32.mrf.mxu0
    %v1284 = vadd.f32 0.0, %v1283
    %1285 = vmatmul.bf16.gmra.mxu0 %v294
    %v1286 = vpop.f32.mrf.mxu0
    %v1287 = vadd.f32 0.0, %v1286
    %v1288 = vpop.f32.mrf.mxu0
    %v1289 = vadd.f32 0.0, %v1288
    %1290 = vmatmul.bf16.gmra.mxu0 %v295
    %v1291 = vpop.f32.mrf.mxu0
    %v1292 = vadd.f32 0.0, %v1291
    %v1293 = vpop.f32.mrf.mxu0
    %v1294 = vadd.f32 0.0, %v1293
    %1295 = vmatmul.bf16.gmra.mxu0 %v296
    %v1296 = vpop.f32.mrf.mxu0
    %v1297 = vadd.f32 0.0, %v1296
    %v1298 = vpop.f32.mrf.mxu0
    %v1299 = vadd.f32 0.0, %v1298
    %1300 = vmatmul.bf16.gmra.mxu0 %v297
    %v1301 = vpop.f32.mrf.mxu0
    %v1302 = vadd.f32 0.0, %v1301
    %v1303 = vpop.f32.mrf.mxu0
    %v1304 = vadd.f32 0.0, %v1303
    %1305 = vmatmul.bf16.gmra.mxu0 %v298
    %v1306 = vpop.f32.mrf.mxu0
    %v1307 = vadd.f32 0.0, %v1306
    %v1308 = vpop.f32.mrf.mxu0
    %v1309 = vadd.f32 0.0, %v1308
    %1310 = vmatmul.bf16.gmra.mxu0 %v299
    %v1311 = vpop.f32.mrf.mxu0
    %v1312 = vadd.f32 0.0, %v1311
    %v1313 = vpop.f32.mrf.mxu0
    %v1314 = vadd.f32 0.0, %v1313
    %1315 = vmatmul.bf16.gmra.mxu0 %v300
    %v1316 = vpop.f32.mrf.mxu0
    %v1317 = vadd.f32 0.0, %v1316
    %v1318 = vpop.f32.mrf.mxu0
    %v1319 = vadd.f32 0.0, %v1318
    %1320 = vmatmul.bf16.gmra.mxu0 %v301
    %v1321 = vpop.f32.mrf.mxu0
    %v1322 = vadd.f32 0.0, %v1321
    %v1323 = vpop.f32.mrf.mxu0
    %v1324 = vadd.f32 0.0, %v1323
    %1325 = vmatmul.bf16.gmra.mxu0 %v302
    %v1326 = vpop.f32.mrf.mxu0
    %v1327 = vadd.f32 0.0, %v1326
    %v1328 = vpop.f32.mrf.mxu0
    %v1329 = vadd.f32 0.0, %v1328
    %1330 = vmatmul.bf16.gmra.mxu0 %v303
    %v1331 = vpop.f32.mrf.mxu0
    %v1332 = vadd.f32 0.0, %v1331
    %v1333 = vpop.f32.mrf.mxu0
    %v1334 = vadd.f32 0.0, %v1333
    %1335 = vmatmul.bf16.gmra.mxu0 %v304
    %v1336 = vpop.f32.mrf.mxu0
    %v1337 = vadd.f32 0.0, %v1336
    %v1338 = vpop.f32.mrf.mxu0
    %v1339 = vadd.f32 0.0, %v1338
    %1340 = vmatmul.bf16.gmra.mxu0 %v305
    %v1341 = vpop.f32.mrf.mxu0
    %v1342 = vadd.f32 0.0, %v1341
    %v1343 = vpop.f32.mrf.mxu0
    %v1344 = vadd.f32 0.0, %v1343
    %1345 = vmatmul.bf16.gmra.mxu0 %v306
    %v1346 = vpop.f32.mrf.mxu0
    %v1347 = vadd.f32 0.0, %v1346
    %v1348 = vpop.f32.mrf.mxu0
    %v1349 = vadd.f32 0.0, %v1348
    %1350 = vmatmul.bf16.gmra.mxu0 %v307
    %v1351 = vpop.f32.mrf.mxu0
    %v1352 = vadd.f32 0.0, %v1351
    %v1353 = vpop.f32.mrf.mxu0
    %v1354 = vadd.f32 0.0, %v1353
    %1355 = vdwg.mxu0
    %v1356 = vmax.f32 %v654, %v674
    %v1357 = vmax.f32 %v743, %v763
    %v1358 = vmax.f32 %v832, %v852
    %v1359 = vmax.f32 %v921, %v941
    %v1360 = vmax.f32 %v1010, %v1030
    %v1361 = vmax.f32 %v1099, %v1119
    %v1362 = vmax.f32 %v1188, %v1208
    %v1363 = vmax.f32 %v1277, %v1297
    %v1364 = vmax.f32 %v656, %v676
    %v1365 = vmax.f32 %v745, %v765
    %v1366 = vmax.f32 %v834, %v854
    %v1367 = vmax.f32 %v923, %v943
    %v1368 = vmax.f32 %v1012, %v1032
    %v1369 = vmax.f32 %v1101, %v1121
    %v1370 = vmax.f32 %v1190, %v1210
    %v1371 = vmax.f32 %v1279, %v1299
    %v1372 = vmax.f32 %v659, %v679
    %v1373 = vmax.f32 %v748, %v768
    %v1374 = vmax.f32 %v837, %v857
    %v1375 = vmax.f32 %v926, %v946
    %v1376 = vmax.f32 %v1015, %v1035
    %v1377 = vmax.f32 %v1104, %v1124
    %v1378 = vmax.f32 %v1193, %v1213
    %v1379 = vmax.f32 %v1282, %v1302
    %v1380 = vmax.f32 %v661, %v681
    %v1381 = vmax.f32 %v750, %v770
    %v1382 = vmax.f32 %v839, %v859
    %v1383 = vmax.f32 %v928, %v948
    %v1384 = vmax.f32 %v1017, %v1037
    %v1385 = vmax.f32 %v1106, %v1126
    %v1386 = vmax.f32 %v1195, %v1215
    %v1387 = vmax.f32 %v1284, %v1304
    %v1388 = vmax.f32 %v664, %v684
    %v1389 = vmax.f32 %v753, %v773
    %v1390 = vmax.f32 %v842, %v862
    %v1391 = vmax.f32 %v931, %v951
    %v1392 = vmax.f32 %v1020, %v1040
    %v1393 = vmax.f32 %v1109, %v1129
    %v1394 = vmax.f32 %v1198, %v1218
    %v1395 = vmax.f32 %v1287, %v1307
    %v1396 = vmax.f32 %v666, %v686
    %v1397 = vmax.f32 %v755, %v775
    %v1398 = vmax.f32 %v844, %v864
    %v1399 = vmax.f32 %v933, %v953
    %v1400 = vmax.f32 %v1022, %v1042
    %v1401 = vmax.f32 %v1111, %v1131
    %v1402 = vmax.f32 %v1200, %v1220
    %v1403 = vmax.f32 %v1289, %v1309
    %v1404 = vmax.f32 %v669, %v689
    %v1405 = vmax.f32 %v758, %v778
    %v1406 = vmax.f32 %v847, %v867
    %v1407 = vmax.f32 %v936, %v956
    %v1408 = vmax.f32 %v1025, %v1045
    %v1409 = vmax.f32 %v1114, %v1134
    %v1410 = vmax.f32 %v1203, %v1223
    %v1411 = vmax.f32 %v1292, %v1312
    %v1412 = vmax.f32 %v671, %v691
    %v1413 = vmax.f32 %v760, %v780
    %v1414 = vmax.f32 %v849, %v869
    %v1415 = vmax.f32 %v938, %v958
    %v1416 = vmax.f32 %v1027, %v1047
    %v1417 = vmax.f32 %v1116, %v1136
    %v1418 = vmax.f32 %v1205, %v1225
    %v1419 = vmax.f32 %v1294, %v1314
    %v1420 = vmax.f32 %v1356, %v1360
    %v1421 = vmax.f32 %v1357, %v1361
    %v1422 = vmax.f32 %v1358, %v1362
    %v1423 = vmax.f32 %v1359, %v1363
    %v1424 = vmax.f32 %v1364, %v1368
    %v1425 = vmax.f32 %v1365, %v1369
    %v1426 = vmax.f32 %v1366, %v1370
    %v1427 = vmax.f32 %v1367, %v1371
    %v1428 = vmax.f32 %v1372, %v1376
    %v1429 = vmax.f32 %v1373, %v1377
    %v1430 = vmax.f32 %v1374, %v1378
    %v1431 = vmax.f32 %v1375, %v1379
    %v1432 = vmax.f32 %v1380, %v1384
    %v1433 = vmax.f32 %v1381, %v1385
    %v1434 = vmax.f32 %v1382, %v1386
    %v1435 = vmax.f32 %v1383, %v1387
    %v1436 = vmax.f32 %v1388, %v1392
    %v1437 = vmax.f32 %v1389, %v1393
    %v1438 = vmax.f32 %v1390, %v1394
    %v1439 = vmax.f32 %v1391, %v1395
    %v1440 = vmax.f32 %v1396, %v1400
    %v1441 = vmax.f32 %v1397, %v1401
    %v1442 = vmax.f32 %v1398, %v1402
    %v1443 = vmax.f32 %v1399, %v1403
    %v1444 = vmax.f32 %v1404, %v1408
    %v1445 = vmax.f32 %v1405, %v1409
    %v1446 = vmax.f32 %v1406, %v1410
    %v1447 = vmax.f32 %v1407, %v1411
    %v1448 = vmax.f32 %v1412, %v1416
    %v1449 = vmax.f32 %v1413, %v1417
    %v1450 = vmax.f32 %v1414, %v1418
    %v1451 = vmax.f32 %v1415, %v1419
    %v1452 = vmax.f32 %v1420, 0.0
    %v1453 = vmax.f32 %v1421, 0.0
    %v1454 = vmax.f32 %v1422, 0.0
    %v1455 = vmax.f32 %v1423, 0.0
    %v1456 = vmax.f32 %v1424, 0.0
    %v1457 = vmax.f32 %v1425, 0.0
    %v1458 = vmax.f32 %v1426, 0.0
    %v1459 = vmax.f32 %v1427, 0.0
    %v1460 = vmax.f32 %v1428, 0.0
    %v1461 = vmax.f32 %v1429, 0.0
    %v1462 = vmax.f32 %v1430, 0.0
    %v1463 = vmax.f32 %v1431, 0.0
    %v1464 = vmax.f32 %v1432, 0.0
    %v1465 = vmax.f32 %v1433, 0.0
    %v1466 = vmax.f32 %v1434, 0.0
    %v1467 = vmax.f32 %v1435, 0.0
    %v1468 = vmax.f32 %v1436, 0.0
    %v1469 = vmax.f32 %v1437, 0.0
    %v1470 = vmax.f32 %v1438, 0.0
    %v1471 = vmax.f32 %v1439, 0.0
    %v1472 = vmax.f32 %v1440, 0.0
    %v1473 = vmax.f32 %v1441, 0.0
    %v1474 = vmax.f32 %v1442, 0.0
    %v1475 = vmax.f32 %v1443, 0.0
    %v1476 = vmax.f32 %v1444, 0.0
    %v1477 = vmax.f32 %v1445, 0.0
    %v1478 = vmax.f32 %v1446, 0.0
    %v1479 = vmax.f32 %v1447, 0.0
    %v1480 = vmax.f32 %v1448, 0.0
    %v1481 = vmax.f32 %v1449, 0.0
    %v1482 = vmax.f32 %v1450, 0.0
    %v1483 = vmax.f32 %v1451, 0.0
    %1484 = vst [vmem:[#allocation2] sm:$0xff] %v1452
    %1485 = vst [vmem:[#allocation2 + $0x8] sm:$0xff] %v1453
    %1486 = vst [vmem:[#allocation2 + $0x10] sm:$0xff] %v1454
    %1487 = vst [vmem:[#allocation2 + $0x18] sm:$0xff] %v1455
    %1488 = vst [vmem:[#allocation2 + $0x20] sm:$0xff] %v1456
    %1489 = vst [vmem:[#allocation2 + $0x28] sm:$0xff] %v1457
    %1490 = vst [vmem:[#allocation2 + $0x30] sm:$0xff] %v1458
    %1491 = vst [vmem:[#allocation2 + $0x38] sm:$0xff] %v1459
    %1492 = vst [vmem:[#allocation2 + $0x40] sm:$0xff] %v1460
    %1493 = vst [vmem:[#allocation2 + $0x48] sm:$0xff] %v1461
    %1494 = vst [vmem:[#allocation2 + $0x50] sm:$0xff] %v1462
    %1495 = vst [vmem:[#allocation2 + $0x58] sm:$0xff] %v1463
    %1496 = vst [vmem:[#allocation2 + $0x60] sm:$0xff] %v1464
    %1497 = vst [vmem:[#allocation2 + $0x68] sm:$0xff] %v1465
    %1498 = vst [vmem:[#allocation2 + $0x70] sm:$0xff] %v1466
    %1499 = vst [vmem:[#allocation2 + $0x78] sm:$0xff] %v1467
    %1500 = vst [vmem:[#allocation2 + $0x80] sm:$0xff] %v1468
    %1501 = vst [vmem:[#allocation2 + $0x88] sm:$0xff] %v1469
    %1502 = vst [vmem:[#allocation2 + $0x90] sm:$0xff] %v1470
    %1503 = vst [vmem:[#allocation2 + $0x98] sm:$0xff] %v1471
    %1504 = vst [vmem:[#allocation2 + $0xa0] sm:$0xff] %v1472
    %1505 = vst [vmem:[#allocation2 + $0xa8] sm:$0xff] %v1473
    %1506 = vst [vmem:[#allocation2 + $0xb0] sm:$0xff] %v1474
    %1507 = vst [vmem:[#allocation2 + $0xb8] sm:$0xff] %v1475
    %1508 = vst [vmem:[#allocation2 + $0xc0] sm:$0xff] %v1476
    %1509 = vst [vmem:[#allocation2 + $0xc8] sm:$0xff] %v1477
    %1510 = vst [vmem:[#allocation2 + $0xd0] sm:$0xff] %v1478
    %1511 = vst [vmem:[#allocation2 + $0xd8] sm:$0xff] %v1479
    %1512 = vst [vmem:[#allocation2 + $0xe0] sm:$0xff] %v1480
    %1513 = vst [vmem:[#allocation2 + $0xe8] sm:$0xff] %v1481
    %1514 = vst [vmem:[#allocation2 + $0xf0] sm:$0xff] %v1482
    %1515 = vst [vmem:[#allocation2 + $0xf8] sm:$0xff] %v1483
    %v1516 = vmax.f32 %v694, %v714
    %v1517 = vmax.f32 %v783, %v803
    %v1518 = vmax.f32 %v872, %v892
    %v1519 = vmax.f32 %v961, %v981
    %v1520 = vmax.f32 %v1050, %v1070
    %v1521 = vmax.f32 %v1139, %v1159
    %v1522 = vmax.f32 %v1228, %v1248
    %v1523 = vmax.f32 %v1317, %v1337
    %v1524 = vmax.f32 %v696, %v716
    %v1525 = vmax.f32 %v785, %v805
    %v1526 = vmax.f32 %v874, %v894
    %v1527 = vmax.f32 %v963, %v983
    %v1528 = vmax.f32 %v1052, %v1072
    %v1529 = vmax.f32 %v1141, %v1161
    %v1530 = vmax.f32 %v1230, %v1250
    %v1531 = vmax.f32 %v1319, %v1339
    %v1532 = vmax.f32 %v699, %v719
    %v1533 = vmax.f32 %v788, %v808
    %v1534 = vmax.f32 %v877, %v897
    %v1535 = vmax.f32 %v966, %v986
    %v1536 = vmax.f32 %v1055, %v1075
    %v1537 = vmax.f32 %v1144, %v1164
    %v1538 = vmax.f32 %v1233, %v1253
    %v1539 = vmax.f32 %v1322, %v1342
    %v1540 = vmax.f32 %v701, %v721
    %v1541 = vmax.f32 %v790, %v810
    %v1542 = vmax.f32 %v879, %v899
    %v1543 = vmax.f32 %v968, %v988
    %v1544 = vmax.f32 %v1057, %v1077
    %v1545 = vmax.f32 %v1146, %v1166
    %v1546 = vmax.f32 %v1235, %v1255
    %v1547 = vmax.f32 %v1324, %v1344
    %v1548 = vmax.f32 %v704, %v724
    %v1549 = vmax.f32 %v793, %v813
    %v1550 = vmax.f32 %v882, %v902
    %v1551 = vmax.f32 %v971, %v991
    %v1552 = vmax.f32 %v1060, %v1080
    %v1553 = vmax.f32 %v1149, %v1169
    %v1554 = vmax.f32 %v1238, %v1258
    %v1555 = vmax.f32 %v1327, %v1347
    %v1556 = vmax.f32 %v706, %v726
    %v1557 = vmax.f32 %v795, %v815
    %v1558 = vmax.f32 %v884, %v904
    %v1559 = vmax.f32 %v973, %v993
    %v1560 = vmax.f32 %v1062, %v1082
    %v1561 = vmax.f32 %v1151, %v1171
    %v1562 = vmax.f32 %v1240, %v1260
    %v1563 = vmax.f32 %v1329, %v1349
    %v1564 = vmax.f32 %v709, %v729
    %v1565 = vmax.f32 %v798, %v818
    %v1566 = vmax.f32 %v887, %v907
    %v1567 = vmax.f32 %v976, %v996
    %v1568 = vmax.f32 %v1065, %v1085
    %v1569 = vmax.f32 %v1154, %v1174
    %v1570 = vmax.f32 %v1243, %v1263
    %v1571 = vmax.f32 %v1332, %v1352
    %v1572 = vmax.f32 %v711, %v731
    %v1573 = vmax.f32 %v800, %v820
    %v1574 = vmax.f32 %v889, %v909
    %v1575 = vmax.f32 %v978, %v998
    %v1576 = vmax.f32 %v1067, %v1087
    %v1577 = vmax.f32 %v1156, %v1176
    %v1578 = vmax.f32 %v1245, %v1265
    %v1579 = vmax.f32 %v1334, %v1354
    %v1580 = vmax.f32 %v1516, %v1520
    %v1581 = vmax.f32 %v1517, %v1521
    %v1582 = vmax.f32 %v1518, %v1522
    %v1583 = vmax.f32 %v1519, %v1523
    %v1584 = vmax.f32 %v1524, %v1528
    %v1585 = vmax.f32 %v1525, %v1529
    %v1586 = vmax.f32 %v1526, %v1530
    %v1587 = vmax.f32 %v1527, %v1531
    %v1588 = vmax.f32 %v1532, %v1536
    %v1589 = vmax.f32 %v1533, %v1537
    %v1590 = vmax.f32 %v1534, %v1538
    %v1591 = vmax.f32 %v1535, %v1539
    %v1592 = vmax.f32 %v1540, %v1544
    %v1593 = vmax.f32 %v1541, %v1545
    %v1594 = vmax.f32 %v1542, %v1546
    %v1595 = vmax.f32 %v1543, %v1547
    %v1596 = vmax.f32 %v1548, %v1552
    %v1597 = vmax.f32 %v1549, %v1553
    %v1598 = vmax.f32 %v1550, %v1554
    %v1599 = vmax.f32 %v1551, %v1555
    %v1600 = vmax.f32 %v1556, %v1560
    %v1601 = vmax.f32 %v1557, %v1561
    %v1602 = vmax.f32 %v1558, %v1562
    %v1603 = vmax.f32 %v1559, %v1563
    %v1604 = vmax.f32 %v1564, %v1568
    %v1605 = vmax.f32 %v1565, %v1569
    %v1606 = vmax.f32 %v1566, %v1570
    %v1607 = vmax.f32 %v1567, %v1571
    %v1608 = vmax.f32 %v1572, %v1576
    %v1609 = vmax.f32 %v1573, %v1577
    %v1610 = vmax.f32 %v1574, %v1578
    %v1611 = vmax.f32 %v1575, %v1579
    %v1612 = vmax.f32 %v1580, 0.0
    %v1613 = vmax.f32 %v1581, 0.0
    %v1614 = vmax.f32 %v1582, 0.0
    %v1615 = vmax.f32 %v1583, 0.0
    %v1616 = vmax.f32 %v1584, 0.0
    %v1617 = vmax.f32 %v1585, 0.0
    %v1618 = vmax.f32 %v1586, 0.0
    %v1619 = vmax.f32 %v1587, 0.0
    %v1620 = vmax.f32 %v1588, 0.0
    %v1621 = vmax.f32 %v1589, 0.0
    %v1622 = vmax.f32 %v1590, 0.0
    %v1623 = vmax.f32 %v1591, 0.0
    %v1624 = vmax.f32 %v1592, 0.0
    %v1625 = vmax.f32 %v1593, 0.0
    %v1626 = vmax.f32 %v1594, 0.0
    %v1627 = vmax.f32 %v1595, 0.0
    %v1628 = vmax.f32 %v1596, 0.0
    %v1629 = vmax.f32 %v1597, 0.0
    %v1630 = vmax.f32 %v1598, 0.0
    %v1631 = vmax.f32 %v1599, 0.0
    %v1632 = vmax.f32 %v1600, 0.0
    %v1633 = vmax.f32 %v1601, 0.0
    %v1634 = vmax.f32 %v1602, 0.0
    %v1635 = vmax.f32 %v1603, 0.0
    %v1636 = vmax.f32 %v1604, 0.0
    %v1637 = vmax.f32 %v1605, 0.0
    %v1638 = vmax.f32 %v1606, 0.0
    %v1639 = vmax.f32 %v1607, 0.0
    %v1640 = vmax.f32 %v1608, 0.0
    %v1641 = vmax.f32 %v1609, 0.0
    %v1642 = vmax.f32 %v1610, 0.0
    %v1643 = vmax.f32 %v1611, 0.0
    %1644 = vst [vmem:[#allocation2 + $0x100] sm:$0xff] %v1612
    %1645 = vst [vmem:[#allocation2 + $0x108] sm:$0xff] %v1613
    %1646 = vst [vmem:[#allocation2 + $0x110] sm:$0xff] %v1614
    %1647 = vst [vmem:[#allocation2 + $0x118] sm:$0xff] %v1615
    %1648 = vst [vmem:[#allocation2 + $0x120] sm:$0xff] %v1616
    %1649 = vst [vmem:[#allocation2 + $0x128] sm:$0xff] %v1617
    %1650 = vst [vmem:[#allocation2 + $0x130] sm:$0xff] %v1618
    %1651 = vst [vmem:[#allocation2 + $0x138] sm:$0xff] %v1619
    %1652 = vst [vmem:[#allocation2 + $0x140] sm:$0xff] %v1620
    %1653 = vst [vmem:[#allocation2 + $0x148] sm:$0xff] %v1621
    %1654 = vst [vmem:[#allocation2 + $0x150] sm:$0xff] %v1622
    %1655 = vst [vmem:[#allocation2 + $0x158] sm:$0xff] %v1623
    %1656 = vst [vmem:[#allocation2 + $0x160] sm:$0xff] %v1624
    %1657 = vst [vmem:[#allocation2 + $0x168] sm:$0xff] %v1625
    %1658 = vst [vmem:[#allocation2 + $0x170] sm:$0xff] %v1626
    %1659 = vst [vmem:[#allocation2 + $0x178] sm:$0xff] %v1627
    %1660 = vst [vmem:[#allocation2 + $0x180] sm:$0xff] %v1628
    %1661 = vst [vmem:[#allocation2 + $0x188] sm:$0xff] %v1629
    %1662 = vst [vmem:[#allocation2 + $0x190] sm:$0xff] %v1630
    %1663 = vst [vmem:[#allocation2 + $0x198] sm:$0xff] %v1631
    %1664 = vst [vmem:[#allocation2 + $0x1a0] sm:$0xff] %v1632
    %1665 = vst [vmem:[#allocation2 + $0x1a8] sm:$0xff] %v1633
    %1666 = vst [vmem:[#allocation2 + $0x1b0] sm:$0xff] %v1634
    %1667 = vst [vmem:[#allocation2 + $0x1b8] sm:$0xff] %v1635
    %1668 = vst [vmem:[#allocation2 + $0x1c0] sm:$0xff] %v1636
    %1669 = vst [vmem:[#allocation2 + $0x1c8] sm:$0xff] %v1637
    %1670 = vst [vmem:[#allocation2 + $0x1d0] sm:$0xff] %v1638
    %1671 = vst [vmem:[#allocation2 + $0x1d8] sm:$0xff] %v1639
    %1672 = vst [vmem:[#allocation2 + $0x1e0] sm:$0xff] %v1640
    %1673 = vst [vmem:[#allocation2 + $0x1e8] sm:$0xff] %v1641
    %1674 = vst [vmem:[#allocation2 + $0x1f0] sm:$0xff] %v1642
    %1675 = vst [vmem:[#allocation2 + $0x1f8] sm:$0xff] %v1643
    %v1676 = vld [vmem:[#allocation2] sm:$0xff]
    %v1677 = vld [vmem:[#allocation2 + $0x8] sm:$0xff]
    %v1678 = vld [vmem:[#allocation2 + $0x10] sm:$0xff]
    %v1679 = vld [vmem:[#allocation2 + $0x18] sm:$0xff]
    %v1680 = vld [vmem:[#allocation2 + $0x20] sm:$0xff]
    %v1681 = vld [vmem:[#allocation2 + $0x28] sm:$0xff]
    %v1682 = vld [vmem:[#allocation2 + $0x30] sm:$0xff]
    %v1683 = vld [vmem:[#allocation2 + $0x38] sm:$0xff]
    %v1684 = vld [vmem:[#allocation2 + $0x40] sm:$0xff]
    %v1685 = vld [vmem:[#allocation2 + $0x48] sm:$0xff]
    %v1686 = vld [vmem:[#allocation2 + $0x50] sm:$0xff]
    %v1687 = vld [vmem:[#allocation2 + $0x58] sm:$0xff]
    %v1688 = vld [vmem:[#allocation2 + $0x60] sm:$0xff]
    %v1689 = vld [vmem:[#allocation2 + $0x68] sm:$0xff]
    %v1690 = vld [vmem:[#allocation2 + $0x70] sm:$0xff]
    %v1691 = vld [vmem:[#allocation2 + $0x78] sm:$0xff]
    %v1692 = vld [vmem:[#allocation2 + $0x80] sm:$0xff]
    %v1693 = vld [vmem:[#allocation2 + $0x88] sm:$0xff]
    %v1694 = vld [vmem:[#allocation2 + $0x90] sm:$0xff]
    %v1695 = vld [vmem:[#allocation2 + $0x98] sm:$0xff]
    %v1696 = vld [vmem:[#allocation2 + $0xa0] sm:$0xff]
    %v1697 = vld [vmem:[#allocation2 + $0xa8] sm:$0xff]
    %v1698 = vld [vmem:[#allocation2 + $0xb0] sm:$0xff]
    %v1699 = vld [vmem:[#allocation2 + $0xb8] sm:$0xff]
    %v1700 = vld [vmem:[#allocation2 + $0xc0] sm:$0xff]
    %v1701 = vld [vmem:[#allocation2 + $0xc8] sm:$0xff]
    %v1702 = vld [vmem:[#allocation2 + $0xd0] sm:$0xff]
    %v1703 = vld [vmem:[#allocation2 + $0xd8] sm:$0xff]
    %v1704 = vld [vmem:[#allocation2 + $0x100] sm:$0xff]
    %v1705 = vld [vmem:[#allocation2 + $0x108] sm:$0xff]
    %v1706 = vld [vmem:[#allocation2 + $0x110] sm:$0xff]
    %v1707 = vld [vmem:[#allocation2 + $0x118] sm:$0xff]
    %v1708 = vld [vmem:[#allocation2 + $0x120] sm:$0xff]
    %v1709 = vld [vmem:[#allocation2 + $0x128] sm:$0xff]
    %v1710 = vld [vmem:[#allocation2 + $0x130] sm:$0xff]
    %v1711 = vld [vmem:[#allocation2 + $0x138] sm:$0xff]
    %v1712 = vld [vmem:[#allocation2 + $0x140] sm:$0xff]
    %v1713 = vld [vmem:[#allocation2 + $0x148] sm:$0xff]
    %v1714 = vld [vmem:[#allocation2 + $0x150] sm:$0xff]
    %v1715 = vld [vmem:[#allocation2 + $0x158] sm:$0xff]
    %v1716 = vld [vmem:[#allocation2 + $0x160] sm:$0xff]
    %v1717 = vld [vmem:[#allocation2 + $0x168] sm:$0xff]
    %v1718 = vld [vmem:[#allocation2 + $0x170] sm:$0xff]
    %v1719 = vld [vmem:[#allocation2 + $0x178] sm:$0xff]
    %v1720 = vld [vmem:[#allocation2 + $0x180] sm:$0xff]
    %v1721 = vld [vmem:[#allocation2 + $0x188] sm:$0xff]
    %v1722 = vld [vmem:[#allocation2 + $0x190] sm:$0xff]
    %v1723 = vld [vmem:[#allocation2 + $0x198] sm:$0xff]
    %v1724 = vld [vmem:[#allocation2 + $0x1a0] sm:$0xff]
    %v1725 = vld [vmem:[#allocation2 + $0x1a8] sm:$0xff]
    %v1726 = vld [vmem:[#allocation2 + $0x1b0] sm:$0xff]
    %v1727 = vld [vmem:[#allocation2 + $0x1b8] sm:$0xff]
    %v1728 = vld [vmem:[#allocation2 + $0x1c0] sm:$0xff]
    %v1729 = vld [vmem:[#allocation2 + $0x1c8] sm:$0xff]
    %v1730 = vld [vmem:[#allocation2 + $0x1d0] sm:$0xff]
    %v1731 = vld [vmem:[#allocation2 + $0x1d8] sm:$0xff]
    %v1732 = vld [vmem:[#allocation2 + $0xe0] sm:$0xff]
    %v1733 = vld [vmem:[#allocation2 + $0xe8] sm:$0xff]
    %v1734 = vld [vmem:[#allocation2 + $0xf0] sm:$0xff]
    %v1735 = vld [vmem:[#allocation2 + $0xf8] sm:$0xff]
    %v1736 = vld [vmem:[#allocation2 + $0x120] sm:$0xff]
    %v1737 = vld [vmem:[#allocation2 + $0x128] sm:$0xff]
    %v1738 = vld [vmem:[#allocation2 + $0x130] sm:$0xff]
    %v1739 = vld [vmem:[#allocation2 + $0x138] sm:$0xff]
    %v1740 = vld [vmem:[#allocation2 + $0x140] sm:$0xff]
    %v1741 = vld [vmem:[#allocation2 + $0x148] sm:$0xff]
    %v1742 = vld [vmem:[#allocation2 + $0x150] sm:$0xff]
    %v1743 = vld [vmem:[#allocation2 + $0x158] sm:$0xff]
    %v1744 = vld [vmem:[#allocation2 + $0x160] sm:$0xff]
    %v1745 = vld [vmem:[#allocation2 + $0x168] sm:$0xff]
    %v1746 = vld [vmem:[#allocation2 + $0x170] sm:$0xff]
    %v1747 = vld [vmem:[#allocation2 + $0x178] sm:$0xff]
    %v1748 = vld [vmem:[#allocation2 + $0x180] sm:$0xff]
    %v1749 = vld [vmem:[#allocation2 + $0x188] sm:$0xff]
    %v1750 = vld [vmem:[#allocation2 + $0x190] sm:$0xff]
    %v1751 = vld [vmem:[#allocation2 + $0x198] sm:$0xff]
    %v1752 = vld [vmem:[#allocation2 + $0x1a0] sm:$0xff]
    %v1753 = vld [vmem:[#allocation2 + $0x1a8] sm:$0xff]
    %v1754 = vld [vmem:[#allocation2 + $0x1b0] sm:$0xff]
    %v1755 = vld [vmem:[#allocation2 + $0x1b8] sm:$0xff]
    %v1756 = vld [vmem:[#allocation2 + $0x1c0] sm:$0xff]
    %v1757 = vld [vmem:[#allocation2 + $0x1c8] sm:$0xff]
    %v1758 = vld [vmem:[#allocation2 + $0x1d0] sm:$0xff]
    %v1759 = vld [vmem:[#allocation2 + $0x1d8] sm:$0xff]
    %v1760 = vld [vmem:[#allocation2 + $0x1e0] sm:$0xff]
    %v1761 = vld [vmem:[#allocation2 + $0x1e8] sm:$0xff]
    %v1762 = vld [vmem:[#allocation2 + $0x1f0] sm:$0xff]
    %v1763 = vld [vmem:[#allocation2 + $0x1f8] sm:$0xff]
    %v1764 = vpack.c.bf16 %v1680, %v1676
    %v1765 = vpack.c.bf16 %v1681, %v1677
    %v1766 = vpack.c.bf16 %v1682, %v1678
    %v1767 = vpack.c.bf16 %v1683, %v1679
    %v1768 = vpack.c.bf16 %v1708, %v1704
    %v1769 = vpack.c.bf16 %v1709, %v1705
    %v1770 = vpack.c.bf16 %v1710, %v1706
    %v1771 = vpack.c.bf16 %v1711, %v1707
    %v1772 = vpack.c.bf16 %v1684, %v1680
    %v1773 = vpack.c.bf16 %v1685, %v1681
    %v1774 = vpack.c.bf16 %v1686, %v1682
    %v1775 = vpack.c.bf16 %v1687, %v1683
    %v1776 = vpack.c.bf16 %v1688, %v1684
    %v1777 = vpack.c.bf16 %v1689, %v1685
    %v1778 = vpack.c.bf16 %v1690, %v1686
    %v1779 = vpack.c.bf16 %v1691, %v1687
    %v1780 = vpack.c.bf16 %v1716, %v1712
    %v1781 = vpack.c.bf16 %v1717, %v1713
    %v1782 = vpack.c.bf16 %v1718, %v1714
    %v1783 = vpack.c.bf16 %v1719, %v1715
    %v1784 = vpack.c.bf16 %v1692, %v1688
    %v1785 = vpack.c.bf16 %v1693, %v1689
    %v1786 = vpack.c.bf16 %v1694, %v1690
    %v1787 = vpack.c.bf16 %v1695, %v1691
    %v1788 = vpack.c.bf16 %v1696, %v1692
    %v1789 = vpack.c.bf16 %v1697, %v1693
    %v1790 = vpack.c.bf16 %v1698, %v1694
    %v1791 = vpack.c.bf16 %v1699, %v1695
    %v1792 = vpack.c.bf16 %v1724, %v1720
    %v1793 = vpack.c.bf16 %v1725, %v1721
    %v1794 = vpack.c.bf16 %v1726, %v1722
    %v1795 = vpack.c.bf16 %v1727, %v1723
    %v1796 = vpack.c.bf16 %v1700, %v1696
    %v1797 = vpack.c.bf16 %v1701, %v1697
    %v1798 = vpack.c.bf16 %v1702, %v1698
    %v1799 = vpack.c.bf16 %v1703, %v1699
    %v1800 = vpack.c.bf16 %v1704, %v1700
    %v1801 = vpack.c.bf16 %v1705, %v1701
    %v1802 = vpack.c.bf16 %v1706, %v1702
    %v1803 = vpack.c.bf16 %v1707, %v1703
    %v1804 = vpack.c.bf16 %v1680, %v1728
    %v1805 = vpack.c.bf16 %v1681, %v1729
    %v1806 = vpack.c.bf16 %v1682, %v1730
    %v1807 = vpack.c.bf16 %v1683, %v1731
    %v1808 = vpack.c.bf16 %v1736, %v1732
    %v1809 = vpack.c.bf16 %v1737, %v1733
    %v1810 = vpack.c.bf16 %v1738, %v1734
    %v1811 = vpack.c.bf16 %v1739, %v1735
    %v1812 = vpack.c.bf16 %v1712, %v1708
    %v1813 = vpack.c.bf16 %v1713, %v1709
    %v1814 = vpack.c.bf16 %v1714, %v1710
    %v1815 = vpack.c.bf16 %v1715, %v1711
    %v1816 = vpack.c.bf16 %v1744, %v1740
    %v1817 = vpack.c.bf16 %v1745, %v1741
    %v1818 = vpack.c.bf16 %v1746, %v1742
    %v1819 = vpack.c.bf16 %v1747, %v1743
    %v1820 = vpack.c.bf16 %v1720, %v1716
    %v1821 = vpack.c.bf16 %v1721, %v1717
    %v1822 = vpack.c.bf16 %v1722, %v1718
    %v1823 = vpack.c.bf16 %v1723, %v1719
    %v1824 = vpack.c.bf16 %v1752, %v1748
    %v1825 = vpack.c.bf16 %v1753, %v1749
    %v1826 = vpack.c.bf16 %v1754, %v1750
    %v1827 = vpack.c.bf16 %v1755, %v1751
    %v1828 = vpack.c.bf16 %v1728, %v1724
    %v1829 = vpack.c.bf16 %v1729, %v1725
    %v1830 = vpack.c.bf16 %v1730, %v1726
    %v1831 = vpack.c.bf16 %v1731, %v1727
    %v1832 = vpack.c.bf16 %v1732, %v1700
    %v1833 = vpack.c.bf16 %v1733, %v1701
    %v1834 = vpack.c.bf16 %v1734, %v1702
    %v1835 = vpack.c.bf16 %v1735, %v1703
    %v1836 = vpack.c.bf16 %v1760, %v1756
    %v1837 = vpack.c.bf16 %v1761, %v1757
    %v1838 = vpack.c.bf16 %v1762, %v1758
    %v1839 = vpack.c.bf16 %v1763, %v1759
    %v1840 = vld [vmem:[#allocation6] sm:$0xff]
    %v1841 = vld [vmem:[#allocation6 + $0x8] sm:$0xff]
    %v1842 = vld [vmem:[#allocation6 + $0x10] sm:$0xff]
    %v1843 = vld [vmem:[#allocation6 + $0x18] sm:$0xff]
    %v1844 = vld [vmem:[#allocation6 + $0x20] sm:$0xff]
    %v1845 = vld [vmem:[#allocation6 + $0x28] sm:$0xff]
    %v1846 = vld [vmem:[#allocation6 + $0x30] sm:$0xff]
    %v1847 = vld [vmem:[#allocation6 + $0x38] sm:$0xff]
    %v1848 = vld [vmem:[#allocation6 + $0x40] sm:$0xff]
    %v1849 = vld [vmem:[#allocation6 + $0x48] sm:$0xff]
    %v1850 = vld [vmem:[#allocation6 + $0x50] sm:$0xff]
    %v1851 = vld [vmem:[#allocation6 + $0x58] sm:$0xff]
    %v1852 = vld [vmem:[#allocation6 + $0x60] sm:$0xff]
    %v1853 = vld [vmem:[#allocation6 + $0x68] sm:$0xff]
    %v1854 = vld [vmem:[#allocation6 + $0x70] sm:$0xff]
    %v1855 = vld [vmem:[#allocation6 + $0x78] sm:$0xff]
    %v1856 = vld [vmem:[#allocation6 + $0x80] sm:$0xff]
    %v1857 = vld [vmem:[#allocation6 + $0x88] sm:$0xff]
    %v1858 = vld [vmem:[#allocation6 + $0x90] sm:$0xff]
    %v1859 = vld [vmem:[#allocation6 + $0x98] sm:$0xff]
    %v1860 = vld [vmem:[#allocation6 + $0xa0] sm:$0xff]
    %v1861 = vld [vmem:[#allocation6 + $0xa8] sm:$0xff]
    %v1862 = vld [vmem:[#allocation6 + $0xb0] sm:$0xff]
    %v1863 = vld [vmem:[#allocation6 + $0xb8] sm:$0xff]
    %v1864 = vld [vmem:[#allocation6 + $0xc0] sm:$0xff]
    %v1865 = vld [vmem:[#allocation6 + $0xc8] sm:$0xff]
    %v1866 = vld [vmem:[#allocation6 + $0xd0] sm:$0xff]
    %v1867 = vld [vmem:[#allocation6 + $0xd8] sm:$0xff]
    %v1868 = vld [vmem:[#allocation6 + $0xe0] sm:$0xff]
    %v1869 = vld [vmem:[#allocation6 + $0xe8] sm:$0xff]
    %v1870 = vld [vmem:[#allocation6 + $0xf0] sm:$0xff]
    %v1871 = vld [vmem:[#allocation6 + $0xf8] sm:$0xff]
    %v1872 = vld [vmem:[#allocation6 + $0x100] sm:$0xff]
    %v1873 = vld [vmem:[#allocation6 + $0x108] sm:$0xff]
    %v1874 = vld [vmem:[#allocation6 + $0x110] sm:$0xff]
    %v1875 = vld [vmem:[#allocation6 + $0x118] sm:$0xff]
    %v1876 = vld [vmem:[#allocation6 + $0x120] sm:$0xff]
    %v1877 = vld [vmem:[#allocation6 + $0x128] sm:$0xff]
    %v1878 = vld [vmem:[#allocation6 + $0x130] sm:$0xff]
    %v1879 = vld [vmem:[#allocation6 + $0x138] sm:$0xff]
    %v1880 = vld [vmem:[#allocation6 + $0x140] sm:$0xff]
    %v1881 = vld [vmem:[#allocation6 + $0x148] sm:$0xff]
    %v1882 = vld [vmem:[#allocation6 + $0x150] sm:$0xff]
    %v1883 = vld [vmem:[#allocation6 + $0x158] sm:$0xff]
    %v1884 = vld [vmem:[#allocation6 + $0x160] sm:$0xff]
    %v1885 = vld [vmem:[#allocation6 + $0x168] sm:$0xff]
    %v1886 = vld [vmem:[#allocation6 + $0x170] sm:$0xff]
    %v1887 = vld [vmem:[#allocation6 + $0x178] sm:$0xff]
    %v1888 = vld [vmem:[#allocation6 + $0x180] sm:$0xff]
    %v1889 = vld [vmem:[#allocation6 + $0x188] sm:$0xff]
    %v1890 = vld [vmem:[#allocation6 + $0x190] sm:$0xff]
    %v1891 = vld [vmem:[#allocation6 + $0x198] sm:$0xff]
    %v1892 = vld [vmem:[#allocation6 + $0x1a0] sm:$0xff]
    %v1893 = vld [vmem:[#allocation6 + $0x1a8] sm:$0xff]
    %v1894 = vld [vmem:[#allocation6 + $0x1b0] sm:$0xff]
    %v1895 = vld [vmem:[#allocation6 + $0x1b8] sm:$0xff]
    %v1896 = vld [vmem:[#allocation6 + $0x1c0] sm:$0xff]
    %v1897 = vld [vmem:[#allocation6 + $0x1c8] sm:$0xff]
    %v1898 = vld [vmem:[#allocation6 + $0x1d0] sm:$0xff]
    %v1899 = vld [vmem:[#allocation6 + $0x1d8] sm:$0xff]
    %v1900 = vld [vmem:[#allocation6 + $0x1e0] sm:$0xff]
    %v1901 = vld [vmem:[#allocation6 + $0x1e8] sm:$0xff]
    %v1902 = vld [vmem:[#allocation6 + $0x1f0] sm:$0xff]
    %v1903 = vld [vmem:[#allocation6 + $0x1f8] sm:$0xff]
    %v1904 = vld [vmem:[#allocation6 + $0x200] sm:$0xff]
    %v1905 = vld [vmem:[#allocation6 + $0x208] sm:$0xff]
    %v1906 = vld [vmem:[#allocation6 + $0x210] sm:$0xff]
    %v1907 = vld [vmem:[#allocation6 + $0x218] sm:$0xff]
    %v1908 = vld [vmem:[#allocation6 + $0x220] sm:$0xff]
    %v1909 = vld [vmem:[#allocation6 + $0x228] sm:$0xff]
    %v1910 = vld [vmem:[#allocation6 + $0x230] sm:$0xff]
    %v1911 = vld [vmem:[#allocation6 + $0x238] sm:$0xff]
    %v1912 = vld [vmem:[#allocation6 + $0x240] sm:$0xff]
    %v1913 = vld [vmem:[#allocation6 + $0x248] sm:$0xff]
    %v1914 = vld [vmem:[#allocation6 + $0x250] sm:$0xff]
    %v1915 = vld [vmem:[#allocation6 + $0x258] sm:$0xff]
    %v1916 = vld [vmem:[#allocation6 + $0x260] sm:$0xff]
    %v1917 = vld [vmem:[#allocation6 + $0x268] sm:$0xff]
    %v1918 = vld [vmem:[#allocation6 + $0x270] sm:$0xff]
    %v1919 = vld [vmem:[#allocation6 + $0x278] sm:$0xff]
    %v1920 = vld [vmem:[#allocation6 + $0x280] sm:$0xff]
    %v1921 = vld [vmem:[#allocation6 + $0x288] sm:$0xff]
    %v1922 = vld [vmem:[#allocation6 + $0x290] sm:$0xff]
    %v1923 = vld [vmem:[#allocation6 + $0x298] sm:$0xff]
    %v1924 = vld [vmem:[#allocation6 + $0x2a0] sm:$0xff]
    %v1925 = vld [vmem:[#allocation6 + $0x2a8] sm:$0xff]
    %v1926 = vld [vmem:[#allocation6 + $0x2b0] sm:$0xff]
    %v1927 = vld [vmem:[#allocation6 + $0x2b8] sm:$0xff]
    %v1928 = vld [vmem:[#allocation6 + $0x2c0] sm:$0xff]
    %v1929 = vld [vmem:[#allocation6 + $0x2c8] sm:$0xff]
    %v1930 = vld [vmem:[#allocation6 + $0x2d0] sm:$0xff]
    %v1931 = vld [vmem:[#allocation6 + $0x2d8] sm:$0xff]
    %v1932 = vld [vmem:[#allocation6 + $0x2e0] sm:$0xff]
    %v1933 = vld [vmem:[#allocation6 + $0x2e8] sm:$0xff]
    %v1934 = vld [vmem:[#allocation6 + $0x2f0] sm:$0xff]
    %v1935 = vld [vmem:[#allocation6 + $0x2f8] sm:$0xff]
    %v1936 = vld [vmem:[#allocation6 + $0x300] sm:$0xff]
    %v1937 = vld [vmem:[#allocation6 + $0x308] sm:$0xff]
    %v1938 = vld [vmem:[#allocation6 + $0x310] sm:$0xff]
    %v1939 = vld [vmem:[#allocation6 + $0x318] sm:$0xff]
    %v1940 = vld [vmem:[#allocation6 + $0x320] sm:$0xff]
    %v1941 = vld [vmem:[#allocation6 + $0x328] sm:$0xff]
    %v1942 = vld [vmem:[#allocation6 + $0x330] sm:$0xff]
    %v1943 = vld [vmem:[#allocation6 + $0x338] sm:$0xff]
    %v1944 = vld [vmem:[#allocation6 + $0x340] sm:$0xff]
    %v1945 = vld [vmem:[#allocation6 + $0x348] sm:$0xff]
    %v1946 = vld [vmem:[#allocation6 + $0x350] sm:$0xff]
    %v1947 = vld [vmem:[#allocation6 + $0x358] sm:$0xff]
    %v1948 = vld [vmem:[#allocation6 + $0x360] sm:$0xff]
    %v1949 = vld [vmem:[#allocation6 + $0x368] sm:$0xff]
    %v1950 = vld [vmem:[#allocation6 + $0x370] sm:$0xff]
    %v1951 = vld [vmem:[#allocation6 + $0x378] sm:$0xff]
    %v1952 = vld [vmem:[#allocation6 + $0x380] sm:$0xff]
    %v1953 = vld [vmem:[#allocation6 + $0x388] sm:$0xff]
    %v1954 = vld [vmem:[#allocation6 + $0x390] sm:$0xff]
    %v1955 = vld [vmem:[#allocation6 + $0x398] sm:$0xff]
    %v1956 = vld [vmem:[#allocation6 + $0x3a0] sm:$0xff]
    %v1957 = vld [vmem:[#allocation6 + $0x3a8] sm:$0xff]
    %v1958 = vld [vmem:[#allocation6 + $0x3b0] sm:$0xff]
    %v1959 = vld [vmem:[#allocation6 + $0x3b8] sm:$0xff]
    %v1960 = vld [vmem:[#allocation6 + $0x3c0] sm:$0xff]
    %v1961 = vld [vmem:[#allocation6 + $0x3c8] sm:$0xff]
    %v1962 = vld [vmem:[#allocation6 + $0x3d0] sm:$0xff]
    %v1963 = vld [vmem:[#allocation6 + $0x3d8] sm:$0xff]
    %v1964 = vld [vmem:[#allocation6 + $0x3e0] sm:$0xff]
    %v1965 = vld [vmem:[#allocation6 + $0x3e8] sm:$0xff]
    %v1966 = vld [vmem:[#allocation6 + $0x3f0] sm:$0xff]
    %v1967 = vld [vmem:[#allocation6 + $0x3f8] sm:$0xff]
    %v1968 = vld [vmem:[#allocation6 + $0x400] sm:$0xff]
    %v1969 = vld [vmem:[#allocation6 + $0x408] sm:$0xff]
    %v1970 = vld [vmem:[#allocation6 + $0x410] sm:$0xff]
    %v1971 = vld [vmem:[#allocation6 + $0x418] sm:$0xff]
    %v1972 = vld [vmem:[#allocation6 + $0x420] sm:$0xff]
    %v1973 = vld [vmem:[#allocation6 + $0x428] sm:$0xff]
    %v1974 = vld [vmem:[#allocation6 + $0x430] sm:$0xff]
    %v1975 = vld [vmem:[#allocation6 + $0x438] sm:$0xff]
    %v1976 = vld [vmem:[#allocation6 + $0x440] sm:$0xff]
    %v1977 = vld [vmem:[#allocation6 + $0x448] sm:$0xff]
    %v1978 = vld [vmem:[#allocation6 + $0x450] sm:$0xff]
    %v1979 = vld [vmem:[#allocation6 + $0x458] sm:$0xff]
    %v1980 = vld [vmem:[#allocation6 + $0x460] sm:$0xff]
    %v1981 = vld [vmem:[#allocation6 + $0x468] sm:$0xff]
    %v1982 = vld [vmem:[#allocation6 + $0x470] sm:$0xff]
    %v1983 = vld [vmem:[#allocation6 + $0x478] sm:$0xff]
    %v1984 = vld [vmem:[#allocation6 + $0x480] sm:$0xff]
    %v1985 = vld [vmem:[#allocation6 + $0x488] sm:$0xff]
    %v1986 = vld [vmem:[#allocation6 + $0x490] sm:$0xff]
    %v1987 = vld [vmem:[#allocation6 + $0x498] sm:$0xff]
    %v1988 = vld [vmem:[#allocation6 + $0x4a0] sm:$0xff]
    %v1989 = vld [vmem:[#allocation6 + $0x4a8] sm:$0xff]
    %v1990 = vld [vmem:[#allocation6 + $0x4b0] sm:$0xff]
    %v1991 = vld [vmem:[#allocation6 + $0x4b8] sm:$0xff]
    %v1992 = vld [vmem:[#allocation6 + $0x4c0] sm:$0xff]
    %v1993 = vld [vmem:[#allocation6 + $0x4c8] sm:$0xff]
    %v1994 = vld [vmem:[#allocation6 + $0x4d0] sm:$0xff]
    %v1995 = vld [vmem:[#allocation6 + $0x4d8] sm:$0xff]
    %v1996 = vld [vmem:[#allocation6 + $0x4e0] sm:$0xff]
    %v1997 = vld [vmem:[#allocation6 + $0x4e8] sm:$0xff]
    %v1998 = vld [vmem:[#allocation6 + $0x4f0] sm:$0xff]
    %v1999 = vld [vmem:[#allocation6 + $0x4f8] sm:$0xff]
    %v2000 = vld [vmem:[#allocation6 + $0x500] sm:$0xff]
    %v2001 = vld [vmem:[#allocation6 + $0x508] sm:$0xff]
    %v2002 = vld [vmem:[#allocation6 + $0x510] sm:$0xff]
    %v2003 = vld [vmem:[#allocation6 + $0x518] sm:$0xff]
    %v2004 = vld [vmem:[#allocation6 + $0x520] sm:$0xff]
    %v2005 = vld [vmem:[#allocation6 + $0x528] sm:$0xff]
    %v2006 = vld [vmem:[#allocation6 + $0x530] sm:$0xff]
    %v2007 = vld [vmem:[#allocation6 + $0x538] sm:$0xff]
    %v2008 = vld [vmem:[#allocation6 + $0x540] sm:$0xff]
    %v2009 = vld [vmem:[#allocation6 + $0x548] sm:$0xff]
    %v2010 = vld [vmem:[#allocation6 + $0x550] sm:$0xff]
    %v2011 = vld [vmem:[#allocation6 + $0x558] sm:$0xff]
    %v2012 = vld [vmem:[#allocation6 + $0x560] sm:$0xff]
    %v2013 = vld [vmem:[#allocation6 + $0x568] sm:$0xff]
    %v2014 = vld [vmem:[#allocation6 + $0x570] sm:$0xff]
    %v2015 = vld [vmem:[#allocation6 + $0x578] sm:$0xff]
    %v2016 = vld [vmem:[#allocation6 + $0x580] sm:$0xff]
    %v2017 = vld [vmem:[#allocation6 + $0x588] sm:$0xff]
    %v2018 = vld [vmem:[#allocation6 + $0x590] sm:$0xff]
    %v2019 = vld [vmem:[#allocation6 + $0x598] sm:$0xff]
    %v2020 = vld [vmem:[#allocation6 + $0x5a0] sm:$0xff]
    %v2021 = vld [vmem:[#allocation6 + $0x5a8] sm:$0xff]
    %v2022 = vld [vmem:[#allocation6 + $0x5b0] sm:$0xff]
    %v2023 = vld [vmem:[#allocation6 + $0x5b8] sm:$0xff]
    %v2024 = vld [vmem:[#allocation6 + $0x5c0] sm:$0xff]
    %v2025 = vld [vmem:[#allocation6 + $0x5c8] sm:$0xff]
    %v2026 = vld [vmem:[#allocation6 + $0x5d0] sm:$0xff]
    %v2027 = vld [vmem:[#allocation6 + $0x5d8] sm:$0xff]
    %v2028 = vld [vmem:[#allocation6 + $0x5e0] sm:$0xff]
    %v2029 = vld [vmem:[#allocation6 + $0x5e8] sm:$0xff]
    %v2030 = vld [vmem:[#allocation6 + $0x5f0] sm:$0xff]
    %v2031 = vld [vmem:[#allocation6 + $0x5f8] sm:$0xff]
    %v2032 = vld [vmem:[#allocation6 + $0x600] sm:$0xff]
    %v2033 = vld [vmem:[#allocation6 + $0x608] sm:$0xff]
    %v2034 = vld [vmem:[#allocation6 + $0x610] sm:$0xff]
    %v2035 = vld [vmem:[#allocation6 + $0x618] sm:$0xff]
    %v2036 = vld [vmem:[#allocation6 + $0x620] sm:$0xff]
    %v2037 = vld [vmem:[#allocation6 + $0x628] sm:$0xff]
    %v2038 = vld [vmem:[#allocation6 + $0x630] sm:$0xff]
    %v2039 = vld [vmem:[#allocation6 + $0x638] sm:$0xff]
    %v2040 = vld [vmem:[#allocation6 + $0x640] sm:$0xff]
    %v2041 = vld [vmem:[#allocation6 + $0x648] sm:$0xff]
    %v2042 = vld [vmem:[#allocation6 + $0x650] sm:$0xff]
    %v2043 = vld [vmem:[#allocation6 + $0x658] sm:$0xff]
    %v2044 = vld [vmem:[#allocation6 + $0x660] sm:$0xff]
    %v2045 = vld [vmem:[#allocation6 + $0x668] sm:$0xff]
    %v2046 = vld [vmem:[#allocation6 + $0x670] sm:$0xff]
    %v2047 = vld [vmem:[#allocation6 + $0x678] sm:$0xff]
    %v2048 = vld [vmem:[#allocation6 + $0x680] sm:$0xff]
    %v2049 = vld [vmem:[#allocation6 + $0x688] sm:$0xff]
    %v2050 = vld [vmem:[#allocation6 + $0x690] sm:$0xff]
    %v2051 = vld [vmem:[#allocation6 + $0x698] sm:$0xff]
    %v2052 = vld [vmem:[#allocation6 + $0x6a0] sm:$0xff]
    %v2053 = vld [vmem:[#allocation6 + $0x6a8] sm:$0xff]
    %v2054 = vld [vmem:[#allocation6 + $0x6b0] sm:$0xff]
    %v2055 = vld [vmem:[#allocation6 + $0x6b8] sm:$0xff]
    %v2056 = vld [vmem:[#allocation6 + $0x6c0] sm:$0xff]
    %v2057 = vld [vmem:[#allocation6 + $0x6c8] sm:$0xff]
    %v2058 = vld [vmem:[#allocation6 + $0x6d0] sm:$0xff]
    %v2059 = vld [vmem:[#allocation6 + $0x6d8] sm:$0xff]
    %v2060 = vld [vmem:[#allocation6 + $0x6e0] sm:$0xff]
    %v2061 = vld [vmem:[#allocation6 + $0x6e8] sm:$0xff]
    %v2062 = vld [vmem:[#allocation6 + $0x6f0] sm:$0xff]
    %v2063 = vld [vmem:[#allocation6 + $0x6f8] sm:$0xff]
    %v2064 = vld [vmem:[#allocation6 + $0x700] sm:$0xff]
    %v2065 = vld [vmem:[#allocation6 + $0x708] sm:$0xff]
    %v2066 = vld [vmem:[#allocation6 + $0x710] sm:$0xff]
    %v2067 = vld [vmem:[#allocation6 + $0x718] sm:$0xff]
    %v2068 = vld [vmem:[#allocation6 + $0x720] sm:$0xff]
    %v2069 = vld [vmem:[#allocation6 + $0x728] sm:$0xff]
    %v2070 = vld [vmem:[#allocation6 + $0x730] sm:$0xff]
    %v2071 = vld [vmem:[#allocation6 + $0x738] sm:$0xff]
    %v2072 = vld [vmem:[#allocation6 + $0x740] sm:$0xff]
    %v2073 = vld [vmem:[#allocation6 + $0x748] sm:$0xff]
    %v2074 = vld [vmem:[#allocation6 + $0x750] sm:$0xff]
    %v2075 = vld [vmem:[#allocation6 + $0x758] sm:$0xff]
    %v2076 = vld [vmem:[#allocation6 + $0x760] sm:$0xff]
    %v2077 = vld [vmem:[#allocation6 + $0x768] sm:$0xff]
    %v2078 = vld [vmem:[#allocation6 + $0x770] sm:$0xff]
    %v2079 = vld [vmem:[#allocation6 + $0x778] sm:$0xff]
    %v2080 = vld [vmem:[#allocation6 + $0x780] sm:$0xff]
    %v2081 = vld [vmem:[#allocation6 + $0x788] sm:$0xff]
    %v2082 = vld [vmem:[#allocation6 + $0x790] sm:$0xff]
    %v2083 = vld [vmem:[#allocation6 + $0x798] sm:$0xff]
    %v2084 = vld [vmem:[#allocation6 + $0x7a0] sm:$0xff]
    %v2085 = vld [vmem:[#allocation6 + $0x7a8] sm:$0xff]
    %v2086 = vld [vmem:[#allocation6 + $0x7b0] sm:$0xff]
    %v2087 = vld [vmem:[#allocation6 + $0x7b8] sm:$0xff]
    %v2088 = vld [vmem:[#allocation6 + $0x7c0] sm:$0xff]
    %v2089 = vld [vmem:[#allocation6 + $0x7c8] sm:$0xff]
    %v2090 = vld [vmem:[#allocation6 + $0x7d0] sm:$0xff]
    %v2091 = vld [vmem:[#allocation6 + $0x7d8] sm:$0xff]
    %v2092 = vld [vmem:[#allocation6 + $0x7e0] sm:$0xff]
    %v2093 = vld [vmem:[#allocation6 + $0x7e8] sm:$0xff]
    %v2094 = vld [vmem:[#allocation6 + $0x7f0] sm:$0xff]
    %v2095 = vld [vmem:[#allocation6 + $0x7f8] sm:$0xff]
    %v2096 = vld [vmem:[#allocation6 + $0x800] sm:$0xff]
    %v2097 = vld [vmem:[#allocation6 + $0x808] sm:$0xff]
    %v2098 = vld [vmem:[#allocation6 + $0x810] sm:$0xff]
    %v2099 = vld [vmem:[#allocation6 + $0x818] sm:$0xff]
    %v2100 = vld [vmem:[#allocation6 + $0x820] sm:$0xff]
    %v2101 = vld [vmem:[#allocation6 + $0x828] sm:$0xff]
    %v2102 = vld [vmem:[#allocation6 + $0x830] sm:$0xff]
    %v2103 = vld [vmem:[#allocation6 + $0x838] sm:$0xff]
    %v2104 = vld [vmem:[#allocation6 + $0x840] sm:$0xff]
    %v2105 = vld [vmem:[#allocation6 + $0x848] sm:$0xff]
    %v2106 = vld [vmem:[#allocation6 + $0x850] sm:$0xff]
    %v2107 = vld [vmem:[#allocation6 + $0x858] sm:$0xff]
    %v2108 = vld [vmem:[#allocation6 + $0x860] sm:$0xff]
    %v2109 = vld [vmem:[#allocation6 + $0x868] sm:$0xff]
    %v2110 = vld [vmem:[#allocation6 + $0x870] sm:$0xff]
    %v2111 = vld [vmem:[#allocation6 + $0x878] sm:$0xff]
    %v2112 = vld [vmem:[#allocation6 + $0x880] sm:$0xff]
    %v2113 = vld [vmem:[#allocation6 + $0x888] sm:$0xff]
    %v2114 = vld [vmem:[#allocation6 + $0x890] sm:$0xff]
    %v2115 = vld [vmem:[#allocation6 + $0x898] sm:$0xff]
    %v2116 = vld [vmem:[#allocation6 + $0x8a0] sm:$0xff]
    %v2117 = vld [vmem:[#allocation6 + $0x8a8] sm:$0xff]
    %v2118 = vld [vmem:[#allocation6 + $0x8b0] sm:$0xff]
    %v2119 = vld [vmem:[#allocation6 + $0x8b8] sm:$0xff]
    %v2120 = vld [vmem:[#allocation6 + $0x8c0] sm:$0xff]
    %v2121 = vld [vmem:[#allocation6 + $0x8c8] sm:$0xff]
    %v2122 = vld [vmem:[#allocation6 + $0x8d0] sm:$0xff]
    %v2123 = vld [vmem:[#allocation6 + $0x8d8] sm:$0xff]
    %v2124 = vld [vmem:[#allocation6 + $0x8e0] sm:$0xff]
    %v2125 = vld [vmem:[#allocation6 + $0x8e8] sm:$0xff]
    %v2126 = vld [vmem:[#allocation6 + $0x8f0] sm:$0xff]
    %v2127 = vld [vmem:[#allocation6 + $0x8f8] sm:$0xff]
    %v2128 = vld [vmem:[#allocation6 + $0x900] sm:$0xff]
    %v2129 = vld [vmem:[#allocation6 + $0x908] sm:$0xff]
    %v2130 = vld [vmem:[#allocation6 + $0x910] sm:$0xff]
    %v2131 = vld [vmem:[#allocation6 + $0x918] sm:$0xff]
    %v2132 = vld [vmem:[#allocation6 + $0x920] sm:$0xff]
    %v2133 = vld [vmem:[#allocation6 + $0x928] sm:$0xff]
    %v2134 = vld [vmem:[#allocation6 + $0x930] sm:$0xff]
    %v2135 = vld [vmem:[#allocation6 + $0x938] sm:$0xff]
    %v2136 = vld [vmem:[#allocation6 + $0x940] sm:$0xff]
    %v2137 = vld [vmem:[#allocation6 + $0x948] sm:$0xff]
    %v2138 = vld [vmem:[#allocation6 + $0x950] sm:$0xff]
    %v2139 = vld [vmem:[#allocation6 + $0x958] sm:$0xff]
    %v2140 = vld [vmem:[#allocation6 + $0x960] sm:$0xff]
    %v2141 = vld [vmem:[#allocation6 + $0x968] sm:$0xff]
    %v2142 = vld [vmem:[#allocation6 + $0x970] sm:$0xff]
    %v2143 = vld [vmem:[#allocation6 + $0x978] sm:$0xff]
    %v2144 = vld [vmem:[#allocation6 + $0x980] sm:$0xff]
    %v2145 = vld [vmem:[#allocation6 + $0x988] sm:$0xff]
    %v2146 = vld [vmem:[#allocation6 + $0x990] sm:$0xff]
    %v2147 = vld [vmem:[#allocation6 + $0x998] sm:$0xff]
    %v2148 = vld [vmem:[#allocation6 + $0x9a0] sm:$0xff]
    %v2149 = vld [vmem:[#allocation6 + $0x9a8] sm:$0xff]
    %v2150 = vld [vmem:[#allocation6 + $0x9b0] sm:$0xff]
    %v2151 = vld [vmem:[#allocation6 + $0x9b8] sm:$0xff]
    %v2152 = vld [vmem:[#allocation6 + $0x9c0] sm:$0xff]
    %v2153 = vld [vmem:[#allocation6 + $0x9c8] sm:$0xff]
    %v2154 = vld [vmem:[#allocation6 + $0x9d0] sm:$0xff]
    %v2155 = vld [vmem:[#allocation6 + $0x9d8] sm:$0xff]
    %v2156 = vld [vmem:[#allocation6 + $0x9e0] sm:$0xff]
    %v2157 = vld [vmem:[#allocation6 + $0x9e8] sm:$0xff]
    %v2158 = vld [vmem:[#allocation6 + $0x9f0] sm:$0xff]
    %v2159 = vld [vmem:[#allocation6 + $0x9f8] sm:$0xff]
    %v2160 = vld [vmem:[#allocation6 + $0xa00] sm:$0xff]
    %v2161 = vld [vmem:[#allocation6 + $0xa08] sm:$0xff]
    %v2162 = vld [vmem:[#allocation6 + $0xa10] sm:$0xff]
    %v2163 = vld [vmem:[#allocation6 + $0xa18] sm:$0xff]
    %v2164 = vld [vmem:[#allocation6 + $0xa20] sm:$0xff]
    %v2165 = vld [vmem:[#allocation6 + $0xa28] sm:$0xff]
    %v2166 = vld [vmem:[#allocation6 + $0xa30] sm:$0xff]
    %v2167 = vld [vmem:[#allocation6 + $0xa38] sm:$0xff]
    %v2168 = vld [vmem:[#allocation6 + $0xa40] sm:$0xff]
    %v2169 = vld [vmem:[#allocation6 + $0xa48] sm:$0xff]
    %v2170 = vld [vmem:[#allocation6 + $0xa50] sm:$0xff]
    %v2171 = vld [vmem:[#allocation6 + $0xa58] sm:$0xff]
    %v2172 = vld [vmem:[#allocation6 + $0xa60] sm:$0xff]
    %v2173 = vld [vmem:[#allocation6 + $0xa68] sm:$0xff]
    %v2174 = vld [vmem:[#allocation6 + $0xa70] sm:$0xff]
    %v2175 = vld [vmem:[#allocation6 + $0xa78] sm:$0xff]
    %v2176 = vld [vmem:[#allocation6 + $0xa80] sm:$0xff]
    %v2177 = vld [vmem:[#allocation6 + $0xa88] sm:$0xff]
    %v2178 = vld [vmem:[#allocation6 + $0xa90] sm:$0xff]
    %v2179 = vld [vmem:[#allocation6 + $0xa98] sm:$0xff]
    %v2180 = vld [vmem:[#allocation6 + $0xaa0] sm:$0xff]
    %v2181 = vld [vmem:[#allocation6 + $0xaa8] sm:$0xff]
    %v2182 = vld [vmem:[#allocation6 + $0xab0] sm:$0xff]
    %v2183 = vld [vmem:[#allocation6 + $0xab8] sm:$0xff]
    %v2184 = vld [vmem:[#allocation6 + $0xac0] sm:$0xff]
    %v2185 = vld [vmem:[#allocation6 + $0xac8] sm:$0xff]
    %v2186 = vld [vmem:[#allocation6 + $0xad0] sm:$0xff]
    %v2187 = vld [vmem:[#allocation6 + $0xad8] sm:$0xff]
    %v2188 = vld [vmem:[#allocation6 + $0xae0] sm:$0xff]
    %v2189 = vld [vmem:[#allocation6 + $0xae8] sm:$0xff]
    %v2190 = vld [vmem:[#allocation6 + $0xaf0] sm:$0xff]
    %v2191 = vld [vmem:[#allocation6 + $0xaf8] sm:$0xff]
    %v2192 = vld [vmem:[#allocation6 + $0xb00] sm:$0xff]
    %v2193 = vld [vmem:[#allocation6 + $0xb08] sm:$0xff]
    %v2194 = vld [vmem:[#allocation6 + $0xb10] sm:$0xff]
    %v2195 = vld [vmem:[#allocation6 + $0xb18] sm:$0xff]
    %v2196 = vld [vmem:[#allocation6 + $0xb20] sm:$0xff]
    %v2197 = vld [vmem:[#allocation6 + $0xb28] sm:$0xff]
    %v2198 = vld [vmem:[#allocation6 + $0xb30] sm:$0xff]
    %v2199 = vld [vmem:[#allocation6 + $0xb38] sm:$0xff]
    %v2200 = vld [vmem:[#allocation6 + $0xb40] sm:$0xff]
    %v2201 = vld [vmem:[#allocation6 + $0xb48] sm:$0xff]
    %v2202 = vld [vmem:[#allocation6 + $0xb50] sm:$0xff]
    %v2203 = vld [vmem:[#allocation6 + $0xb58] sm:$0xff]
    %v2204 = vld [vmem:[#allocation6 + $0xb60] sm:$0xff]
    %v2205 = vld [vmem:[#allocation6 + $0xb68] sm:$0xff]
    %v2206 = vld [vmem:[#allocation6 + $0xb70] sm:$0xff]
    %v2207 = vld [vmem:[#allocation6 + $0xb78] sm:$0xff]
    %v2208 = vld [vmem:[#allocation6 + $0xb80] sm:$0xff]
    %v2209 = vld [vmem:[#allocation6 + $0xb88] sm:$0xff]
    %v2210 = vld [vmem:[#allocation6 + $0xb90] sm:$0xff]
    %v2211 = vld [vmem:[#allocation6 + $0xb98] sm:$0xff]
    %v2212 = vld [vmem:[#allocation6 + $0xba0] sm:$0xff]
    %v2213 = vld [vmem:[#allocation6 + $0xba8] sm:$0xff]
    %v2214 = vld [vmem:[#allocation6 + $0xbb0] sm:$0xff]
    %v2215 = vld [vmem:[#allocation6 + $0xbb8] sm:$0xff]
    %v2216 = vld [vmem:[#allocation6 + $0xbc0] sm:$0xff]
    %v2217 = vld [vmem:[#allocation6 + $0xbc8] sm:$0xff]
    %v2218 = vld [vmem:[#allocation6 + $0xbd0] sm:$0xff]
    %v2219 = vld [vmem:[#allocation6 + $0xbd8] sm:$0xff]
    %v2220 = vld [vmem:[#allocation6 + $0xbe0] sm:$0xff]
    %v2221 = vld [vmem:[#allocation6 + $0xbe8] sm:$0xff]
    %v2222 = vld [vmem:[#allocation6 + $0xbf0] sm:$0xff]
    %v2223 = vld [vmem:[#allocation6 + $0xbf8] sm:$0xff]
    %v2224 = vld [vmem:[#allocation6 + $0xc00] sm:$0xff]
    %v2225 = vld [vmem:[#allocation6 + $0xc08] sm:$0xff]
    %v2226 = vld [vmem:[#allocation6 + $0xc10] sm:$0xff]
    %v2227 = vld [vmem:[#allocation6 + $0xc18] sm:$0xff]
    %v2228 = vld [vmem:[#allocation6 + $0xc20] sm:$0xff]
    %v2229 = vld [vmem:[#allocation6 + $0xc28] sm:$0xff]
    %v2230 = vld [vmem:[#allocation6 + $0xc30] sm:$0xff]
    %v2231 = vld [vmem:[#allocation6 + $0xc38] sm:$0xff]
    %v2232 = vld [vmem:[#allocation6 + $0xc40] sm:$0xff]
    %v2233 = vld [vmem:[#allocation6 + $0xc48] sm:$0xff]
    %v2234 = vld [vmem:[#allocation6 + $0xc50] sm:$0xff]
    %v2235 = vld [vmem:[#allocation6 + $0xc58] sm:$0xff]
    %v2236 = vld [vmem:[#allocation6 + $0xc60] sm:$0xff]
    %v2237 = vld [vmem:[#allocation6 + $0xc68] sm:$0xff]
    %v2238 = vld [vmem:[#allocation6 + $0xc70] sm:$0xff]
    %v2239 = vld [vmem:[#allocation6 + $0xc78] sm:$0xff]
    %v2240 = vld [vmem:[#allocation6 + $0xc80] sm:$0xff]
    %v2241 = vld [vmem:[#allocation6 + $0xc88] sm:$0xff]
    %v2242 = vld [vmem:[#allocation6 + $0xc90] sm:$0xff]
    %v2243 = vld [vmem:[#allocation6 + $0xc98] sm:$0xff]
    %v2244 = vld [vmem:[#allocation6 + $0xca0] sm:$0xff]
    %v2245 = vld [vmem:[#allocation6 + $0xca8] sm:$0xff]
    %v2246 = vld [vmem:[#allocation6 + $0xcb0] sm:$0xff]
    %v2247 = vld [vmem:[#allocation6 + $0xcb8] sm:$0xff]
    %v2248 = vld [vmem:[#allocation6 + $0xcc0] sm:$0xff]
    %v2249 = vld [vmem:[#allocation6 + $0xcc8] sm:$0xff]
    %v2250 = vld [vmem:[#allocation6 + $0xcd0] sm:$0xff]
    %v2251 = vld [vmem:[#allocation6 + $0xcd8] sm:$0xff]
    %v2252 = vld [vmem:[#allocation6 + $0xce0] sm:$0xff]
    %v2253 = vld [vmem:[#allocation6 + $0xce8] sm:$0xff]
    %v2254 = vld [vmem:[#allocation6 + $0xcf0] sm:$0xff]
    %v2255 = vld [vmem:[#allocation6 + $0xcf8] sm:$0xff]
    %v2256 = vld [vmem:[#allocation6 + $0xd00] sm:$0xff]
    %v2257 = vld [vmem:[#allocation6 + $0xd08] sm:$0xff]
    %v2258 = vld [vmem:[#allocation6 + $0xd10] sm:$0xff]
    %v2259 = vld [vmem:[#allocation6 + $0xd18] sm:$0xff]
    %v2260 = vld [vmem:[#allocation6 + $0xd20] sm:$0xff]
    %v2261 = vld [vmem:[#allocation6 + $0xd28] sm:$0xff]
    %v2262 = vld [vmem:[#allocation6 + $0xd30] sm:$0xff]
    %v2263 = vld [vmem:[#allocation6 + $0xd38] sm:$0xff]
    %v2264 = vld [vmem:[#allocation6 + $0xd40] sm:$0xff]
    %v2265 = vld [vmem:[#allocation6 + $0xd48] sm:$0xff]
    %v2266 = vld [vmem:[#allocation6 + $0xd50] sm:$0xff]
    %v2267 = vld [vmem:[#allocation6 + $0xd58] sm:$0xff]
    %v2268 = vld [vmem:[#allocation6 + $0xd60] sm:$0xff]
    %v2269 = vld [vmem:[#allocation6 + $0xd68] sm:$0xff]
    %v2270 = vld [vmem:[#allocation6 + $0xd70] sm:$0xff]
    %v2271 = vld [vmem:[#allocation6 + $0xd78] sm:$0xff]
    %v2272 = vld [vmem:[#allocation6 + $0xd80] sm:$0xff]
    %v2273 = vld [vmem:[#allocation6 + $0xd88] sm:$0xff]
    %v2274 = vld [vmem:[#allocation6 + $0xd90] sm:$0xff]
    %v2275 = vld [vmem:[#allocation6 + $0xd98] sm:$0xff]
    %v2276 = vld [vmem:[#allocation6 + $0xda0] sm:$0xff]
    %v2277 = vld [vmem:[#allocation6 + $0xda8] sm:$0xff]
    %v2278 = vld [vmem:[#allocation6 + $0xdb0] sm:$0xff]
    %v2279 = vld [vmem:[#allocation6 + $0xdb8] sm:$0xff]
    %v2280 = vld [vmem:[#allocation6 + $0xdc0] sm:$0xff]
    %v2281 = vld [vmem:[#allocation6 + $0xdc8] sm:$0xff]
    %v2282 = vld [vmem:[#allocation6 + $0xdd0] sm:$0xff]
    %v2283 = vld [vmem:[#allocation6 + $0xdd8] sm:$0xff]
    %v2284 = vld [vmem:[#allocation6 + $0xde0] sm:$0xff]
    %v2285 = vld [vmem:[#allocation6 + $0xde8] sm:$0xff]
    %v2286 = vld [vmem:[#allocation6 + $0xdf0] sm:$0xff]
    %v2287 = vld [vmem:[#allocation6 + $0xdf8] sm:$0xff]
    %v2288 = vld [vmem:[#allocation6 + $0xe00] sm:$0xff]
    %v2289 = vld [vmem:[#allocation6 + $0xe08] sm:$0xff]
    %v2290 = vld [vmem:[#allocation6 + $0xe10] sm:$0xff]
    %v2291 = vld [vmem:[#allocation6 + $0xe18] sm:$0xff]
    %v2292 = vld [vmem:[#allocation6 + $0xe20] sm:$0xff]
    %v2293 = vld [vmem:[#allocation6 + $0xe28] sm:$0xff]
    %v2294 = vld [vmem:[#allocation6 + $0xe30] sm:$0xff]
    %v2295 = vld [vmem:[#allocation6 + $0xe38] sm:$0xff]
    %v2296 = vld [vmem:[#allocation6 + $0xe40] sm:$0xff]
    %v2297 = vld [vmem:[#allocation6 + $0xe48] sm:$0xff]
    %v2298 = vld [vmem:[#allocation6 + $0xe50] sm:$0xff]
    %v2299 = vld [vmem:[#allocation6 + $0xe58] sm:$0xff]
    %v2300 = vld [vmem:[#allocation6 + $0xe60] sm:$0xff]
    %v2301 = vld [vmem:[#allocation6 + $0xe68] sm:$0xff]
    %v2302 = vld [vmem:[#allocation6 + $0xe70] sm:$0xff]
    %v2303 = vld [vmem:[#allocation6 + $0xe78] sm:$0xff]
    %v2304 = vld [vmem:[#allocation6 + $0xe80] sm:$0xff]
    %v2305 = vld [vmem:[#allocation6 + $0xe88] sm:$0xff]
    %v2306 = vld [vmem:[#allocation6 + $0xe90] sm:$0xff]
    %v2307 = vld [vmem:[#allocation6 + $0xe98] sm:$0xff]
    %v2308 = vld [vmem:[#allocation6 + $0xea0] sm:$0xff]
    %v2309 = vld [vmem:[#allocation6 + $0xea8] sm:$0xff]
    %v2310 = vld [vmem:[#allocation6 + $0xeb0] sm:$0xff]
    %v2311 = vld [vmem:[#allocation6 + $0xeb8] sm:$0xff]
    %v2312 = vld [vmem:[#allocation6 + $0xec0] sm:$0xff]
    %v2313 = vld [vmem:[#allocation6 + $0xec8] sm:$0xff]
    %v2314 = vld [vmem:[#allocation6 + $0xed0] sm:$0xff]
    %v2315 = vld [vmem:[#allocation6 + $0xed8] sm:$0xff]
    %v2316 = vld [vmem:[#allocation6 + $0xee0] sm:$0xff]
    %v2317 = vld [vmem:[#allocation6 + $0xee8] sm:$0xff]
    %v2318 = vld [vmem:[#allocation6 + $0xef0] sm:$0xff]
    %v2319 = vld [vmem:[#allocation6 + $0xef8] sm:$0xff]
    %v2320 = vld [vmem:[#allocation6 + $0xf00] sm:$0xff]
    %v2321 = vld [vmem:[#allocation6 + $0xf08] sm:$0xff]
    %v2322 = vld [vmem:[#allocation6 + $0xf10] sm:$0xff]
    %v2323 = vld [vmem:[#allocation6 + $0xf18] sm:$0xff]
    %v2324 = vld [vmem:[#allocation6 + $0xf20] sm:$0xff]
    %v2325 = vld [vmem:[#allocation6 + $0xf28] sm:$0xff]
    %v2326 = vld [vmem:[#allocation6 + $0xf30] sm:$0xff]
    %v2327 = vld [vmem:[#allocation6 + $0xf38] sm:$0xff]
    %v2328 = vld [vmem:[#allocation6 + $0xf40] sm:$0xff]
    %v2329 = vld [vmem:[#allocation6 + $0xf48] sm:$0xff]
    %v2330 = vld [vmem:[#allocation6 + $0xf50] sm:$0xff]
    %v2331 = vld [vmem:[#allocation6 + $0xf58] sm:$0xff]
    %v2332 = vld [vmem:[#allocation6 + $0xf60] sm:$0xff]
    %v2333 = vld [vmem:[#allocation6 + $0xf68] sm:$0xff]
    %v2334 = vld [vmem:[#allocation6 + $0xf70] sm:$0xff]
    %v2335 = vld [vmem:[#allocation6 + $0xf78] sm:$0xff]
    %v2336 = vld [vmem:[#allocation6 + $0xf80] sm:$0xff]
    %v2337 = vld [vmem:[#allocation6 + $0xf88] sm:$0xff]
    %v2338 = vld [vmem:[#allocation6 + $0xf90] sm:$0xff]
    %v2339 = vld [vmem:[#allocation6 + $0xf98] sm:$0xff]
    %v2340 = vld [vmem:[#allocation6 + $0xfa0] sm:$0xff]
    %v2341 = vld [vmem:[#allocation6 + $0xfa8] sm:$0xff]
    %v2342 = vld [vmem:[#allocation6 + $0xfb0] sm:$0xff]
    %v2343 = vld [vmem:[#allocation6 + $0xfb8] sm:$0xff]
    %v2344 = vld [vmem:[#allocation6 + $0xfc0] sm:$0xff]
    %v2345 = vld [vmem:[#allocation6 + $0xfc8] sm:$0xff]
    %v2346 = vld [vmem:[#allocation6 + $0xfd0] sm:$0xff]
    %v2347 = vld [vmem:[#allocation6 + $0xfd8] sm:$0xff]
    %v2348 = vld [vmem:[#allocation6 + $0xfe0] sm:$0xff]
    %v2349 = vld [vmem:[#allocation6 + $0xfe8] sm:$0xff]
    %v2350 = vld [vmem:[#allocation6 + $0xff0] sm:$0xff]
    %v2351 = vld [vmem:[#allocation6 + $0xff8] sm:$0xff]
    %v2352 = vld [vmem:[#allocation6 + $0x1000] sm:$0xff]
    %v2353 = vld [vmem:[#allocation6 + $0x1008] sm:$0xff]
    %v2354 = vld [vmem:[#allocation6 + $0x1010] sm:$0xff]
    %v2355 = vld [vmem:[#allocation6 + $0x1018] sm:$0xff]
    %v2356 = vld [vmem:[#allocation6 + $0x1020] sm:$0xff]
    %v2357 = vld [vmem:[#allocation6 + $0x1028] sm:$0xff]
    %v2358 = vld [vmem:[#allocation6 + $0x1030] sm:$0xff]
    %v2359 = vld [vmem:[#allocation6 + $0x1038] sm:$0xff]
    %v2360 = vld [vmem:[#allocation6 + $0x1040] sm:$0xff]
    %v2361 = vld [vmem:[#allocation6 + $0x1048] sm:$0xff]
    %v2362 = vld [vmem:[#allocation6 + $0x1050] sm:$0xff]
    %v2363 = vld [vmem:[#allocation6 + $0x1058] sm:$0xff]
    %v2364 = vld [vmem:[#allocation6 + $0x1060] sm:$0xff]
    %v2365 = vld [vmem:[#allocation6 + $0x1068] sm:$0xff]
    %v2366 = vld [vmem:[#allocation6 + $0x1070] sm:$0xff]
    %v2367 = vld [vmem:[#allocation6 + $0x1078] sm:$0xff]
    %v2368 = vld [vmem:[#allocation6 + $0x1080] sm:$0xff]
    %v2369 = vld [vmem:[#allocation6 + $0x1088] sm:$0xff]
    %v2370 = vld [vmem:[#allocation6 + $0x1090] sm:$0xff]
    %v2371 = vld [vmem:[#allocation6 + $0x1098] sm:$0xff]
    %v2372 = vld [vmem:[#allocation6 + $0x10a0] sm:$0xff]
    %v2373 = vld [vmem:[#allocation6 + $0x10a8] sm:$0xff]
    %v2374 = vld [vmem:[#allocation6 + $0x10b0] sm:$0xff]
    %v2375 = vld [vmem:[#allocation6 + $0x10b8] sm:$0xff]
    %v2376 = vld [vmem:[#allocation6 + $0x10c0] sm:$0xff]
    %v2377 = vld [vmem:[#allocation6 + $0x10c8] sm:$0xff]
    %v2378 = vld [vmem:[#allocation6 + $0x10d0] sm:$0xff]
    %v2379 = vld [vmem:[#allocation6 + $0x10d8] sm:$0xff]
    %v2380 = vld [vmem:[#allocation6 + $0x10e0] sm:$0xff]
    %v2381 = vld [vmem:[#allocation6 + $0x10e8] sm:$0xff]
    %v2382 = vld [vmem:[#allocation6 + $0x10f0] sm:$0xff]
    %v2383 = vld [vmem:[#allocation6 + $0x10f8] sm:$0xff]
    %v2384 = vld [vmem:[#allocation6 + $0x1100] sm:$0xff]
    %v2385 = vld [vmem:[#allocation6 + $0x1108] sm:$0xff]
    %v2386 = vld [vmem:[#allocation6 + $0x1110] sm:$0xff]
    %v2387 = vld [vmem:[#allocation6 + $0x1118] sm:$0xff]
    %v2388 = vld [vmem:[#allocation6 + $0x1120] sm:$0xff]
    %v2389 = vld [vmem:[#allocation6 + $0x1128] sm:$0xff]
    %v2390 = vld [vmem:[#allocation6 + $0x1130] sm:$0xff]
    %v2391 = vld [vmem:[#allocation6 + $0x1138] sm:$0xff]
    %v2392 = vld [vmem:[#allocation6 + $0x1140] sm:$0xff]
    %v2393 = vld [vmem:[#allocation6 + $0x1148] sm:$0xff]
    %v2394 = vld [vmem:[#allocation6 + $0x1150] sm:$0xff]
    %v2395 = vld [vmem:[#allocation6 + $0x1158] sm:$0xff]
    %v2396 = vld [vmem:[#allocation6 + $0x1160] sm:$0xff]
    %v2397 = vld [vmem:[#allocation6 + $0x1168] sm:$0xff]
    %v2398 = vld [vmem:[#allocation6 + $0x1170] sm:$0xff]
    %v2399 = vld [vmem:[#allocation6 + $0x1178] sm:$0xff]
    %v2400 = vld [vmem:[#allocation6 + $0x1180] sm:$0xff]
    %v2401 = vld [vmem:[#allocation6 + $0x1188] sm:$0xff]
    %v2402 = vld [vmem:[#allocation6 + $0x1190] sm:$0xff]
    %v2403 = vld [vmem:[#allocation6 + $0x1198] sm:$0xff]
    %v2404 = vld [vmem:[#allocation6 + $0x11a0] sm:$0xff]
    %v2405 = vld [vmem:[#allocation6 + $0x11a8] sm:$0xff]
    %v2406 = vld [vmem:[#allocation6 + $0x11b0] sm:$0xff]
    %v2407 = vld [vmem:[#allocation6 + $0x11b8] sm:$0xff]
    %v2408 = vld [vmem:[#allocation6 + $0x11c0] sm:$0xff]
    %v2409 = vld [vmem:[#allocation6 + $0x11c8] sm:$0xff]
    %v2410 = vld [vmem:[#allocation6 + $0x11d0] sm:$0xff]
    %v2411 = vld [vmem:[#allocation6 + $0x11d8] sm:$0xff]
    %v2412 = vld [vmem:[#allocation6 + $0x11e0] sm:$0xff]
    %v2413 = vld [vmem:[#allocation6 + $0x11e8] sm:$0xff]
    %v2414 = vld [vmem:[#allocation6 + $0x11f0] sm:$0xff]
    %v2415 = vld [vmem:[#allocation6 + $0x11f8] sm:$0xff]
    %v2416 = vld [vmem:[#allocation6 + $0x1200] sm:$0xff]
    %v2417 = vld [vmem:[#allocation6 + $0x1208] sm:$0xff]
    %v2418 = vld [vmem:[#allocation6 + $0x1210] sm:$0xff]
    %v2419 = vld [vmem:[#allocation6 + $0x1218] sm:$0xff]
    %v2420 = vld [vmem:[#allocation6 + $0x1220] sm:$0xff]
    %v2421 = vld [vmem:[#allocation6 + $0x1228] sm:$0xff]
    %v2422 = vld [vmem:[#allocation6 + $0x1230] sm:$0xff]
    %v2423 = vld [vmem:[#allocation6 + $0x1238] sm:$0xff]
    %v2424 = vld [vmem:[#allocation6 + $0x1240] sm:$0xff]
    %v2425 = vld [vmem:[#allocation6 + $0x1248] sm:$0xff]
    %v2426 = vld [vmem:[#allocation6 + $0x1250] sm:$0xff]
    %v2427 = vld [vmem:[#allocation6 + $0x1258] sm:$0xff]
    %v2428 = vld [vmem:[#allocation6 + $0x1260] sm:$0xff]
    %v2429 = vld [vmem:[#allocation6 + $0x1268] sm:$0xff]
    %v2430 = vld [vmem:[#allocation6 + $0x1270] sm:$0xff]
    %v2431 = vld [vmem:[#allocation6 + $0x1278] sm:$0xff]
    %v2432 = vld [vmem:[#allocation6 + $0x1280] sm:$0xff]
    %v2433 = vld [vmem:[#allocation6 + $0x1288] sm:$0xff]
    %v2434 = vld [vmem:[#allocation6 + $0x1290] sm:$0xff]
    %v2435 = vld [vmem:[#allocation6 + $0x1298] sm:$0xff]
    %v2436 = vld [vmem:[#allocation6 + $0x12a0] sm:$0xff]
    %v2437 = vld [vmem:[#allocation6 + $0x12a8] sm:$0xff]
    %v2438 = vld [vmem:[#allocation6 + $0x12b0] sm:$0xff]
    %v2439 = vld [vmem:[#allocation6 + $0x12b8] sm:$0xff]
    %v2440 = vld [vmem:[#allocation6 + $0x12c0] sm:$0xff]
    %v2441 = vld [vmem:[#allocation6 + $0x12c8] sm:$0xff]
    %v2442 = vld [vmem:[#allocation6 + $0x12d0] sm:$0xff]
    %v2443 = vld [vmem:[#allocation6 + $0x12d8] sm:$0xff]
    %v2444 = vld [vmem:[#allocation6 + $0x12e0] sm:$0xff]
    %v2445 = vld [vmem:[#allocation6 + $0x12e8] sm:$0xff]
    %v2446 = vld [vmem:[#allocation6 + $0x12f0] sm:$0xff]
    %v2447 = vld [vmem:[#allocation6 + $0x12f8] sm:$0xff]
    %v2448 = vld [vmem:[#allocation6 + $0x1300] sm:$0xff]
    %v2449 = vld [vmem:[#allocation6 + $0x1308] sm:$0xff]
    %v2450 = vld [vmem:[#allocation6 + $0x1310] sm:$0xff]
    %v2451 = vld [vmem:[#allocation6 + $0x1318] sm:$0xff]
    %v2452 = vld [vmem:[#allocation6 + $0x1320] sm:$0xff]
    %v2453 = vld [vmem:[#allocation6 + $0x1328] sm:$0xff]
    %v2454 = vld [vmem:[#allocation6 + $0x1330] sm:$0xff]
    %v2455 = vld [vmem:[#allocation6 + $0x1338] sm:$0xff]
    %v2456 = vld [vmem:[#allocation6 + $0x1340] sm:$0xff]
    %v2457 = vld [vmem:[#allocation6 + $0x1348] sm:$0xff]
    %v2458 = vld [vmem:[#allocation6 + $0x1350] sm:$0xff]
    %v2459 = vld [vmem:[#allocation6 + $0x1358] sm:$0xff]
    %v2460 = vld [vmem:[#allocation6 + $0x1360] sm:$0xff]
    %v2461 = vld [vmem:[#allocation6 + $0x1368] sm:$0xff]
    %v2462 = vld [vmem:[#allocation6 + $0x1370] sm:$0xff]
    %v2463 = vld [vmem:[#allocation6 + $0x1378] sm:$0xff]
    %v2464 = vld [vmem:[#allocation6 + $0x1380] sm:$0xff]
    %v2465 = vld [vmem:[#allocation6 + $0x1388] sm:$0xff]
    %v2466 = vld [vmem:[#allocation6 + $0x1390] sm:$0xff]
    %v2467 = vld [vmem:[#allocation6 + $0x1398] sm:$0xff]
    %v2468 = vld [vmem:[#allocation6 + $0x13a0] sm:$0xff]
    %v2469 = vld [vmem:[#allocation6 + $0x13a8] sm:$0xff]
    %v2470 = vld [vmem:[#allocation6 + $0x13b0] sm:$0xff]
    %v2471 = vld [vmem:[#allocation6 + $0x13b8] sm:$0xff]
    %v2472 = vld [vmem:[#allocation6 + $0x13c0] sm:$0xff]
    %v2473 = vld [vmem:[#allocation6 + $0x13c8] sm:$0xff]
    %v2474 = vld [vmem:[#allocation6 + $0x13d0] sm:$0xff]
    %v2475 = vld [vmem:[#allocation6 + $0x13d8] sm:$0xff]
    %v2476 = vld [vmem:[#allocation6 + $0x13e0] sm:$0xff]
    %v2477 = vld [vmem:[#allocation6 + $0x13e8] sm:$0xff]
    %v2478 = vld [vmem:[#allocation6 + $0x13f0] sm:$0xff]
    %v2479 = vld [vmem:[#allocation6 + $0x13f8] sm:$0xff]
    %v2480 = vld [vmem:[#allocation6 + $0x1400] sm:$0xff]
    %v2481 = vld [vmem:[#allocation6 + $0x1408] sm:$0xff]
    %v2482 = vld [vmem:[#allocation6 + $0x1410] sm:$0xff]
    %v2483 = vld [vmem:[#allocation6 + $0x1418] sm:$0xff]
    %v2484 = vld [vmem:[#allocation6 + $0x1420] sm:$0xff]
    %v2485 = vld [vmem:[#allocation6 + $0x1428] sm:$0xff]
    %v2486 = vld [vmem:[#allocation6 + $0x1430] sm:$0xff]
    %v2487 = vld [vmem:[#allocation6 + $0x1438] sm:$0xff]
    %v2488 = vld [vmem:[#allocation6 + $0x1440] sm:$0xff]
    %v2489 = vld [vmem:[#allocation6 + $0x1448] sm:$0xff]
    %v2490 = vld [vmem:[#allocation6 + $0x1450] sm:$0xff]
    %v2491 = vld [vmem:[#allocation6 + $0x1458] sm:$0xff]
    %v2492 = vld [vmem:[#allocation6 + $0x1460] sm:$0xff]
    %v2493 = vld [vmem:[#allocation6 + $0x1468] sm:$0xff]
    %v2494 = vld [vmem:[#allocation6 + $0x1470] sm:$0xff]
    %v2495 = vld [vmem:[#allocation6 + $0x1478] sm:$0xff]
    %v2496 = vld [vmem:[#allocation6 + $0x1480] sm:$0xff]
    %v2497 = vld [vmem:[#allocation6 + $0x1488] sm:$0xff]
    %v2498 = vld [vmem:[#allocation6 + $0x1490] sm:$0xff]
    %v2499 = vld [vmem:[#allocation6 + $0x1498] sm:$0xff]
    %v2500 = vld [vmem:[#allocation6 + $0x14a0] sm:$0xff]
    %v2501 = vld [vmem:[#allocation6 + $0x14a8] sm:$0xff]
    %v2502 = vld [vmem:[#allocation6 + $0x14b0] sm:$0xff]
    %v2503 = vld [vmem:[#allocation6 + $0x14b8] sm:$0xff]
    %v2504 = vld [vmem:[#allocation6 + $0x14c0] sm:$0xff]
    %v2505 = vld [vmem:[#allocation6 + $0x14c8] sm:$0xff]
    %v2506 = vld [vmem:[#allocation6 + $0x14d0] sm:$0xff]
    %v2507 = vld [vmem:[#allocation6 + $0x14d8] sm:$0xff]
    %v2508 = vld [vmem:[#allocation6 + $0x14e0] sm:$0xff]
    %v2509 = vld [vmem:[#allocation6 + $0x14e8] sm:$0xff]
    %v2510 = vld [vmem:[#allocation6 + $0x14f0] sm:$0xff]
    %v2511 = vld [vmem:[#allocation6 + $0x14f8] sm:$0xff]
    %v2512 = vld [vmem:[#allocation6 + $0x1500] sm:$0xff]
    %v2513 = vld [vmem:[#allocation6 + $0x1508] sm:$0xff]
    %v2514 = vld [vmem:[#allocation6 + $0x1510] sm:$0xff]
    %v2515 = vld [vmem:[#allocation6 + $0x1518] sm:$0xff]
    %v2516 = vld [vmem:[#allocation6 + $0x1520] sm:$0xff]
    %v2517 = vld [vmem:[#allocation6 + $0x1528] sm:$0xff]
    %v2518 = vld [vmem:[#allocation6 + $0x1530] sm:$0xff]
    %v2519 = vld [vmem:[#allocation6 + $0x1538] sm:$0xff]
    %v2520 = vld [vmem:[#allocation6 + $0x1540] sm:$0xff]
    %v2521 = vld [vmem:[#allocation6 + $0x1548] sm:$0xff]
    %v2522 = vld [vmem:[#allocation6 + $0x1550] sm:$0xff]
    %v2523 = vld [vmem:[#allocation6 + $0x1558] sm:$0xff]
    %v2524 = vld [vmem:[#allocation6 + $0x1560] sm:$0xff]
    %v2525 = vld [vmem:[#allocation6 + $0x1568] sm:$0xff]
    %v2526 = vld [vmem:[#allocation6 + $0x1570] sm:$0xff]
    %v2527 = vld [vmem:[#allocation6 + $0x1578] sm:$0xff]
    %v2528 = vld [vmem:[#allocation6 + $0x1580] sm:$0xff]
    %v2529 = vld [vmem:[#allocation6 + $0x1588] sm:$0xff]
    %v2530 = vld [vmem:[#allocation6 + $0x1590] sm:$0xff]
    %v2531 = vld [vmem:[#allocation6 + $0x1598] sm:$0xff]
    %v2532 = vld [vmem:[#allocation6 + $0x15a0] sm:$0xff]
    %v2533 = vld [vmem:[#allocation6 + $0x15a8] sm:$0xff]
    %v2534 = vld [vmem:[#allocation6 + $0x15b0] sm:$0xff]
    %v2535 = vld [vmem:[#allocation6 + $0x15b8] sm:$0xff]
    %v2536 = vld [vmem:[#allocation6 + $0x15c0] sm:$0xff]
    %v2537 = vld [vmem:[#allocation6 + $0x15c8] sm:$0xff]
    %v2538 = vld [vmem:[#allocation6 + $0x15d0] sm:$0xff]
    %v2539 = vld [vmem:[#allocation6 + $0x15d8] sm:$0xff]
    %v2540 = vld [vmem:[#allocation6 + $0x15e0] sm:$0xff]
    %v2541 = vld [vmem:[#allocation6 + $0x15e8] sm:$0xff]
    %v2542 = vld [vmem:[#allocation6 + $0x15f0] sm:$0xff]
    %v2543 = vld [vmem:[#allocation6 + $0x15f8] sm:$0xff]
    %v2544 = vld [vmem:[#allocation6 + $0x1600] sm:$0xff]
    %v2545 = vld [vmem:[#allocation6 + $0x1608] sm:$0xff]
    %v2546 = vld [vmem:[#allocation6 + $0x1610] sm:$0xff]
    %v2547 = vld [vmem:[#allocation6 + $0x1618] sm:$0xff]
    %v2548 = vld [vmem:[#allocation6 + $0x1620] sm:$0xff]
    %v2549 = vld [vmem:[#allocation6 + $0x1628] sm:$0xff]
    %v2550 = vld [vmem:[#allocation6 + $0x1630] sm:$0xff]
    %v2551 = vld [vmem:[#allocation6 + $0x1638] sm:$0xff]
    %v2552 = vld [vmem:[#allocation6 + $0x1640] sm:$0xff]
    %v2553 = vld [vmem:[#allocation6 + $0x1648] sm:$0xff]
    %v2554 = vld [vmem:[#allocation6 + $0x1650] sm:$0xff]
    %v2555 = vld [vmem:[#allocation6 + $0x1658] sm:$0xff]
    %v2556 = vld [vmem:[#allocation6 + $0x1660] sm:$0xff]
    %v2557 = vld [vmem:[#allocation6 + $0x1668] sm:$0xff]
    %v2558 = vld [vmem:[#allocation6 + $0x1670] sm:$0xff]
    %v2559 = vld [vmem:[#allocation6 + $0x1678] sm:$0xff]
    %v2560 = vld [vmem:[#allocation6 + $0x1680] sm:$0xff]
    %v2561 = vld [vmem:[#allocation6 + $0x1688] sm:$0xff]
    %v2562 = vld [vmem:[#allocation6 + $0x1690] sm:$0xff]
    %v2563 = vld [vmem:[#allocation6 + $0x1698] sm:$0xff]
    %v2564 = vld [vmem:[#allocation6 + $0x16a0] sm:$0xff]
    %v2565 = vld [vmem:[#allocation6 + $0x16a8] sm:$0xff]
    %v2566 = vld [vmem:[#allocation6 + $0x16b0] sm:$0xff]
    %v2567 = vld [vmem:[#allocation6 + $0x16b8] sm:$0xff]
    %v2568 = vld [vmem:[#allocation6 + $0x16c0] sm:$0xff]
    %v2569 = vld [vmem:[#allocation6 + $0x16c8] sm:$0xff]
    %v2570 = vld [vmem:[#allocation6 + $0x16d0] sm:$0xff]
    %v2571 = vld [vmem:[#allocation6 + $0x16d8] sm:$0xff]
    %v2572 = vld [vmem:[#allocation6 + $0x16e0] sm:$0xff]
    %v2573 = vld [vmem:[#allocation6 + $0x16e8] sm:$0xff]
    %v2574 = vld [vmem:[#allocation6 + $0x16f0] sm:$0xff]
    %v2575 = vld [vmem:[#allocation6 + $0x16f8] sm:$0xff]
    %v2576 = vld [vmem:[#allocation6 + $0x1700] sm:$0xff]
    %v2577 = vld [vmem:[#allocation6 + $0x1708] sm:$0xff]
    %v2578 = vld [vmem:[#allocation6 + $0x1710] sm:$0xff]
    %v2579 = vld [vmem:[#allocation6 + $0x1718] sm:$0xff]
    %v2580 = vld [vmem:[#allocation6 + $0x1720] sm:$0xff]
    %v2581 = vld [vmem:[#allocation6 + $0x1728] sm:$0xff]
    %v2582 = vld [vmem:[#allocation6 + $0x1730] sm:$0xff]
    %v2583 = vld [vmem:[#allocation6 + $0x1738] sm:$0xff]
    %v2584 = vld [vmem:[#allocation6 + $0x1740] sm:$0xff]
    %v2585 = vld [vmem:[#allocation6 + $0x1748] sm:$0xff]
    %v2586 = vld [vmem:[#allocation6 + $0x1750] sm:$0xff]
    %v2587 = vld [vmem:[#allocation6 + $0x1758] sm:$0xff]
    %v2588 = vld [vmem:[#allocation6 + $0x1760] sm:$0xff]
    %v2589 = vld [vmem:[#allocation6 + $0x1768] sm:$0xff]
    %v2590 = vld [vmem:[#allocation6 + $0x1770] sm:$0xff]
    %v2591 = vld [vmem:[#allocation6 + $0x1778] sm:$0xff]
    %v2592 = vld [vmem:[#allocation6 + $0x1780] sm:$0xff]
    %v2593 = vld [vmem:[#allocation6 + $0x1788] sm:$0xff]
    %v2594 = vld [vmem:[#allocation6 + $0x1790] sm:$0xff]
    %v2595 = vld [vmem:[#allocation6 + $0x1798] sm:$0xff]
    %v2596 = vld [vmem:[#allocation6 + $0x17a0] sm:$0xff]
    %v2597 = vld [vmem:[#allocation6 + $0x17a8] sm:$0xff]
    %v2598 = vld [vmem:[#allocation6 + $0x17b0] sm:$0xff]
    %v2599 = vld [vmem:[#allocation6 + $0x17b8] sm:$0xff]
    %v2600 = vld [vmem:[#allocation6 + $0x17c0] sm:$0xff]
    %v2601 = vld [vmem:[#allocation6 + $0x17c8] sm:$0xff]
    %v2602 = vld [vmem:[#allocation6 + $0x17d0] sm:$0xff]
    %v2603 = vld [vmem:[#allocation6 + $0x17d8] sm:$0xff]
    %v2604 = vld [vmem:[#allocation6 + $0x17e0] sm:$0xff]
    %v2605 = vld [vmem:[#allocation6 + $0x17e8] sm:$0xff]
    %v2606 = vld [vmem:[#allocation6 + $0x17f0] sm:$0xff]
    %v2607 = vld [vmem:[#allocation6 + $0x17f8] sm:$0xff]
    %v2608 = vld [vmem:[#allocation8] sm:$0xff]
    %v2610 = vperm.slane %v2608, 0
    %v2611 = vperm.slane %v2608, 1
    %v2612 = vperm.slane %v2608, 2
    %v2613 = vperm.slane %v2608, 3
    %v2614 = vperm.slane %v2608, 4
    %v2615 = vperm.slane %v2608, 5
    %v2616 = vperm.slane %v2608, 6
    %v2617 = vperm.slane %v2608, 7
    %v3394 = vunpack.c.l.b16 %v1840
    %v3395 = vunpack.c.h.b16 %v1840
    %v3396 = vunpack.c.l.b16 %v1841
    %v3397 = vunpack.c.h.b16 %v1841
    %v3398 = vunpack.c.l.b16 %v1842
    %v3399 = vunpack.c.h.b16 %v1842
    %v3400 = vunpack.c.l.b16 %v1843
    %v3401 = vunpack.c.h.b16 %v1843
    %v3402 = vunpack.c.l.b16 %v1844
    %v3403 = vunpack.c.h.b16 %v1844
    %v3404 = vunpack.c.l.b16 %v1845
    %v3405 = vunpack.c.h.b16 %v1845
    %v3406 = vunpack.c.l.b16 %v1846
    %v3407 = vunpack.c.h.b16 %v1846
    %v3408 = vunpack.c.l.b16 %v1847
    %v3409 = vunpack.c.h.b16 %v1847
    %v3410 = vunpack.c.l.b16 %v1848
    %v3411 = vunpack.c.h.b16 %v1848
    %v3412 = vunpack.c.l.b16 %v1849
    %v3413 = vunpack.c.h.b16 %v1849
    %v3414 = vunpack.c.l.b16 %v1850
    %v3415 = vunpack.c.h.b16 %v1850
    %v3416 = vunpack.c.l.b16 %v1851
    %v3417 = vunpack.c.h.b16 %v1851
    %v3418 = vunpack.c.l.b16 %v1852
    %v3419 = vunpack.c.h.b16 %v1852
    %v3420 = vunpack.c.l.b16 %v1853
    %v3421 = vunpack.c.h.b16 %v1853
    %v3422 = vunpack.c.l.b16 %v1854
    %v3423 = vunpack.c.h.b16 %v1854
    %v3424 = vunpack.c.l.b16 %v1855
    %v3425 = vunpack.c.h.b16 %v1855
    %v3426 = vunpack.c.l.b16 %v1856
    %v3427 = vunpack.c.h.b16 %v1856
    %v3428 = vunpack.c.l.b16 %v1857
    %v3429 = vunpack.c.h.b16 %v1857
    %v3430 = vunpack.c.l.b16 %v1858
    %v3431 = vunpack.c.h.b16 %v1858
    %v3432 = vunpack.c.l.b16 %v1859
    %v3433 = vunpack.c.h.b16 %v1859
    %v3434 = vunpack.c.l.b16 %v1860
    %v3435 = vunpack.c.h.b16 %v1860
    %v3436 = vunpack.c.l.b16 %v1861
    %v3437 = vunpack.c.h.b16 %v1861
    %v3438 = vunpack.c.l.b16 %v1862
    %v3439 = vunpack.c.h.b16 %v1862
    %v3440 = vunpack.c.l.b16 %v1863
    %v3441 = vunpack.c.h.b16 %v1863
    %v3442 = vunpack.c.l.b16 %v1864
    %v3443 = vunpack.c.h.b16 %v1864
    %v3444 = vunpack.c.l.b16 %v1865
    %v3445 = vunpack.c.h.b16 %v1865
    %v3446 = vunpack.c.l.b16 %v1866
    %v3447 = vunpack.c.h.b16 %v1866
    %v3448 = vunpack.c.l.b16 %v1867
    %v3449 = vunpack.c.h.b16 %v1867
    %v3450 = vunpack.c.l.b16 %v1868
    %v3451 = vunpack.c.h.b16 %v1868
    %v3452 = vunpack.c.l.b16 %v1869
    %v3453 = vunpack.c.h.b16 %v1869
    %v3454 = vunpack.c.l.b16 %v1870
    %v3455 = vunpack.c.h.b16 %v1870
    %v3456 = vunpack.c.l.b16 %v1871
    %v3457 = vunpack.c.h.b16 %v1871
    %v3458 = vunpack.c.l.b16 %v1872
    %v3459 = vunpack.c.h.b16 %v1872
    %v3460 = vunpack.c.l.b16 %v1873
    %v3461 = vunpack.c.h.b16 %v1873
    %v3462 = vunpack.c.l.b16 %v1874
    %v3463 = vunpack.c.h.b16 %v1874
    %v3464 = vunpack.c.l.b16 %v1875
    %v3465 = vunpack.c.h.b16 %v1875
    %v3466 = vunpack.c.l.b16 %v1876
    %v3467 = vunpack.c.h.b16 %v1876
    %v3468 = vunpack.c.l.b16 %v1877
    %v3469 = vunpack.c.h.b16 %v1877
    %v3470 = vunpack.c.l.b16 %v1878
    %v3471 = vunpack.c.h.b16 %v1878
    %v3472 = vunpack.c.l.b16 %v1879
    %v3473 = vunpack.c.h.b16 %v1879
    %v3474 = vunpack.c.l.b16 %v1880
    %v3475 = vunpack.c.h.b16 %v1880
    %v3476 = vunpack.c.l.b16 %v1881
    %v3477 = vunpack.c.h.b16 %v1881
    %v3478 = vunpack.c.l.b16 %v1882
    %v3479 = vunpack.c.h.b16 %v1882
    %v3480 = vunpack.c.l.b16 %v1883
    %v3481 = vunpack.c.h.b16 %v1883
    %v3482 = vunpack.c.l.b16 %v1884
    %v3483 = vunpack.c.h.b16 %v1884
    %v3484 = vunpack.c.l.b16 %v1885
    %v3485 = vunpack.c.h.b16 %v1885
    %v3486 = vunpack.c.l.b16 %v1886
    %v3487 = vunpack.c.h.b16 %v1886
    %v3488 = vunpack.c.l.b16 %v1887
    %v3489 = vunpack.c.h.b16 %v1887
    %v3490 = vunpack.c.l.b16 %v1888
    %v3491 = vunpack.c.h.b16 %v1888
    %v3492 = vunpack.c.l.b16 %v1889
    %v3493 = vunpack.c.h.b16 %v1889
    %v3494 = vunpack.c.l.b16 %v1890
    %v3495 = vunpack.c.h.b16 %v1890
    %v3496 = vunpack.c.l.b16 %v1891
    %v3497 = vunpack.c.h.b16 %v1891
    %v3498 = vunpack.c.l.b16 %v1892
    %v3499 = vunpack.c.h.b16 %v1892
    %v3500 = vunpack.c.l.b16 %v1893
    %v3501 = vunpack.c.h.b16 %v1893
    %v3502 = vunpack.c.l.b16 %v1894
    %v3503 = vunpack.c.h.b16 %v1894
    %v3504 = vunpack.c.l.b16 %v1895
    %v3505 = vunpack.c.h.b16 %v1895
    %v3506 = vunpack.c.l.b16 %v1896
    %v3507 = vunpack.c.h.b16 %v1896
    %v3508 = vunpack.c.l.b16 %v1897
    %v3509 = vunpack.c.h.b16 %v1897
    %v3510 = vunpack.c.l.b16 %v1898
    %v3511 = vunpack.c.h.b16 %v1898
    %v3512 = vunpack.c.l.b16 %v1899
    %v3513 = vunpack.c.h.b16 %v1899
    %v3514 = vunpack.c.l.b16 %v1900
    %v3515 = vunpack.c.h.b16 %v1900
    %v3516 = vunpack.c.l.b16 %v1901
    %v3517 = vunpack.c.h.b16 %v1901
    %v3518 = vunpack.c.l.b16 %v1902
    %v3519 = vunpack.c.h.b16 %v1902
    %v3520 = vunpack.c.l.b16 %v1903
    %v3521 = vunpack.c.h.b16 %v1903
    %v3522 = vunpack.c.l.b16 %v1904
    %v3523 = vunpack.c.h.b16 %v1904
    %v3524 = vunpack.c.l.b16 %v1905
    %v3525 = vunpack.c.h.b16 %v1905
    %v3526 = vunpack.c.l.b16 %v1906
    %v3527 = vunpack.c.h.b16 %v1906
    %v3528 = vunpack.c.l.b16 %v1907
    %v3529 = vunpack.c.h.b16 %v1907
    %v3530 = vunpack.c.l.b16 %v1908
    %v3531 = vunpack.c.h.b16 %v1908
    %v3532 = vunpack.c.l.b16 %v1909
    %v3533 = vunpack.c.h.b16 %v1909
    %v3534 = vunpack.c.l.b16 %v1910
    %v3535 = vunpack.c.h.b16 %v1910
    %v3536 = vunpack.c.l.b16 %v1911
    %v3537 = vunpack.c.h.b16 %v1911
    %v3538 = vunpack.c.l.b16 %v1912
    %v3539 = vunpack.c.h.b16 %v1912
    %v3540 = vunpack.c.l.b16 %v1913
    %v3541 = vunpack.c.h.b16 %v1913
    %v3542 = vunpack.c.l.b16 %v1914
    %v3543 = vunpack.c.h.b16 %v1914
    %v3544 = vunpack.c.l.b16 %v1915
    %v3545 = vunpack.c.h.b16 %v1915
    %v3546 = vunpack.c.l.b16 %v1916
    %v3547 = vunpack.c.h.b16 %v1916
    %v3548 = vunpack.c.l.b16 %v1917
    %v3549 = vunpack.c.h.b16 %v1917
    %v3550 = vunpack.c.l.b16 %v1918
    %v3551 = vunpack.c.h.b16 %v1918
    %v3552 = vunpack.c.l.b16 %v1919
    %v3553 = vunpack.c.h.b16 %v1919
    %v3554 = vunpack.c.l.b16 %v1920
    %v3555 = vunpack.c.h.b16 %v1920
    %v3556 = vunpack.c.l.b16 %v1921
    %v3557 = vunpack.c.h.b16 %v1921
    %v3558 = vunpack.c.l.b16 %v1922
    %v3559 = vunpack.c.h.b16 %v1922
    %v3560 = vunpack.c.l.b16 %v1923
    %v3561 = vunpack.c.h.b16 %v1923
    %v3562 = vunpack.c.l.b16 %v1924
    %v3563 = vunpack.c.h.b16 %v1924
    %v3564 = vunpack.c.l.b16 %v1925
    %v3565 = vunpack.c.h.b16 %v1925
    %v3566 = vunpack.c.l.b16 %v1926
    %v3567 = vunpack.c.h.b16 %v1926
    %v3568 = vunpack.c.l.b16 %v1927
    %v3569 = vunpack.c.h.b16 %v1927
    %v3570 = vunpack.c.l.b16 %v1928
    %v3571 = vunpack.c.h.b16 %v1928
    %v3572 = vunpack.c.l.b16 %v1929
    %v3573 = vunpack.c.h.b16 %v1929
    %v3574 = vunpack.c.l.b16 %v1930
    %v3575 = vunpack.c.h.b16 %v1930
    %v3576 = vunpack.c.l.b16 %v1931
    %v3577 = vunpack.c.h.b16 %v1931
    %v3578 = vunpack.c.l.b16 %v1932
    %v3579 = vunpack.c.h.b16 %v1932
    %v3580 = vunpack.c.l.b16 %v1933
    %v3581 = vunpack.c.h.b16 %v1933
    %v3582 = vunpack.c.l.b16 %v1934
    %v3583 = vunpack.c.h.b16 %v1934
    %v3584 = vunpack.c.l.b16 %v1935
    %v3585 = vunpack.c.h.b16 %v1935
    %v3586 = vunpack.c.l.b16 %v1936
    %v3587 = vunpack.c.h.b16 %v1936
    %v3588 = vunpack.c.l.b16 %v1937
    %v3589 = vunpack.c.h.b16 %v1937
    %v3590 = vunpack.c.l.b16 %v1938
    %v3591 = vunpack.c.h.b16 %v1938
    %v3592 = vunpack.c.l.b16 %v1939
    %v3593 = vunpack.c.h.b16 %v1939
    %v3594 = vunpack.c.l.b16 %v1940
    %v3595 = vunpack.c.h.b16 %v1940
    %v3596 = vunpack.c.l.b16 %v1941
    %v3597 = vunpack.c.h.b16 %v1941
    %v3598 = vunpack.c.l.b16 %v1942
    %v3599 = vunpack.c.h.b16 %v1942
    %v3600 = vunpack.c.l.b16 %v1943
    %v3601 = vunpack.c.h.b16 %v1943
    %v3602 = vunpack.c.l.b16 %v1944
    %v3603 = vunpack.c.h.b16 %v1944
    %v3604 = vunpack.c.l.b16 %v1945
    %v3605 = vunpack.c.h.b16 %v1945
    %v3606 = vunpack.c.l.b16 %v1946
    %v3607 = vunpack.c.h.b16 %v1946
    %v3608 = vunpack.c.l.b16 %v1947
    %v3609 = vunpack.c.h.b16 %v1947
    %v3610 = vunpack.c.l.b16 %v1948
    %v3611 = vunpack.c.h.b16 %v1948
    %v3612 = vunpack.c.l.b16 %v1949
    %v3613 = vunpack.c.h.b16 %v1949
    %v3614 = vunpack.c.l.b16 %v1950
    %v3615 = vunpack.c.h.b16 %v1950
    %v3616 = vunpack.c.l.b16 %v1951
    %v3617 = vunpack.c.h.b16 %v1951
    %v3618 = vunpack.c.l.b16 %v1952
    %v3619 = vunpack.c.h.b16 %v1952
    %v3620 = vunpack.c.l.b16 %v1953
    %v3621 = vunpack.c.h.b16 %v1953
    %v3622 = vunpack.c.l.b16 %v1954
    %v3623 = vunpack.c.h.b16 %v1954
    %v3624 = vunpack.c.l.b16 %v1955
    %v3625 = vunpack.c.h.b16 %v1955
    %v3626 = vunpack.c.l.b16 %v1956
    %v3627 = vunpack.c.h.b16 %v1956
    %v3628 = vunpack.c.l.b16 %v1957
    %v3629 = vunpack.c.h.b16 %v1957
    %v3630 = vunpack.c.l.b16 %v1958
    %v3631 = vunpack.c.h.b16 %v1958
    %v3632 = vunpack.c.l.b16 %v1959
    %v3633 = vunpack.c.h.b16 %v1959
    %v3634 = vunpack.c.l.b16 %v1960
    %v3635 = vunpack.c.h.b16 %v1960
    %v3636 = vunpack.c.l.b16 %v1961
    %v3637 = vunpack.c.h.b16 %v1961
    %v3638 = vunpack.c.l.b16 %v1962
    %v3639 = vunpack.c.h.b16 %v1962
    %v3640 = vunpack.c.l.b16 %v1963
    %v3641 = vunpack.c.h.b16 %v1963
    %v3642 = vunpack.c.l.b16 %v1964
    %v3643 = vunpack.c.h.b16 %v1964
    %v3644 = vunpack.c.l.b16 %v1965
    %v3645 = vunpack.c.h.b16 %v1965
    %v3646 = vunpack.c.l.b16 %v1966
    %v3647 = vunpack.c.h.b16 %v1966
    %v3648 = vunpack.c.l.b16 %v1967
    %v3649 = vunpack.c.h.b16 %v1967
    %v3650 = vunpack.c.l.b16 %v1968
    %v3651 = vunpack.c.h.b16 %v1968
    %v3652 = vunpack.c.l.b16 %v1969
    %v3653 = vunpack.c.h.b16 %v1969
    %v3654 = vunpack.c.l.b16 %v1970
    %v3655 = vunpack.c.h.b16 %v1970
    %v3656 = vunpack.c.l.b16 %v1971
    %v3657 = vunpack.c.h.b16 %v1971
    %v3658 = vunpack.c.l.b16 %v1972
    %v3659 = vunpack.c.h.b16 %v1972
    %v3660 = vunpack.c.l.b16 %v1973
    %v3661 = vunpack.c.h.b16 %v1973
    %v3662 = vunpack.c.l.b16 %v1974
    %v3663 = vunpack.c.h.b16 %v1974
    %v3664 = vunpack.c.l.b16 %v1975
    %v3665 = vunpack.c.h.b16 %v1975
    %v3666 = vunpack.c.l.b16 %v1976
    %v3667 = vunpack.c.h.b16 %v1976
    %v3668 = vunpack.c.l.b16 %v1977
    %v3669 = vunpack.c.h.b16 %v1977
    %v3670 = vunpack.c.l.b16 %v1978
    %v3671 = vunpack.c.h.b16 %v1978
    %v3672 = vunpack.c.l.b16 %v1979
    %v3673 = vunpack.c.h.b16 %v1979
    %v3674 = vunpack.c.l.b16 %v1980
    %v3675 = vunpack.c.h.b16 %v1980
    %v3676 = vunpack.c.l.b16 %v1981
    %v3677 = vunpack.c.h.b16 %v1981
    %v3678 = vunpack.c.l.b16 %v1982
    %v3679 = vunpack.c.h.b16 %v1982
    %v3680 = vunpack.c.l.b16 %v1983
    %v3681 = vunpack.c.h.b16 %v1983
    %v3682 = vunpack.c.l.b16 %v1984
    %v3683 = vunpack.c.h.b16 %v1984
    %v3684 = vunpack.c.l.b16 %v1985
    %v3685 = vunpack.c.h.b16 %v1985
    %v3686 = vunpack.c.l.b16 %v1986
    %v3687 = vunpack.c.h.b16 %v1986
    %v3688 = vunpack.c.l.b16 %v1987
    %v3689 = vunpack.c.h.b16 %v1987
    %v3690 = vunpack.c.l.b16 %v1988
    %v3691 = vunpack.c.h.b16 %v1988
    %v3692 = vunpack.c.l.b16 %v1989
    %v3693 = vunpack.c.h.b16 %v1989
    %v3694 = vunpack.c.l.b16 %v1990
    %v3695 = vunpack.c.h.b16 %v1990
    %v3696 = vunpack.c.l.b16 %v1991
    %v3697 = vunpack.c.h.b16 %v1991
    %v3698 = vunpack.c.l.b16 %v1992
    %v3699 = vunpack.c.h.b16 %v1992
    %v3700 = vunpack.c.l.b16 %v1993
    %v3701 = vunpack.c.h.b16 %v1993
    %v3702 = vunpack.c.l.b16 %v1994
    %v3703 = vunpack.c.h.b16 %v1994
    %v3704 = vunpack.c.l.b16 %v1995
    %v3705 = vunpack.c.h.b16 %v1995
    %v3706 = vunpack.c.l.b16 %v1996
    %v3707 = vunpack.c.h.b16 %v1996
    %v3708 = vunpack.c.l.b16 %v1997
    %v3709 = vunpack.c.h.b16 %v1997
    %v3710 = vunpack.c.l.b16 %v1998
    %v3711 = vunpack.c.h.b16 %v1998
    %v3712 = vunpack.c.l.b16 %v1999
    %v3713 = vunpack.c.h.b16 %v1999
    %v3714 = vunpack.c.l.b16 %v2000
    %v3715 = vunpack.c.h.b16 %v2000
    %v3716 = vunpack.c.l.b16 %v2001
    %v3717 = vunpack.c.h.b16 %v2001
    %v3718 = vunpack.c.l.b16 %v2002
    %v3719 = vunpack.c.h.b16 %v2002
    %v3720 = vunpack.c.l.b16 %v2003
    %v3721 = vunpack.c.h.b16 %v2003
    %v3722 = vunpack.c.l.b16 %v2004
    %v3723 = vunpack.c.h.b16 %v2004
    %v3724 = vunpack.c.l.b16 %v2005
    %v3725 = vunpack.c.h.b16 %v2005
    %v3726 = vunpack.c.l.b16 %v2006
    %v3727 = vunpack.c.h.b16 %v2006
    %v3728 = vunpack.c.l.b16 %v2007
    %v3729 = vunpack.c.h.b16 %v2007
    %v3730 = vunpack.c.l.b16 %v2008
    %v3731 = vunpack.c.h.b16 %v2008
    %v3732 = vunpack.c.l.b16 %v2009
    %v3733 = vunpack.c.h.b16 %v2009
    %v3734 = vunpack.c.l.b16 %v2010
    %v3735 = vunpack.c.h.b16 %v2010
    %v3736 = vunpack.c.l.b16 %v2011
    %v3737 = vunpack.c.h.b16 %v2011
    %v3738 = vunpack.c.l.b16 %v2012
    %v3739 = vunpack.c.h.b16 %v2012
    %v3740 = vunpack.c.l.b16 %v2013
    %v3741 = vunpack.c.h.b16 %v2013
    %v3742 = vunpack.c.l.b16 %v2014
    %v3743 = vunpack.c.h.b16 %v2014
    %v3744 = vunpack.c.l.b16 %v2015
    %v3745 = vunpack.c.h.b16 %v2015
    %v3746 = vunpack.c.l.b16 %v2016
    %v3747 = vunpack.c.h.b16 %v2016
    %v3748 = vunpack.c.l.b16 %v2017
    %v3749 = vunpack.c.h.b16 %v2017
    %v3750 = vunpack.c.l.b16 %v2018
    %v3751 = vunpack.c.h.b16 %v2018
    %v3752 = vunpack.c.l.b16 %v2019
    %v3753 = vunpack.c.h.b16 %v2019
    %v3754 = vunpack.c.l.b16 %v2020
    %v3755 = vunpack.c.h.b16 %v2020
    %v3756 = vunpack.c.l.b16 %v2021
    %v3757 = vunpack.c.h.b16 %v2021
    %v3758 = vunpack.c.l.b16 %v2022
    %v3759 = vunpack.c.h.b16 %v2022
    %v3760 = vunpack.c.l.b16 %v2023
    %v3761 = vunpack.c.h.b16 %v2023
    %v3762 = vunpack.c.l.b16 %v2024
    %v3763 = vunpack.c.h.b16 %v2024
    %v3764 = vunpack.c.l.b16 %v2025
    %v3765 = vunpack.c.h.b16 %v2025
    %v3766 = vunpack.c.l.b16 %v2026
    %v3767 = vunpack.c.h.b16 %v2026
    %v3768 = vunpack.c.l.b16 %v2027
    %v3769 = vunpack.c.h.b16 %v2027
    %v3770 = vunpack.c.l.b16 %v2028
    %v3771 = vunpack.c.h.b16 %v2028
    %v3772 = vunpack.c.l.b16 %v2029
    %v3773 = vunpack.c.h.b16 %v2029
    %v3774 = vunpack.c.l.b16 %v2030
    %v3775 = vunpack.c.h.b16 %v2030
    %v3776 = vunpack.c.l.b16 %v2031
    %v3777 = vunpack.c.h.b16 %v2031
    %v3778 = vunpack.c.l.b16 %v2032
    %v3779 = vunpack.c.h.b16 %v2032
    %v3780 = vunpack.c.l.b16 %v2033
    %v3781 = vunpack.c.h.b16 %v2033
    %v3782 = vunpack.c.l.b16 %v2034
    %v3783 = vunpack.c.h.b16 %v2034
    %v3784 = vunpack.c.l.b16 %v2035
    %v3785 = vunpack.c.h.b16 %v2035
    %v3786 = vunpack.c.l.b16 %v2036
    %v3787 = vunpack.c.h.b16 %v2036
    %v3788 = vunpack.c.l.b16 %v2037
    %v3789 = vunpack.c.h.b16 %v2037
    %v3790 = vunpack.c.l.b16 %v2038
    %v3791 = vunpack.c.h.b16 %v2038
    %v3792 = vunpack.c.l.b16 %v2039
    %v3793 = vunpack.c.h.b16 %v2039
    %v3794 = vunpack.c.l.b16 %v2040
    %v3795 = vunpack.c.h.b16 %v2040
    %v3796 = vunpack.c.l.b16 %v2041
    %v3797 = vunpack.c.h.b16 %v2041
    %v3798 = vunpack.c.l.b16 %v2042
    %v3799 = vunpack.c.h.b16 %v2042
    %v3800 = vunpack.c.l.b16 %v2043
    %v3801 = vunpack.c.h.b16 %v2043
    %v3802 = vunpack.c.l.b16 %v2044
    %v3803 = vunpack.c.h.b16 %v2044
    %v3804 = vunpack.c.l.b16 %v2045
    %v3805 = vunpack.c.h.b16 %v2045
    %v3806 = vunpack.c.l.b16 %v2046
    %v3807 = vunpack.c.h.b16 %v2046
    %v3808 = vunpack.c.l.b16 %v2047
    %v3809 = vunpack.c.h.b16 %v2047
    %v3810 = vunpack.c.l.b16 %v2048
    %v3811 = vunpack.c.h.b16 %v2048
    %v3812 = vunpack.c.l.b16 %v2049
    %v3813 = vunpack.c.h.b16 %v2049
    %v3814 = vunpack.c.l.b16 %v2050
    %v3815 = vunpack.c.h.b16 %v2050
    %v3816 = vunpack.c.l.b16 %v2051
    %v3817 = vunpack.c.h.b16 %v2051
    %v3818 = vunpack.c.l.b16 %v2052
    %v3819 = vunpack.c.h.b16 %v2052
    %v3820 = vunpack.c.l.b16 %v2053
    %v3821 = vunpack.c.h.b16 %v2053
    %v3822 = vunpack.c.l.b16 %v2054
    %v3823 = vunpack.c.h.b16 %v2054
    %v3824 = vunpack.c.l.b16 %v2055
    %v3825 = vunpack.c.h.b16 %v2055
    %v3826 = vunpack.c.l.b16 %v2056
    %v3827 = vunpack.c.h.b16 %v2056
    %v3828 = vunpack.c.l.b16 %v2057
    %v3829 = vunpack.c.h.b16 %v2057
    %v3830 = vunpack.c.l.b16 %v2058
    %v3831 = vunpack.c.h.b16 %v2058
    %v3832 = vunpack.c.l.b16 %v2059
    %v3833 = vunpack.c.h.b16 %v2059
    %v3834 = vunpack.c.l.b16 %v2060
    %v3835 = vunpack.c.h.b16 %v2060
    %v3836 = vunpack.c.l.b16 %v2061
    %v3837 = vunpack.c.h.b16 %v2061
    %v3838 = vunpack.c.l.b16 %v2062
    %v3839 = vunpack.c.h.b16 %v2062
    %v3840 = vunpack.c.l.b16 %v2063
    %v3841 = vunpack.c.h.b16 %v2063
    %v3842 = vunpack.c.l.b16 %v2064
    %v3843 = vunpack.c.h.b16 %v2064
    %v3844 = vunpack.c.l.b16 %v2065
    %v3845 = vunpack.c.h.b16 %v2065
    %v3846 = vunpack.c.l.b16 %v2066
    %v3847 = vunpack.c.h.b16 %v2066
    %v3848 = vunpack.c.l.b16 %v2067
    %v3849 = vunpack.c.h.b16 %v2067
    %v3850 = vunpack.c.l.b16 %v2068
    %v3851 = vunpack.c.h.b16 %v2068
    %v3852 = vunpack.c.l.b16 %v2069
    %v3853 = vunpack.c.h.b16 %v2069
    %v3854 = vunpack.c.l.b16 %v2070
    %v3855 = vunpack.c.h.b16 %v2070
    %v3856 = vunpack.c.l.b16 %v2071
    %v3857 = vunpack.c.h.b16 %v2071
    %v3858 = vunpack.c.l.b16 %v2072
    %v3859 = vunpack.c.h.b16 %v2072
    %v3860 = vunpack.c.l.b16 %v2073
    %v3861 = vunpack.c.h.b16 %v2073
    %v3862 = vunpack.c.l.b16 %v2074
    %v3863 = vunpack.c.h.b16 %v2074
    %v3864 = vunpack.c.l.b16 %v2075
    %v3865 = vunpack.c.h.b16 %v2075
    %v3866 = vunpack.c.l.b16 %v2076
    %v3867 = vunpack.c.h.b16 %v2076
    %v3868 = vunpack.c.l.b16 %v2077
    %v3869 = vunpack.c.h.b16 %v2077
    %v3870 = vunpack.c.l.b16 %v2078
    %v3871 = vunpack.c.h.b16 %v2078
    %v3872 = vunpack.c.l.b16 %v2079
    %v3873 = vunpack.c.h.b16 %v2079
    %v3874 = vunpack.c.l.b16 %v2080
    %v3875 = vunpack.c.h.b16 %v2080
    %v3876 = vunpack.c.l.b16 %v2081
    %v3877 = vunpack.c.h.b16 %v2081
    %v3878 = vunpack.c.l.b16 %v2082
    %v3879 = vunpack.c.h.b16 %v2082
    %v3880 = vunpack.c.l.b16 %v2083
    %v3881 = vunpack.c.h.b16 %v2083
    %v3882 = vunpack.c.l.b16 %v2084
    %v3883 = vunpack.c.h.b16 %v2084
    %v3884 = vunpack.c.l.b16 %v2085
    %v3885 = vunpack.c.h.b16 %v2085
    %v3886 = vunpack.c.l.b16 %v2086
    %v3887 = vunpack.c.h.b16 %v2086
    %v3888 = vunpack.c.l.b16 %v2087
    %v3889 = vunpack.c.h.b16 %v2087
    %v3890 = vunpack.c.l.b16 %v2088
    %v3891 = vunpack.c.h.b16 %v2088
    %v3892 = vunpack.c.l.b16 %v2089
    %v3893 = vunpack.c.h.b16 %v2089
    %v3894 = vunpack.c.l.b16 %v2090
    %v3895 = vunpack.c.h.b16 %v2090
    %v3896 = vunpack.c.l.b16 %v2091
    %v3897 = vunpack.c.h.b16 %v2091
    %v3898 = vunpack.c.l.b16 %v2092
    %v3899 = vunpack.c.h.b16 %v2092
    %v3900 = vunpack.c.l.b16 %v2093
    %v3901 = vunpack.c.h.b16 %v2093
    %v3902 = vunpack.c.l.b16 %v2094
    %v3903 = vunpack.c.h.b16 %v2094
    %v3904 = vunpack.c.l.b16 %v2095
    %v3905 = vunpack.c.h.b16 %v2095
    %v3906 = vunpack.c.l.b16 %v2096
    %v3907 = vunpack.c.h.b16 %v2096
    %v3908 = vunpack.c.l.b16 %v2097
    %v3909 = vunpack.c.h.b16 %v2097
    %v3910 = vunpack.c.l.b16 %v2098
    %v3911 = vunpack.c.h.b16 %v2098
    %v3912 = vunpack.c.l.b16 %v2099
    %v3913 = vunpack.c.h.b16 %v2099
    %v3914 = vunpack.c.l.b16 %v2100
    %v3915 = vunpack.c.h.b16 %v2100
    %v3916 = vunpack.c.l.b16 %v2101
    %v3917 = vunpack.c.h.b16 %v2101
    %v3918 = vunpack.c.l.b16 %v2102
    %v3919 = vunpack.c.h.b16 %v2102
    %v3920 = vunpack.c.l.b16 %v2103
    %v3921 = vunpack.c.h.b16 %v2103
    %v3922 = vunpack.c.l.b16 %v2104
    %v3923 = vunpack.c.h.b16 %v2104
    %v3924 = vunpack.c.l.b16 %v2105
    %v3925 = vunpack.c.h.b16 %v2105
    %v3926 = vunpack.c.l.b16 %v2106
    %v3927 = vunpack.c.h.b16 %v2106
    %v3928 = vunpack.c.l.b16 %v2107
    %v3929 = vunpack.c.h.b16 %v2107
    %v3930 = vunpack.c.l.b16 %v2108
    %v3931 = vunpack.c.h.b16 %v2108
    %v3932 = vunpack.c.l.b16 %v2109
    %v3933 = vunpack.c.h.b16 %v2109
    %v3934 = vunpack.c.l.b16 %v2110
    %v3935 = vunpack.c.h.b16 %v2110
    %v3936 = vunpack.c.l.b16 %v2111
    %v3937 = vunpack.c.h.b16 %v2111
    %v3938 = vunpack.c.l.b16 %v2112
    %v3939 = vunpack.c.h.b16 %v2112
    %v3940 = vunpack.c.l.b16 %v2113
    %v3941 = vunpack.c.h.b16 %v2113
    %v3942 = vunpack.c.l.b16 %v2114
    %v3943 = vunpack.c.h.b16 %v2114
    %v3944 = vunpack.c.l.b16 %v2115
    %v3945 = vunpack.c.h.b16 %v2115
    %v3946 = vunpack.c.l.b16 %v2116
    %v3947 = vunpack.c.h.b16 %v2116
    %v3948 = vunpack.c.l.b16 %v2117
    %v3949 = vunpack.c.h.b16 %v2117
    %v3950 = vunpack.c.l.b16 %v2118
    %v3951 = vunpack.c.h.b16 %v2118
    %v3952 = vunpack.c.l.b16 %v2119
    %v3953 = vunpack.c.h.b16 %v2119
    %v3954 = vunpack.c.l.b16 %v2120
    %v3955 = vunpack.c.h.b16 %v2120
    %v3956 = vunpack.c.l.b16 %v2121
    %v3957 = vunpack.c.h.b16 %v2121
    %v3958 = vunpack.c.l.b16 %v2122
    %v3959 = vunpack.c.h.b16 %v2122
    %v3960 = vunpack.c.l.b16 %v2123
    %v3961 = vunpack.c.h.b16 %v2123
    %v3962 = vunpack.c.l.b16 %v2124
    %v3963 = vunpack.c.h.b16 %v2124
    %v3964 = vunpack.c.l.b16 %v2125
    %v3965 = vunpack.c.h.b16 %v2125
    %v3966 = vunpack.c.l.b16 %v2126
    %v3967 = vunpack.c.h.b16 %v2126
    %v3968 = vunpack.c.l.b16 %v2127
    %v3969 = vunpack.c.h.b16 %v2127
    %v3970 = vunpack.c.l.b16 %v2128
    %v3971 = vunpack.c.h.b16 %v2128
    %v3972 = vunpack.c.l.b16 %v2129
    %v3973 = vunpack.c.h.b16 %v2129
    %v3974 = vunpack.c.l.b16 %v2130
    %v3975 = vunpack.c.h.b16 %v2130
    %v3976 = vunpack.c.l.b16 %v2131
    %v3977 = vunpack.c.h.b16 %v2131
    %v3978 = vunpack.c.l.b16 %v2132
    %v3979 = vunpack.c.h.b16 %v2132
    %v3980 = vunpack.c.l.b16 %v2133
    %v3981 = vunpack.c.h.b16 %v2133
    %v3982 = vunpack.c.l.b16 %v2134
    %v3983 = vunpack.c.h.b16 %v2134
    %v3984 = vunpack.c.l.b16 %v2135
    %v3985 = vunpack.c.h.b16 %v2135
    %v3986 = vunpack.c.l.b16 %v2136
    %v3987 = vunpack.c.h.b16 %v2136
    %v3988 = vunpack.c.l.b16 %v2137
    %v3989 = vunpack.c.h.b16 %v2137
    %v3990 = vunpack.c.l.b16 %v2138
    %v3991 = vunpack.c.h.b16 %v2138
    %v3992 = vunpack.c.l.b16 %v2139
    %v3993 = vunpack.c.h.b16 %v2139
    %v3994 = vunpack.c.l.b16 %v2140
    %v3995 = vunpack.c.h.b16 %v2140
    %v3996 = vunpack.c.l.b16 %v2141
    %v3997 = vunpack.c.h.b16 %v2141
    %v3998 = vunpack.c.l.b16 %v2142
    %v3999 = vunpack.c.h.b16 %v2142
    %v4000 = vunpack.c.l.b16 %v2143
    %v4001 = vunpack.c.h.b16 %v2143
    %v4002 = vunpack.c.l.b16 %v2144
    %v4003 = vunpack.c.h.b16 %v2144
    %v4004 = vunpack.c.l.b16 %v2145
    %v4005 = vunpack.c.h.b16 %v2145
    %v4006 = vunpack.c.l.b16 %v2146
    %v4007 = vunpack.c.h.b16 %v2146
    %v4008 = vunpack.c.l.b16 %v2147
    %v4009 = vunpack.c.h.b16 %v2147
    %v4010 = vunpack.c.l.b16 %v2148
    %v4011 = vunpack.c.h.b16 %v2148
    %v4012 = vunpack.c.l.b16 %v2149
    %v4013 = vunpack.c.h.b16 %v2149
    %v4014 = vunpack.c.l.b16 %v2150
    %v4015 = vunpack.c.h.b16 %v2150
    %v4016 = vunpack.c.l.b16 %v2151
    %v4017 = vunpack.c.h.b16 %v2151
    %v4018 = vunpack.c.l.b16 %v2152
    %v4019 = vunpack.c.h.b16 %v2152
    %v4020 = vunpack.c.l.b16 %v2153
    %v4021 = vunpack.c.h.b16 %v2153
    %v4022 = vunpack.c.l.b16 %v2154
    %v4023 = vunpack.c.h.b16 %v2154
    %v4024 = vunpack.c.l.b16 %v2155
    %v4025 = vunpack.c.h.b16 %v2155
    %v4026 = vunpack.c.l.b16 %v2156
    %v4027 = vunpack.c.h.b16 %v2156
    %v4028 = vunpack.c.l.b16 %v2157
    %v4029 = vunpack.c.h.b16 %v2157
    %v4030 = vunpack.c.l.b16 %v2158
    %v4031 = vunpack.c.h.b16 %v2158
    %v4032 = vunpack.c.l.b16 %v2159
    %v4033 = vunpack.c.h.b16 %v2159
    %v4034 = vunpack.c.l.b16 %v2160
    %v4035 = vunpack.c.h.b16 %v2160
    %v4036 = vunpack.c.l.b16 %v2161
    %v4037 = vunpack.c.h.b16 %v2161
    %v4038 = vunpack.c.l.b16 %v2162
    %v4039 = vunpack.c.h.b16 %v2162
    %v4040 = vunpack.c.l.b16 %v2163
    %v4041 = vunpack.c.h.b16 %v2163
    %v4042 = vunpack.c.l.b16 %v2164
    %v4043 = vunpack.c.h.b16 %v2164
    %v4044 = vunpack.c.l.b16 %v2165
    %v4045 = vunpack.c.h.b16 %v2165
    %v4046 = vunpack.c.l.b16 %v2166
    %v4047 = vunpack.c.h.b16 %v2166
    %v4048 = vunpack.c.l.b16 %v2167
    %v4049 = vunpack.c.h.b16 %v2167
    %v4050 = vunpack.c.l.b16 %v2168
    %v4051 = vunpack.c.h.b16 %v2168
    %v4052 = vunpack.c.l.b16 %v2169
    %v4053 = vunpack.c.h.b16 %v2169
    %v4054 = vunpack.c.l.b16 %v2170
    %v4055 = vunpack.c.h.b16 %v2170
    %v4056 = vunpack.c.l.b16 %v2171
    %v4057 = vunpack.c.h.b16 %v2171
    %v4058 = vunpack.c.l.b16 %v2172
    %v4059 = vunpack.c.h.b16 %v2172
    %v4060 = vunpack.c.l.b16 %v2173
    %v4061 = vunpack.c.h.b16 %v2173
    %v4062 = vunpack.c.l.b16 %v2174
    %v4063 = vunpack.c.h.b16 %v2174
    %v4064 = vunpack.c.l.b16 %v2175
    %v4065 = vunpack.c.h.b16 %v2175
    %v4066 = vunpack.c.l.b16 %v2176
    %v4067 = vunpack.c.h.b16 %v2176
    %v4068 = vunpack.c.l.b16 %v2177
    %v4069 = vunpack.c.h.b16 %v2177
    %v4070 = vunpack.c.l.b16 %v2178
    %v4071 = vunpack.c.h.b16 %v2178
    %v4072 = vunpack.c.l.b16 %v2179
    %v4073 = vunpack.c.h.b16 %v2179
    %v4074 = vunpack.c.l.b16 %v2180
    %v4075 = vunpack.c.h.b16 %v2180
    %v4076 = vunpack.c.l.b16 %v2181
    %v4077 = vunpack.c.h.b16 %v2181
    %v4078 = vunpack.c.l.b16 %v2182
    %v4079 = vunpack.c.h.b16 %v2182
    %v4080 = vunpack.c.l.b16 %v2183
    %v4081 = vunpack.c.h.b16 %v2183
    %v4082 = vunpack.c.l.b16 %v2184
    %v4083 = vunpack.c.h.b16 %v2184
    %v4084 = vunpack.c.l.b16 %v2185
    %v4085 = vunpack.c.h.b16 %v2185
    %v4086 = vunpack.c.l.b16 %v2186
    %v4087 = vunpack.c.h.b16 %v2186
    %v4088 = vunpack.c.l.b16 %v2187
    %v4089 = vunpack.c.h.b16 %v2187
    %v4090 = vunpack.c.l.b16 %v2188
    %v4091 = vunpack.c.h.b16 %v2188
    %v4092 = vunpack.c.l.b16 %v2189
    %v4093 = vunpack.c.h.b16 %v2189
    %v4094 = vunpack.c.l.b16 %v2190
    %v4095 = vunpack.c.h.b16 %v2190
    %v4096 = vunpack.c.l.b16 %v2191
    %v4097 = vunpack.c.h.b16 %v2191
    %v4098 = vunpack.c.l.b16 %v2192
    %v4099 = vunpack.c.h.b16 %v2192
    %v4100 = vunpack.c.l.b16 %v2193
    %v4101 = vunpack.c.h.b16 %v2193
    %v4102 = vunpack.c.l.b16 %v2194
    %v4103 = vunpack.c.h.b16 %v2194
    %v4104 = vunpack.c.l.b16 %v2195
    %v4105 = vunpack.c.h.b16 %v2195
    %v4106 = vunpack.c.l.b16 %v2196
    %v4107 = vunpack.c.h.b16 %v2196
    %v4108 = vunpack.c.l.b16 %v2197
    %v4109 = vunpack.c.h.b16 %v2197
    %v4110 = vunpack.c.l.b16 %v2198
    %v4111 = vunpack.c.h.b16 %v2198
    %v4112 = vunpack.c.l.b16 %v2199
    %v4113 = vunpack.c.h.b16 %v2199
    %v4114 = vunpack.c.l.b16 %v2200
    %v4115 = vunpack.c.h.b16 %v2200
    %v4116 = vunpack.c.l.b16 %v2201
    %v4117 = vunpack.c.h.b16 %v2201
    %v4118 = vunpack.c.l.b16 %v2202
    %v4119 = vunpack.c.h.b16 %v2202
    %v4120 = vunpack.c.l.b16 %v2203
    %v4121 = vunpack.c.h.b16 %v2203
    %v4122 = vunpack.c.l.b16 %v2204
    %v4123 = vunpack.c.h.b16 %v2204
    %v4124 = vunpack.c.l.b16 %v2205
    %v4125 = vunpack.c.h.b16 %v2205
    %v4126 = vunpack.c.l.b16 %v2206
    %v4127 = vunpack.c.h.b16 %v2206
    %v4128 = vunpack.c.l.b16 %v2207
    %v4129 = vunpack.c.h.b16 %v2207
    %v4130 = vunpack.c.l.b16 %v2208
    %v4131 = vunpack.c.h.b16 %v2208
    %v4132 = vunpack.c.l.b16 %v2209
    %v4133 = vunpack.c.h.b16 %v2209
    %v4134 = vunpack.c.l.b16 %v2210
    %v4135 = vunpack.c.h.b16 %v2210
    %v4136 = vunpack.c.l.b16 %v2211
    %v4137 = vunpack.c.h.b16 %v2211
    %v4138 = vunpack.c.l.b16 %v2212
    %v4139 = vunpack.c.h.b16 %v2212
    %v4140 = vunpack.c.l.b16 %v2213
    %v4141 = vunpack.c.h.b16 %v2213
    %v4142 = vunpack.c.l.b16 %v2214
    %v4143 = vunpack.c.h.b16 %v2214
    %v4144 = vunpack.c.l.b16 %v2215
    %v4145 = vunpack.c.h.b16 %v2215
    %v4146 = vunpack.c.l.b16 %v2216
    %v4147 = vunpack.c.h.b16 %v2216
    %v4148 = vunpack.c.l.b16 %v2217
    %v4149 = vunpack.c.h.b16 %v2217
    %v4150 = vunpack.c.l.b16 %v2218
    %v4151 = vunpack.c.h.b16 %v2218
    %v4152 = vunpack.c.l.b16 %v2219
    %v4153 = vunpack.c.h.b16 %v2219
    %v4154 = vunpack.c.l.b16 %v2220
    %v4155 = vunpack.c.h.b16 %v2220
    %v4156 = vunpack.c.l.b16 %v2221
    %v4157 = vunpack.c.h.b16 %v2221
    %v4158 = vunpack.c.l.b16 %v2222
    %v4159 = vunpack.c.h.b16 %v2222
    %v4160 = vunpack.c.l.b16 %v2223
    %v4161 = vunpack.c.h.b16 %v2223
    %v4162 = vunpack.c.l.b16 %v2224
    %v4163 = vunpack.c.h.b16 %v2224
    %v4164 = vunpack.c.l.b16 %v2225
    %v4165 = vunpack.c.h.b16 %v2225
    %v4166 = vunpack.c.l.b16 %v2226
    %v4167 = vunpack.c.h.b16 %v2226
    %v4168 = vunpack.c.l.b16 %v2227
    %v4169 = vunpack.c.h.b16 %v2227
    %v4170 = vunpack.c.l.b16 %v2228
    %v4171 = vunpack.c.h.b16 %v2228
    %v4172 = vunpack.c.l.b16 %v2229
    %v4173 = vunpack.c.h.b16 %v2229
    %v4174 = vunpack.c.l.b16 %v2230
    %v4175 = vunpack.c.h.b16 %v2230
    %v4176 = vunpack.c.l.b16 %v2231
    %v4177 = vunpack.c.h.b16 %v2231
    %v4178 = vunpack.c.l.b16 %v2232
    %v4179 = vunpack.c.h.b16 %v2232
    %v4180 = vunpack.c.l.b16 %v2233
    %v4181 = vunpack.c.h.b16 %v2233
    %v4182 = vunpack.c.l.b16 %v2234
    %v4183 = vunpack.c.h.b16 %v2234
    %v4184 = vunpack.c.l.b16 %v2235
    %v4185 = vunpack.c.h.b16 %v2235
    %v4186 = vunpack.c.l.b16 %v2236
    %v4187 = vunpack.c.h.b16 %v2236
    %v4188 = vunpack.c.l.b16 %v2237
    %v4189 = vunpack.c.h.b16 %v2237
    %v4190 = vunpack.c.l.b16 %v2238
    %v4191 = vunpack.c.h.b16 %v2238
    %v4192 = vunpack.c.l.b16 %v2239
    %v4193 = vunpack.c.h.b16 %v2239
    %v4194 = vunpack.c.l.b16 %v2240
    %v4195 = vunpack.c.h.b16 %v2240
    %v4196 = vunpack.c.l.b16 %v2241
    %v4197 = vunpack.c.h.b16 %v2241
    %v4198 = vunpack.c.l.b16 %v2242
    %v4199 = vunpack.c.h.b16 %v2242
    %v4200 = vunpack.c.l.b16 %v2243
    %v4201 = vunpack.c.h.b16 %v2243
    %v4202 = vunpack.c.l.b16 %v2244
    %v4203 = vunpack.c.h.b16 %v2244
    %v4204 = vunpack.c.l.b16 %v2245
    %v4205 = vunpack.c.h.b16 %v2245
    %v4206 = vunpack.c.l.b16 %v2246
    %v4207 = vunpack.c.h.b16 %v2246
    %v4208 = vunpack.c.l.b16 %v2247
    %v4209 = vunpack.c.h.b16 %v2247
    %v4210 = vunpack.c.l.b16 %v2248
    %v4211 = vunpack.c.h.b16 %v2248
    %v4212 = vunpack.c.l.b16 %v2249
    %v4213 = vunpack.c.h.b16 %v2249
    %v4214 = vunpack.c.l.b16 %v2250
    %v4215 = vunpack.c.h.b16 %v2250
    %v4216 = vunpack.c.l.b16 %v2251
    %v4217 = vunpack.c.h.b16 %v2251
    %v4218 = vunpack.c.l.b16 %v2252
    %v4219 = vunpack.c.h.b16 %v2252
    %v4220 = vunpack.c.l.b16 %v2253
    %v4221 = vunpack.c.h.b16 %v2253
    %v4222 = vunpack.c.l.b16 %v2254
    %v4223 = vunpack.c.h.b16 %v2254
    %v4224 = vunpack.c.l.b16 %v2255
    %v4225 = vunpack.c.h.b16 %v2255
    %v4226 = vunpack.c.l.b16 %v2256
    %v4227 = vunpack.c.h.b16 %v2256
    %v4228 = vunpack.c.l.b16 %v2257
    %v4229 = vunpack.c.h.b16 %v2257
    %v4230 = vunpack.c.l.b16 %v2258
    %v4231 = vunpack.c.h.b16 %v2258
    %v4232 = vunpack.c.l.b16 %v2259
    %v4233 = vunpack.c.h.b16 %v2259
    %v4234 = vunpack.c.l.b16 %v2260
    %v4235 = vunpack.c.h.b16 %v2260
    %v4236 = vunpack.c.l.b16 %v2261
    %v4237 = vunpack.c.h.b16 %v2261
    %v4238 = vunpack.c.l.b16 %v2262
    %v4239 = vunpack.c.h.b16 %v2262
    %v4240 = vunpack.c.l.b16 %v2263
    %v4241 = vunpack.c.h.b16 %v2263
    %v4242 = vunpack.c.l.b16 %v2264
    %v4243 = vunpack.c.h.b16 %v2264
    %v4244 = vunpack.c.l.b16 %v2265
    %v4245 = vunpack.c.h.b16 %v2265
    %v4246 = vunpack.c.l.b16 %v2266
    %v4247 = vunpack.c.h.b16 %v2266
    %v4248 = vunpack.c.l.b16 %v2267
    %v4249 = vunpack.c.h.b16 %v2267
    %v4250 = vunpack.c.l.b16 %v2268
    %v4251 = vunpack.c.h.b16 %v2268
    %v4252 = vunpack.c.l.b16 %v2269
    %v4253 = vunpack.c.h.b16 %v2269
    %v4254 = vunpack.c.l.b16 %v2270
    %v4255 = vunpack.c.h.b16 %v2270
    %v4256 = vunpack.c.l.b16 %v2271
    %v4257 = vunpack.c.h.b16 %v2271
    %v4258 = vunpack.c.l.b16 %v2272
    %v4259 = vunpack.c.h.b16 %v2272
    %v4260 = vunpack.c.l.b16 %v2273
    %v4261 = vunpack.c.h.b16 %v2273
    %v4262 = vunpack.c.l.b16 %v2274
    %v4263 = vunpack.c.h.b16 %v2274
    %v4264 = vunpack.c.l.b16 %v2275
    %v4265 = vunpack.c.h.b16 %v2275
    %v4266 = vunpack.c.l.b16 %v2276
    %v4267 = vunpack.c.h.b16 %v2276
    %v4268 = vunpack.c.l.b16 %v2277
    %v4269 = vunpack.c.h.b16 %v2277
    %v4270 = vunpack.c.l.b16 %v2278
    %v4271 = vunpack.c.h.b16 %v2278
    %v4272 = vunpack.c.l.b16 %v2279
    %v4273 = vunpack.c.h.b16 %v2279
    %v4274 = vunpack.c.l.b16 %v2280
    %v4275 = vunpack.c.h.b16 %v2280
    %v4276 = vunpack.c.l.b16 %v2281
    %v4277 = vunpack.c.h.b16 %v2281
    %v4278 = vunpack.c.l.b16 %v2282
    %v4279 = vunpack.c.h.b16 %v2282
    %v4280 = vunpack.c.l.b16 %v2283
    %v4281 = vunpack.c.h.b16 %v2283
    %v4282 = vunpack.c.l.b16 %v2284
    %v4283 = vunpack.c.h.b16 %v2284
    %v4284 = vunpack.c.l.b16 %v2285
    %v4285 = vunpack.c.h.b16 %v2285
    %v4286 = vunpack.c.l.b16 %v2286
    %v4287 = vunpack.c.h.b16 %v2286
    %v4288 = vunpack.c.l.b16 %v2287
    %v4289 = vunpack.c.h.b16 %v2287
    %v4290 = vunpack.c.l.b16 %v2288
    %v4291 = vunpack.c.h.b16 %v2288
    %v4292 = vunpack.c.l.b16 %v2289
    %v4293 = vunpack.c.h.b16 %v2289
    %v4294 = vunpack.c.l.b16 %v2290
    %v4295 = vunpack.c.h.b16 %v2290
    %v4296 = vunpack.c.l.b16 %v2291
    %v4297 = vunpack.c.h.b16 %v2291
    %v4298 = vunpack.c.l.b16 %v2292
    %v4299 = vunpack.c.h.b16 %v2292
    %v4300 = vunpack.c.l.b16 %v2293
    %v4301 = vunpack.c.h.b16 %v2293
    %v4302 = vunpack.c.l.b16 %v2294
    %v4303 = vunpack.c.h.b16 %v2294
    %v4304 = vunpack.c.l.b16 %v2295
    %v4305 = vunpack.c.h.b16 %v2295
    %v4306 = vunpack.c.l.b16 %v2296
    %v4307 = vunpack.c.h.b16 %v2296
    %v4308 = vunpack.c.l.b16 %v2297
    %v4309 = vunpack.c.h.b16 %v2297
    %v4310 = vunpack.c.l.b16 %v2298
    %v4311 = vunpack.c.h.b16 %v2298
    %v4312 = vunpack.c.l.b16 %v2299
    %v4313 = vunpack.c.h.b16 %v2299
    %v4314 = vunpack.c.l.b16 %v2300
    %v4315 = vunpack.c.h.b16 %v2300
    %v4316 = vunpack.c.l.b16 %v2301
    %v4317 = vunpack.c.h.b16 %v2301
    %v4318 = vunpack.c.l.b16 %v2302
    %v4319 = vunpack.c.h.b16 %v2302
    %v4320 = vunpack.c.l.b16 %v2303
    %v4321 = vunpack.c.h.b16 %v2303
    %v4322 = vunpack.c.l.b16 %v2304
    %v4323 = vunpack.c.h.b16 %v2304
    %v4324 = vunpack.c.l.b16 %v2305
    %v4325 = vunpack.c.h.b16 %v2305
    %v4326 = vunpack.c.l.b16 %v2306
    %v4327 = vunpack.c.h.b16 %v2306
    %v4328 = vunpack.c.l.b16 %v2307
    %v4329 = vunpack.c.h.b16 %v2307
    %v4330 = vunpack.c.l.b16 %v2308
    %v4331 = vunpack.c.h.b16 %v2308
    %v4332 = vunpack.c.l.b16 %v2309
    %v4333 = vunpack.c.h.b16 %v2309
    %v4334 = vunpack.c.l.b16 %v2310
    %v4335 = vunpack.c.h.b16 %v2310
    %v4336 = vunpack.c.l.b16 %v2311
    %v4337 = vunpack.c.h.b16 %v2311
    %v4338 = vunpack.c.l.b16 %v2312
    %v4339 = vunpack.c.h.b16 %v2312
    %v4340 = vunpack.c.l.b16 %v2313
    %v4341 = vunpack.c.h.b16 %v2313
    %v4342 = vunpack.c.l.b16 %v2314
    %v4343 = vunpack.c.h.b16 %v2314
    %v4344 = vunpack.c.l.b16 %v2315
    %v4345 = vunpack.c.h.b16 %v2315
    %v4346 = vunpack.c.l.b16 %v2316
    %v4347 = vunpack.c.h.b16 %v2316
    %v4348 = vunpack.c.l.b16 %v2317
    %v4349 = vunpack.c.h.b16 %v2317
    %v4350 = vunpack.c.l.b16 %v2318
    %v4351 = vunpack.c.h.b16 %v2318
    %v4352 = vunpack.c.l.b16 %v2319
    %v4353 = vunpack.c.h.b16 %v2319
    %v4354 = vunpack.c.l.b16 %v2320
    %v4355 = vunpack.c.h.b16 %v2320
    %v4356 = vunpack.c.l.b16 %v2321
    %v4357 = vunpack.c.h.b16 %v2321
    %v4358 = vunpack.c.l.b16 %v2322
    %v4359 = vunpack.c.h.b16 %v2322
    %v4360 = vunpack.c.l.b16 %v2323
    %v4361 = vunpack.c.h.b16 %v2323
    %v4362 = vunpack.c.l.b16 %v2324
    %v4363 = vunpack.c.h.b16 %v2324
    %v4364 = vunpack.c.l.b16 %v2325
    %v4365 = vunpack.c.h.b16 %v2325
    %v4366 = vunpack.c.l.b16 %v2326
    %v4367 = vunpack.c.h.b16 %v2326
    %v4368 = vunpack.c.l.b16 %v2327
    %v4369 = vunpack.c.h.b16 %v2327
    %v4370 = vunpack.c.l.b16 %v2328
    %v4371 = vunpack.c.h.b16 %v2328
    %v4372 = vunpack.c.l.b16 %v2329
    %v4373 = vunpack.c.h.b16 %v2329
    %v4374 = vunpack.c.l.b16 %v2330
    %v4375 = vunpack.c.h.b16 %v2330
    %v4376 = vunpack.c.l.b16 %v2331
    %v4377 = vunpack.c.h.b16 %v2331
    %v4378 = vunpack.c.l.b16 %v2332
    %v4379 = vunpack.c.h.b16 %v2332
    %v4380 = vunpack.c.l.b16 %v2333
    %v4381 = vunpack.c.h.b16 %v2333
    %v4382 = vunpack.c.l.b16 %v2334
    %v4383 = vunpack.c.h.b16 %v2334
    %v4384 = vunpack.c.l.b16 %v2335
    %v4385 = vunpack.c.h.b16 %v2335
    %v4386 = vunpack.c.l.b16 %v2336
    %v4387 = vunpack.c.h.b16 %v2336
    %v4388 = vunpack.c.l.b16 %v2337
    %v4389 = vunpack.c.h.b16 %v2337
    %v4390 = vunpack.c.l.b16 %v2338
    %v4391 = vunpack.c.h.b16 %v2338
    %v4392 = vunpack.c.l.b16 %v2339
    %v4393 = vunpack.c.h.b16 %v2339
    %v4394 = vunpack.c.l.b16 %v2340
    %v4395 = vunpack.c.h.b16 %v2340
    %v4396 = vunpack.c.l.b16 %v2341
    %v4397 = vunpack.c.h.b16 %v2341
    %v4398 = vunpack.c.l.b16 %v2342
    %v4399 = vunpack.c.h.b16 %v2342
    %v4400 = vunpack.c.l.b16 %v2343
    %v4401 = vunpack.c.h.b16 %v2343
    %v4402 = vunpack.c.l.b16 %v2344
    %v4403 = vunpack.c.h.b16 %v2344
    %v4404 = vunpack.c.l.b16 %v2345
    %v4405 = vunpack.c.h.b16 %v2345
    %v4406 = vunpack.c.l.b16 %v2346
    %v4407 = vunpack.c.h.b16 %v2346
    %v4408 = vunpack.c.l.b16 %v2347
    %v4409 = vunpack.c.h.b16 %v2347
    %v4410 = vunpack.c.l.b16 %v2348
    %v4411 = vunpack.c.h.b16 %v2348
    %v4412 = vunpack.c.l.b16 %v2349
    %v4413 = vunpack.c.h.b16 %v2349
    %v4414 = vunpack.c.l.b16 %v2350
    %v4415 = vunpack.c.h.b16 %v2350
    %v4416 = vunpack.c.l.b16 %v2351
    %v4417 = vunpack.c.h.b16 %v2351
    %v4418 = vunpack.c.l.b16 %v2352
    %v4419 = vunpack.c.h.b16 %v2352
    %v4420 = vunpack.c.l.b16 %v2353
    %v4421 = vunpack.c.h.b16 %v2353
    %v4422 = vunpack.c.l.b16 %v2354
    %v4423 = vunpack.c.h.b16 %v2354
    %v4424 = vunpack.c.l.b16 %v2355
    %v4425 = vunpack.c.h.b16 %v2355
    %v4426 = vunpack.c.l.b16 %v2356
    %v4427 = vunpack.c.h.b16 %v2356
    %v4428 = vunpack.c.l.b16 %v2357
    %v4429 = vunpack.c.h.b16 %v2357
    %v4430 = vunpack.c.l.b16 %v2358
    %v4431 = vunpack.c.h.b16 %v2358
    %v4432 = vunpack.c.l.b16 %v2359
    %v4433 = vunpack.c.h.b16 %v2359
    %v4434 = vunpack.c.l.b16 %v2360
    %v4435 = vunpack.c.h.b16 %v2360
    %v4436 = vunpack.c.l.b16 %v2361
    %v4437 = vunpack.c.h.b16 %v2361
    %v4438 = vunpack.c.l.b16 %v2362
    %v4439 = vunpack.c.h.b16 %v2362
    %v4440 = vunpack.c.l.b16 %v2363
    %v4441 = vunpack.c.h.b16 %v2363
    %v4442 = vunpack.c.l.b16 %v2364
    %v4443 = vunpack.c.h.b16 %v2364
    %v4444 = vunpack.c.l.b16 %v2365
    %v4445 = vunpack.c.h.b16 %v2365
    %v4446 = vunpack.c.l.b16 %v2366
    %v4447 = vunpack.c.h.b16 %v2366
    %v4448 = vunpack.c.l.b16 %v2367
    %v4449 = vunpack.c.h.b16 %v2367
    %v4450 = vunpack.c.l.b16 %v2368
    %v4451 = vunpack.c.h.b16 %v2368
    %v4452 = vunpack.c.l.b16 %v2369
    %v4453 = vunpack.c.h.b16 %v2369
    %v4454 = vunpack.c.l.b16 %v2370
    %v4455 = vunpack.c.h.b16 %v2370
    %v4456 = vunpack.c.l.b16 %v2371
    %v4457 = vunpack.c.h.b16 %v2371
    %v4458 = vunpack.c.l.b16 %v2372
    %v4459 = vunpack.c.h.b16 %v2372
    %v4460 = vunpack.c.l.b16 %v2373
    %v4461 = vunpack.c.h.b16 %v2373
    %v4462 = vunpack.c.l.b16 %v2374
    %v4463 = vunpack.c.h.b16 %v2374
    %v4464 = vunpack.c.l.b16 %v2375
    %v4465 = vunpack.c.h.b16 %v2375
    %v4466 = vunpack.c.l.b16 %v2376
    %v4467 = vunpack.c.h.b16 %v2376
    %v4468 = vunpack.c.l.b16 %v2377
    %v4469 = vunpack.c.h.b16 %v2377
    %v4470 = vunpack.c.l.b16 %v2378
    %v4471 = vunpack.c.h.b16 %v2378
    %v4472 = vunpack.c.l.b16 %v2379
    %v4473 = vunpack.c.h.b16 %v2379
    %v4474 = vunpack.c.l.b16 %v2380
    %v4475 = vunpack.c.h.b16 %v2380
    %v4476 = vunpack.c.l.b16 %v2381
    %v4477 = vunpack.c.h.b16 %v2381
    %v4478 = vunpack.c.l.b16 %v2382
    %v4479 = vunpack.c.h.b16 %v2382
    %v4480 = vunpack.c.l.b16 %v2383
    %v4481 = vunpack.c.h.b16 %v2383
    %v4482 = vunpack.c.l.b16 %v2384
    %v4483 = vunpack.c.h.b16 %v2384
    %v4484 = vunpack.c.l.b16 %v2385
    %v4485 = vunpack.c.h.b16 %v2385
    %v4486 = vunpack.c.l.b16 %v2386
    %v4487 = vunpack.c.h.b16 %v2386
    %v4488 = vunpack.c.l.b16 %v2387
    %v4489 = vunpack.c.h.b16 %v2387
    %v4490 = vunpack.c.l.b16 %v2388
    %v4491 = vunpack.c.h.b16 %v2388
    %v4492 = vunpack.c.l.b16 %v2389
    %v4493 = vunpack.c.h.b16 %v2389
    %v4494 = vunpack.c.l.b16 %v2390
    %v4495 = vunpack.c.h.b16 %v2390
    %v4496 = vunpack.c.l.b16 %v2391
    %v4497 = vunpack.c.h.b16 %v2391
    %v4498 = vunpack.c.l.b16 %v2392
    %v4499 = vunpack.c.h.b16 %v2392
    %v4500 = vunpack.c.l.b16 %v2393
    %v4501 = vunpack.c.h.b16 %v2393
    %v4502 = vunpack.c.l.b16 %v2394
    %v4503 = vunpack.c.h.b16 %v2394
    %v4504 = vunpack.c.l.b16 %v2395
    %v4505 = vunpack.c.h.b16 %v2395
    %v4506 = vunpack.c.l.b16 %v2396
    %v4507 = vunpack.c.h.b16 %v2396
    %v4508 = vunpack.c.l.b16 %v2397
    %v4509 = vunpack.c.h.b16 %v2397
    %v4510 = vunpack.c.l.b16 %v2398
    %v4511 = vunpack.c.h.b16 %v2398
    %v4512 = vunpack.c.l.b16 %v2399
    %v4513 = vunpack.c.h.b16 %v2399
    %v4514 = vunpack.c.l.b16 %v2400
    %v4515 = vunpack.c.h.b16 %v2400
    %v4516 = vunpack.c.l.b16 %v2401
    %v4517 = vunpack.c.h.b16 %v2401
    %v4518 = vunpack.c.l.b16 %v2402
    %v4519 = vunpack.c.h.b16 %v2402
    %v4520 = vunpack.c.l.b16 %v2403
    %v4521 = vunpack.c.h.b16 %v2403
    %v4522 = vunpack.c.l.b16 %v2404
    %v4523 = vunpack.c.h.b16 %v2404
    %v4524 = vunpack.c.l.b16 %v2405
    %v4525 = vunpack.c.h.b16 %v2405
    %v4526 = vunpack.c.l.b16 %v2406
    %v4527 = vunpack.c.h.b16 %v2406
    %v4528 = vunpack.c.l.b16 %v2407
    %v4529 = vunpack.c.h.b16 %v2407
    %v4530 = vunpack.c.l.b16 %v2408
    %v4531 = vunpack.c.h.b16 %v2408
    %v4532 = vunpack.c.l.b16 %v2409
    %v4533 = vunpack.c.h.b16 %v2409
    %v4534 = vunpack.c.l.b16 %v2410
    %v4535 = vunpack.c.h.b16 %v2410
    %v4536 = vunpack.c.l.b16 %v2411
    %v4537 = vunpack.c.h.b16 %v2411
    %v4538 = vunpack.c.l.b16 %v2412
    %v4539 = vunpack.c.h.b16 %v2412
    %v4540 = vunpack.c.l.b16 %v2413
    %v4541 = vunpack.c.h.b16 %v2413
    %v4542 = vunpack.c.l.b16 %v2414
    %v4543 = vunpack.c.h.b16 %v2414
    %v4544 = vunpack.c.l.b16 %v2415
    %v4545 = vunpack.c.h.b16 %v2415
    %v4546 = vunpack.c.l.b16 %v2416
    %v4547 = vunpack.c.h.b16 %v2416
    %v4548 = vunpack.c.l.b16 %v2417
    %v4549 = vunpack.c.h.b16 %v2417
    %v4550 = vunpack.c.l.b16 %v2418
    %v4551 = vunpack.c.h.b16 %v2418
    %v4552 = vunpack.c.l.b16 %v2419
    %v4553 = vunpack.c.h.b16 %v2419
    %v4554 = vunpack.c.l.b16 %v2420
    %v4555 = vunpack.c.h.b16 %v2420
    %v4556 = vunpack.c.l.b16 %v2421
    %v4557 = vunpack.c.h.b16 %v2421
    %v4558 = vunpack.c.l.b16 %v2422
    %v4559 = vunpack.c.h.b16 %v2422
    %v4560 = vunpack.c.l.b16 %v2423
    %v4561 = vunpack.c.h.b16 %v2423
    %v4562 = vunpack.c.l.b16 %v2424
    %v4563 = vunpack.c.h.b16 %v2424
    %v4564 = vunpack.c.l.b16 %v2425
    %v4565 = vunpack.c.h.b16 %v2425
    %v4566 = vunpack.c.l.b16 %v2426
    %v4567 = vunpack.c.h.b16 %v2426
    %v4568 = vunpack.c.l.b16 %v2427
    %v4569 = vunpack.c.h.b16 %v2427
    %v4570 = vunpack.c.l.b16 %v2428
    %v4571 = vunpack.c.h.b16 %v2428
    %v4572 = vunpack.c.l.b16 %v2429
    %v4573 = vunpack.c.h.b16 %v2429
    %v4574 = vunpack.c.l.b16 %v2430
    %v4575 = vunpack.c.h.b16 %v2430
    %v4576 = vunpack.c.l.b16 %v2431
    %v4577 = vunpack.c.h.b16 %v2431
    %v4578 = vunpack.c.l.b16 %v2432
    %v4579 = vunpack.c.h.b16 %v2432
    %v4580 = vunpack.c.l.b16 %v2433
    %v4581 = vunpack.c.h.b16 %v2433
    %v4582 = vunpack.c.l.b16 %v2434
    %v4583 = vunpack.c.h.b16 %v2434
    %v4584 = vunpack.c.l.b16 %v2435
    %v4585 = vunpack.c.h.b16 %v2435
    %v4586 = vunpack.c.l.b16 %v2436
    %v4587 = vunpack.c.h.b16 %v2436
    %v4588 = vunpack.c.l.b16 %v2437
    %v4589 = vunpack.c.h.b16 %v2437
    %v4590 = vunpack.c.l.b16 %v2438
    %v4591 = vunpack.c.h.b16 %v2438
    %v4592 = vunpack.c.l.b16 %v2439
    %v4593 = vunpack.c.h.b16 %v2439
    %v4594 = vunpack.c.l.b16 %v2440
    %v4595 = vunpack.c.h.b16 %v2440
    %v4596 = vunpack.c.l.b16 %v2441
    %v4597 = vunpack.c.h.b16 %v2441
    %v4598 = vunpack.c.l.b16 %v2442
    %v4599 = vunpack.c.h.b16 %v2442
    %v4600 = vunpack.c.l.b16 %v2443
    %v4601 = vunpack.c.h.b16 %v2443
    %v4602 = vunpack.c.l.b16 %v2444
    %v4603 = vunpack.c.h.b16 %v2444
    %v4604 = vunpack.c.l.b16 %v2445
    %v4605 = vunpack.c.h.b16 %v2445
    %v4606 = vunpack.c.l.b16 %v2446
    %v4607 = vunpack.c.h.b16 %v2446
    %v4608 = vunpack.c.l.b16 %v2447
    %v4609 = vunpack.c.h.b16 %v2447
    %v4610 = vunpack.c.l.b16 %v2448
    %v4611 = vunpack.c.h.b16 %v2448
    %v4612 = vunpack.c.l.b16 %v2449
    %v4613 = vunpack.c.h.b16 %v2449
    %v4614 = vunpack.c.l.b16 %v2450
    %v4615 = vunpack.c.h.b16 %v2450
    %v4616 = vunpack.c.l.b16 %v2451
    %v4617 = vunpack.c.h.b16 %v2451
    %v4618 = vunpack.c.l.b16 %v2452
    %v4619 = vunpack.c.h.b16 %v2452
    %v4620 = vunpack.c.l.b16 %v2453
    %v4621 = vunpack.c.h.b16 %v2453
    %v4622 = vunpack.c.l.b16 %v2454
    %v4623 = vunpack.c.h.b16 %v2454
    %v4624 = vunpack.c.l.b16 %v2455
    %v4625 = vunpack.c.h.b16 %v2455
    %v4626 = vunpack.c.l.b16 %v2456
    %v4627 = vunpack.c.h.b16 %v2456
    %v4628 = vunpack.c.l.b16 %v2457
    %v4629 = vunpack.c.h.b16 %v2457
    %v4630 = vunpack.c.l.b16 %v2458
    %v4631 = vunpack.c.h.b16 %v2458
    %v4632 = vunpack.c.l.b16 %v2459
    %v4633 = vunpack.c.h.b16 %v2459
    %v4634 = vunpack.c.l.b16 %v2460
    %v4635 = vunpack.c.h.b16 %v2460
    %v4636 = vunpack.c.l.b16 %v2461
    %v4637 = vunpack.c.h.b16 %v2461
    %v4638 = vunpack.c.l.b16 %v2462
    %v4639 = vunpack.c.h.b16 %v2462
    %v4640 = vunpack.c.l.b16 %v2463
    %v4641 = vunpack.c.h.b16 %v2463
    %v4642 = vunpack.c.l.b16 %v2464
    %v4643 = vunpack.c.h.b16 %v2464
    %v4644 = vunpack.c.l.b16 %v2465
    %v4645 = vunpack.c.h.b16 %v2465
    %v4646 = vunpack.c.l.b16 %v2466
    %v4647 = vunpack.c.h.b16 %v2466
    %v4648 = vunpack.c.l.b16 %v2467
    %v4649 = vunpack.c.h.b16 %v2467
    %v4650 = vunpack.c.l.b16 %v2468
    %v4651 = vunpack.c.h.b16 %v2468
    %v4652 = vunpack.c.l.b16 %v2469
    %v4653 = vunpack.c.h.b16 %v2469
    %v4654 = vunpack.c.l.b16 %v2470
    %v4655 = vunpack.c.h.b16 %v2470
    %v4656 = vunpack.c.l.b16 %v2471
    %v4657 = vunpack.c.h.b16 %v2471
    %v4658 = vunpack.c.l.b16 %v2472
    %v4659 = vunpack.c.h.b16 %v2472
    %v4660 = vunpack.c.l.b16 %v2473
    %v4661 = vunpack.c.h.b16 %v2473
    %v4662 = vunpack.c.l.b16 %v2474
    %v4663 = vunpack.c.h.b16 %v2474
    %v4664 = vunpack.c.l.b16 %v2475
    %v4665 = vunpack.c.h.b16 %v2475
    %v4666 = vunpack.c.l.b16 %v2476
    %v4667 = vunpack.c.h.b16 %v2476
    %v4668 = vunpack.c.l.b16 %v2477
    %v4669 = vunpack.c.h.b16 %v2477
    %v4670 = vunpack.c.l.b16 %v2478
    %v4671 = vunpack.c.h.b16 %v2478
    %v4672 = vunpack.c.l.b16 %v2479
    %v4673 = vunpack.c.h.b16 %v2479
    %v4674 = vunpack.c.l.b16 %v2480
    %v4675 = vunpack.c.h.b16 %v2480
    %v4676 = vunpack.c.l.b16 %v2481
    %v4677 = vunpack.c.h.b16 %v2481
    %v4678 = vunpack.c.l.b16 %v2482
    %v4679 = vunpack.c.h.b16 %v2482
    %v4680 = vunpack.c.l.b16 %v2483
    %v4681 = vunpack.c.h.b16 %v2483
    %v4682 = vunpack.c.l.b16 %v2484
    %v4683 = vunpack.c.h.b16 %v2484
    %v4684 = vunpack.c.l.b16 %v2485
    %v4685 = vunpack.c.h.b16 %v2485
    %v4686 = vunpack.c.l.b16 %v2486
    %v4687 = vunpack.c.h.b16 %v2486
    %v4688 = vunpack.c.l.b16 %v2487
    %v4689 = vunpack.c.h.b16 %v2487
    %v4690 = vunpack.c.l.b16 %v2488
    %v4691 = vunpack.c.h.b16 %v2488
    %v4692 = vunpack.c.l.b16 %v2489
    %v4693 = vunpack.c.h.b16 %v2489
    %v4694 = vunpack.c.l.b16 %v2490
    %v4695 = vunpack.c.h.b16 %v2490
    %v4696 = vunpack.c.l.b16 %v2491
    %v4697 = vunpack.c.h.b16 %v2491
    %v4698 = vunpack.c.l.b16 %v2492
    %v4699 = vunpack.c.h.b16 %v2492
    %v4700 = vunpack.c.l.b16 %v2493
    %v4701 = vunpack.c.h.b16 %v2493
    %v4702 = vunpack.c.l.b16 %v2494
    %v4703 = vunpack.c.h.b16 %v2494
    %v4704 = vunpack.c.l.b16 %v2495
    %v4705 = vunpack.c.h.b16 %v2495
    %v4706 = vunpack.c.l.b16 %v2496
    %v4707 = vunpack.c.h.b16 %v2496
    %v4708 = vunpack.c.l.b16 %v2497
    %v4709 = vunpack.c.h.b16 %v2497
    %v4710 = vunpack.c.l.b16 %v2498
    %v4711 = vunpack.c.h.b16 %v2498
    %v4712 = vunpack.c.l.b16 %v2499
    %v4713 = vunpack.c.h.b16 %v2499
    %v4714 = vunpack.c.l.b16 %v2500
    %v4715 = vunpack.c.h.b16 %v2500
    %v4716 = vunpack.c.l.b16 %v2501
    %v4717 = vunpack.c.h.b16 %v2501
    %v4718 = vunpack.c.l.b16 %v2502
    %v4719 = vunpack.c.h.b16 %v2502
    %v4720 = vunpack.c.l.b16 %v2503
    %v4721 = vunpack.c.h.b16 %v2503
    %v4722 = vunpack.c.l.b16 %v2504
    %v4723 = vunpack.c.h.b16 %v2504
    %v4724 = vunpack.c.l.b16 %v2505
    %v4725 = vunpack.c.h.b16 %v2505
    %v4726 = vunpack.c.l.b16 %v2506
    %v4727 = vunpack.c.h.b16 %v2506
    %v4728 = vunpack.c.l.b16 %v2507
    %v4729 = vunpack.c.h.b16 %v2507
    %v4730 = vunpack.c.l.b16 %v2508
    %v4731 = vunpack.c.h.b16 %v2508
    %v4732 = vunpack.c.l.b16 %v2509
    %v4733 = vunpack.c.h.b16 %v2509
    %v4734 = vunpack.c.l.b16 %v2510
    %v4735 = vunpack.c.h.b16 %v2510
    %v4736 = vunpack.c.l.b16 %v2511
    %v4737 = vunpack.c.h.b16 %v2511
    %v4738 = vunpack.c.l.b16 %v2512
    %v4739 = vunpack.c.h.b16 %v2512
    %v4740 = vunpack.c.l.b16 %v2513
    %v4741 = vunpack.c.h.b16 %v2513
    %v4742 = vunpack.c.l.b16 %v2514
    %v4743 = vunpack.c.h.b16 %v2514
    %v4744 = vunpack.c.l.b16 %v2515
    %v4745 = vunpack.c.h.b16 %v2515
    %v4746 = vunpack.c.l.b16 %v2516
    %v4747 = vunpack.c.h.b16 %v2516
    %v4748 = vunpack.c.l.b16 %v2517
    %v4749 = vunpack.c.h.b16 %v2517
    %v4750 = vunpack.c.l.b16 %v2518
    %v4751 = vunpack.c.h.b16 %v2518
    %v4752 = vunpack.c.l.b16 %v2519
    %v4753 = vunpack.c.h.b16 %v2519
    %v4754 = vunpack.c.l.b16 %v2520
    %v4755 = vunpack.c.h.b16 %v2520
    %v4756 = vunpack.c.l.b16 %v2521
    %v4757 = vunpack.c.h.b16 %v2521
    %v4758 = vunpack.c.l.b16 %v2522
    %v4759 = vunpack.c.h.b16 %v2522
    %v4760 = vunpack.c.l.b16 %v2523
    %v4761 = vunpack.c.h.b16 %v2523
    %v4762 = vunpack.c.l.b16 %v2524
    %v4763 = vunpack.c.h.b16 %v2524
    %v4764 = vunpack.c.l.b16 %v2525
    %v4765 = vunpack.c.h.b16 %v2525
    %v4766 = vunpack.c.l.b16 %v2526
    %v4767 = vunpack.c.h.b16 %v2526
    %v4768 = vunpack.c.l.b16 %v2527
    %v4769 = vunpack.c.h.b16 %v2527
    %v4770 = vunpack.c.l.b16 %v2528
    %v4771 = vunpack.c.h.b16 %v2528
    %v4772 = vunpack.c.l.b16 %v2529
    %v4773 = vunpack.c.h.b16 %v2529
    %v4774 = vunpack.c.l.b16 %v2530
    %v4775 = vunpack.c.h.b16 %v2530
    %v4776 = vunpack.c.l.b16 %v2531
    %v4777 = vunpack.c.h.b16 %v2531
    %v4778 = vunpack.c.l.b16 %v2532
    %v4779 = vunpack.c.h.b16 %v2532
    %v4780 = vunpack.c.l.b16 %v2533
    %v4781 = vunpack.c.h.b16 %v2533
    %v4782 = vunpack.c.l.b16 %v2534
    %v4783 = vunpack.c.h.b16 %v2534
    %v4784 = vunpack.c.l.b16 %v2535
    %v4785 = vunpack.c.h.b16 %v2535
    %v4786 = vunpack.c.l.b16 %v2536
    %v4787 = vunpack.c.h.b16 %v2536
    %v4788 = vunpack.c.l.b16 %v2537
    %v4789 = vunpack.c.h.b16 %v2537
    %v4790 = vunpack.c.l.b16 %v2538
    %v4791 = vunpack.c.h.b16 %v2538
    %v4792 = vunpack.c.l.b16 %v2539
    %v4793 = vunpack.c.h.b16 %v2539
    %v4794 = vunpack.c.l.b16 %v2540
    %v4795 = vunpack.c.h.b16 %v2540
    %v4796 = vunpack.c.l.b16 %v2541
    %v4797 = vunpack.c.h.b16 %v2541
    %v4798 = vunpack.c.l.b16 %v2542
    %v4799 = vunpack.c.h.b16 %v2542
    %v4800 = vunpack.c.l.b16 %v2543
    %v4801 = vunpack.c.h.b16 %v2543
    %v4802 = vunpack.c.l.b16 %v2544
    %v4803 = vunpack.c.h.b16 %v2544
    %v4804 = vunpack.c.l.b16 %v2545
    %v4805 = vunpack.c.h.b16 %v2545
    %v4806 = vunpack.c.l.b16 %v2546
    %v4807 = vunpack.c.h.b16 %v2546
    %v4808 = vunpack.c.l.b16 %v2547
    %v4809 = vunpack.c.h.b16 %v2547
    %v4810 = vunpack.c.l.b16 %v2548
    %v4811 = vunpack.c.h.b16 %v2548
    %v4812 = vunpack.c.l.b16 %v2549
    %v4813 = vunpack.c.h.b16 %v2549
    %v4814 = vunpack.c.l.b16 %v2550
    %v4815 = vunpack.c.h.b16 %v2550
    %v4816 = vunpack.c.l.b16 %v2551
    %v4817 = vunpack.c.h.b16 %v2551
    %v4818 = vunpack.c.l.b16 %v2552
    %v4819 = vunpack.c.h.b16 %v2552
    %v4820 = vunpack.c.l.b16 %v2553
    %v4821 = vunpack.c.h.b16 %v2553
    %v4822 = vunpack.c.l.b16 %v2554
    %v4823 = vunpack.c.h.b16 %v2554
    %v4824 = vunpack.c.l.b16 %v2555
    %v4825 = vunpack.c.h.b16 %v2555
    %v4826 = vunpack.c.l.b16 %v2556
    %v4827 = vunpack.c.h.b16 %v2556
    %v4828 = vunpack.c.l.b16 %v2557
    %v4829 = vunpack.c.h.b16 %v2557
    %v4830 = vunpack.c.l.b16 %v2558
    %v4831 = vunpack.c.h.b16 %v2558
    %v4832 = vunpack.c.l.b16 %v2559
    %v4833 = vunpack.c.h.b16 %v2559
    %v4834 = vunpack.c.l.b16 %v2560
    %v4835 = vunpack.c.h.b16 %v2560
    %v4836 = vunpack.c.l.b16 %v2561
    %v4837 = vunpack.c.h.b16 %v2561
    %v4838 = vunpack.c.l.b16 %v2562
    %v4839 = vunpack.c.h.b16 %v2562
    %v4840 = vunpack.c.l.b16 %v2563
    %v4841 = vunpack.c.h.b16 %v2563
    %v4842 = vunpack.c.l.b16 %v2564
    %v4843 = vunpack.c.h.b16 %v2564
    %v4844 = vunpack.c.l.b16 %v2565
    %v4845 = vunpack.c.h.b16 %v2565
    %v4846 = vunpack.c.l.b16 %v2566
    %v4847 = vunpack.c.h.b16 %v2566
    %v4848 = vunpack.c.l.b16 %v2567
    %v4849 = vunpack.c.h.b16 %v2567
    %v4850 = vunpack.c.l.b16 %v2568
    %v4851 = vunpack.c.h.b16 %v2568
    %v4852 = vunpack.c.l.b16 %v2569
    %v4853 = vunpack.c.h.b16 %v2569
    %v4854 = vunpack.c.l.b16 %v2570
    %v4855 = vunpack.c.h.b16 %v2570
    %v4856 = vunpack.c.l.b16 %v2571
    %v4857 = vunpack.c.h.b16 %v2571
    %v4858 = vunpack.c.l.b16 %v2572
    %v4859 = vunpack.c.h.b16 %v2572
    %v4860 = vunpack.c.l.b16 %v2573
    %v4861 = vunpack.c.h.b16 %v2573
    %v4862 = vunpack.c.l.b16 %v2574
    %v4863 = vunpack.c.h.b16 %v2574
    %v4864 = vunpack.c.l.b16 %v2575
    %v4865 = vunpack.c.h.b16 %v2575
    %v4866 = vunpack.c.l.b16 %v2576
    %v4867 = vunpack.c.h.b16 %v2576
    %v4868 = vunpack.c.l.b16 %v2577
    %v4869 = vunpack.c.h.b16 %v2577
    %v4870 = vunpack.c.l.b16 %v2578
    %v4871 = vunpack.c.h.b16 %v2578
    %v4872 = vunpack.c.l.b16 %v2579
    %v4873 = vunpack.c.h.b16 %v2579
    %v4874 = vunpack.c.l.b16 %v2580
    %v4875 = vunpack.c.h.b16 %v2580
    %v4876 = vunpack.c.l.b16 %v2581
    %v4877 = vunpack.c.h.b16 %v2581
    %v4878 = vunpack.c.l.b16 %v2582
    %v4879 = vunpack.c.h.b16 %v2582
    %v4880 = vunpack.c.l.b16 %v2583
    %v4881 = vunpack.c.h.b16 %v2583
    %v4882 = vunpack.c.l.b16 %v2584
    %v4883 = vunpack.c.h.b16 %v2584
    %v4884 = vunpack.c.l.b16 %v2585
    %v4885 = vunpack.c.h.b16 %v2585
    %v4886 = vunpack.c.l.b16 %v2586
    %v4887 = vunpack.c.h.b16 %v2586
    %v4888 = vunpack.c.l.b16 %v2587
    %v4889 = vunpack.c.h.b16 %v2587
    %v4890 = vunpack.c.l.b16 %v2588
    %v4891 = vunpack.c.h.b16 %v2588
    %v4892 = vunpack.c.l.b16 %v2589
    %v4893 = vunpack.c.h.b16 %v2589
    %v4894 = vunpack.c.l.b16 %v2590
    %v4895 = vunpack.c.h.b16 %v2590
    %v4896 = vunpack.c.l.b16 %v2591
    %v4897 = vunpack.c.h.b16 %v2591
    %v4898 = vunpack.c.l.b16 %v2592
    %v4899 = vunpack.c.h.b16 %v2592
    %v4900 = vunpack.c.l.b16 %v2593
    %v4901 = vunpack.c.h.b16 %v2593
    %v4902 = vunpack.c.l.b16 %v2594
    %v4903 = vunpack.c.h.b16 %v2594
    %v4904 = vunpack.c.l.b16 %v2595
    %v4905 = vunpack.c.h.b16 %v2595
    %v4906 = vunpack.c.l.b16 %v2596
    %v4907 = vunpack.c.h.b16 %v2596
    %v4908 = vunpack.c.l.b16 %v2597
    %v4909 = vunpack.c.h.b16 %v2597
    %v4910 = vunpack.c.l.b16 %v2598
    %v4911 = vunpack.c.h.b16 %v2598
    %v4912 = vunpack.c.l.b16 %v2599
    %v4913 = vunpack.c.h.b16 %v2599
    %v4914 = vunpack.c.l.b16 %v2600
    %v4915 = vunpack.c.h.b16 %v2600
    %v4916 = vunpack.c.l.b16 %v2601
    %v4917 = vunpack.c.h.b16 %v2601
    %v4918 = vunpack.c.l.b16 %v2602
    %v4919 = vunpack.c.h.b16 %v2602
    %v4920 = vunpack.c.l.b16 %v2603
    %v4921 = vunpack.c.h.b16 %v2603
    %v4922 = vunpack.c.l.b16 %v2604
    %v4923 = vunpack.c.h.b16 %v2604
    %v4924 = vunpack.c.l.b16 %v2605
    %v4925 = vunpack.c.h.b16 %v2605
    %v4926 = vunpack.c.l.b16 %v2606
    %v4927 = vunpack.c.h.b16 %v2606
    %v4928 = vunpack.c.l.b16 %v2607
    %v4929 = vunpack.c.h.b16 %v2607
    %v4930 = vpack.c.b16 %v3402, %v3394
    %v4931 = vpack.c.b16 %v3403, %v3395
    %v4932 = vpack.c.b16 %v3404, %v3396
    %v4933 = vpack.c.b16 %v3405, %v3397
    %v4934 = vpack.c.b16 %v3406, %v3398
    %v4935 = vpack.c.b16 %v3407, %v3399
    %v4936 = vpack.c.b16 %v3408, %v3400
    %v4937 = vpack.c.b16 %v3409, %v3401
    %v4938 = vpack.c.b16 %v3418, %v3410
    %v4939 = vpack.c.b16 %v3419, %v3411
    %v4940 = vpack.c.b16 %v3420, %v3412
    %v4941 = vpack.c.b16 %v3421, %v3413
    %v4942 = vpack.c.b16 %v3422, %v3414
    %v4943 = vpack.c.b16 %v3423, %v3415
    %v4944 = vpack.c.b16 %v3424, %v3416
    %v4945 = vpack.c.b16 %v3425, %v3417
    %v4946 = vpack.c.b16 %v3434, %v3426
    %v4947 = vpack.c.b16 %v3435, %v3427
    %v4948 = vpack.c.b16 %v3436, %v3428
    %v4949 = vpack.c.b16 %v3437, %v3429
    %v4950 = vpack.c.b16 %v3438, %v3430
    %v4951 = vpack.c.b16 %v3439, %v3431
    %v4952 = vpack.c.b16 %v3440, %v3432
    %v4953 = vpack.c.b16 %v3441, %v3433
    %v4954 = vpack.c.b16 %v3450, %v3442
    %v4955 = vpack.c.b16 %v3451, %v3443
    %v4956 = vpack.c.b16 %v3452, %v3444
    %v4957 = vpack.c.b16 %v3453, %v3445
    %v4958 = vpack.c.b16 %v3454, %v3446
    %v4959 = vpack.c.b16 %v3455, %v3447
    %v4960 = vpack.c.b16 %v3456, %v3448
    %v4961 = vpack.c.b16 %v3457, %v3449
    %v4962 = vpack.c.b16 %v3466, %v3458
    %v4963 = vpack.c.b16 %v3467, %v3459
    %v4964 = vpack.c.b16 %v3468, %v3460
    %v4965 = vpack.c.b16 %v3469, %v3461
    %v4966 = vpack.c.b16 %v3470, %v3462
    %v4967 = vpack.c.b16 %v3471, %v3463
    %v4968 = vpack.c.b16 %v3472, %v3464
    %v4969 = vpack.c.b16 %v3473, %v3465
    %v4970 = vpack.c.b16 %v3482, %v3474
    %v4971 = vpack.c.b16 %v3483, %v3475
    %v4972 = vpack.c.b16 %v3484, %v3476
    %v4973 = vpack.c.b16 %v3485, %v3477
    %v4974 = vpack.c.b16 %v3486, %v3478
    %v4975 = vpack.c.b16 %v3487, %v3479
    %v4976 = vpack.c.b16 %v3488, %v3480
    %v4977 = vpack.c.b16 %v3489, %v3481
    %v4978 = vpack.c.b16 %v3498, %v3490
    %v4979 = vpack.c.b16 %v3499, %v3491
    %v4980 = vpack.c.b16 %v3500, %v3492
    %v4981 = vpack.c.b16 %v3501, %v3493
    %v4982 = vpack.c.b16 %v3502, %v3494
    %v4983 = vpack.c.b16 %v3503, %v3495
    %v4984 = vpack.c.b16 %v3504, %v3496
    %v4985 = vpack.c.b16 %v3505, %v3497
    %v4986 = vpack.c.b16 %v3514, %v3506
    %v4987 = vpack.c.b16 %v3515, %v3507
    %v4988 = vpack.c.b16 %v3516, %v3508
    %v4989 = vpack.c.b16 %v3517, %v3509
    %v4990 = vpack.c.b16 %v3518, %v3510
    %v4991 = vpack.c.b16 %v3519, %v3511
    %v4992 = vpack.c.b16 %v3520, %v3512
    %v4993 = vpack.c.b16 %v3521, %v3513
    %v4994 = vpack.c.b16 %v3530, %v3522
    %v4995 = vpack.c.b16 %v3531, %v3523
    %v4996 = vpack.c.b16 %v3532, %v3524
    %v4997 = vpack.c.b16 %v3533, %v3525
    %v4998 = vpack.c.b16 %v3534, %v3526
    %v4999 = vpack.c.b16 %v3535, %v3527
    %v5000 = vpack.c.b16 %v3536, %v3528
    %v5001 = vpack.c.b16 %v3537, %v3529
    %v5002 = vpack.c.b16 %v3546, %v3538
    %v5003 = vpack.c.b16 %v3547, %v3539
    %v5004 = vpack.c.b16 %v3548, %v3540
    %v5005 = vpack.c.b16 %v3549, %v3541
    %v5006 = vpack.c.b16 %v3550, %v3542
    %v5007 = vpack.c.b16 %v3551, %v3543
    %v5008 = vpack.c.b16 %v3552, %v3544
    %v5009 = vpack.c.b16 %v3553, %v3545
    %v5010 = vpack.c.b16 %v3562, %v3554
    %v5011 = vpack.c.b16 %v3563, %v3555
    %v5012 = vpack.c.b16 %v3564, %v3556
    %v5013 = vpack.c.b16 %v3565, %v3557
    %v5014 = vpack.c.b16 %v3566, %v3558
    %v5015 = vpack.c.b16 %v3567, %v3559
    %v5016 = vpack.c.b16 %v3568, %v3560
    %v5017 = vpack.c.b16 %v3569, %v3561
    %v5018 = vpack.c.b16 %v3578, %v3570
    %v5019 = vpack.c.b16 %v3579, %v3571
    %v5020 = vpack.c.b16 %v3580, %v3572
    %v5021 = vpack.c.b16 %v3581, %v3573
    %v5022 = vpack.c.b16 %v3582, %v3574
    %v5023 = vpack.c.b16 %v3583, %v3575
    %v5024 = vpack.c.b16 %v3584, %v3576
    %v5025 = vpack.c.b16 %v3585, %v3577
    %v5026 = vpack.c.b16 %v3594, %v3586
    %v5027 = vpack.c.b16 %v3595, %v3587
    %v5028 = vpack.c.b16 %v3596, %v3588
    %v5029 = vpack.c.b16 %v3597, %v3589
    %v5030 = vpack.c.b16 %v3598, %v3590
    %v5031 = vpack.c.b16 %v3599, %v3591
    %v5032 = vpack.c.b16 %v3600, %v3592
    %v5033 = vpack.c.b16 %v3601, %v3593
    %v5034 = vpack.c.b16 %v3610, %v3602
    %v5035 = vpack.c.b16 %v3611, %v3603
    %v5036 = vpack.c.b16 %v3612, %v3604
    %v5037 = vpack.c.b16 %v3613, %v3605
    %v5038 = vpack.c.b16 %v3614, %v3606
    %v5039 = vpack.c.b16 %v3615, %v3607
    %v5040 = vpack.c.b16 %v3616, %v3608
    %v5041 = vpack.c.b16 %v3617, %v3609
    %v5042 = vpack.c.b16 %v3626, %v3618
    %v5043 = vpack.c.b16 %v3627, %v3619
    %v5044 = vpack.c.b16 %v3628, %v3620
    %v5045 = vpack.c.b16 %v3629, %v3621
    %v5046 = vpack.c.b16 %v3630, %v3622
    %v5047 = vpack.c.b16 %v3631, %v3623
    %v5048 = vpack.c.b16 %v3632, %v3624
    %v5049 = vpack.c.b16 %v3633, %v3625
    %v5050 = vpack.c.b16 %v3642, %v3634
    %v5051 = vpack.c.b16 %v3643, %v3635
    %v5052 = vpack.c.b16 %v3644, %v3636
    %v5053 = vpack.c.b16 %v3645, %v3637
    %v5054 = vpack.c.b16 %v3646, %v3638
    %v5055 = vpack.c.b16 %v3647, %v3639
    %v5056 = vpack.c.b16 %v3648, %v3640
    %v5057 = vpack.c.b16 %v3649, %v3641
    %v5058 = vpack.c.b16 %v3658, %v3650
    %v5059 = vpack.c.b16 %v3659, %v3651
    %v5060 = vpack.c.b16 %v3660, %v3652
    %v5061 = vpack.c.b16 %v3661, %v3653
    %v5062 = vpack.c.b16 %v3662, %v3654
    %v5063 = vpack.c.b16 %v3663, %v3655
    %v5064 = vpack.c.b16 %v3664, %v3656
    %v5065 = vpack.c.b16 %v3665, %v3657
    %v5066 = vpack.c.b16 %v3674, %v3666
    %v5067 = vpack.c.b16 %v3675, %v3667
    %v5068 = vpack.c.b16 %v3676, %v3668
    %v5069 = vpack.c.b16 %v3677, %v3669
    %v5070 = vpack.c.b16 %v3678, %v3670
    %v5071 = vpack.c.b16 %v3679, %v3671
    %v5072 = vpack.c.b16 %v3680, %v3672
    %v5073 = vpack.c.b16 %v3681, %v3673
    %v5074 = vpack.c.b16 %v3690, %v3682
    %v5075 = vpack.c.b16 %v3691, %v3683
    %v5076 = vpack.c.b16 %v3692, %v3684
    %v5077 = vpack.c.b16 %v3693, %v3685
    %v5078 = vpack.c.b16 %v3694, %v3686
    %v5079 = vpack.c.b16 %v3695, %v3687
    %v5080 = vpack.c.b16 %v3696, %v3688
    %v5081 = vpack.c.b16 %v3697, %v3689
    %v5082 = vpack.c.b16 %v3706, %v3698
    %v5083 = vpack.c.b16 %v3707, %v3699
    %v5084 = vpack.c.b16 %v3708, %v3700
    %v5085 = vpack.c.b16 %v3709, %v3701
    %v5086 = vpack.c.b16 %v3710, %v3702
    %v5087 = vpack.c.b16 %v3711, %v3703
    %v5088 = vpack.c.b16 %v3712, %v3704
    %v5089 = vpack.c.b16 %v3713, %v3705
    %v5090 = vpack.c.b16 %v3722, %v3714
    %v5091 = vpack.c.b16 %v3723, %v3715
    %v5092 = vpack.c.b16 %v3724, %v3716
    %v5093 = vpack.c.b16 %v3725, %v3717
    %v5094 = vpack.c.b16 %v3726, %v3718
    %v5095 = vpack.c.b16 %v3727, %v3719
    %v5096 = vpack.c.b16 %v3728, %v3720
    %v5097 = vpack.c.b16 %v3729, %v3721
    %v5098 = vpack.c.b16 %v3738, %v3730
    %v5099 = vpack.c.b16 %v3739, %v3731
    %v5100 = vpack.c.b16 %v3740, %v3732
    %v5101 = vpack.c.b16 %v3741, %v3733
    %v5102 = vpack.c.b16 %v3742, %v3734
    %v5103 = vpack.c.b16 %v3743, %v3735
    %v5104 = vpack.c.b16 %v3744, %v3736
    %v5105 = vpack.c.b16 %v3745, %v3737
    %v5106 = vpack.c.b16 %v3754, %v3746
    %v5107 = vpack.c.b16 %v3755, %v3747
    %v5108 = vpack.c.b16 %v3756, %v3748
    %v5109 = vpack.c.b16 %v3757, %v3749
    %v5110 = vpack.c.b16 %v3758, %v3750
    %v5111 = vpack.c.b16 %v3759, %v3751
    %v5112 = vpack.c.b16 %v3760, %v3752
    %v5113 = vpack.c.b16 %v3761, %v3753
    %v5114 = vpack.c.b16 %v3770, %v3762
    %v5115 = vpack.c.b16 %v3771, %v3763
    %v5116 = vpack.c.b16 %v3772, %v3764
    %v5117 = vpack.c.b16 %v3773, %v3765
    %v5118 = vpack.c.b16 %v3774, %v3766
    %v5119 = vpack.c.b16 %v3775, %v3767
    %v5120 = vpack.c.b16 %v3776, %v3768
    %v5121 = vpack.c.b16 %v3777, %v3769
    %v5122 = vpack.c.b16 %v3786, %v3778
    %v5123 = vpack.c.b16 %v3787, %v3779
    %v5124 = vpack.c.b16 %v3788, %v3780
    %v5125 = vpack.c.b16 %v3789, %v3781
    %v5126 = vpack.c.b16 %v3790, %v3782
    %v5127 = vpack.c.b16 %v3791, %v3783
    %v5128 = vpack.c.b16 %v3792, %v3784
    %v5129 = vpack.c.b16 %v3793, %v3785
    %v5130 = vpack.c.b16 %v3802, %v3794
    %v5131 = vpack.c.b16 %v3803, %v3795
    %v5132 = vpack.c.b16 %v3804, %v3796
    %v5133 = vpack.c.b16 %v3805, %v3797
    %v5134 = vpack.c.b16 %v3806, %v3798
    %v5135 = vpack.c.b16 %v3807, %v3799
    %v5136 = vpack.c.b16 %v3808, %v3800
    %v5137 = vpack.c.b16 %v3809, %v3801
    %v5138 = vpack.c.b16 %v3818, %v3810
    %v5139 = vpack.c.b16 %v3819, %v3811
    %v5140 = vpack.c.b16 %v3820, %v3812
    %v5141 = vpack.c.b16 %v3821, %v3813
    %v5142 = vpack.c.b16 %v3822, %v3814
    %v5143 = vpack.c.b16 %v3823, %v3815
    %v5144 = vpack.c.b16 %v3824, %v3816
    %v5145 = vpack.c.b16 %v3825, %v3817
    %v5146 = vpack.c.b16 %v3834, %v3826
    %v5147 = vpack.c.b16 %v3835, %v3827
    %v5148 = vpack.c.b16 %v3836, %v3828
    %v5149 = vpack.c.b16 %v3837, %v3829
    %v5150 = vpack.c.b16 %v3838, %v3830
    %v5151 = vpack.c.b16 %v3839, %v3831
    %v5152 = vpack.c.b16 %v3840, %v3832
    %v5153 = vpack.c.b16 %v3841, %v3833
    %v5154 = vpack.c.b16 %v3850, %v3842
    %v5155 = vpack.c.b16 %v3851, %v3843
    %v5156 = vpack.c.b16 %v3852, %v3844
    %v5157 = vpack.c.b16 %v3853, %v3845
    %v5158 = vpack.c.b16 %v3854, %v3846
    %v5159 = vpack.c.b16 %v3855, %v3847
    %v5160 = vpack.c.b16 %v3856, %v3848
    %v5161 = vpack.c.b16 %v3857, %v3849
    %v5162 = vpack.c.b16 %v3866, %v3858
    %v5163 = vpack.c.b16 %v3867, %v3859
    %v5164 = vpack.c.b16 %v3868, %v3860
    %v5165 = vpack.c.b16 %v3869, %v3861
    %v5166 = vpack.c.b16 %v3870, %v3862
    %v5167 = vpack.c.b16 %v3871, %v3863
    %v5168 = vpack.c.b16 %v3872, %v3864
    %v5169 = vpack.c.b16 %v3873, %v3865
    %v5170 = vpack.c.b16 %v3882, %v3874
    %v5171 = vpack.c.b16 %v3883, %v3875
    %v5172 = vpack.c.b16 %v3884, %v3876
    %v5173 = vpack.c.b16 %v3885, %v3877
    %v5174 = vpack.c.b16 %v3886, %v3878
    %v5175 = vpack.c.b16 %v3887, %v3879
    %v5176 = vpack.c.b16 %v3888, %v3880
    %v5177 = vpack.c.b16 %v3889, %v3881
    %v5178 = vpack.c.b16 %v3898, %v3890
    %v5179 = vpack.c.b16 %v3899, %v3891
    %v5180 = vpack.c.b16 %v3900, %v3892
    %v5181 = vpack.c.b16 %v3901, %v3893
    %v5182 = vpack.c.b16 %v3902, %v3894
    %v5183 = vpack.c.b16 %v3903, %v3895
    %v5184 = vpack.c.b16 %v3904, %v3896
    %v5185 = vpack.c.b16 %v3905, %v3897
    %v5186 = vpack.c.b16 %v3914, %v3906
    %v5187 = vpack.c.b16 %v3915, %v3907
    %v5188 = vpack.c.b16 %v3916, %v3908
    %v5189 = vpack.c.b16 %v3917, %v3909
    %v5190 = vpack.c.b16 %v3918, %v3910
    %v5191 = vpack.c.b16 %v3919, %v3911
    %v5192 = vpack.c.b16 %v3920, %v3912
    %v5193 = vpack.c.b16 %v3921, %v3913
    %v5194 = vpack.c.b16 %v3930, %v3922
    %v5195 = vpack.c.b16 %v3931, %v3923
    %v5196 = vpack.c.b16 %v3932, %v3924
    %v5197 = vpack.c.b16 %v3933, %v3925
    %v5198 = vpack.c.b16 %v3934, %v3926
    %v5199 = vpack.c.b16 %v3935, %v3927
    %v5200 = vpack.c.b16 %v3936, %v3928
    %v5201 = vpack.c.b16 %v3937, %v3929
    %v5202 = vpack.c.b16 %v3946, %v3938
    %v5203 = vpack.c.b16 %v3947, %v3939
    %v5204 = vpack.c.b16 %v3948, %v3940
    %v5205 = vpack.c.b16 %v3949, %v3941
    %v5206 = vpack.c.b16 %v3950, %v3942
    %v5207 = vpack.c.b16 %v3951, %v3943
    %v5208 = vpack.c.b16 %v3952, %v3944
    %v5209 = vpack.c.b16 %v3953, %v3945
    %v5210 = vpack.c.b16 %v3962, %v3954
    %v5211 = vpack.c.b16 %v3963, %v3955
    %v5212 = vpack.c.b16 %v3964, %v3956
    %v5213 = vpack.c.b16 %v3965, %v3957
    %v5214 = vpack.c.b16 %v3966, %v3958
    %v5215 = vpack.c.b16 %v3967, %v3959
    %v5216 = vpack.c.b16 %v3968, %v3960
    %v5217 = vpack.c.b16 %v3969, %v3961
    %v5218 = vpack.c.b16 %v3978, %v3970
    %v5219 = vpack.c.b16 %v3979, %v3971
    %v5220 = vpack.c.b16 %v3980, %v3972
    %v5221 = vpack.c.b16 %v3981, %v3973
    %v5222 = vpack.c.b16 %v3982, %v3974
    %v5223 = vpack.c.b16 %v3983, %v3975
    %v5224 = vpack.c.b16 %v3984, %v3976
    %v5225 = vpack.c.b16 %v3985, %v3977
    %v5226 = vpack.c.b16 %v3994, %v3986
    %v5227 = vpack.c.b16 %v3995, %v3987
    %v5228 = vpack.c.b16 %v3996, %v3988
    %v5229 = vpack.c.b16 %v3997, %v3989
    %v5230 = vpack.c.b16 %v3998, %v3990
    %v5231 = vpack.c.b16 %v3999, %v3991
    %v5232 = vpack.c.b16 %v4000, %v3992
    %v5233 = vpack.c.b16 %v4001, %v3993
    %v5234 = vpack.c.b16 %v4010, %v4002
    %v5235 = vpack.c.b16 %v4011, %v4003
    %v5236 = vpack.c.b16 %v4012, %v4004
    %v5237 = vpack.c.b16 %v4013, %v4005
    %v5238 = vpack.c.b16 %v4014, %v4006
    %v5239 = vpack.c.b16 %v4015, %v4007
    %v5240 = vpack.c.b16 %v4016, %v4008
    %v5241 = vpack.c.b16 %v4017, %v4009
    %v5242 = vpack.c.b16 %v4026, %v4018
    %v5243 = vpack.c.b16 %v4027, %v4019
    %v5244 = vpack.c.b16 %v4028, %v4020
    %v5245 = vpack.c.b16 %v4029, %v4021
    %v5246 = vpack.c.b16 %v4030, %v4022
    %v5247 = vpack.c.b16 %v4031, %v4023
    %v5248 = vpack.c.b16 %v4032, %v4024
    %v5249 = vpack.c.b16 %v4033, %v4025
    %v5250 = vpack.c.b16 %v4042, %v4034
    %v5251 = vpack.c.b16 %v4043, %v4035
    %v5252 = vpack.c.b16 %v4044, %v4036
    %v5253 = vpack.c.b16 %v4045, %v4037
    %v5254 = vpack.c.b16 %v4046, %v4038
    %v5255 = vpack.c.b16 %v4047, %v4039
    %v5256 = vpack.c.b16 %v4048, %v4040
    %v5257 = vpack.c.b16 %v4049, %v4041
    %v5258 = vpack.c.b16 %v4058, %v4050
    %v5259 = vpack.c.b16 %v4059, %v4051
    %v5260 = vpack.c.b16 %v4060, %v4052
    %v5261 = vpack.c.b16 %v4061, %v4053
    %v5262 = vpack.c.b16 %v4062, %v4054
    %v5263 = vpack.c.b16 %v4063, %v4055
    %v5264 = vpack.c.b16 %v4064, %v4056
    %v5265 = vpack.c.b16 %v4065, %v4057
    %v5266 = vpack.c.b16 %v4074, %v4066
    %v5267 = vpack.c.b16 %v4075, %v4067
    %v5268 = vpack.c.b16 %v4076, %v4068
    %v5269 = vpack.c.b16 %v4077, %v4069
    %v5270 = vpack.c.b16 %v4078, %v4070
    %v5271 = vpack.c.b16 %v4079, %v4071
    %v5272 = vpack.c.b16 %v4080, %v4072
    %v5273 = vpack.c.b16 %v4081, %v4073
    %v5274 = vpack.c.b16 %v4090, %v4082
    %v5275 = vpack.c.b16 %v4091, %v4083
    %v5276 = vpack.c.b16 %v4092, %v4084
    %v5277 = vpack.c.b16 %v4093, %v4085
    %v5278 = vpack.c.b16 %v4094, %v4086
    %v5279 = vpack.c.b16 %v4095, %v4087
    %v5280 = vpack.c.b16 %v4096, %v4088
    %v5281 = vpack.c.b16 %v4097, %v4089
    %v5282 = vpack.c.b16 %v4106, %v4098
    %v5283 = vpack.c.b16 %v4107, %v4099
    %v5284 = vpack.c.b16 %v4108, %v4100
    %v5285 = vpack.c.b16 %v4109, %v4101
    %v5286 = vpack.c.b16 %v4110, %v4102
    %v5287 = vpack.c.b16 %v4111, %v4103
    %v5288 = vpack.c.b16 %v4112, %v4104
    %v5289 = vpack.c.b16 %v4113, %v4105
    %v5290 = vpack.c.b16 %v4122, %v4114
    %v5291 = vpack.c.b16 %v4123, %v4115
    %v5292 = vpack.c.b16 %v4124, %v4116
    %v5293 = vpack.c.b16 %v4125, %v4117
    %v5294 = vpack.c.b16 %v4126, %v4118
    %v5295 = vpack.c.b16 %v4127, %v4119
    %v5296 = vpack.c.b16 %v4128, %v4120
    %v5297 = vpack.c.b16 %v4129, %v4121
    %v5298 = vpack.c.b16 %v4138, %v4130
    %v5299 = vpack.c.b16 %v4139, %v4131
    %v5300 = vpack.c.b16 %v4140, %v4132
    %v5301 = vpack.c.b16 %v4141, %v4133
    %v5302 = vpack.c.b16 %v4142, %v4134
    %v5303 = vpack.c.b16 %v4143, %v4135
    %v5304 = vpack.c.b16 %v4144, %v4136
    %v5305 = vpack.c.b16 %v4145, %v4137
    %v5306 = vpack.c.b16 %v4154, %v4146
    %v5307 = vpack.c.b16 %v4155, %v4147
    %v5308 = vpack.c.b16 %v4156, %v4148
    %v5309 = vpack.c.b16 %v4157, %v4149
    %v5310 = vpack.c.b16 %v4158, %v4150
    %v5311 = vpack.c.b16 %v4159, %v4151
    %v5312 = vpack.c.b16 %v4160, %v4152
    %v5313 = vpack.c.b16 %v4161, %v4153
    %v5314 = vpack.c.b16 %v4170, %v4162
    %v5315 = vpack.c.b16 %v4171, %v4163
    %v5316 = vpack.c.b16 %v4172, %v4164
    %v5317 = vpack.c.b16 %v4173, %v4165
    %v5318 = vpack.c.b16 %v4174, %v4166
    %v5319 = vpack.c.b16 %v4175, %v4167
    %v5320 = vpack.c.b16 %v4176, %v4168
    %v5321 = vpack.c.b16 %v4177, %v4169
    %v5322 = vpack.c.b16 %v4186, %v4178
    %v5323 = vpack.c.b16 %v4187, %v4179
    %v5324 = vpack.c.b16 %v4188, %v4180
    %v5325 = vpack.c.b16 %v4189, %v4181
    %v5326 = vpack.c.b16 %v4190, %v4182
    %v5327 = vpack.c.b16 %v4191, %v4183
    %v5328 = vpack.c.b16 %v4192, %v4184
    %v5329 = vpack.c.b16 %v4193, %v4185
    %v5330 = vpack.c.b16 %v4202, %v4194
    %v5331 = vpack.c.b16 %v4203, %v4195
    %v5332 = vpack.c.b16 %v4204, %v4196
    %v5333 = vpack.c.b16 %v4205, %v4197
    %v5334 = vpack.c.b16 %v4206, %v4198
    %v5335 = vpack.c.b16 %v4207, %v4199
    %v5336 = vpack.c.b16 %v4208, %v4200
    %v5337 = vpack.c.b16 %v4209, %v4201
    %v5338 = vpack.c.b16 %v4218, %v4210
    %v5339 = vpack.c.b16 %v4219, %v4211
    %v5340 = vpack.c.b16 %v4220, %v4212
    %v5341 = vpack.c.b16 %v4221, %v4213
    %v5342 = vpack.c.b16 %v4222, %v4214
    %v5343 = vpack.c.b16 %v4223, %v4215
    %v5344 = vpack.c.b16 %v4224, %v4216
    %v5345 = vpack.c.b16 %v4225, %v4217
    %v5346 = vpack.c.b16 %v4234, %v4226
    %v5347 = vpack.c.b16 %v4235, %v4227
    %v5348 = vpack.c.b16 %v4236, %v4228
    %v5349 = vpack.c.b16 %v4237, %v4229
    %v5350 = vpack.c.b16 %v4238, %v4230
    %v5351 = vpack.c.b16 %v4239, %v4231
    %v5352 = vpack.c.b16 %v4240, %v4232
    %v5353 = vpack.c.b16 %v4241, %v4233
    %v5354 = vpack.c.b16 %v4250, %v4242
    %v5355 = vpack.c.b16 %v4251, %v4243
    %v5356 = vpack.c.b16 %v4252, %v4244
    %v5357 = vpack.c.b16 %v4253, %v4245
    %v5358 = vpack.c.b16 %v4254, %v4246
    %v5359 = vpack.c.b16 %v4255, %v4247
    %v5360 = vpack.c.b16 %v4256, %v4248
    %v5361 = vpack.c.b16 %v4257, %v4249
    %v5362 = vpack.c.b16 %v4266, %v4258
    %v5363 = vpack.c.b16 %v4267, %v4259
    %v5364 = vpack.c.b16 %v4268, %v4260
    %v5365 = vpack.c.b16 %v4269, %v4261
    %v5366 = vpack.c.b16 %v4270, %v4262
    %v5367 = vpack.c.b16 %v4271, %v4263
    %v5368 = vpack.c.b16 %v4272, %v4264
    %v5369 = vpack.c.b16 %v4273, %v4265
    %v5370 = vpack.c.b16 %v4282, %v4274
    %v5371 = vpack.c.b16 %v4283, %v4275
    %v5372 = vpack.c.b16 %v4284, %v4276
    %v5373 = vpack.c.b16 %v4285, %v4277
    %v5374 = vpack.c.b16 %v4286, %v4278
    %v5375 = vpack.c.b16 %v4287, %v4279
    %v5376 = vpack.c.b16 %v4288, %v4280
    %v5377 = vpack.c.b16 %v4289, %v4281
    %v5378 = vpack.c.b16 %v4298, %v4290
    %v5379 = vpack.c.b16 %v4299, %v4291
    %v5380 = vpack.c.b16 %v4300, %v4292
    %v5381 = vpack.c.b16 %v4301, %v4293
    %v5382 = vpack.c.b16 %v4302, %v4294
    %v5383 = vpack.c.b16 %v4303, %v4295
    %v5384 = vpack.c.b16 %v4304, %v4296
    %v5385 = vpack.c.b16 %v4305, %v4297
    %v5386 = vpack.c.b16 %v4314, %v4306
    %v5387 = vpack.c.b16 %v4315, %v4307
    %v5388 = vpack.c.b16 %v4316, %v4308
    %v5389 = vpack.c.b16 %v4317, %v4309
    %v5390 = vpack.c.b16 %v4318, %v4310
    %v5391 = vpack.c.b16 %v4319, %v4311
    %v5392 = vpack.c.b16 %v4320, %v4312
    %v5393 = vpack.c.b16 %v4321, %v4313
    %v5394 = vpack.c.b16 %v4330, %v4322
    %v5395 = vpack.c.b16 %v4331, %v4323
    %v5396 = vpack.c.b16 %v4332, %v4324
    %v5397 = vpack.c.b16 %v4333, %v4325
    %v5398 = vpack.c.b16 %v4334, %v4326
    %v5399 = vpack.c.b16 %v4335, %v4327
    %v5400 = vpack.c.b16 %v4336, %v4328
    %v5401 = vpack.c.b16 %v4337, %v4329
    %v5402 = vpack.c.b16 %v4346, %v4338
    %v5403 = vpack.c.b16 %v4347, %v4339
    %v5404 = vpack.c.b16 %v4348, %v4340
    %v5405 = vpack.c.b16 %v4349, %v4341
    %v5406 = vpack.c.b16 %v4350, %v4342
    %v5407 = vpack.c.b16 %v4351, %v4343
    %v5408 = vpack.c.b16 %v4352, %v4344
    %v5409 = vpack.c.b16 %v4353, %v4345
    %v5410 = vpack.c.b16 %v4362, %v4354
    %v5411 = vpack.c.b16 %v4363, %v4355
    %v5412 = vpack.c.b16 %v4364, %v4356
    %v5413 = vpack.c.b16 %v4365, %v4357
    %v5414 = vpack.c.b16 %v4366, %v4358
    %v5415 = vpack.c.b16 %v4367, %v4359
    %v5416 = vpack.c.b16 %v4368, %v4360
    %v5417 = vpack.c.b16 %v4369, %v4361
    %v5418 = vpack.c.b16 %v4378, %v4370
    %v5419 = vpack.c.b16 %v4379, %v4371
    %v5420 = vpack.c.b16 %v4380, %v4372
    %v5421 = vpack.c.b16 %v4381, %v4373
    %v5422 = vpack.c.b16 %v4382, %v4374
    %v5423 = vpack.c.b16 %v4383, %v4375
    %v5424 = vpack.c.b16 %v4384, %v4376
    %v5425 = vpack.c.b16 %v4385, %v4377
    %v5426 = vpack.c.b16 %v4394, %v4386
    %v5427 = vpack.c.b16 %v4395, %v4387
    %v5428 = vpack.c.b16 %v4396, %v4388
    %v5429 = vpack.c.b16 %v4397, %v4389
    %v5430 = vpack.c.b16 %v4398, %v4390
    %v5431 = vpack.c.b16 %v4399, %v4391
    %v5432 = vpack.c.b16 %v4400, %v4392
    %v5433 = vpack.c.b16 %v4401, %v4393
    %v5434 = vpack.c.b16 %v4410, %v4402
    %v5435 = vpack.c.b16 %v4411, %v4403
    %v5436 = vpack.c.b16 %v4412, %v4404
    %v5437 = vpack.c.b16 %v4413, %v4405
    %v5438 = vpack.c.b16 %v4414, %v4406
    %v5439 = vpack.c.b16 %v4415, %v4407
    %v5440 = vpack.c.b16 %v4416, %v4408
    %v5441 = vpack.c.b16 %v4417, %v4409
    %v5442 = vpack.c.b16 %v4426, %v4418
    %v5443 = vpack.c.b16 %v4427, %v4419
    %v5444 = vpack.c.b16 %v4428, %v4420
    %v5445 = vpack.c.b16 %v4429, %v4421
    %v5446 = vpack.c.b16 %v4430, %v4422
    %v5447 = vpack.c.b16 %v4431, %v4423
    %v5448 = vpack.c.b16 %v4432, %v4424
    %v5449 = vpack.c.b16 %v4433, %v4425
    %v5450 = vpack.c.b16 %v4442, %v4434
    %v5451 = vpack.c.b16 %v4443, %v4435
    %v5452 = vpack.c.b16 %v4444, %v4436
    %v5453 = vpack.c.b16 %v4445, %v4437
    %v5454 = vpack.c.b16 %v4446, %v4438
    %v5455 = vpack.c.b16 %v4447, %v4439
    %v5456 = vpack.c.b16 %v4448, %v4440
    %v5457 = vpack.c.b16 %v4449, %v4441
    %v5458 = vpack.c.b16 %v4458, %v4450
    %v5459 = vpack.c.b16 %v4459, %v4451
    %v5460 = vpack.c.b16 %v4460, %v4452
    %v5461 = vpack.c.b16 %v4461, %v4453
    %v5462 = vpack.c.b16 %v4462, %v4454
    %v5463 = vpack.c.b16 %v4463, %v4455
    %v5464 = vpack.c.b16 %v4464, %v4456
    %v5465 = vpack.c.b16 %v4465, %v4457
    %v5466 = vpack.c.b16 %v4474, %v4466
    %v5467 = vpack.c.b16 %v4475, %v4467
    %v5468 = vpack.c.b16 %v4476, %v4468
    %v5469 = vpack.c.b16 %v4477, %v4469
    %v5470 = vpack.c.b16 %v4478, %v4470
    %v5471 = vpack.c.b16 %v4479, %v4471
    %v5472 = vpack.c.b16 %v4480, %v4472
    %v5473 = vpack.c.b16 %v4481, %v4473
    %v5474 = vpack.c.b16 %v4490, %v4482
    %v5475 = vpack.c.b16 %v4491, %v4483
    %v5476 = vpack.c.b16 %v4492, %v4484
    %v5477 = vpack.c.b16 %v4493, %v4485
    %v5478 = vpack.c.b16 %v4494, %v4486
    %v5479 = vpack.c.b16 %v4495, %v4487
    %v5480 = vpack.c.b16 %v4496, %v4488
    %v5481 = vpack.c.b16 %v4497, %v4489
    %v5482 = vpack.c.b16 %v4506, %v4498
    %v5483 = vpack.c.b16 %v4507, %v4499
    %v5484 = vpack.c.b16 %v4508, %v4500
    %v5485 = vpack.c.b16 %v4509, %v4501
    %v5486 = vpack.c.b16 %v4510, %v4502
    %v5487 = vpack.c.b16 %v4511, %v4503
    %v5488 = vpack.c.b16 %v4512, %v4504
    %v5489 = vpack.c.b16 %v4513, %v4505
    %v5490 = vpack.c.b16 %v4522, %v4514
    %v5491 = vpack.c.b16 %v4523, %v4515
    %v5492 = vpack.c.b16 %v4524, %v4516
    %v5493 = vpack.c.b16 %v4525, %v4517
    %v5494 = vpack.c.b16 %v4526, %v4518
    %v5495 = vpack.c.b16 %v4527, %v4519
    %v5496 = vpack.c.b16 %v4528, %v4520
    %v5497 = vpack.c.b16 %v4529, %v4521
    %v5498 = vpack.c.b16 %v4538, %v4530
    %v5499 = vpack.c.b16 %v4539, %v4531
    %v5500 = vpack.c.b16 %v4540, %v4532
    %v5501 = vpack.c.b16 %v4541, %v4533
    %v5502 = vpack.c.b16 %v4542, %v4534
    %v5503 = vpack.c.b16 %v4543, %v4535
    %v5504 = vpack.c.b16 %v4544, %v4536
    %v5505 = vpack.c.b16 %v4545, %v4537
    %v5506 = vpack.c.b16 %v4554, %v4546
    %v5507 = vpack.c.b16 %v4555, %v4547
    %v5508 = vpack.c.b16 %v4556, %v4548
    %v5509 = vpack.c.b16 %v4557, %v4549
    %v5510 = vpack.c.b16 %v4558, %v4550
    %v5511 = vpack.c.b16 %v4559, %v4551
    %v5512 = vpack.c.b16 %v4560, %v4552
    %v5513 = vpack.c.b16 %v4561, %v4553
    %v5514 = vpack.c.b16 %v4570, %v4562
    %v5515 = vpack.c.b16 %v4571, %v4563
    %v5516 = vpack.c.b16 %v4572, %v4564
    %v5517 = vpack.c.b16 %v4573, %v4565
    %v5518 = vpack.c.b16 %v4574, %v4566
    %v5519 = vpack.c.b16 %v4575, %v4567
    %v5520 = vpack.c.b16 %v4576, %v4568
    %v5521 = vpack.c.b16 %v4577, %v4569
    %v5522 = vpack.c.b16 %v4586, %v4578
    %v5523 = vpack.c.b16 %v4587, %v4579
    %v5524 = vpack.c.b16 %v4588, %v4580
    %v5525 = vpack.c.b16 %v4589, %v4581
    %v5526 = vpack.c.b16 %v4590, %v4582
    %v5527 = vpack.c.b16 %v4591, %v4583
    %v5528 = vpack.c.b16 %v4592, %v4584
    %v5529 = vpack.c.b16 %v4593, %v4585
    %v5530 = vpack.c.b16 %v4602, %v4594
    %v5531 = vpack.c.b16 %v4603, %v4595
    %v5532 = vpack.c.b16 %v4604, %v4596
    %v5533 = vpack.c.b16 %v4605, %v4597
    %v5534 = vpack.c.b16 %v4606, %v4598
    %v5535 = vpack.c.b16 %v4607, %v4599
    %v5536 = vpack.c.b16 %v4608, %v4600
    %v5537 = vpack.c.b16 %v4609, %v4601
    %v5538 = vpack.c.b16 %v4618, %v4610
    %v5539 = vpack.c.b16 %v4619, %v4611
    %v5540 = vpack.c.b16 %v4620, %v4612
    %v5541 = vpack.c.b16 %v4621, %v4613
    %v5542 = vpack.c.b16 %v4622, %v4614
    %v5543 = vpack.c.b16 %v4623, %v4615
    %v5544 = vpack.c.b16 %v4624, %v4616
    %v5545 = vpack.c.b16 %v4625, %v4617
    %v5546 = vpack.c.b16 %v4634, %v4626
    %v5547 = vpack.c.b16 %v4635, %v4627
    %v5548 = vpack.c.b16 %v4636, %v4628
    %v5549 = vpack.c.b16 %v4637, %v4629
    %v5550 = vpack.c.b16 %v4638, %v4630
    %v5551 = vpack.c.b16 %v4639, %v4631
    %v5552 = vpack.c.b16 %v4640, %v4632
    %v5553 = vpack.c.b16 %v4641, %v4633
    %v5554 = vpack.c.b16 %v4650, %v4642
    %v5555 = vpack.c.b16 %v4651, %v4643
    %v5556 = vpack.c.b16 %v4652, %v4644
    %v5557 = vpack.c.b16 %v4653, %v4645
    %v5558 = vpack.c.b16 %v4654, %v4646
    %v5559 = vpack.c.b16 %v4655, %v4647
    %v5560 = vpack.c.b16 %v4656, %v4648
    %v5561 = vpack.c.b16 %v4657, %v4649
    %v5562 = vpack.c.b16 %v4666, %v4658
    %v5563 = vpack.c.b16 %v4667, %v4659
    %v5564 = vpack.c.b16 %v4668, %v4660
    %v5565 = vpack.c.b16 %v4669, %v4661
    %v5566 = vpack.c.b16 %v4670, %v4662
    %v5567 = vpack.c.b16 %v4671, %v4663
    %v5568 = vpack.c.b16 %v4672, %v4664
    %v5569 = vpack.c.b16 %v4673, %v4665
    %v5570 = vpack.c.b16 %v4682, %v4674
    %v5571 = vpack.c.b16 %v4683, %v4675
    %v5572 = vpack.c.b16 %v4684, %v4676
    %v5573 = vpack.c.b16 %v4685, %v4677
    %v5574 = vpack.c.b16 %v4686, %v4678
    %v5575 = vpack.c.b16 %v4687, %v4679
    %v5576 = vpack.c.b16 %v4688, %v4680
    %v5577 = vpack.c.b16 %v4689, %v4681
    %v5578 = vpack.c.b16 %v4698, %v4690
    %v5579 = vpack.c.b16 %v4699, %v4691
    %v5580 = vpack.c.b16 %v4700, %v4692
    %v5581 = vpack.c.b16 %v4701, %v4693
    %v5582 = vpack.c.b16 %v4702, %v4694
    %v5583 = vpack.c.b16 %v4703, %v4695
    %v5584 = vpack.c.b16 %v4704, %v4696
    %v5585 = vpack.c.b16 %v4705, %v4697
    %v5586 = vpack.c.b16 %v4714, %v4706
    %v5587 = vpack.c.b16 %v4715, %v4707
    %v5588 = vpack.c.b16 %v4716, %v4708
    %v5589 = vpack.c.b16 %v4717, %v4709
    %v5590 = vpack.c.b16 %v4718, %v4710
    %v5591 = vpack.c.b16 %v4719, %v4711
    %v5592 = vpack.c.b16 %v4720, %v4712
    %v5593 = vpack.c.b16 %v4721, %v4713
    %v5594 = vpack.c.b16 %v4730, %v4722
    %v5595 = vpack.c.b16 %v4731, %v4723
    %v5596 = vpack.c.b16 %v4732, %v4724
    %v5597 = vpack.c.b16 %v4733, %v4725
    %v5598 = vpack.c.b16 %v4734, %v4726
    %v5599 = vpack.c.b16 %v4735, %v4727
    %v5600 = vpack.c.b16 %v4736, %v4728
    %v5601 = vpack.c.b16 %v4737, %v4729
    %v5602 = vpack.c.b16 %v4746, %v4738
    %v5603 = vpack.c.b16 %v4747, %v4739
    %v5604 = vpack.c.b16 %v4748, %v4740
    %v5605 = vpack.c.b16 %v4749, %v4741
    %v5606 = vpack.c.b16 %v4750, %v4742
    %v5607 = vpack.c.b16 %v4751, %v4743
    %v5608 = vpack.c.b16 %v4752, %v4744
    %v5609 = vpack.c.b16 %v4753, %v4745
    %v5610 = vpack.c.b16 %v4762, %v4754
    %v5611 = vpack.c.b16 %v4763, %v4755
    %v5612 = vpack.c.b16 %v4764, %v4756
    %v5613 = vpack.c.b16 %v4765, %v4757
    %v5614 = vpack.c.b16 %v4766, %v4758
    %v5615 = vpack.c.b16 %v4767, %v4759
    %v5616 = vpack.c.b16 %v4768, %v4760
    %v5617 = vpack.c.b16 %v4769, %v4761
    %v5618 = vpack.c.b16 %v4778, %v4770
    %v5619 = vpack.c.b16 %v4779, %v4771
    %v5620 = vpack.c.b16 %v4780, %v4772
    %v5621 = vpack.c.b16 %v4781, %v4773
    %v5622 = vpack.c.b16 %v4782, %v4774
    %v5623 = vpack.c.b16 %v4783, %v4775
    %v5624 = vpack.c.b16 %v4784, %v4776
    %v5625 = vpack.c.b16 %v4785, %v4777
    %v5626 = vpack.c.b16 %v4794, %v4786
    %v5627 = vpack.c.b16 %v4795, %v4787
    %v5628 = vpack.c.b16 %v4796, %v4788
    %v5629 = vpack.c.b16 %v4797, %v4789
    %v5630 = vpack.c.b16 %v4798, %v4790
    %v5631 = vpack.c.b16 %v4799, %v4791
    %v5632 = vpack.c.b16 %v4800, %v4792
    %v5633 = vpack.c.b16 %v4801, %v4793
    %v5634 = vpack.c.b16 %v4810, %v4802
    %v5635 = vpack.c.b16 %v4811, %v4803
    %v5636 = vpack.c.b16 %v4812, %v4804
    %v5637 = vpack.c.b16 %v4813, %v4805
    %v5638 = vpack.c.b16 %v4814, %v4806
    %v5639 = vpack.c.b16 %v4815, %v4807
    %v5640 = vpack.c.b16 %v4816, %v4808
    %v5641 = vpack.c.b16 %v4817, %v4809
    %v5642 = vpack.c.b16 %v4826, %v4818
    %v5643 = vpack.c.b16 %v4827, %v4819
    %v5644 = vpack.c.b16 %v4828, %v4820
    %v5645 = vpack.c.b16 %v4829, %v4821
    %v5646 = vpack.c.b16 %v4830, %v4822
    %v5647 = vpack.c.b16 %v4831, %v4823
    %v5648 = vpack.c.b16 %v4832, %v4824
    %v5649 = vpack.c.b16 %v4833, %v4825
    %v5650 = vpack.c.b16 %v4842, %v4834
    %v5651 = vpack.c.b16 %v4843, %v4835
    %v5652 = vpack.c.b16 %v4844, %v4836
    %v5653 = vpack.c.b16 %v4845, %v4837
    %v5654 = vpack.c.b16 %v4846, %v4838
    %v5655 = vpack.c.b16 %v4847, %v4839
    %v5656 = vpack.c.b16 %v4848, %v4840
    %v5657 = vpack.c.b16 %v4849, %v4841
    %v5658 = vpack.c.b16 %v4858, %v4850
    %v5659 = vpack.c.b16 %v4859, %v4851
    %v5660 = vpack.c.b16 %v4860, %v4852
    %v5661 = vpack.c.b16 %v4861, %v4853
    %v5662 = vpack.c.b16 %v4862, %v4854
    %v5663 = vpack.c.b16 %v4863, %v4855
    %v5664 = vpack.c.b16 %v4864, %v4856
    %v5665 = vpack.c.b16 %v4865, %v4857
    %v5666 = vpack.c.b16 %v4874, %v4866
    %v5667 = vpack.c.b16 %v4875, %v4867
    %v5668 = vpack.c.b16 %v4876, %v4868
    %v5669 = vpack.c.b16 %v4877, %v4869
    %v5670 = vpack.c.b16 %v4878, %v4870
    %v5671 = vpack.c.b16 %v4879, %v4871
    %v5672 = vpack.c.b16 %v4880, %v4872
    %v5673 = vpack.c.b16 %v4881, %v4873
    %v5674 = vpack.c.b16 %v4890, %v4882
    %v5675 = vpack.c.b16 %v4891, %v4883
    %v5676 = vpack.c.b16 %v4892, %v4884
    %v5677 = vpack.c.b16 %v4893, %v4885
    %v5678 = vpack.c.b16 %v4894, %v4886
    %v5679 = vpack.c.b16 %v4895, %v4887
    %v5680 = vpack.c.b16 %v4896, %v4888
    %v5681 = vpack.c.b16 %v4897, %v4889
    %v5682 = vpack.c.b16 %v4906, %v4898
    %v5683 = vpack.c.b16 %v4907, %v4899
    %v5684 = vpack.c.b16 %v4908, %v4900
    %v5685 = vpack.c.b16 %v4909, %v4901
    %v5686 = vpack.c.b16 %v4910, %v4902
    %v5687 = vpack.c.b16 %v4911, %v4903
    %v5688 = vpack.c.b16 %v4912, %v4904
    %v5689 = vpack.c.b16 %v4913, %v4905
    %v5690 = vpack.c.b16 %v4922, %v4914
    %v5691 = vpack.c.b16 %v4923, %v4915
    %v5692 = vpack.c.b16 %v4924, %v4916
    %v5693 = vpack.c.b16 %v4925, %v4917
    %v5694 = vpack.c.b16 %v4926, %v4918
    %v5695 = vpack.c.b16 %v4927, %v4919
    %v5696 = vpack.c.b16 %v4928, %v4920
    %v5697 = vpack.c.b16 %v4929, %v4921
    %6466 = vmatpush.bf16.msra.mxu0 %v4986
    %6467 = vmatpush.bf16.msra.mxu0 %v4978
    %6468 = vmatpush.bf16.msra.mxu0 %v4970
    %6469 = vmatpush.bf16.msra.mxu0 %v4962
    %6470 = vmatpush.bf16.msra.mxu0 %v4954
    %6471 = vmatpush.bf16.msra.mxu0 %v4946
    %6472 = vmatpush.bf16.msra.mxu0 %v4938
    %6473 = vmatpush.bf16.msra.mxu0 %v4930
    %6474 = vmatmul.bf16.gmra.mxu0 %v1764
    %v6475 = vpop.f32.mrf.mxu0
    %v6476 = vadd.f32 %v2610, %v6475
    %v6477 = vpop.f32.mrf.mxu0
    %v6478 = vadd.f32 %v2610, %v6477
    %6479 = vmatmul.bf16.gmra.mxu0 %v1776
    %v6480 = vpop.f32.mrf.mxu0
    %v6481 = vadd.f32 %v2610, %v6480
    %v6482 = vpop.f32.mrf.mxu0
    %v6483 = vadd.f32 %v2610, %v6482
    %6484 = vmatmul.bf16.gmra.mxu0 %v1788
    %v6485 = vpop.f32.mrf.mxu0
    %v6486 = vadd.f32 %v2610, %v6485
    %v6487 = vpop.f32.mrf.mxu0
    %v6488 = vadd.f32 %v2610, %v6487
    %6489 = vmatmul.bf16.gmra.mxu0 %v1800
    %v6490 = vpop.f32.mrf.mxu0
    %v6491 = vadd.f32 %v2610, %v6490
    %v6492 = vpop.f32.mrf.mxu0
    %v6493 = vadd.f32 %v2610, %v6492
    %6494 = vmatmul.bf16.gmra.mxu0 %v1812
    %v6495 = vpop.f32.mrf.mxu0
    %v6496 = vadd.f32 %v2610, %v6495
    %v6497 = vpop.f32.mrf.mxu0
    %v6498 = vadd.f32 %v2610, %v6497
    %6499 = vmatmul.bf16.gmra.mxu0 %v1820
    %v6500 = vpop.f32.mrf.mxu0
    %v6501 = vadd.f32 %v2610, %v6500
    %v6502 = vpop.f32.mrf.mxu0
    %v6503 = vadd.f32 %v2610, %v6502
    %6504 = vmatmul.bf16.gmra.mxu0 %v1828
    %v6505 = vpop.f32.mrf.mxu0
    %v6506 = vadd.f32 %v2610, %v6505
    %v6507 = vpop.f32.mrf.mxu0
    %v6508 = vadd.f32 %v2610, %v6507
    %6509 = vdwg.mxu0
    %6510 = vmatpush.bf16.msra.mxu0 %v5050
    %6511 = vmatpush.bf16.msra.mxu0 %v5042
    %6512 = vmatpush.bf16.msra.mxu0 %v5034
    %6513 = vmatpush.bf16.msra.mxu0 %v5026
    %6514 = vmatpush.bf16.msra.mxu0 %v5018
    %6515 = vmatpush.bf16.msra.mxu0 %v5010
    %6516 = vmatpush.bf16.msra.mxu0 %v5002
    %6517 = vmatpush.bf16.msra.mxu0 %v4994
    %6518 = vmatmul.bf16.gmra.mxu0 %v1765
    %v6519 = vpop.f32.mrf.mxu0
    %v6520 = vadd.f32 %v6476, %v6519
    %v6521 = vpop.f32.mrf.mxu0
    %v6522 = vadd.f32 %v6478, %v6521
    %6523 = vmatmul.bf16.gmra.mxu0 %v1777
    %v6524 = vpop.f32.mrf.mxu0
    %v6525 = vadd.f32 %v6481, %v6524
    %v6526 = vpop.f32.mrf.mxu0
    %v6527 = vadd.f32 %v6483, %v6526
    %6528 = vmatmul.bf16.gmra.mxu0 %v1789
    %v6529 = vpop.f32.mrf.mxu0
    %v6530 = vadd.f32 %v6486, %v6529
    %v6531 = vpop.f32.mrf.mxu0
    %v6532 = vadd.f32 %v6488, %v6531
    %6533 = vmatmul.bf16.gmra.mxu0 %v1801
    %v6534 = vpop.f32.mrf.mxu0
    %v6535 = vadd.f32 %v6491, %v6534
    %v6536 = vpop.f32.mrf.mxu0
    %v6537 = vadd.f32 %v6493, %v6536
    %6538 = vmatmul.bf16.gmra.mxu0 %v1813
    %v6539 = vpop.f32.mrf.mxu0
    %v6540 = vadd.f32 %v6496, %v6539
    %v6541 = vpop.f32.mrf.mxu0
    %v6542 = vadd.f32 %v6498, %v6541
    %6543 = vmatmul.bf16.gmra.mxu0 %v1821
    %v6544 = vpop.f32.mrf.mxu0
    %v6545 = vadd.f32 %v6501, %v6544
    %v6546 = vpop.f32.mrf.mxu0
    %v6547 = vadd.f32 %v6503, %v6546
    %6548 = vmatmul.bf16.gmra.mxu0 %v1829
    %v6549 = vpop.f32.mrf.mxu0
    %v6550 = vadd.f32 %v6506, %v6549
    %v6551 = vpop.f32.mrf.mxu0
    %v6552 = vadd.f32 %v6508, %v6551
    %6553 = vdwg.mxu0
    %6554 = vmatpush.bf16.msra.mxu0 %v5114
    %6555 = vmatpush.bf16.msra.mxu0 %v5106
    %6556 = vmatpush.bf16.msra.mxu0 %v5098
    %6557 = vmatpush.bf16.msra.mxu0 %v5090
    %6558 = vmatpush.bf16.msra.mxu0 %v5082
    %6559 = vmatpush.bf16.msra.mxu0 %v5074
    %6560 = vmatpush.bf16.msra.mxu0 %v5066
    %6561 = vmatpush.bf16.msra.mxu0 %v5058
    %6562 = vmatmul.bf16.gmra.mxu0 %v1766
    %v6563 = vpop.f32.mrf.mxu0
    %v6564 = vadd.f32 %v6520, %v6563
    %v6565 = vpop.f32.mrf.mxu0
    %v6566 = vadd.f32 %v6522, %v6565
    %6567 = vmatmul.bf16.gmra.mxu0 %v1778
    %v6568 = vpop.f32.mrf.mxu0
    %v6569 = vadd.f32 %v6525, %v6568
    %v6570 = vpop.f32.mrf.mxu0
    %v6571 = vadd.f32 %v6527, %v6570
    %6572 = vmatmul.bf16.gmra.mxu0 %v1790
    %v6573 = vpop.f32.mrf.mxu0
    %v6574 = vadd.f32 %v6530, %v6573
    %v6575 = vpop.f32.mrf.mxu0
    %v6576 = vadd.f32 %v6532, %v6575
    %6577 = vmatmul.bf16.gmra.mxu0 %v1802
    %v6578 = vpop.f32.mrf.mxu0
    %v6579 = vadd.f32 %v6535, %v6578
    %v6580 = vpop.f32.mrf.mxu0
    %v6581 = vadd.f32 %v6537, %v6580
    %6582 = vmatmul.bf16.gmra.mxu0 %v1814
    %v6583 = vpop.f32.mrf.mxu0
    %v6584 = vadd.f32 %v6540, %v6583
    %v6585 = vpop.f32.mrf.mxu0
    %v6586 = vadd.f32 %v6542, %v6585
    %6587 = vmatmul.bf16.gmra.mxu0 %v1822
    %v6588 = vpop.f32.mrf.mxu0
    %v6589 = vadd.f32 %v6545, %v6588
    %v6590 = vpop.f32.mrf.mxu0
    %v6591 = vadd.f32 %v6547, %v6590
    %6592 = vmatmul.bf16.gmra.mxu0 %v1830
    %v6593 = vpop.f32.mrf.mxu0
    %v6594 = vadd.f32 %v6550, %v6593
    %v6595 = vpop.f32.mrf.mxu0
    %v6596 = vadd.f32 %v6552, %v6595
    %6597 = vdwg.mxu0
    %6598 = vmatpush.bf16.msra.mxu0 %v5178
    %6599 = vmatpush.bf16.msra.mxu0 %v5170
    %6600 = vmatpush.bf16.msra.mxu0 %v5162
    %6601 = vmatpush.bf16.msra.mxu0 %v5154
    %6602 = vmatpush.bf16.msra.mxu0 %v5146
    %6603 = vmatpush.bf16.msra.mxu0 %v5138
    %6604 = vmatpush.bf16.msra.mxu0 %v5130
    %6605 = vmatpush.bf16.msra.mxu0 %v5122
    %6606 = vmatmul.bf16.gmra.mxu0 %v1767
    %v6607 = vpop.f32.mrf.mxu0
    %v6608 = vadd.f32 %v6564, %v6607
    %v6609 = vpop.f32.mrf.mxu0
    %v6610 = vadd.f32 %v6566, %v6609
    %6611 = vmatmul.bf16.gmra.mxu0 %v1779
    %v6612 = vpop.f32.mrf.mxu0
    %v6613 = vadd.f32 %v6569, %v6612
    %v6614 = vpop.f32.mrf.mxu0
    %v6615 = vadd.f32 %v6571, %v6614
    %6616 = vmatmul.bf16.gmra.mxu0 %v1791
    %v6617 = vpop.f32.mrf.mxu0
    %v6618 = vadd.f32 %v6574, %v6617
    %v6619 = vpop.f32.mrf.mxu0
    %v6620 = vadd.f32 %v6576, %v6619
    %6621 = vmatmul.bf16.gmra.mxu0 %v1803
    %v6622 = vpop.f32.mrf.mxu0
    %v6623 = vadd.f32 %v6579, %v6622
    %v6624 = vpop.f32.mrf.mxu0
    %v6625 = vadd.f32 %v6581, %v6624
    %6626 = vmatmul.bf16.gmra.mxu0 %v1815
    %v6627 = vpop.f32.mrf.mxu0
    %v6628 = vadd.f32 %v6584, %v6627
    %v6629 = vpop.f32.mrf.mxu0
    %v6630 = vadd.f32 %v6586, %v6629
    %6631 = vmatmul.bf16.gmra.mxu0 %v1823
    %v6632 = vpop.f32.mrf.mxu0
    %v6633 = vadd.f32 %v6589, %v6632
    %v6634 = vpop.f32.mrf.mxu0
    %v6635 = vadd.f32 %v6591, %v6634
    %6636 = vmatmul.bf16.gmra.mxu0 %v1831
    %v6637 = vpop.f32.mrf.mxu0
    %v6638 = vadd.f32 %v6594, %v6637
    %v6639 = vpop.f32.mrf.mxu0
    %v6640 = vadd.f32 %v6596, %v6639
    %6641 = vdwg.mxu0
    %6642 = vmatpush.bf16.msra.mxu0 %v5242
    %6643 = vmatpush.bf16.msra.mxu0 %v5234
    %6644 = vmatpush.bf16.msra.mxu0 %v5226
    %6645 = vmatpush.bf16.msra.mxu0 %v5218
    %6646 = vmatpush.bf16.msra.mxu0 %v5210
    %6647 = vmatpush.bf16.msra.mxu0 %v5202
    %6648 = vmatpush.bf16.msra.mxu0 %v5194
    %6649 = vmatpush.bf16.msra.mxu0 %v5186
    %6650 = vmatmul.bf16.gmra.mxu0 %v1768
    %v6651 = vpop.f32.mrf.mxu0
    %v6652 = vadd.f32 %v6608, %v6651
    %v6653 = vpop.f32.mrf.mxu0
    %v6654 = vadd.f32 %v6610, %v6653
    %6655 = vmatmul.bf16.gmra.mxu0 %v1780
    %v6656 = vpop.f32.mrf.mxu0
    %v6657 = vadd.f32 %v6613, %v6656
    %v6658 = vpop.f32.mrf.mxu0
    %v6659 = vadd.f32 %v6615, %v6658
    %6660 = vmatmul.bf16.gmra.mxu0 %v1792
    %v6661 = vpop.f32.mrf.mxu0
    %v6662 = vadd.f32 %v6618, %v6661
    %v6663 = vpop.f32.mrf.mxu0
    %v6664 = vadd.f32 %v6620, %v6663
    %6665 = vmatmul.bf16.gmra.mxu0 %v1804
    %v6666 = vpop.f32.mrf.mxu0
    %v6667 = vadd.f32 %v6623, %v6666
    %v6668 = vpop.f32.mrf.mxu0
    %v6669 = vadd.f32 %v6625, %v6668
    %6670 = vmatmul.bf16.gmra.mxu0 %v1776
    %v6671 = vpop.f32.mrf.mxu0
    %v6672 = vadd.f32 %v6628, %v6671
    %v6673 = vpop.f32.mrf.mxu0
    %v6674 = vadd.f32 %v6630, %v6673
    %6675 = vmatmul.bf16.gmra.mxu0 %v1788
    %v6676 = vpop.f32.mrf.mxu0
    %v6677 = vadd.f32 %v6633, %v6676
    %v6678 = vpop.f32.mrf.mxu0
    %v6679 = vadd.f32 %v6635, %v6678
    %6680 = vmatmul.bf16.gmra.mxu0 %v1832
    %v6681 = vpop.f32.mrf.mxu0
    %v6682 = vadd.f32 %v6638, %v6681
    %v6683 = vpop.f32.mrf.mxu0
    %v6684 = vadd.f32 %v6640, %v6683
    %6685 = vdwg.mxu0
    %6686 = vmatpush.bf16.msra.mxu0 %v5306
    %6687 = vmatpush.bf16.msra.mxu0 %v5298
    %6688 = vmatpush.bf16.msra.mxu0 %v5290
    %6689 = vmatpush.bf16.msra.mxu0 %v5282
    %6690 = vmatpush.bf16.msra.mxu0 %v5274
    %6691 = vmatpush.bf16.msra.mxu0 %v5266
    %6692 = vmatpush.bf16.msra.mxu0 %v5258
    %6693 = vmatpush.bf16.msra.mxu0 %v5250
    %6694 = vmatmul.bf16.gmra.mxu0 %v1769
    %v6695 = vpop.f32.mrf.mxu0
    %v6696 = vadd.f32 %v6652, %v6695
    %v6697 = vpop.f32.mrf.mxu0
    %v6698 = vadd.f32 %v6654, %v6697
    %6699 = vmatmul.bf16.gmra.mxu0 %v1781
    %v6700 = vpop.f32.mrf.mxu0
    %v6701 = vadd.f32 %v6657, %v6700
    %v6702 = vpop.f32.mrf.mxu0
    %v6703 = vadd.f32 %v6659, %v6702
    %6704 = vmatmul.bf16.gmra.mxu0 %v1793
    %v6705 = vpop.f32.mrf.mxu0
    %v6706 = vadd.f32 %v6662, %v6705
    %v6707 = vpop.f32.mrf.mxu0
    %v6708 = vadd.f32 %v6664, %v6707
    %6709 = vmatmul.bf16.gmra.mxu0 %v1805
    %v6710 = vpop.f32.mrf.mxu0
    %v6711 = vadd.f32 %v6667, %v6710
    %v6712 = vpop.f32.mrf.mxu0
    %v6713 = vadd.f32 %v6669, %v6712
    %6714 = vmatmul.bf16.gmra.mxu0 %v1777
    %v6715 = vpop.f32.mrf.mxu0
    %v6716 = vadd.f32 %v6672, %v6715
    %v6717 = vpop.f32.mrf.mxu0
    %v6718 = vadd.f32 %v6674, %v6717
    %6719 = vmatmul.bf16.gmra.mxu0 %v1789
    %v6720 = vpop.f32.mrf.mxu0
    %v6721 = vadd.f32 %v6677, %v6720
    %v6722 = vpop.f32.mrf.mxu0
    %v6723 = vadd.f32 %v6679, %v6722
    %6724 = vmatmul.bf16.gmra.mxu0 %v1833
    %v6725 = vpop.f32.mrf.mxu0
    %v6726 = vadd.f32 %v6682, %v6725
    %v6727 = vpop.f32.mrf.mxu0
    %v6728 = vadd.f32 %v6684, %v6727
    %6729 = vdwg.mxu0
    %6730 = vmatpush.bf16.msra.mxu0 %v5370
    %6731 = vmatpush.bf16.msra.mxu0 %v5362
    %6732 = vmatpush.bf16.msra.mxu0 %v5354
    %6733 = vmatpush.bf16.msra.mxu0 %v5346
    %6734 = vmatpush.bf16.msra.mxu0 %v5338
    %6735 = vmatpush.bf16.msra.mxu0 %v5330
    %6736 = vmatpush.bf16.msra.mxu0 %v5322
    %6737 = vmatpush.bf16.msra.mxu0 %v5314
    %6738 = vmatmul.bf16.gmra.mxu0 %v1770
    %v6739 = vpop.f32.mrf.mxu0
    %v6740 = vadd.f32 %v6696, %v6739
    %v6741 = vpop.f32.mrf.mxu0
    %v6742 = vadd.f32 %v6698, %v6741
    %6743 = vmatmul.bf16.gmra.mxu0 %v1782
    %v6744 = vpop.f32.mrf.mxu0
    %v6745 = vadd.f32 %v6701, %v6744
    %v6746 = vpop.f32.mrf.mxu0
    %v6747 = vadd.f32 %v6703, %v6746
    %6748 = vmatmul.bf16.gmra.mxu0 %v1794
    %v6749 = vpop.f32.mrf.mxu0
    %v6750 = vadd.f32 %v6706, %v6749
    %v6751 = vpop.f32.mrf.mxu0
    %v6752 = vadd.f32 %v6708, %v6751
    %6753 = vmatmul.bf16.gmra.mxu0 %v1806
    %v6754 = vpop.f32.mrf.mxu0
    %v6755 = vadd.f32 %v6711, %v6754
    %v6756 = vpop.f32.mrf.mxu0
    %v6757 = vadd.f32 %v6713, %v6756
    %6758 = vmatmul.bf16.gmra.mxu0 %v1778
    %v6759 = vpop.f32.mrf.mxu0
    %v6760 = vadd.f32 %v6716, %v6759
    %v6761 = vpop.f32.mrf.mxu0
    %v6762 = vadd.f32 %v6718, %v6761
    %6763 = vmatmul.bf16.gmra.mxu0 %v1790
    %v6764 = vpop.f32.mrf.mxu0
    %v6765 = vadd.f32 %v6721, %v6764
    %v6766 = vpop.f32.mrf.mxu0
    %v6767 = vadd.f32 %v6723, %v6766
    %6768 = vmatmul.bf16.gmra.mxu0 %v1834
    %v6769 = vpop.f32.mrf.mxu0
    %v6770 = vadd.f32 %v6726, %v6769
    %v6771 = vpop.f32.mrf.mxu0
    %v6772 = vadd.f32 %v6728, %v6771
    %6773 = vdwg.mxu0
    %6774 = vmatpush.bf16.msra.mxu0 %v5434
    %6775 = vmatpush.bf16.msra.mxu0 %v5426
    %6776 = vmatpush.bf16.msra.mxu0 %v5418
    %6777 = vmatpush.bf16.msra.mxu0 %v5410
    %6778 = vmatpush.bf16.msra.mxu0 %v5402
    %6779 = vmatpush.bf16.msra.mxu0 %v5394
    %6780 = vmatpush.bf16.msra.mxu0 %v5386
    %6781 = vmatpush.bf16.msra.mxu0 %v5378
    %6782 = vmatmul.bf16.gmra.mxu0 %v1771
    %v6783 = vpop.f32.mrf.mxu0
    %v6784 = vadd.f32 %v6740, %v6783
    %v6785 = vpop.f32.mrf.mxu0
    %v6786 = vadd.f32 %v6742, %v6785
    %6787 = vmatmul.bf16.gmra.mxu0 %v1783
    %v6788 = vpop.f32.mrf.mxu0
    %v6789 = vadd.f32 %v6745, %v6788
    %v6790 = vpop.f32.mrf.mxu0
    %v6791 = vadd.f32 %v6747, %v6790
    %6792 = vmatmul.bf16.gmra.mxu0 %v1795
    %v6793 = vpop.f32.mrf.mxu0
    %v6794 = vadd.f32 %v6750, %v6793
    %v6795 = vpop.f32.mrf.mxu0
    %v6796 = vadd.f32 %v6752, %v6795
    %6797 = vmatmul.bf16.gmra.mxu0 %v1807
    %v6798 = vpop.f32.mrf.mxu0
    %v6799 = vadd.f32 %v6755, %v6798
    %v6800 = vpop.f32.mrf.mxu0
    %v6801 = vadd.f32 %v6757, %v6800
    %6802 = vmatmul.bf16.gmra.mxu0 %v1779
    %v6803 = vpop.f32.mrf.mxu0
    %v6804 = vadd.f32 %v6760, %v6803
    %v6805 = vpop.f32.mrf.mxu0
    %v6806 = vadd.f32 %v6762, %v6805
    %6807 = vmatmul.bf16.gmra.mxu0 %v1791
    %v6808 = vpop.f32.mrf.mxu0
    %v6809 = vadd.f32 %v6765, %v6808
    %v6810 = vpop.f32.mrf.mxu0
    %v6811 = vadd.f32 %v6767, %v6810
    %6812 = vmatmul.bf16.gmra.mxu0 %v1835
    %v6813 = vpop.f32.mrf.mxu0
    %v6814 = vadd.f32 %v6770, %v6813
    %v6815 = vpop.f32.mrf.mxu0
    %v6816 = vadd.f32 %v6772, %v6815
    %6817 = vdwg.mxu0
    %6818 = vmatpush.bf16.msra.mxu0 %v5498
    %6819 = vmatpush.bf16.msra.mxu0 %v5490
    %6820 = vmatpush.bf16.msra.mxu0 %v5482
    %6821 = vmatpush.bf16.msra.mxu0 %v5474
    %6822 = vmatpush.bf16.msra.mxu0 %v5466
    %6823 = vmatpush.bf16.msra.mxu0 %v5458
    %6824 = vmatpush.bf16.msra.mxu0 %v5450
    %6825 = vmatpush.bf16.msra.mxu0 %v5442
    %6826 = vmatmul.bf16.gmra.mxu0 %v1772
    %v6827 = vpop.f32.mrf.mxu0
    %v6828 = vadd.f32 %v6784, %v6827
    %v6829 = vpop.f32.mrf.mxu0
    %v6830 = vadd.f32 %v6786, %v6829
    %6831 = vmatmul.bf16.gmra.mxu0 %v1784
    %v6832 = vpop.f32.mrf.mxu0
    %v6833 = vadd.f32 %v6789, %v6832
    %v6834 = vpop.f32.mrf.mxu0
    %v6835 = vadd.f32 %v6791, %v6834
    %6836 = vmatmul.bf16.gmra.mxu0 %v1796
    %v6837 = vpop.f32.mrf.mxu0
    %v6838 = vadd.f32 %v6794, %v6837
    %v6839 = vpop.f32.mrf.mxu0
    %v6840 = vadd.f32 %v6796, %v6839
    %6841 = vmatmul.bf16.gmra.mxu0 %v1808
    %v6842 = vpop.f32.mrf.mxu0
    %v6843 = vadd.f32 %v6799, %v6842
    %v6844 = vpop.f32.mrf.mxu0
    %v6845 = vadd.f32 %v6801, %v6844
    %6846 = vmatmul.bf16.gmra.mxu0 %v1816
    %v6847 = vpop.f32.mrf.mxu0
    %v6848 = vadd.f32 %v6804, %v6847
    %v6849 = vpop.f32.mrf.mxu0
    %v6850 = vadd.f32 %v6806, %v6849
    %6851 = vmatmul.bf16.gmra.mxu0 %v1824
    %v6852 = vpop.f32.mrf.mxu0
    %v6853 = vadd.f32 %v6809, %v6852
    %v6854 = vpop.f32.mrf.mxu0
    %v6855 = vadd.f32 %v6811, %v6854
    %6856 = vmatmul.bf16.gmra.mxu0 %v1836
    %v6857 = vpop.f32.mrf.mxu0
    %v6858 = vadd.f32 %v6814, %v6857
    %v6859 = vpop.f32.mrf.mxu0
    %v6860 = vadd.f32 %v6816, %v6859
    %6861 = vdwg.mxu0
    %6862 = vmatpush.bf16.msra.mxu0 %v5562
    %6863 = vmatpush.bf16.msra.mxu0 %v5554
    %6864 = vmatpush.bf16.msra.mxu0 %v5546
    %6865 = vmatpush.bf16.msra.mxu0 %v5538
    %6866 = vmatpush.bf16.msra.mxu0 %v5530
    %6867 = vmatpush.bf16.msra.mxu0 %v5522
    %6868 = vmatpush.bf16.msra.mxu0 %v5514
    %6869 = vmatpush.bf16.msra.mxu0 %v5506
    %6870 = vmatmul.bf16.gmra.mxu0 %v1773
    %v6871 = vpop.f32.mrf.mxu0
    %v6872 = vadd.f32 %v6828, %v6871
    %v6873 = vpop.f32.mrf.mxu0
    %v6874 = vadd.f32 %v6830, %v6873
    %6875 = vmatmul.bf16.gmra.mxu0 %v1785
    %v6876 = vpop.f32.mrf.mxu0
    %v6877 = vadd.f32 %v6833, %v6876
    %v6878 = vpop.f32.mrf.mxu0
    %v6879 = vadd.f32 %v6835, %v6878
    %6880 = vmatmul.bf16.gmra.mxu0 %v1797
    %v6881 = vpop.f32.mrf.mxu0
    %v6882 = vadd.f32 %v6838, %v6881
    %v6883 = vpop.f32.mrf.mxu0
    %v6884 = vadd.f32 %v6840, %v6883
    %6885 = vmatmul.bf16.gmra.mxu0 %v1809
    %v6886 = vpop.f32.mrf.mxu0
    %v6887 = vadd.f32 %v6843, %v6886
    %v6888 = vpop.f32.mrf.mxu0
    %v6889 = vadd.f32 %v6845, %v6888
    %6890 = vmatmul.bf16.gmra.mxu0 %v1817
    %v6891 = vpop.f32.mrf.mxu0
    %v6892 = vadd.f32 %v6848, %v6891
    %v6893 = vpop.f32.mrf.mxu0
    %v6894 = vadd.f32 %v6850, %v6893
    %6895 = vmatmul.bf16.gmra.mxu0 %v1825
    %v6896 = vpop.f32.mrf.mxu0
    %v6897 = vadd.f32 %v6853, %v6896
    %v6898 = vpop.f32.mrf.mxu0
    %v6899 = vadd.f32 %v6855, %v6898
    %6900 = vmatmul.bf16.gmra.mxu0 %v1837
    %v6901 = vpop.f32.mrf.mxu0
    %v6902 = vadd.f32 %v6858, %v6901
    %v6903 = vpop.f32.mrf.mxu0
    %v6904 = vadd.f32 %v6860, %v6903
    %6905 = vdwg.mxu0
    %6906 = vmatpush.bf16.msra.mxu0 %v5626
    %6907 = vmatpush.bf16.msra.mxu0 %v5618
    %6908 = vmatpush.bf16.msra.mxu0 %v5610
    %6909 = vmatpush.bf16.msra.mxu0 %v5602
    %6910 = vmatpush.bf16.msra.mxu0 %v5594
    %6911 = vmatpush.bf16.msra.mxu0 %v5586
    %6912 = vmatpush.bf16.msra.mxu0 %v5578
    %6913 = vmatpush.bf16.msra.mxu0 %v5570
    %6914 = vmatmul.bf16.gmra.mxu0 %v1774
    %v6915 = vpop.f32.mrf.mxu0
    %v6916 = vadd.f32 %v6872, %v6915
    %v6917 = vpop.f32.mrf.mxu0
    %v6918 = vadd.f32 %v6874, %v6917
    %6919 = vmatmul.bf16.gmra.mxu0 %v1786
    %v6920 = vpop.f32.mrf.mxu0
    %v6921 = vadd.f32 %v6877, %v6920
    %v6922 = vpop.f32.mrf.mxu0
    %v6923 = vadd.f32 %v6879, %v6922
    %6924 = vmatmul.bf16.gmra.mxu0 %v1798
    %v6925 = vpop.f32.mrf.mxu0
    %v6926 = vadd.f32 %v6882, %v6925
    %v6927 = vpop.f32.mrf.mxu0
    %v6928 = vadd.f32 %v6884, %v6927
    %6929 = vmatmul.bf16.gmra.mxu0 %v1810
    %v6930 = vpop.f32.mrf.mxu0
    %v6931 = vadd.f32 %v6887, %v6930
    %v6932 = vpop.f32.mrf.mxu0
    %v6933 = vadd.f32 %v6889, %v6932
    %6934 = vmatmul.bf16.gmra.mxu0 %v1818
    %v6935 = vpop.f32.mrf.mxu0
    %v6936 = vadd.f32 %v6892, %v6935
    %v6937 = vpop.f32.mrf.mxu0
    %v6938 = vadd.f32 %v6894, %v6937
    %6939 = vmatmul.bf16.gmra.mxu0 %v1826
    %v6940 = vpop.f32.mrf.mxu0
    %v6941 = vadd.f32 %v6897, %v6940
    %v6942 = vpop.f32.mrf.mxu0
    %v6943 = vadd.f32 %v6899, %v6942
    %6944 = vmatmul.bf16.gmra.mxu0 %v1838
    %v6945 = vpop.f32.mrf.mxu0
    %v6946 = vadd.f32 %v6902, %v6945
    %v6947 = vpop.f32.mrf.mxu0
    %v6948 = vadd.f32 %v6904, %v6947
    %6949 = vdwg.mxu0
    %6950 = vmatpush.bf16.msra.mxu0 %v5690
    %6951 = vmatpush.bf16.msra.mxu0 %v5682
    %6952 = vmatpush.bf16.msra.mxu0 %v5674
    %6953 = vmatpush.bf16.msra.mxu0 %v5666
    %6954 = vmatpush.bf16.msra.mxu0 %v5658
    %6955 = vmatpush.bf16.msra.mxu0 %v5650
    %6956 = vmatpush.bf16.msra.mxu0 %v5642
    %6957 = vmatpush.bf16.msra.mxu0 %v5634
    %6958 = vmatmul.bf16.gmra.mxu0 %v1775
    %v6959 = vpop.f32.mrf.mxu0
    %v6960 = vadd.f32 %v6916, %v6959
    %v6961 = vpop.f32.mrf.mxu0
    %v6962 = vadd.f32 %v6918, %v6961
    %6963 = vmatmul.bf16.gmra.mxu0 %v1787
    %v6964 = vpop.f32.mrf.mxu0
    %v6965 = vadd.f32 %v6921, %v6964
    %v6966 = vpop.f32.mrf.mxu0
    %v6967 = vadd.f32 %v6923, %v6966
    %6968 = vmatmul.bf16.gmra.mxu0 %v1799
    %v6969 = vpop.f32.mrf.mxu0
    %v6970 = vadd.f32 %v6926, %v6969
    %v6971 = vpop.f32.mrf.mxu0
    %v6972 = vadd.f32 %v6928, %v6971
    %6973 = vmatmul.bf16.gmra.mxu0 %v1811
    %v6974 = vpop.f32.mrf.mxu0
    %v6975 = vadd.f32 %v6931, %v6974
    %v6976 = vpop.f32.mrf.mxu0
    %v6977 = vadd.f32 %v6933, %v6976
    %6978 = vmatmul.bf16.gmra.mxu0 %v1819
    %v6979 = vpop.f32.mrf.mxu0
    %v6980 = vadd.f32 %v6936, %v6979
    %v6981 = vpop.f32.mrf.mxu0
    %v6982 = vadd.f32 %v6938, %v6981
    %6983 = vmatmul.bf16.gmra.mxu0 %v1827
    %v6984 = vpop.f32.mrf.mxu0
    %v6985 = vadd.f32 %v6941, %v6984
    %v6986 = vpop.f32.mrf.mxu0
    %v6987 = vadd.f32 %v6943, %v6986
    %6988 = vmatmul.bf16.gmra.mxu0 %v1839
    %v6989 = vpop.f32.mrf.mxu0
    %v6990 = vadd.f32 %v6946, %v6989
    %v6991 = vpop.f32.mrf.mxu0
    %v6992 = vadd.f32 %v6948, %v6991
    %6993 = vdwg.mxu0
    %6994 = vmatpush.bf16.msra.mxu0 %v4987
    %6995 = vmatpush.bf16.msra.mxu0 %v4979
    %6996 = vmatpush.bf16.msra.mxu0 %v4971
    %6997 = vmatpush.bf16.msra.mxu0 %v4963
    %6998 = vmatpush.bf16.msra.mxu0 %v4955
    %6999 = vmatpush.bf16.msra.mxu0 %v4947
    %7000 = vmatpush.bf16.msra.mxu0 %v4939
    %7001 = vmatpush.bf16.msra.mxu0 %v4931
    %7002 = vmatmul.bf16.gmra.mxu0 %v1764
    %v7003 = vpop.f32.mrf.mxu0
    %v7004 = vadd.f32 %v2611, %v7003
    %v7005 = vpop.f32.mrf.mxu0
    %v7006 = vadd.f32 %v2611, %v7005
    %7007 = vmatmul.bf16.gmra.mxu0 %v1776
    %v7008 = vpop.f32.mrf.mxu0
    %v7009 = vadd.f32 %v2611, %v7008
    %v7010 = vpop.f32.mrf.mxu0
    %v7011 = vadd.f32 %v2611, %v7010
    %7012 = vmatmul.bf16.gmra.mxu0 %v1788
    %v7013 = vpop.f32.mrf.mxu0
    %v7014 = vadd.f32 %v2611, %v7013
    %v7015 = vpop.f32.mrf.mxu0
    %v7016 = vadd.f32 %v2611, %v7015
    %7017 = vmatmul.bf16.gmra.mxu0 %v1800
    %v7018 = vpop.f32.mrf.mxu0
    %v7019 = vadd.f32 %v2611, %v7018
    %v7020 = vpop.f32.mrf.mxu0
    %v7021 = vadd.f32 %v2611, %v7020
    %7022 = vmatmul.bf16.gmra.mxu0 %v1812
    %v7023 = vpop.f32.mrf.mxu0
    %v7024 = vadd.f32 %v2611, %v7023
    %v7025 = vpop.f32.mrf.mxu0
    %v7026 = vadd.f32 %v2611, %v7025
    %7027 = vmatmul.bf16.gmra.mxu0 %v1820
    %v7028 = vpop.f32.mrf.mxu0
    %v7029 = vadd.f32 %v2611, %v7028
    %v7030 = vpop.f32.mrf.mxu0
    %v7031 = vadd.f32 %v2611, %v7030
    %7032 = vmatmul.bf16.gmra.mxu0 %v1828
    %v7033 = vpop.f32.mrf.mxu0
    %v7034 = vadd.f32 %v2611, %v7033
    %v7035 = vpop.f32.mrf.mxu0
    %v7036 = vadd.f32 %v2611, %v7035
    %7037 = vdwg.mxu0
    %7038 = vmatpush.bf16.msra.mxu0 %v5051
    %7039 = vmatpush.bf16.msra.mxu0 %v5043
    %7040 = vmatpush.bf16.msra.mxu0 %v5035
    %7041 = vmatpush.bf16.msra.mxu0 %v5027
    %7042 = vmatpush.bf16.msra.mxu0 %v5019
    %7043 = vmatpush.bf16.msra.mxu0 %v5011
    %7044 = vmatpush.bf16.msra.mxu0 %v5003
    %7045 = vmatpush.bf16.msra.mxu0 %v4995
    %7046 = vmatmul.bf16.gmra.mxu0 %v1765
    %v7047 = vpop.f32.mrf.mxu0
    %v7048 = vadd.f32 %v7004, %v7047
    %v7049 = vpop.f32.mrf.mxu0
    %v7050 = vadd.f32 %v7006, %v7049
    %7051 = vmatmul.bf16.gmra.mxu0 %v1777
    %v7052 = vpop.f32.mrf.mxu0
    %v7053 = vadd.f32 %v7009, %v7052
    %v7054 = vpop.f32.mrf.mxu0
    %v7055 = vadd.f32 %v7011, %v7054
    %7056 = vmatmul.bf16.gmra.mxu0 %v1789
    %v7057 = vpop.f32.mrf.mxu0
    %v7058 = vadd.f32 %v7014, %v7057
    %v7059 = vpop.f32.mrf.mxu0
    %v7060 = vadd.f32 %v7016, %v7059
    %7061 = vmatmul.bf16.gmra.mxu0 %v1801
    %v7062 = vpop.f32.mrf.mxu0
    %v7063 = vadd.f32 %v7019, %v7062
    %v7064 = vpop.f32.mrf.mxu0
    %v7065 = vadd.f32 %v7021, %v7064
    %7066 = vmatmul.bf16.gmra.mxu0 %v1813
    %v7067 = vpop.f32.mrf.mxu0
    %v7068 = vadd.f32 %v7024, %v7067
    %v7069 = vpop.f32.mrf.mxu0
    %v7070 = vadd.f32 %v7026, %v7069
    %7071 = vmatmul.bf16.gmra.mxu0 %v1821
    %v7072 = vpop.f32.mrf.mxu0
    %v7073 = vadd.f32 %v7029, %v7072
    %v7074 = vpop.f32.mrf.mxu0
    %v7075 = vadd.f32 %v7031, %v7074
    %7076 = vmatmul.bf16.gmra.mxu0 %v1829
    %v7077 = vpop.f32.mrf.mxu0
    %v7078 = vadd.f32 %v7034, %v7077
    %v7079 = vpop.f32.mrf.mxu0
    %v7080 = vadd.f32 %v7036, %v7079
    %7081 = vdwg.mxu0
    %7082 = vmatpush.bf16.msra.mxu0 %v5115
    %7083 = vmatpush.bf16.msra.mxu0 %v5107
    %7084 = vmatpush.bf16.msra.mxu0 %v5099
    %7085 = vmatpush.bf16.msra.mxu0 %v5091
    %7086 = vmatpush.bf16.msra.mxu0 %v5083
    %7087 = vmatpush.bf16.msra.mxu0 %v5075
    %7088 = vmatpush.bf16.msra.mxu0 %v5067
    %7089 = vmatpush.bf16.msra.mxu0 %v5059
    %7090 = vmatmul.bf16.gmra.mxu0 %v1766
    %v7091 = vpop.f32.mrf.mxu0
    %v7092 = vadd.f32 %v7048, %v7091
    %v7093 = vpop.f32.mrf.mxu0
    %v7094 = vadd.f32 %v7050, %v7093
    %7095 = vmatmul.bf16.gmra.mxu0 %v1778
    %v7096 = vpop.f32.mrf.mxu0
    %v7097 = vadd.f32 %v7053, %v7096
    %v7098 = vpop.f32.mrf.mxu0
    %v7099 = vadd.f32 %v7055, %v7098
    %7100 = vmatmul.bf16.gmra.mxu0 %v1790
    %v7101 = vpop.f32.mrf.mxu0
    %v7102 = vadd.f32 %v7058, %v7101
    %v7103 = vpop.f32.mrf.mxu0
    %v7104 = vadd.f32 %v7060, %v7103
    %7105 = vmatmul.bf16.gmra.mxu0 %v1802
    %v7106 = vpop.f32.mrf.mxu0
    %v7107 = vadd.f32 %v7063, %v7106
    %v7108 = vpop.f32.mrf.mxu0
    %v7109 = vadd.f32 %v7065, %v7108
    %7110 = vmatmul.bf16.gmra.mxu0 %v1814
    %v7111 = vpop.f32.mrf.mxu0
    %v7112 = vadd.f32 %v7068, %v7111
    %v7113 = vpop.f32.mrf.mxu0
    %v7114 = vadd.f32 %v7070, %v7113
    %7115 = vmatmul.bf16.gmra.mxu0 %v1822
    %v7116 = vpop.f32.mrf.mxu0
    %v7117 = vadd.f32 %v7073, %v7116
    %v7118 = vpop.f32.mrf.mxu0
    %v7119 = vadd.f32 %v7075, %v7118
    %7120 = vmatmul.bf16.gmra.mxu0 %v1830
    %v7121 = vpop.f32.mrf.mxu0
    %v7122 = vadd.f32 %v7078, %v7121
    %v7123 = vpop.f32.mrf.mxu0
    %v7124 = vadd.f32 %v7080, %v7123
    %7125 = vdwg.mxu0
    %7126 = vmatpush.bf16.msra.mxu0 %v5179
    %7127 = vmatpush.bf16.msra.mxu0 %v5171
    %7128 = vmatpush.bf16.msra.mxu0 %v5163
    %7129 = vmatpush.bf16.msra.mxu0 %v5155
    %7130 = vmatpush.bf16.msra.mxu0 %v5147
    %7131 = vmatpush.bf16.msra.mxu0 %v5139
    %7132 = vmatpush.bf16.msra.mxu0 %v5131
    %7133 = vmatpush.bf16.msra.mxu0 %v5123
    %7134 = vmatmul.bf16.gmra.mxu0 %v1767
    %v7135 = vpop.f32.mrf.mxu0
    %v7136 = vadd.f32 %v7092, %v7135
    %v7137 = vpop.f32.mrf.mxu0
    %v7138 = vadd.f32 %v7094, %v7137
    %7139 = vmatmul.bf16.gmra.mxu0 %v1779
    %v7140 = vpop.f32.mrf.mxu0
    %v7141 = vadd.f32 %v7097, %v7140
    %v7142 = vpop.f32.mrf.mxu0
    %v7143 = vadd.f32 %v7099, %v7142
    %7144 = vmatmul.bf16.gmra.mxu0 %v1791
    %v7145 = vpop.f32.mrf.mxu0
    %v7146 = vadd.f32 %v7102, %v7145
    %v7147 = vpop.f32.mrf.mxu0
    %v7148 = vadd.f32 %v7104, %v7147
    %7149 = vmatmul.bf16.gmra.mxu0 %v1803
    %v7150 = vpop.f32.mrf.mxu0
    %v7151 = vadd.f32 %v7107, %v7150
    %v7152 = vpop.f32.mrf.mxu0
    %v7153 = vadd.f32 %v7109, %v7152
    %7154 = vmatmul.bf16.gmra.mxu0 %v1815
    %v7155 = vpop.f32.mrf.mxu0
    %v7156 = vadd.f32 %v7112, %v7155
    %v7157 = vpop.f32.mrf.mxu0
    %v7158 = vadd.f32 %v7114, %v7157
    %7159 = vmatmul.bf16.gmra.mxu0 %v1823
    %v7160 = vpop.f32.mrf.mxu0
    %v7161 = vadd.f32 %v7117, %v7160
    %v7162 = vpop.f32.mrf.mxu0
    %v7163 = vadd.f32 %v7119, %v7162
    %7164 = vmatmul.bf16.gmra.mxu0 %v1831
    %v7165 = vpop.f32.mrf.mxu0
    %v7166 = vadd.f32 %v7122, %v7165
    %v7167 = vpop.f32.mrf.mxu0
    %v7168 = vadd.f32 %v7124, %v7167
    %7169 = vdwg.mxu0
    %7170 = vmatpush.bf16.msra.mxu0 %v5243
    %7171 = vmatpush.bf16.msra.mxu0 %v5235
    %7172 = vmatpush.bf16.msra.mxu0 %v5227
    %7173 = vmatpush.bf16.msra.mxu0 %v5219
    %7174 = vmatpush.bf16.msra.mxu0 %v5211
    %7175 = vmatpush.bf16.msra.mxu0 %v5203
    %7176 = vmatpush.bf16.msra.mxu0 %v5195
    %7177 = vmatpush.bf16.msra.mxu0 %v5187
    %7178 = vmatmul.bf16.gmra.mxu0 %v1768
    %v7179 = vpop.f32.mrf.mxu0
    %v7180 = vadd.f32 %v7136, %v7179
    %v7181 = vpop.f32.mrf.mxu0
    %v7182 = vadd.f32 %v7138, %v7181
    %7183 = vmatmul.bf16.gmra.mxu0 %v1780
    %v7184 = vpop.f32.mrf.mxu0
    %v7185 = vadd.f32 %v7141, %v7184
    %v7186 = vpop.f32.mrf.mxu0
    %v7187 = vadd.f32 %v7143, %v7186
    %7188 = vmatmul.bf16.gmra.mxu0 %v1792
    %v7189 = vpop.f32.mrf.mxu0
    %v7190 = vadd.f32 %v7146, %v7189
    %v7191 = vpop.f32.mrf.mxu0
    %v7192 = vadd.f32 %v7148, %v7191
    %7193 = vmatmul.bf16.gmra.mxu0 %v1804
    %v7194 = vpop.f32.mrf.mxu0
    %v7195 = vadd.f32 %v7151, %v7194
    %v7196 = vpop.f32.mrf.mxu0
    %v7197 = vadd.f32 %v7153, %v7196
    %7198 = vmatmul.bf16.gmra.mxu0 %v1776
    %v7199 = vpop.f32.mrf.mxu0
    %v7200 = vadd.f32 %v7156, %v7199
    %v7201 = vpop.f32.mrf.mxu0
    %v7202 = vadd.f32 %v7158, %v7201
    %7203 = vmatmul.bf16.gmra.mxu0 %v1788
    %v7204 = vpop.f32.mrf.mxu0
    %v7205 = vadd.f32 %v7161, %v7204
    %v7206 = vpop.f32.mrf.mxu0
    %v7207 = vadd.f32 %v7163, %v7206
    %7208 = vmatmul.bf16.gmra.mxu0 %v1832
    %v7209 = vpop.f32.mrf.mxu0
    %v7210 = vadd.f32 %v7166, %v7209
    %v7211 = vpop.f32.mrf.mxu0
    %v7212 = vadd.f32 %v7168, %v7211
    %7213 = vdwg.mxu0
    %7214 = vmatpush.bf16.msra.mxu0 %v5307
    %7215 = vmatpush.bf16.msra.mxu0 %v5299
    %7216 = vmatpush.bf16.msra.mxu0 %v5291
    %7217 = vmatpush.bf16.msra.mxu0 %v5283
    %7218 = vmatpush.bf16.msra.mxu0 %v5275
    %7219 = vmatpush.bf16.msra.mxu0 %v5267
    %7220 = vmatpush.bf16.msra.mxu0 %v5259
    %7221 = vmatpush.bf16.msra.mxu0 %v5251
    %7222 = vmatmul.bf16.gmra.mxu0 %v1769
    %v7223 = vpop.f32.mrf.mxu0
    %v7224 = vadd.f32 %v7180, %v7223
    %v7225 = vpop.f32.mrf.mxu0
    %v7226 = vadd.f32 %v7182, %v7225
    %7227 = vmatmul.bf16.gmra.mxu0 %v1781
    %v7228 = vpop.f32.mrf.mxu0
    %v7229 = vadd.f32 %v7185, %v7228
    %v7230 = vpop.f32.mrf.mxu0
    %v7231 = vadd.f32 %v7187, %v7230
    %7232 = vmatmul.bf16.gmra.mxu0 %v1793
    %v7233 = vpop.f32.mrf.mxu0
    %v7234 = vadd.f32 %v7190, %v7233
    %v7235 = vpop.f32.mrf.mxu0
    %v7236 = vadd.f32 %v7192, %v7235
    %7237 = vmatmul.bf16.gmra.mxu0 %v1805
    %v7238 = vpop.f32.mrf.mxu0
    %v7239 = vadd.f32 %v7195, %v7238
    %v7240 = vpop.f32.mrf.mxu0
    %v7241 = vadd.f32 %v7197, %v7240
    %7242 = vmatmul.bf16.gmra.mxu0 %v1777
    %v7243 = vpop.f32.mrf.mxu0
    %v7244 = vadd.f32 %v7200, %v7243
    %v7245 = vpop.f32.mrf.mxu0
    %v7246 = vadd.f32 %v7202, %v7245
    %7247 = vmatmul.bf16.gmra.mxu0 %v1789
    %v7248 = vpop.f32.mrf.mxu0
    %v7249 = vadd.f32 %v7205, %v7248
    %v7250 = vpop.f32.mrf.mxu0
    %v7251 = vadd.f32 %v7207, %v7250
    %7252 = vmatmul.bf16.gmra.mxu0 %v1833
    %v7253 = vpop.f32.mrf.mxu0
    %v7254 = vadd.f32 %v7210, %v7253
    %v7255 = vpop.f32.mrf.mxu0
    %v7256 = vadd.f32 %v7212, %v7255
    %7257 = vdwg.mxu0
    %7258 = vmatpush.bf16.msra.mxu0 %v5371
    %7259 = vmatpush.bf16.msra.mxu0 %v5363
    %7260 = vmatpush.bf16.msra.mxu0 %v5355
    %7261 = vmatpush.bf16.msra.mxu0 %v5347
    %7262 = vmatpush.bf16.msra.mxu0 %v5339
    %7263 = vmatpush.bf16.msra.mxu0 %v5331
    %7264 = vmatpush.bf16.msra.mxu0 %v5323
    %7265 = vmatpush.bf16.msra.mxu0 %v5315
    %7266 = vmatmul.bf16.gmra.mxu0 %v1770
    %v7267 = vpop.f32.mrf.mxu0
    %v7268 = vadd.f32 %v7224, %v7267
    %v7269 = vpop.f32.mrf.mxu0
    %v7270 = vadd.f32 %v7226, %v7269
    %7271 = vmatmul.bf16.gmra.mxu0 %v1782
    %v7272 = vpop.f32.mrf.mxu0
    %v7273 = vadd.f32 %v7229, %v7272
    %v7274 = vpop.f32.mrf.mxu0
    %v7275 = vadd.f32 %v7231, %v7274
    %7276 = vmatmul.bf16.gmra.mxu0 %v1794
    %v7277 = vpop.f32.mrf.mxu0
    %v7278 = vadd.f32 %v7234, %v7277
    %v7279 = vpop.f32.mrf.mxu0
    %v7280 = vadd.f32 %v7236, %v7279
    %7281 = vmatmul.bf16.gmra.mxu0 %v1806
    %v7282 = vpop.f32.mrf.mxu0
    %v7283 = vadd.f32 %v7239, %v7282
    %v7284 = vpop.f32.mrf.mxu0
    %v7285 = vadd.f32 %v7241, %v7284
    %7286 = vmatmul.bf16.gmra.mxu0 %v1778
    %v7287 = vpop.f32.mrf.mxu0
    %v7288 = vadd.f32 %v7244, %v7287
    %v7289 = vpop.f32.mrf.mxu0
    %v7290 = vadd.f32 %v7246, %v7289
    %7291 = vmatmul.bf16.gmra.mxu0 %v1790
    %v7292 = vpop.f32.mrf.mxu0
    %v7293 = vadd.f32 %v7249, %v7292
    %v7294 = vpop.f32.mrf.mxu0
    %v7295 = vadd.f32 %v7251, %v7294
    %7296 = vmatmul.bf16.gmra.mxu0 %v1834
    %v7297 = vpop.f32.mrf.mxu0
    %v7298 = vadd.f32 %v7254, %v7297
    %v7299 = vpop.f32.mrf.mxu0
    %v7300 = vadd.f32 %v7256, %v7299
    %7301 = vdwg.mxu0
    %7302 = vmatpush.bf16.msra.mxu0 %v5435
    %7303 = vmatpush.bf16.msra.mxu0 %v5427
    %7304 = vmatpush.bf16.msra.mxu0 %v5419
    %7305 = vmatpush.bf16.msra.mxu0 %v5411
    %7306 = vmatpush.bf16.msra.mxu0 %v5403
    %7307 = vmatpush.bf16.msra.mxu0 %v5395
    %7308 = vmatpush.bf16.msra.mxu0 %v5387
    %7309 = vmatpush.bf16.msra.mxu0 %v5379
    %7310 = vmatmul.bf16.gmra.mxu0 %v1771
    %v7311 = vpop.f32.mrf.mxu0
    %v7312 = vadd.f32 %v7268, %v7311
    %v7313 = vpop.f32.mrf.mxu0
    %v7314 = vadd.f32 %v7270, %v7313
    %7315 = vmatmul.bf16.gmra.mxu0 %v1783
    %v7316 = vpop.f32.mrf.mxu0
    %v7317 = vadd.f32 %v7273, %v7316
    %v7318 = vpop.f32.mrf.mxu0
    %v7319 = vadd.f32 %v7275, %v7318
    %7320 = vmatmul.bf16.gmra.mxu0 %v1795
    %v7321 = vpop.f32.mrf.mxu0
    %v7322 = vadd.f32 %v7278, %v7321
    %v7323 = vpop.f32.mrf.mxu0
    %v7324 = vadd.f32 %v7280, %v7323
    %7325 = vmatmul.bf16.gmra.mxu0 %v1807
    %v7326 = vpop.f32.mrf.mxu0
    %v7327 = vadd.f32 %v7283, %v7326
    %v7328 = vpop.f32.mrf.mxu0
    %v7329 = vadd.f32 %v7285, %v7328
    %7330 = vmatmul.bf16.gmra.mxu0 %v1779
    %v7331 = vpop.f32.mrf.mxu0
    %v7332 = vadd.f32 %v7288, %v7331
    %v7333 = vpop.f32.mrf.mxu0
    %v7334 = vadd.f32 %v7290, %v7333
    %7335 = vmatmul.bf16.gmra.mxu0 %v1791
    %v7336 = vpop.f32.mrf.mxu0
    %v7337 = vadd.f32 %v7293, %v7336
    %v7338 = vpop.f32.mrf.mxu0
    %v7339 = vadd.f32 %v7295, %v7338
    %7340 = vmatmul.bf16.gmra.mxu0 %v1835
    %v7341 = vpop.f32.mrf.mxu0
    %v7342 = vadd.f32 %v7298, %v7341
    %v7343 = vpop.f32.mrf.mxu0
    %v7344 = vadd.f32 %v7300, %v7343
    %7345 = vdwg.mxu0
    %7346 = vmatpush.bf16.msra.mxu0 %v5499
    %7347 = vmatpush.bf16.msra.mxu0 %v5491
    %7348 = vmatpush.bf16.msra.mxu0 %v5483
    %7349 = vmatpush.bf16.msra.mxu0 %v5475
    %7350 = vmatpush.bf16.msra.mxu0 %v5467
    %7351 = vmatpush.bf16.msra.mxu0 %v5459
    %7352 = vmatpush.bf16.msra.mxu0 %v5451
    %7353 = vmatpush.bf16.msra.mxu0 %v5443
    %7354 = vmatmul.bf16.gmra.mxu0 %v1772
    %v7355 = vpop.f32.mrf.mxu0
    %v7356 = vadd.f32 %v7312, %v7355
    %v7357 = vpop.f32.mrf.mxu0
    %v7358 = vadd.f32 %v7314, %v7357
    %7359 = vmatmul.bf16.gmra.mxu0 %v1784
    %v7360 = vpop.f32.mrf.mxu0
    %v7361 = vadd.f32 %v7317, %v7360
    %v7362 = vpop.f32.mrf.mxu0
    %v7363 = vadd.f32 %v7319, %v7362
    %7364 = vmatmul.bf16.gmra.mxu0 %v1796
    %v7365 = vpop.f32.mrf.mxu0
    %v7366 = vadd.f32 %v7322, %v7365
    %v7367 = vpop.f32.mrf.mxu0
    %v7368 = vadd.f32 %v7324, %v7367
    %7369 = vmatmul.bf16.gmra.mxu0 %v1808
    %v7370 = vpop.f32.mrf.mxu0
    %v7371 = vadd.f32 %v7327, %v7370
    %v7372 = vpop.f32.mrf.mxu0
    %v7373 = vadd.f32 %v7329, %v7372
    %7374 = vmatmul.bf16.gmra.mxu0 %v1816
    %v7375 = vpop.f32.mrf.mxu0
    %v7376 = vadd.f32 %v7332, %v7375
    %v7377 = vpop.f32.mrf.mxu0
    %v7378 = vadd.f32 %v7334, %v7377
    %7379 = vmatmul.bf16.gmra.mxu0 %v1824
    %v7380 = vpop.f32.mrf.mxu0
    %v7381 = vadd.f32 %v7337, %v7380
    %v7382 = vpop.f32.mrf.mxu0
    %v7383 = vadd.f32 %v7339, %v7382
    %7384 = vmatmul.bf16.gmra.mxu0 %v1836
    %v7385 = vpop.f32.mrf.mxu0
    %v7386 = vadd.f32 %v7342, %v7385
    %v7387 = vpop.f32.mrf.mxu0
    %v7388 = vadd.f32 %v7344, %v7387
    %7389 = vdwg.mxu0
    %7390 = vmatpush.bf16.msra.mxu0 %v5563
    %7391 = vmatpush.bf16.msra.mxu0 %v5555
    %7392 = vmatpush.bf16.msra.mxu0 %v5547
    %7393 = vmatpush.bf16.msra.mxu0 %v5539
    %7394 = vmatpush.bf16.msra.mxu0 %v5531
    %7395 = vmatpush.bf16.msra.mxu0 %v5523
    %7396 = vmatpush.bf16.msra.mxu0 %v5515
    %7397 = vmatpush.bf16.msra.mxu0 %v5507
    %7398 = vmatmul.bf16.gmra.mxu0 %v1773
    %v7399 = vpop.f32.mrf.mxu0
    %v7400 = vadd.f32 %v7356, %v7399
    %v7401 = vpop.f32.mrf.mxu0
    %v7402 = vadd.f32 %v7358, %v7401
    %7403 = vmatmul.bf16.gmra.mxu0 %v1785
    %v7404 = vpop.f32.mrf.mxu0
    %v7405 = vadd.f32 %v7361, %v7404
    %v7406 = vpop.f32.mrf.mxu0
    %v7407 = vadd.f32 %v7363, %v7406
    %7408 = vmatmul.bf16.gmra.mxu0 %v1797
    %v7409 = vpop.f32.mrf.mxu0
    %v7410 = vadd.f32 %v7366, %v7409
    %v7411 = vpop.f32.mrf.mxu0
    %v7412 = vadd.f32 %v7368, %v7411
    %7413 = vmatmul.bf16.gmra.mxu0 %v1809
    %v7414 = vpop.f32.mrf.mxu0
    %v7415 = vadd.f32 %v7371, %v7414
    %v7416 = vpop.f32.mrf.mxu0
    %v7417 = vadd.f32 %v7373, %v7416
    %7418 = vmatmul.bf16.gmra.mxu0 %v1817
    %v7419 = vpop.f32.mrf.mxu0
    %v7420 = vadd.f32 %v7376, %v7419
    %v7421 = vpop.f32.mrf.mxu0
    %v7422 = vadd.f32 %v7378, %v7421
    %7423 = vmatmul.bf16.gmra.mxu0 %v1825
    %v7424 = vpop.f32.mrf.mxu0
    %v7425 = vadd.f32 %v7381, %v7424
    %v7426 = vpop.f32.mrf.mxu0
    %v7427 = vadd.f32 %v7383, %v7426
    %7428 = vmatmul.bf16.gmra.mxu0 %v1837
    %v7429 = vpop.f32.mrf.mxu0
    %v7430 = vadd.f32 %v7386, %v7429
    %v7431 = vpop.f32.mrf.mxu0
    %v7432 = vadd.f32 %v7388, %v7431
    %7433 = vdwg.mxu0
    %7434 = vmatpush.bf16.msra.mxu0 %v5627
    %7435 = vmatpush.bf16.msra.mxu0 %v5619
    %7436 = vmatpush.bf16.msra.mxu0 %v5611
    %7437 = vmatpush.bf16.msra.mxu0 %v5603
    %7438 = vmatpush.bf16.msra.mxu0 %v5595
    %7439 = vmatpush.bf16.msra.mxu0 %v5587
    %7440 = vmatpush.bf16.msra.mxu0 %v5579
    %7441 = vmatpush.bf16.msra.mxu0 %v5571
    %7442 = vmatmul.bf16.gmra.mxu0 %v1774
    %v7443 = vpop.f32.mrf.mxu0
    %v7444 = vadd.f32 %v7400, %v7443
    %v7445 = vpop.f32.mrf.mxu0
    %v7446 = vadd.f32 %v7402, %v7445
    %7447 = vmatmul.bf16.gmra.mxu0 %v1786
    %v7448 = vpop.f32.mrf.mxu0
    %v7449 = vadd.f32 %v7405, %v7448
    %v7450 = vpop.f32.mrf.mxu0
    %v7451 = vadd.f32 %v7407, %v7450
    %7452 = vmatmul.bf16.gmra.mxu0 %v1798
    %v7453 = vpop.f32.mrf.mxu0
    %v7454 = vadd.f32 %v7410, %v7453
    %v7455 = vpop.f32.mrf.mxu0
    %v7456 = vadd.f32 %v7412, %v7455
    %7457 = vmatmul.bf16.gmra.mxu0 %v1810
    %v7458 = vpop.f32.mrf.mxu0
    %v7459 = vadd.f32 %v7415, %v7458
    %v7460 = vpop.f32.mrf.mxu0
    %v7461 = vadd.f32 %v7417, %v7460
    %7462 = vmatmul.bf16.gmra.mxu0 %v1818
    %v7463 = vpop.f32.mrf.mxu0
    %v7464 = vadd.f32 %v7420, %v7463
    %v7465 = vpop.f32.mrf.mxu0
    %v7466 = vadd.f32 %v7422, %v7465
    %7467 = vmatmul.bf16.gmra.mxu0 %v1826
    %v7468 = vpop.f32.mrf.mxu0
    %v7469 = vadd.f32 %v7425, %v7468
    %v7470 = vpop.f32.mrf.mxu0
    %v7471 = vadd.f32 %v7427, %v7470
    %7472 = vmatmul.bf16.gmra.mxu0 %v1838
    %v7473 = vpop.f32.mrf.mxu0
    %v7474 = vadd.f32 %v7430, %v7473
    %v7475 = vpop.f32.mrf.mxu0
    %v7476 = vadd.f32 %v7432, %v7475
    %7477 = vdwg.mxu0
    %7478 = vmatpush.bf16.msra.mxu0 %v5691
    %7479 = vmatpush.bf16.msra.mxu0 %v5683
    %7480 = vmatpush.bf16.msra.mxu0 %v5675
    %7481 = vmatpush.bf16.msra.mxu0 %v5667
    %7482 = vmatpush.bf16.msra.mxu0 %v5659
    %7483 = vmatpush.bf16.msra.mxu0 %v5651
    %7484 = vmatpush.bf16.msra.mxu0 %v5643
    %7485 = vmatpush.bf16.msra.mxu0 %v5635
    %7486 = vmatmul.bf16.gmra.mxu0 %v1775
    %v7487 = vpop.f32.mrf.mxu0
    %v7488 = vadd.f32 %v7444, %v7487
    %v7489 = vpop.f32.mrf.mxu0
    %v7490 = vadd.f32 %v7446, %v7489
    %7491 = vmatmul.bf16.gmra.mxu0 %v1787
    %v7492 = vpop.f32.mrf.mxu0
    %v7493 = vadd.f32 %v7449, %v7492
    %v7494 = vpop.f32.mrf.mxu0
    %v7495 = vadd.f32 %v7451, %v7494
    %7496 = vmatmul.bf16.gmra.mxu0 %v1799
    %v7497 = vpop.f32.mrf.mxu0
    %v7498 = vadd.f32 %v7454, %v7497
    %v7499 = vpop.f32.mrf.mxu0
    %v7500 = vadd.f32 %v7456, %v7499
    %7501 = vmatmul.bf16.gmra.mxu0 %v1811
    %v7502 = vpop.f32.mrf.mxu0
    %v7503 = vadd.f32 %v7459, %v7502
    %v7504 = vpop.f32.mrf.mxu0
    %v7505 = vadd.f32 %v7461, %v7504
    %7506 = vmatmul.bf16.gmra.mxu0 %v1819
    %v7507 = vpop.f32.mrf.mxu0
    %v7508 = vadd.f32 %v7464, %v7507
    %v7509 = vpop.f32.mrf.mxu0
    %v7510 = vadd.f32 %v7466, %v7509
    %7511 = vmatmul.bf16.gmra.mxu0 %v1827
    %v7512 = vpop.f32.mrf.mxu0
    %v7513 = vadd.f32 %v7469, %v7512
    %v7514 = vpop.f32.mrf.mxu0
    %v7515 = vadd.f32 %v7471, %v7514
    %7516 = vmatmul.bf16.gmra.mxu0 %v1839
    %v7517 = vpop.f32.mrf.mxu0
    %v7518 = vadd.f32 %v7474, %v7517
    %v7519 = vpop.f32.mrf.mxu0
    %v7520 = vadd.f32 %v7476, %v7519
    %7521 = vdwg.mxu0
    %7522 = vmatpush.bf16.msra.mxu0 %v4988
    %7523 = vmatpush.bf16.msra.mxu0 %v4980
    %7524 = vmatpush.bf16.msra.mxu0 %v4972
    %7525 = vmatpush.bf16.msra.mxu0 %v4964
    %7526 = vmatpush.bf16.msra.mxu0 %v4956
    %7527 = vmatpush.bf16.msra.mxu0 %v4948
    %7528 = vmatpush.bf16.msra.mxu0 %v4940
    %7529 = vmatpush.bf16.msra.mxu0 %v4932
    %7530 = vmatmul.bf16.gmra.mxu0 %v1764
    %v7531 = vpop.f32.mrf.mxu0
    %v7532 = vadd.f32 %v2612, %v7531
    %v7533 = vpop.f32.mrf.mxu0
    %v7534 = vadd.f32 %v2612, %v7533
    %7535 = vmatmul.bf16.gmra.mxu0 %v1776
    %v7536 = vpop.f32.mrf.mxu0
    %v7537 = vadd.f32 %v2612, %v7536
    %v7538 = vpop.f32.mrf.mxu0
    %v7539 = vadd.f32 %v2612, %v7538
    %7540 = vmatmul.bf16.gmra.mxu0 %v1788
    %v7541 = vpop.f32.mrf.mxu0
    %v7542 = vadd.f32 %v2612, %v7541
    %v7543 = vpop.f32.mrf.mxu0
    %v7544 = vadd.f32 %v2612, %v7543
    %7545 = vmatmul.bf16.gmra.mxu0 %v1800
    %v7546 = vpop.f32.mrf.mxu0
    %v7547 = vadd.f32 %v2612, %v7546
    %v7548 = vpop.f32.mrf.mxu0
    %v7549 = vadd.f32 %v2612, %v7548
    %7550 = vmatmul.bf16.gmra.mxu0 %v1812
    %v7551 = vpop.f32.mrf.mxu0
    %v7552 = vadd.f32 %v2612, %v7551
    %v7553 = vpop.f32.mrf.mxu0
    %v7554 = vadd.f32 %v2612, %v7553
    %7555 = vmatmul.bf16.gmra.mxu0 %v1820
    %v7556 = vpop.f32.mrf.mxu0
    %v7557 = vadd.f32 %v2612, %v7556
    %v7558 = vpop.f32.mrf.mxu0
    %v7559 = vadd.f32 %v2612, %v7558
    %7560 = vmatmul.bf16.gmra.mxu0 %v1828
    %v7561 = vpop.f32.mrf.mxu0
    %v7562 = vadd.f32 %v2612, %v7561
    %v7563 = vpop.f32.mrf.mxu0
    %v7564 = vadd.f32 %v2612, %v7563
    %7565 = vdwg.mxu0
    %7566 = vmatpush.bf16.msra.mxu0 %v5052
    %7567 = vmatpush.bf16.msra.mxu0 %v5044
    %7568 = vmatpush.bf16.msra.mxu0 %v5036
    %7569 = vmatpush.bf16.msra.mxu0 %v5028
    %7570 = vmatpush.bf16.msra.mxu0 %v5020
    %7571 = vmatpush.bf16.msra.mxu0 %v5012
    %7572 = vmatpush.bf16.msra.mxu0 %v5004
    %7573 = vmatpush.bf16.msra.mxu0 %v4996
    %7574 = vmatmul.bf16.gmra.mxu0 %v1765
    %v7575 = vpop.f32.mrf.mxu0
    %v7576 = vadd.f32 %v7532, %v7575
    %v7577 = vpop.f32.mrf.mxu0
    %v7578 = vadd.f32 %v7534, %v7577
    %7579 = vmatmul.bf16.gmra.mxu0 %v1777
    %v7580 = vpop.f32.mrf.mxu0
    %v7581 = vadd.f32 %v7537, %v7580
    %v7582 = vpop.f32.mrf.mxu0
    %v7583 = vadd.f32 %v7539, %v7582
    %7584 = vmatmul.bf16.gmra.mxu0 %v1789
    %v7585 = vpop.f32.mrf.mxu0
    %v7586 = vadd.f32 %v7542, %v7585
    %v7587 = vpop.f32.mrf.mxu0
    %v7588 = vadd.f32 %v7544, %v7587
    %7589 = vmatmul.bf16.gmra.mxu0 %v1801
    %v7590 = vpop.f32.mrf.mxu0
    %v7591 = vadd.f32 %v7547, %v7590
    %v7592 = vpop.f32.mrf.mxu0
    %v7593 = vadd.f32 %v7549, %v7592
    %7594 = vmatmul.bf16.gmra.mxu0 %v1813
    %v7595 = vpop.f32.mrf.mxu0
    %v7596 = vadd.f32 %v7552, %v7595
    %v7597 = vpop.f32.mrf.mxu0
    %v7598 = vadd.f32 %v7554, %v7597
    %7599 = vmatmul.bf16.gmra.mxu0 %v1821
    %v7600 = vpop.f32.mrf.mxu0
    %v7601 = vadd.f32 %v7557, %v7600
    %v7602 = vpop.f32.mrf.mxu0
    %v7603 = vadd.f32 %v7559, %v7602
    %7604 = vmatmul.bf16.gmra.mxu0 %v1829
    %v7605 = vpop.f32.mrf.mxu0
    %v7606 = vadd.f32 %v7562, %v7605
    %v7607 = vpop.f32.mrf.mxu0
    %v7608 = vadd.f32 %v7564, %v7607
    %7609 = vdwg.mxu0
    %7610 = vmatpush.bf16.msra.mxu0 %v5116
    %7611 = vmatpush.bf16.msra.mxu0 %v5108
    %7612 = vmatpush.bf16.msra.mxu0 %v5100
    %7613 = vmatpush.bf16.msra.mxu0 %v5092
    %7614 = vmatpush.bf16.msra.mxu0 %v5084
    %7615 = vmatpush.bf16.msra.mxu0 %v5076
    %7616 = vmatpush.bf16.msra.mxu0 %v5068
    %7617 = vmatpush.bf16.msra.mxu0 %v5060
    %7618 = vmatmul.bf16.gmra.mxu0 %v1766
    %v7619 = vpop.f32.mrf.mxu0
    %v7620 = vadd.f32 %v7576, %v7619
    %v7621 = vpop.f32.mrf.mxu0
    %v7622 = vadd.f32 %v7578, %v7621
    %7623 = vmatmul.bf16.gmra.mxu0 %v1778
    %v7624 = vpop.f32.mrf.mxu0
    %v7625 = vadd.f32 %v7581, %v7624
    %v7626 = vpop.f32.mrf.mxu0
    %v7627 = vadd.f32 %v7583, %v7626
    %7628 = vmatmul.bf16.gmra.mxu0 %v1790
    %v7629 = vpop.f32.mrf.mxu0
    %v7630 = vadd.f32 %v7586, %v7629
    %v7631 = vpop.f32.mrf.mxu0
    %v7632 = vadd.f32 %v7588, %v7631
    %7633 = vmatmul.bf16.gmra.mxu0 %v1802
    %v7634 = vpop.f32.mrf.mxu0
    %v7635 = vadd.f32 %v7591, %v7634
    %v7636 = vpop.f32.mrf.mxu0
    %v7637 = vadd.f32 %v7593, %v7636
    %7638 = vmatmul.bf16.gmra.mxu0 %v1814
    %v7639 = vpop.f32.mrf.mxu0
    %v7640 = vadd.f32 %v7596, %v7639
    %v7641 = vpop.f32.mrf.mxu0
    %v7642 = vadd.f32 %v7598, %v7641
    %7643 = vmatmul.bf16.gmra.mxu0 %v1822
    %v7644 = vpop.f32.mrf.mxu0
    %v7645 = vadd.f32 %v7601, %v7644
    %v7646 = vpop.f32.mrf.mxu0
    %v7647 = vadd.f32 %v7603, %v7646
    %7648 = vmatmul.bf16.gmra.mxu0 %v1830
    %v7649 = vpop.f32.mrf.mxu0
    %v7650 = vadd.f32 %v7606, %v7649
    %v7651 = vpop.f32.mrf.mxu0
    %v7652 = vadd.f32 %v7608, %v7651
    %7653 = vdwg.mxu0
    %7654 = vmatpush.bf16.msra.mxu0 %v5180
    %7655 = vmatpush.bf16.msra.mxu0 %v5172
    %7656 = vmatpush.bf16.msra.mxu0 %v5164
    %7657 = vmatpush.bf16.msra.mxu0 %v5156
    %7658 = vmatpush.bf16.msra.mxu0 %v5148
    %7659 = vmatpush.bf16.msra.mxu0 %v5140
    %7660 = vmatpush.bf16.msra.mxu0 %v5132
    %7661 = vmatpush.bf16.msra.mxu0 %v5124
    %7662 = vmatmul.bf16.gmra.mxu0 %v1767
    %v7663 = vpop.f32.mrf.mxu0
    %v7664 = vadd.f32 %v7620, %v7663
    %v7665 = vpop.f32.mrf.mxu0
    %v7666 = vadd.f32 %v7622, %v7665
    %7667 = vmatmul.bf16.gmra.mxu0 %v1779
    %v7668 = vpop.f32.mrf.mxu0
    %v7669 = vadd.f32 %v7625, %v7668
    %v7670 = vpop.f32.mrf.mxu0
    %v7671 = vadd.f32 %v7627, %v7670
    %7672 = vmatmul.bf16.gmra.mxu0 %v1791
    %v7673 = vpop.f32.mrf.mxu0
    %v7674 = vadd.f32 %v7630, %v7673
    %v7675 = vpop.f32.mrf.mxu0
    %v7676 = vadd.f32 %v7632, %v7675
    %7677 = vmatmul.bf16.gmra.mxu0 %v1803
    %v7678 = vpop.f32.mrf.mxu0
    %v7679 = vadd.f32 %v7635, %v7678
    %v7680 = vpop.f32.mrf.mxu0
    %v7681 = vadd.f32 %v7637, %v7680
    %7682 = vmatmul.bf16.gmra.mxu0 %v1815
    %v7683 = vpop.f32.mrf.mxu0
    %v7684 = vadd.f32 %v7640, %v7683
    %v7685 = vpop.f32.mrf.mxu0
    %v7686 = vadd.f32 %v7642, %v7685
    %7687 = vmatmul.bf16.gmra.mxu0 %v1823
    %v7688 = vpop.f32.mrf.mxu0
    %v7689 = vadd.f32 %v7645, %v7688
    %v7690 = vpop.f32.mrf.mxu0
    %v7691 = vadd.f32 %v7647, %v7690
    %7692 = vmatmul.bf16.gmra.mxu0 %v1831
    %v7693 = vpop.f32.mrf.mxu0
    %v7694 = vadd.f32 %v7650, %v7693
    %v7695 = vpop.f32.mrf.mxu0
    %v7696 = vadd.f32 %v7652, %v7695
    %7697 = vdwg.mxu0
    %7698 = vmatpush.bf16.msra.mxu0 %v5244
    %7699 = vmatpush.bf16.msra.mxu0 %v5236
    %7700 = vmatpush.bf16.msra.mxu0 %v5228
    %7701 = vmatpush.bf16.msra.mxu0 %v5220
    %7702 = vmatpush.bf16.msra.mxu0 %v5212
    %7703 = vmatpush.bf16.msra.mxu0 %v5204
    %7704 = vmatpush.bf16.msra.mxu0 %v5196
    %7705 = vmatpush.bf16.msra.mxu0 %v5188
    %7706 = vmatmul.bf16.gmra.mxu0 %v1768
    %v7707 = vpop.f32.mrf.mxu0
    %v7708 = vadd.f32 %v7664, %v7707
    %v7709 = vpop.f32.mrf.mxu0
    %v7710 = vadd.f32 %v7666, %v7709
    %7711 = vmatmul.bf16.gmra.mxu0 %v1780
    %v7712 = vpop.f32.mrf.mxu0
    %v7713 = vadd.f32 %v7669, %v7712
    %v7714 = vpop.f32.mrf.mxu0
    %v7715 = vadd.f32 %v7671, %v7714
    %7716 = vmatmul.bf16.gmra.mxu0 %v1792
    %v7717 = vpop.f32.mrf.mxu0
    %v7718 = vadd.f32 %v7674, %v7717
    %v7719 = vpop.f32.mrf.mxu0
    %v7720 = vadd.f32 %v7676, %v7719
    %7721 = vmatmul.bf16.gmra.mxu0 %v1804
    %v7722 = vpop.f32.mrf.mxu0
    %v7723 = vadd.f32 %v7679, %v7722
    %v7724 = vpop.f32.mrf.mxu0
    %v7725 = vadd.f32 %v7681, %v7724
    %7726 = vmatmul.bf16.gmra.mxu0 %v1776
    %v7727 = vpop.f32.mrf.mxu0
    %v7728 = vadd.f32 %v7684, %v7727
    %v7729 = vpop.f32.mrf.mxu0
    %v7730 = vadd.f32 %v7686, %v7729
    %7731 = vmatmul.bf16.gmra.mxu0 %v1788
    %v7732 = vpop.f32.mrf.mxu0
    %v7733 = vadd.f32 %v7689, %v7732
    %v7734 = vpop.f32.mrf.mxu0
    %v7735 = vadd.f32 %v7691, %v7734
    %7736 = vmatmul.bf16.gmra.mxu0 %v1832
    %v7737 = vpop.f32.mrf.mxu0
    %v7738 = vadd.f32 %v7694, %v7737
    %v7739 = vpop.f32.mrf.mxu0
    %v7740 = vadd.f32 %v7696, %v7739
    %7741 = vdwg.mxu0
    %7742 = vmatpush.bf16.msra.mxu0 %v5308
    %7743 = vmatpush.bf16.msra.mxu0 %v5300
    %7744 = vmatpush.bf16.msra.mxu0 %v5292
    %7745 = vmatpush.bf16.msra.mxu0 %v5284
    %7746 = vmatpush.bf16.msra.mxu0 %v5276
    %7747 = vmatpush.bf16.msra.mxu0 %v5268
    %7748 = vmatpush.bf16.msra.mxu0 %v5260
    %7749 = vmatpush.bf16.msra.mxu0 %v5252
    %7750 = vmatmul.bf16.gmra.mxu0 %v1769
    %v7751 = vpop.f32.mrf.mxu0
    %v7752 = vadd.f32 %v7708, %v7751
    %v7753 = vpop.f32.mrf.mxu0
    %v7754 = vadd.f32 %v7710, %v7753
    %7755 = vmatmul.bf16.gmra.mxu0 %v1781
    %v7756 = vpop.f32.mrf.mxu0
    %v7757 = vadd.f32 %v7713, %v7756
    %v7758 = vpop.f32.mrf.mxu0
    %v7759 = vadd.f32 %v7715, %v7758
    %7760 = vmatmul.bf16.gmra.mxu0 %v1793
    %v7761 = vpop.f32.mrf.mxu0
    %v7762 = vadd.f32 %v7718, %v7761
    %v7763 = vpop.f32.mrf.mxu0
    %v7764 = vadd.f32 %v7720, %v7763
    %7765 = vmatmul.bf16.gmra.mxu0 %v1805
    %v7766 = vpop.f32.mrf.mxu0
    %v7767 = vadd.f32 %v7723, %v7766
    %v7768 = vpop.f32.mrf.mxu0
    %v7769 = vadd.f32 %v7725, %v7768
    %7770 = vmatmul.bf16.gmra.mxu0 %v1777
    %v7771 = vpop.f32.mrf.mxu0
    %v7772 = vadd.f32 %v7728, %v7771
    %v7773 = vpop.f32.mrf.mxu0
    %v7774 = vadd.f32 %v7730, %v7773
    %7775 = vmatmul.bf16.gmra.mxu0 %v1789
    %v7776 = vpop.f32.mrf.mxu0
    %v7777 = vadd.f32 %v7733, %v7776
    %v7778 = vpop.f32.mrf.mxu0
    %v7779 = vadd.f32 %v7735, %v7778
    %7780 = vmatmul.bf16.gmra.mxu0 %v1833
    %v7781 = vpop.f32.mrf.mxu0
    %v7782 = vadd.f32 %v7738, %v7781
    %v7783 = vpop.f32.mrf.mxu0
    %v7784 = vadd.f32 %v7740, %v7783
    %7785 = vdwg.mxu0
    %7786 = vmatpush.bf16.msra.mxu0 %v5372
    %7787 = vmatpush.bf16.msra.mxu0 %v5364
    %7788 = vmatpush.bf16.msra.mxu0 %v5356
    %7789 = vmatpush.bf16.msra.mxu0 %v5348
    %7790 = vmatpush.bf16.msra.mxu0 %v5340
    %7791 = vmatpush.bf16.msra.mxu0 %v5332
    %7792 = vmatpush.bf16.msra.mxu0 %v5324
    %7793 = vmatpush.bf16.msra.mxu0 %v5316
    %7794 = vmatmul.bf16.gmra.mxu0 %v1770
    %v7795 = vpop.f32.mrf.mxu0
    %v7796 = vadd.f32 %v7752, %v7795
    %v7797 = vpop.f32.mrf.mxu0
    %v7798 = vadd.f32 %v7754, %v7797
    %7799 = vmatmul.bf16.gmra.mxu0 %v1782
    %v7800 = vpop.f32.mrf.mxu0
    %v7801 = vadd.f32 %v7757, %v7800
    %v7802 = vpop.f32.mrf.mxu0
    %v7803 = vadd.f32 %v7759, %v7802
    %7804 = vmatmul.bf16.gmra.mxu0 %v1794
    %v7805 = vpop.f32.mrf.mxu0
    %v7806 = vadd.f32 %v7762, %v7805
    %v7807 = vpop.f32.mrf.mxu0
    %v7808 = vadd.f32 %v7764, %v7807
    %7809 = vmatmul.bf16.gmra.mxu0 %v1806
    %v7810 = vpop.f32.mrf.mxu0
    %v7811 = vadd.f32 %v7767, %v7810
    %v7812 = vpop.f32.mrf.mxu0
    %v7813 = vadd.f32 %v7769, %v7812
    %7814 = vmatmul.bf16.gmra.mxu0 %v1778
    %v7815 = vpop.f32.mrf.mxu0
    %v7816 = vadd.f32 %v7772, %v7815
    %v7817 = vpop.f32.mrf.mxu0
    %v7818 = vadd.f32 %v7774, %v7817
    %7819 = vmatmul.bf16.gmra.mxu0 %v1790
    %v7820 = vpop.f32.mrf.mxu0
    %v7821 = vadd.f32 %v7777, %v7820
    %v7822 = vpop.f32.mrf.mxu0
    %v7823 = vadd.f32 %v7779, %v7822
    %7824 = vmatmul.bf16.gmra.mxu0 %v1834
    %v7825 = vpop.f32.mrf.mxu0
    %v7826 = vadd.f32 %v7782, %v7825
    %v7827 = vpop.f32.mrf.mxu0
    %v7828 = vadd.f32 %v7784, %v7827
    %7829 = vdwg.mxu0
    %7830 = vmatpush.bf16.msra.mxu0 %v5436
    %7831 = vmatpush.bf16.msra.mxu0 %v5428
    %7832 = vmatpush.bf16.msra.mxu0 %v5420
    %7833 = vmatpush.bf16.msra.mxu0 %v5412
    %7834 = vmatpush.bf16.msra.mxu0 %v5404
    %7835 = vmatpush.bf16.msra.mxu0 %v5396
    %7836 = vmatpush.bf16.msra.mxu0 %v5388
    %7837 = vmatpush.bf16.msra.mxu0 %v5380
    %7838 = vmatmul.bf16.gmra.mxu0 %v1771
    %v7839 = vpop.f32.mrf.mxu0
    %v7840 = vadd.f32 %v7796, %v7839
    %v7841 = vpop.f32.mrf.mxu0
    %v7842 = vadd.f32 %v7798, %v7841
    %7843 = vmatmul.bf16.gmra.mxu0 %v1783
    %v7844 = vpop.f32.mrf.mxu0
    %v7845 = vadd.f32 %v7801, %v7844
    %v7846 = vpop.f32.mrf.mxu0
    %v7847 = vadd.f32 %v7803, %v7846
    %7848 = vmatmul.bf16.gmra.mxu0 %v1795
    %v7849 = vpop.f32.mrf.mxu0
    %v7850 = vadd.f32 %v7806, %v7849
    %v7851 = vpop.f32.mrf.mxu0
    %v7852 = vadd.f32 %v7808, %v7851
    %7853 = vmatmul.bf16.gmra.mxu0 %v1807
    %v7854 = vpop.f32.mrf.mxu0
    %v7855 = vadd.f32 %v7811, %v7854
    %v7856 = vpop.f32.mrf.mxu0
    %v7857 = vadd.f32 %v7813, %v7856
    %7858 = vmatmul.bf16.gmra.mxu0 %v1779
    %v7859 = vpop.f32.mrf.mxu0
    %v7860 = vadd.f32 %v7816, %v7859
    %v7861 = vpop.f32.mrf.mxu0
    %v7862 = vadd.f32 %v7818, %v7861
    %7863 = vmatmul.bf16.gmra.mxu0 %v1791
    %v7864 = vpop.f32.mrf.mxu0
    %v7865 = vadd.f32 %v7821, %v7864
    %v7866 = vpop.f32.mrf.mxu0
    %v7867 = vadd.f32 %v7823, %v7866
    %7868 = vmatmul.bf16.gmra.mxu0 %v1835
    %v7869 = vpop.f32.mrf.mxu0
    %v7870 = vadd.f32 %v7826, %v7869
    %v7871 = vpop.f32.mrf.mxu0
    %v7872 = vadd.f32 %v7828, %v7871
    %7873 = vdwg.mxu0
    %7874 = vmatpush.bf16.msra.mxu0 %v5500
    %7875 = vmatpush.bf16.msra.mxu0 %v5492
    %7876 = vmatpush.bf16.msra.mxu0 %v5484
    %7877 = vmatpush.bf16.msra.mxu0 %v5476
    %7878 = vmatpush.bf16.msra.mxu0 %v5468
    %7879 = vmatpush.bf16.msra.mxu0 %v5460
    %7880 = vmatpush.bf16.msra.mxu0 %v5452
    %7881 = vmatpush.bf16.msra.mxu0 %v5444
    %7882 = vmatmul.bf16.gmra.mxu0 %v1772
    %v7883 = vpop.f32.mrf.mxu0
    %v7884 = vadd.f32 %v7840, %v7883
    %v7885 = vpop.f32.mrf.mxu0
    %v7886 = vadd.f32 %v7842, %v7885
    %7887 = vmatmul.bf16.gmra.mxu0 %v1784
    %v7888 = vpop.f32.mrf.mxu0
    %v7889 = vadd.f32 %v7845, %v7888
    %v7890 = vpop.f32.mrf.mxu0
    %v7891 = vadd.f32 %v7847, %v7890
    %7892 = vmatmul.bf16.gmra.mxu0 %v1796
    %v7893 = vpop.f32.mrf.mxu0
    %v7894 = vadd.f32 %v7850, %v7893
    %v7895 = vpop.f32.mrf.mxu0
    %v7896 = vadd.f32 %v7852, %v7895
    %7897 = vmatmul.bf16.gmra.mxu0 %v1808
    %v7898 = vpop.f32.mrf.mxu0
    %v7899 = vadd.f32 %v7855, %v7898
    %v7900 = vpop.f32.mrf.mxu0
    %v7901 = vadd.f32 %v7857, %v7900
    %7902 = vmatmul.bf16.gmra.mxu0 %v1816
    %v7903 = vpop.f32.mrf.mxu0
    %v7904 = vadd.f32 %v7860, %v7903
    %v7905 = vpop.f32.mrf.mxu0
    %v7906 = vadd.f32 %v7862, %v7905
    %7907 = vmatmul.bf16.gmra.mxu0 %v1824
    %v7908 = vpop.f32.mrf.mxu0
    %v7909 = vadd.f32 %v7865, %v7908
    %v7910 = vpop.f32.mrf.mxu0
    %v7911 = vadd.f32 %v7867, %v7910
    %7912 = vmatmul.bf16.gmra.mxu0 %v1836
    %v7913 = vpop.f32.mrf.mxu0
    %v7914 = vadd.f32 %v7870, %v7913
    %v7915 = vpop.f32.mrf.mxu0
    %v7916 = vadd.f32 %v7872, %v7915
    %7917 = vdwg.mxu0
    %7918 = vmatpush.bf16.msra.mxu0 %v5564
    %7919 = vmatpush.bf16.msra.mxu0 %v5556
    %7920 = vmatpush.bf16.msra.mxu0 %v5548
    %7921 = vmatpush.bf16.msra.mxu0 %v5540
    %7922 = vmatpush.bf16.msra.mxu0 %v5532
    %7923 = vmatpush.bf16.msra.mxu0 %v5524
    %7924 = vmatpush.bf16.msra.mxu0 %v5516
    %7925 = vmatpush.bf16.msra.mxu0 %v5508
    %7926 = vmatmul.bf16.gmra.mxu0 %v1773
    %v7927 = vpop.f32.mrf.mxu0
    %v7928 = vadd.f32 %v7884, %v7927
    %v7929 = vpop.f32.mrf.mxu0
    %v7930 = vadd.f32 %v7886, %v7929
    %7931 = vmatmul.bf16.gmra.mxu0 %v1785
    %v7932 = vpop.f32.mrf.mxu0
    %v7933 = vadd.f32 %v7889, %v7932
    %v7934 = vpop.f32.mrf.mxu0
    %v7935 = vadd.f32 %v7891, %v7934
    %7936 = vmatmul.bf16.gmra.mxu0 %v1797
    %v7937 = vpop.f32.mrf.mxu0
    %v7938 = vadd.f32 %v7894, %v7937
    %v7939 = vpop.f32.mrf.mxu0
    %v7940 = vadd.f32 %v7896, %v7939
    %7941 = vmatmul.bf16.gmra.mxu0 %v1809
    %v7942 = vpop.f32.mrf.mxu0
    %v7943 = vadd.f32 %v7899, %v7942
    %v7944 = vpop.f32.mrf.mxu0
    %v7945 = vadd.f32 %v7901, %v7944
    %7946 = vmatmul.bf16.gmra.mxu0 %v1817
    %v7947 = vpop.f32.mrf.mxu0
    %v7948 = vadd.f32 %v7904, %v7947
    %v7949 = vpop.f32.mrf.mxu0
    %v7950 = vadd.f32 %v7906, %v7949
    %7951 = vmatmul.bf16.gmra.mxu0 %v1825
    %v7952 = vpop.f32.mrf.mxu0
    %v7953 = vadd.f32 %v7909, %v7952
    %v7954 = vpop.f32.mrf.mxu0
    %v7955 = vadd.f32 %v7911, %v7954
    %7956 = vmatmul.bf16.gmra.mxu0 %v1837
    %v7957 = vpop.f32.mrf.mxu0
    %v7958 = vadd.f32 %v7914, %v7957
    %v7959 = vpop.f32.mrf.mxu0
    %v7960 = vadd.f32 %v7916, %v7959
    %7961 = vdwg.mxu0
    %7962 = vmatpush.bf16.msra.mxu0 %v5628
    %7963 = vmatpush.bf16.msra.mxu0 %v5620
    %7964 = vmatpush.bf16.msra.mxu0 %v5612
    %7965 = vmatpush.bf16.msra.mxu0 %v5604
    %7966 = vmatpush.bf16.msra.mxu0 %v5596
    %7967 = vmatpush.bf16.msra.mxu0 %v5588
    %7968 = vmatpush.bf16.msra.mxu0 %v5580
    %7969 = vmatpush.bf16.msra.mxu0 %v5572
    %7970 = vmatmul.bf16.gmra.mxu0 %v1774
    %v7971 = vpop.f32.mrf.mxu0
    %v7972 = vadd.f32 %v7928, %v7971
    %v7973 = vpop.f32.mrf.mxu0
    %v7974 = vadd.f32 %v7930, %v7973
    %7975 = vmatmul.bf16.gmra.mxu0 %v1786
    %v7976 = vpop.f32.mrf.mxu0
    %v7977 = vadd.f32 %v7933, %v7976
    %v7978 = vpop.f32.mrf.mxu0
    %v7979 = vadd.f32 %v7935, %v7978
    %7980 = vmatmul.bf16.gmra.mxu0 %v1798
    %v7981 = vpop.f32.mrf.mxu0
    %v7982 = vadd.f32 %v7938, %v7981
    %v7983 = vpop.f32.mrf.mxu0
    %v7984 = vadd.f32 %v7940, %v7983
    %7985 = vmatmul.bf16.gmra.mxu0 %v1810
    %v7986 = vpop.f32.mrf.mxu0
    %v7987 = vadd.f32 %v7943, %v7986
    %v7988 = vpop.f32.mrf.mxu0
    %v7989 = vadd.f32 %v7945, %v7988
    %7990 = vmatmul.bf16.gmra.mxu0 %v1818
    %v7991 = vpop.f32.mrf.mxu0
    %v7992 = vadd.f32 %v7948, %v7991
    %v7993 = vpop.f32.mrf.mxu0
    %v7994 = vadd.f32 %v7950, %v7993
    %7995 = vmatmul.bf16.gmra.mxu0 %v1826
    %v7996 = vpop.f32.mrf.mxu0
    %v7997 = vadd.f32 %v7953, %v7996
    %v7998 = vpop.f32.mrf.mxu0
    %v7999 = vadd.f32 %v7955, %v7998
    %8000 = vmatmul.bf16.gmra.mxu0 %v1838
    %v8001 = vpop.f32.mrf.mxu0
    %v8002 = vadd.f32 %v7958, %v8001
    %v8003 = vpop.f32.mrf.mxu0
    %v8004 = vadd.f32 %v7960, %v8003
    %8005 = vdwg.mxu0
    %8006 = vmatpush.bf16.msra.mxu0 %v5692
    %8007 = vmatpush.bf16.msra.mxu0 %v5684
    %8008 = vmatpush.bf16.msra.mxu0 %v5676
    %8009 = vmatpush.bf16.msra.mxu0 %v5668
    %8010 = vmatpush.bf16.msra.mxu0 %v5660
    %8011 = vmatpush.bf16.msra.mxu0 %v5652
    %8012 = vmatpush.bf16.msra.mxu0 %v5644
    %8013 = vmatpush.bf16.msra.mxu0 %v5636
    %8014 = vmatmul.bf16.gmra.mxu0 %v1775
    %v8015 = vpop.f32.mrf.mxu0
    %v8016 = vadd.f32 %v7972, %v8015
    %v8017 = vpop.f32.mrf.mxu0
    %v8018 = vadd.f32 %v7974, %v8017
    %8019 = vmatmul.bf16.gmra.mxu0 %v1787
    %v8020 = vpop.f32.mrf.mxu0
    %v8021 = vadd.f32 %v7977, %v8020
    %v8022 = vpop.f32.mrf.mxu0
    %v8023 = vadd.f32 %v7979, %v8022
    %8024 = vmatmul.bf16.gmra.mxu0 %v1799
    %v8025 = vpop.f32.mrf.mxu0
    %v8026 = vadd.f32 %v7982, %v8025
    %v8027 = vpop.f32.mrf.mxu0
    %v8028 = vadd.f32 %v7984, %v8027
    %8029 = vmatmul.bf16.gmra.mxu0 %v1811
    %v8030 = vpop.f32.mrf.mxu0
    %v8031 = vadd.f32 %v7987, %v8030
    %v8032 = vpop.f32.mrf.mxu0
    %v8033 = vadd.f32 %v7989, %v8032
    %8034 = vmatmul.bf16.gmra.mxu0 %v1819
    %v8035 = vpop.f32.mrf.mxu0
    %v8036 = vadd.f32 %v7992, %v8035
    %v8037 = vpop.f32.mrf.mxu0
    %v8038 = vadd.f32 %v7994, %v8037
    %8039 = vmatmul.bf16.gmra.mxu0 %v1827
    %v8040 = vpop.f32.mrf.mxu0
    %v8041 = vadd.f32 %v7997, %v8040
    %v8042 = vpop.f32.mrf.mxu0
    %v8043 = vadd.f32 %v7999, %v8042
    %8044 = vmatmul.bf16.gmra.mxu0 %v1839
    %v8045 = vpop.f32.mrf.mxu0
    %v8046 = vadd.f32 %v8002, %v8045
    %v8047 = vpop.f32.mrf.mxu0
    %v8048 = vadd.f32 %v8004, %v8047
    %8049 = vdwg.mxu0
    %8050 = vmatpush.bf16.msra.mxu0 %v4989
    %8051 = vmatpush.bf16.msra.mxu0 %v4981
    %8052 = vmatpush.bf16.msra.mxu0 %v4973
    %8053 = vmatpush.bf16.msra.mxu0 %v4965
    %8054 = vmatpush.bf16.msra.mxu0 %v4957
    %8055 = vmatpush.bf16.msra.mxu0 %v4949
    %8056 = vmatpush.bf16.msra.mxu0 %v4941
    %8057 = vmatpush.bf16.msra.mxu0 %v4933
    %8058 = vmatmul.bf16.gmra.mxu0 %v1764
    %v8059 = vpop.f32.mrf.mxu0
    %v8060 = vadd.f32 %v2613, %v8059
    %v8061 = vpop.f32.mrf.mxu0
    %v8062 = vadd.f32 %v2613, %v8061
    %8063 = vmatmul.bf16.gmra.mxu0 %v1776
    %v8064 = vpop.f32.mrf.mxu0
    %v8065 = vadd.f32 %v2613, %v8064
    %v8066 = vpop.f32.mrf.mxu0
    %v8067 = vadd.f32 %v2613, %v8066
    %8068 = vmatmul.bf16.gmra.mxu0 %v1788
    %v8069 = vpop.f32.mrf.mxu0
    %v8070 = vadd.f32 %v2613, %v8069
    %v8071 = vpop.f32.mrf.mxu0
    %v8072 = vadd.f32 %v2613, %v8071
    %8073 = vmatmul.bf16.gmra.mxu0 %v1800
    %v8074 = vpop.f32.mrf.mxu0
    %v8075 = vadd.f32 %v2613, %v8074
    %v8076 = vpop.f32.mrf.mxu0
    %v8077 = vadd.f32 %v2613, %v8076
    %8078 = vmatmul.bf16.gmra.mxu0 %v1812
    %v8079 = vpop.f32.mrf.mxu0
    %v8080 = vadd.f32 %v2613, %v8079
    %v8081 = vpop.f32.mrf.mxu0
    %v8082 = vadd.f32 %v2613, %v8081
    %8083 = vmatmul.bf16.gmra.mxu0 %v1820
    %v8084 = vpop.f32.mrf.mxu0
    %v8085 = vadd.f32 %v2613, %v8084
    %v8086 = vpop.f32.mrf.mxu0
    %v8087 = vadd.f32 %v2613, %v8086
    %8088 = vmatmul.bf16.gmra.mxu0 %v1828
    %v8089 = vpop.f32.mrf.mxu0
    %v8090 = vadd.f32 %v2613, %v8089
    %v8091 = vpop.f32.mrf.mxu0
    %v8092 = vadd.f32 %v2613, %v8091
    %8093 = vdwg.mxu0
    %8094 = vmatpush.bf16.msra.mxu0 %v5053
    %8095 = vmatpush.bf16.msra.mxu0 %v5045
    %8096 = vmatpush.bf16.msra.mxu0 %v5037
    %8097 = vmatpush.bf16.msra.mxu0 %v5029
    %8098 = vmatpush.bf16.msra.mxu0 %v5021
    %8099 = vmatpush.bf16.msra.mxu0 %v5013
    %8100 = vmatpush.bf16.msra.mxu0 %v5005
    %8101 = vmatpush.bf16.msra.mxu0 %v4997
    %8102 = vmatmul.bf16.gmra.mxu0 %v1765
    %v8103 = vpop.f32.mrf.mxu0
    %v8104 = vadd.f32 %v8060, %v8103
    %v8105 = vpop.f32.mrf.mxu0
    %v8106 = vadd.f32 %v8062, %v8105
    %8107 = vmatmul.bf16.gmra.mxu0 %v1777
    %v8108 = vpop.f32.mrf.mxu0
    %v8109 = vadd.f32 %v8065, %v8108
    %v8110 = vpop.f32.mrf.mxu0
    %v8111 = vadd.f32 %v8067, %v8110
    %8112 = vmatmul.bf16.gmra.mxu0 %v1789
    %v8113 = vpop.f32.mrf.mxu0
    %v8114 = vadd.f32 %v8070, %v8113
    %v8115 = vpop.f32.mrf.mxu0
    %v8116 = vadd.f32 %v8072, %v8115
    %8117 = vmatmul.bf16.gmra.mxu0 %v1801
    %v8118 = vpop.f32.mrf.mxu0
    %v8119 = vadd.f32 %v8075, %v8118
    %v8120 = vpop.f32.mrf.mxu0
    %v8121 = vadd.f32 %v8077, %v8120
    %8122 = vmatmul.bf16.gmra.mxu0 %v1813
    %v8123 = vpop.f32.mrf.mxu0
    %v8124 = vadd.f32 %v8080, %v8123
    %v8125 = vpop.f32.mrf.mxu0
    %v8126 = vadd.f32 %v8082, %v8125
    %8127 = vmatmul.bf16.gmra.mxu0 %v1821
    %v8128 = vpop.f32.mrf.mxu0
    %v8129 = vadd.f32 %v8085, %v8128
    %v8130 = vpop.f32.mrf.mxu0
    %v8131 = vadd.f32 %v8087, %v8130
    %8132 = vmatmul.bf16.gmra.mxu0 %v1829
    %v8133 = vpop.f32.mrf.mxu0
    %v8134 = vadd.f32 %v8090, %v8133
    %v8135 = vpop.f32.mrf.mxu0
    %v8136 = vadd.f32 %v8092, %v8135
    %8137 = vdwg.mxu0
    %8138 = vmatpush.bf16.msra.mxu0 %v5117
    %8139 = vmatpush.bf16.msra.mxu0 %v5109
    %8140 = vmatpush.bf16.msra.mxu0 %v5101
    %8141 = vmatpush.bf16.msra.mxu0 %v5093
    %8142 = vmatpush.bf16.msra.mxu0 %v5085
    %8143 = vmatpush.bf16.msra.mxu0 %v5077
    %8144 = vmatpush.bf16.msra.mxu0 %v5069
    %8145 = vmatpush.bf16.msra.mxu0 %v5061
    %8146 = vmatmul.bf16.gmra.mxu0 %v1766
    %v8147 = vpop.f32.mrf.mxu0
    %v8148 = vadd.f32 %v8104, %v8147
    %v8149 = vpop.f32.mrf.mxu0
    %v8150 = vadd.f32 %v8106, %v8149
    %8151 = vmatmul.bf16.gmra.mxu0 %v1778
    %v8152 = vpop.f32.mrf.mxu0
    %v8153 = vadd.f32 %v8109, %v8152
    %v8154 = vpop.f32.mrf.mxu0
    %v8155 = vadd.f32 %v8111, %v8154
    %8156 = vmatmul.bf16.gmra.mxu0 %v1790
    %v8157 = vpop.f32.mrf.mxu0
    %v8158 = vadd.f32 %v8114, %v8157
    %v8159 = vpop.f32.mrf.mxu0
    %v8160 = vadd.f32 %v8116, %v8159
    %8161 = vmatmul.bf16.gmra.mxu0 %v1802
    %v8162 = vpop.f32.mrf.mxu0
    %v8163 = vadd.f32 %v8119, %v8162
    %v8164 = vpop.f32.mrf.mxu0
    %v8165 = vadd.f32 %v8121, %v8164
    %8166 = vmatmul.bf16.gmra.mxu0 %v1814
    %v8167 = vpop.f32.mrf.mxu0
    %v8168 = vadd.f32 %v8124, %v8167
    %v8169 = vpop.f32.mrf.mxu0
    %v8170 = vadd.f32 %v8126, %v8169
    %8171 = vmatmul.bf16.gmra.mxu0 %v1822
    %v8172 = vpop.f32.mrf.mxu0
    %v8173 = vadd.f32 %v8129, %v8172
    %v8174 = vpop.f32.mrf.mxu0
    %v8175 = vadd.f32 %v8131, %v8174
    %8176 = vmatmul.bf16.gmra.mxu0 %v1830
    %v8177 = vpop.f32.mrf.mxu0
    %v8178 = vadd.f32 %v8134, %v8177
    %v8179 = vpop.f32.mrf.mxu0
    %v8180 = vadd.f32 %v8136, %v8179
    %8181 = vdwg.mxu0
    %8182 = vmatpush.bf16.msra.mxu0 %v5181
    %8183 = vmatpush.bf16.msra.mxu0 %v5173
    %8184 = vmatpush.bf16.msra.mxu0 %v5165
    %8185 = vmatpush.bf16.msra.mxu0 %v5157
    %8186 = vmatpush.bf16.msra.mxu0 %v5149
    %8187 = vmatpush.bf16.msra.mxu0 %v5141
    %8188 = vmatpush.bf16.msra.mxu0 %v5133
    %8189 = vmatpush.bf16.msra.mxu0 %v5125
    %8190 = vmatmul.bf16.gmra.mxu0 %v1767
    %v8191 = vpop.f32.mrf.mxu0
    %v8192 = vadd.f32 %v8148, %v8191
    %v8193 = vpop.f32.mrf.mxu0
    %v8194 = vadd.f32 %v8150, %v8193
    %8195 = vmatmul.bf16.gmra.mxu0 %v1779
    %v8196 = vpop.f32.mrf.mxu0
    %v8197 = vadd.f32 %v8153, %v8196
    %v8198 = vpop.f32.mrf.mxu0
    %v8199 = vadd.f32 %v8155, %v8198
    %8200 = vmatmul.bf16.gmra.mxu0 %v1791
    %v8201 = vpop.f32.mrf.mxu0
    %v8202 = vadd.f32 %v8158, %v8201
    %v8203 = vpop.f32.mrf.mxu0
    %v8204 = vadd.f32 %v8160, %v8203
    %8205 = vmatmul.bf16.gmra.mxu0 %v1803
    %v8206 = vpop.f32.mrf.mxu0
    %v8207 = vadd.f32 %v8163, %v8206
    %v8208 = vpop.f32.mrf.mxu0
    %v8209 = vadd.f32 %v8165, %v8208
    %8210 = vmatmul.bf16.gmra.mxu0 %v1815
    %v8211 = vpop.f32.mrf.mxu0
    %v8212 = vadd.f32 %v8168, %v8211
    %v8213 = vpop.f32.mrf.mxu0
    %v8214 = vadd.f32 %v8170, %v8213
    %8215 = vmatmul.bf16.gmra.mxu0 %v1823
    %v8216 = vpop.f32.mrf.mxu0
    %v8217 = vadd.f32 %v8173, %v8216
    %v8218 = vpop.f32.mrf.mxu0
    %v8219 = vadd.f32 %v8175, %v8218
    %8220 = vmatmul.bf16.gmra.mxu0 %v1831
    %v8221 = vpop.f32.mrf.mxu0
    %v8222 = vadd.f32 %v8178, %v8221
    %v8223 = vpop.f32.mrf.mxu0
    %v8224 = vadd.f32 %v8180, %v8223
    %8225 = vdwg.mxu0
    %8226 = vmatpush.bf16.msra.mxu0 %v5245
    %8227 = vmatpush.bf16.msra.mxu0 %v5237
    %8228 = vmatpush.bf16.msra.mxu0 %v5229
    %8229 = vmatpush.bf16.msra.mxu0 %v5221
    %8230 = vmatpush.bf16.msra.mxu0 %v5213
    %8231 = vmatpush.bf16.msra.mxu0 %v5205
    %8232 = vmatpush.bf16.msra.mxu0 %v5197
    %8233 = vmatpush.bf16.msra.mxu0 %v5189
    %8234 = vmatmul.bf16.gmra.mxu0 %v1768
    %v8235 = vpop.f32.mrf.mxu0
    %v8236 = vadd.f32 %v8192, %v8235
    %v8237 = vpop.f32.mrf.mxu0
    %v8238 = vadd.f32 %v8194, %v8237
    %8239 = vmatmul.bf16.gmra.mxu0 %v1780
    %v8240 = vpop.f32.mrf.mxu0
    %v8241 = vadd.f32 %v8197, %v8240
    %v8242 = vpop.f32.mrf.mxu0
    %v8243 = vadd.f32 %v8199, %v8242
    %8244 = vmatmul.bf16.gmra.mxu0 %v1792
    %v8245 = vpop.f32.mrf.mxu0
    %v8246 = vadd.f32 %v8202, %v8245
    %v8247 = vpop.f32.mrf.mxu0
    %v8248 = vadd.f32 %v8204, %v8247
    %8249 = vmatmul.bf16.gmra.mxu0 %v1804
    %v8250 = vpop.f32.mrf.mxu0
    %v8251 = vadd.f32 %v8207, %v8250
    %v8252 = vpop.f32.mrf.mxu0
    %v8253 = vadd.f32 %v8209, %v8252
    %8254 = vmatmul.bf16.gmra.mxu0 %v1776
    %v8255 = vpop.f32.mrf.mxu0
    %v8256 = vadd.f32 %v8212, %v8255
    %v8257 = vpop.f32.mrf.mxu0
    %v8258 = vadd.f32 %v8214, %v8257
    %8259 = vmatmul.bf16.gmra.mxu0 %v1788
    %v8260 = vpop.f32.mrf.mxu0
    %v8261 = vadd.f32 %v8217, %v8260
    %v8262 = vpop.f32.mrf.mxu0
    %v8263 = vadd.f32 %v8219, %v8262
    %8264 = vmatmul.bf16.gmra.mxu0 %v1832
    %v8265 = vpop.f32.mrf.mxu0
    %v8266 = vadd.f32 %v8222, %v8265
    %v8267 = vpop.f32.mrf.mxu0
    %v8268 = vadd.f32 %v8224, %v8267
    %8269 = vdwg.mxu0
    %8270 = vmatpush.bf16.msra.mxu0 %v5309
    %8271 = vmatpush.bf16.msra.mxu0 %v5301
    %8272 = vmatpush.bf16.msra.mxu0 %v5293
    %8273 = vmatpush.bf16.msra.mxu0 %v5285
    %8274 = vmatpush.bf16.msra.mxu0 %v5277
    %8275 = vmatpush.bf16.msra.mxu0 %v5269
    %8276 = vmatpush.bf16.msra.mxu0 %v5261
    %8277 = vmatpush.bf16.msra.mxu0 %v5253
    %8278 = vmatmul.bf16.gmra.mxu0 %v1769
    %v8279 = vpop.f32.mrf.mxu0
    %v8280 = vadd.f32 %v8236, %v8279
    %v8281 = vpop.f32.mrf.mxu0
    %v8282 = vadd.f32 %v8238, %v8281
    %8283 = vmatmul.bf16.gmra.mxu0 %v1781
    %v8284 = vpop.f32.mrf.mxu0
    %v8285 = vadd.f32 %v8241, %v8284
    %v8286 = vpop.f32.mrf.mxu0
    %v8287 = vadd.f32 %v8243, %v8286
    %8288 = vmatmul.bf16.gmra.mxu0 %v1793
    %v8289 = vpop.f32.mrf.mxu0
    %v8290 = vadd.f32 %v8246, %v8289
    %v8291 = vpop.f32.mrf.mxu0
    %v8292 = vadd.f32 %v8248, %v8291
    %8293 = vmatmul.bf16.gmra.mxu0 %v1805
    %v8294 = vpop.f32.mrf.mxu0
    %v8295 = vadd.f32 %v8251, %v8294
    %v8296 = vpop.f32.mrf.mxu0
    %v8297 = vadd.f32 %v8253, %v8296
    %8298 = vmatmul.bf16.gmra.mxu0 %v1777
    %v8299 = vpop.f32.mrf.mxu0
    %v8300 = vadd.f32 %v8256, %v8299
    %v8301 = vpop.f32.mrf.mxu0
    %v8302 = vadd.f32 %v8258, %v8301
    %8303 = vmatmul.bf16.gmra.mxu0 %v1789
    %v8304 = vpop.f32.mrf.mxu0
    %v8305 = vadd.f32 %v8261, %v8304
    %v8306 = vpop.f32.mrf.mxu0
    %v8307 = vadd.f32 %v8263, %v8306
    %8308 = vmatmul.bf16.gmra.mxu0 %v1833
    %v8309 = vpop.f32.mrf.mxu0
    %v8310 = vadd.f32 %v8266, %v8309
    %v8311 = vpop.f32.mrf.mxu0
    %v8312 = vadd.f32 %v8268, %v8311
    %8313 = vdwg.mxu0
    %8314 = vmatpush.bf16.msra.mxu0 %v5373
    %8315 = vmatpush.bf16.msra.mxu0 %v5365
    %8316 = vmatpush.bf16.msra.mxu0 %v5357
    %8317 = vmatpush.bf16.msra.mxu0 %v5349
    %8318 = vmatpush.bf16.msra.mxu0 %v5341
    %8319 = vmatpush.bf16.msra.mxu0 %v5333
    %8320 = vmatpush.bf16.msra.mxu0 %v5325
    %8321 = vmatpush.bf16.msra.mxu0 %v5317
    %8322 = vmatmul.bf16.gmra.mxu0 %v1770
    %v8323 = vpop.f32.mrf.mxu0
    %v8324 = vadd.f32 %v8280, %v8323
    %v8325 = vpop.f32.mrf.mxu0
    %v8326 = vadd.f32 %v8282, %v8325
    %8327 = vmatmul.bf16.gmra.mxu0 %v1782
    %v8328 = vpop.f32.mrf.mxu0
    %v8329 = vadd.f32 %v8285, %v8328
    %v8330 = vpop.f32.mrf.mxu0
    %v8331 = vadd.f32 %v8287, %v8330
    %8332 = vmatmul.bf16.gmra.mxu0 %v1794
    %v8333 = vpop.f32.mrf.mxu0
    %v8334 = vadd.f32 %v8290, %v8333
    %v8335 = vpop.f32.mrf.mxu0
    %v8336 = vadd.f32 %v8292, %v8335
    %8337 = vmatmul.bf16.gmra.mxu0 %v1806
    %v8338 = vpop.f32.mrf.mxu0
    %v8339 = vadd.f32 %v8295, %v8338
    %v8340 = vpop.f32.mrf.mxu0
    %v8341 = vadd.f32 %v8297, %v8340
    %8342 = vmatmul.bf16.gmra.mxu0 %v1778
    %v8343 = vpop.f32.mrf.mxu0
    %v8344 = vadd.f32 %v8300, %v8343
    %v8345 = vpop.f32.mrf.mxu0
    %v8346 = vadd.f32 %v8302, %v8345
    %8347 = vmatmul.bf16.gmra.mxu0 %v1790
    %v8348 = vpop.f32.mrf.mxu0
    %v8349 = vadd.f32 %v8305, %v8348
    %v8350 = vpop.f32.mrf.mxu0
    %v8351 = vadd.f32 %v8307, %v8350
    %8352 = vmatmul.bf16.gmra.mxu0 %v1834
    %v8353 = vpop.f32.mrf.mxu0
    %v8354 = vadd.f32 %v8310, %v8353
    %v8355 = vpop.f32.mrf.mxu0
    %v8356 = vadd.f32 %v8312, %v8355
    %8357 = vdwg.mxu0
    %8358 = vmatpush.bf16.msra.mxu0 %v5437
    %8359 = vmatpush.bf16.msra.mxu0 %v5429
    %8360 = vmatpush.bf16.msra.mxu0 %v5421
    %8361 = vmatpush.bf16.msra.mxu0 %v5413
    %8362 = vmatpush.bf16.msra.mxu0 %v5405
    %8363 = vmatpush.bf16.msra.mxu0 %v5397
    %8364 = vmatpush.bf16.msra.mxu0 %v5389
    %8365 = vmatpush.bf16.msra.mxu0 %v5381
    %8366 = vmatmul.bf16.gmra.mxu0 %v1771
    %v8367 = vpop.f32.mrf.mxu0
    %v8368 = vadd.f32 %v8324, %v8367
    %v8369 = vpop.f32.mrf.mxu0
    %v8370 = vadd.f32 %v8326, %v8369
    %8371 = vmatmul.bf16.gmra.mxu0 %v1783
    %v8372 = vpop.f32.mrf.mxu0
    %v8373 = vadd.f32 %v8329, %v8372
    %v8374 = vpop.f32.mrf.mxu0
    %v8375 = vadd.f32 %v8331, %v8374
    %8376 = vmatmul.bf16.gmra.mxu0 %v1795
    %v8377 = vpop.f32.mrf.mxu0
    %v8378 = vadd.f32 %v8334, %v8377
    %v8379 = vpop.f32.mrf.mxu0
    %v8380 = vadd.f32 %v8336, %v8379
    %8381 = vmatmul.bf16.gmra.mxu0 %v1807
    %v8382 = vpop.f32.mrf.mxu0
    %v8383 = vadd.f32 %v8339, %v8382
    %v8384 = vpop.f32.mrf.mxu0
    %v8385 = vadd.f32 %v8341, %v8384
    %8386 = vmatmul.bf16.gmra.mxu0 %v1779
    %v8387 = vpop.f32.mrf.mxu0
    %v8388 = vadd.f32 %v8344, %v8387
    %v8389 = vpop.f32.mrf.mxu0
    %v8390 = vadd.f32 %v8346, %v8389
    %8391 = vmatmul.bf16.gmra.mxu0 %v1791
    %v8392 = vpop.f32.mrf.mxu0
    %v8393 = vadd.f32 %v8349, %v8392
    %v8394 = vpop.f32.mrf.mxu0
    %v8395 = vadd.f32 %v8351, %v8394
    %8396 = vmatmul.bf16.gmra.mxu0 %v1835
    %v8397 = vpop.f32.mrf.mxu0
    %v8398 = vadd.f32 %v8354, %v8397
    %v8399 = vpop.f32.mrf.mxu0
    %v8400 = vadd.f32 %v8356, %v8399
    %8401 = vdwg.mxu0
    %8402 = vmatpush.bf16.msra.mxu0 %v5501
    %8403 = vmatpush.bf16.msra.mxu0 %v5493
    %8404 = vmatpush.bf16.msra.mxu0 %v5485
    %8405 = vmatpush.bf16.msra.mxu0 %v5477
    %8406 = vmatpush.bf16.msra.mxu0 %v5469
    %8407 = vmatpush.bf16.msra.mxu0 %v5461
    %8408 = vmatpush.bf16.msra.mxu0 %v5453
    %8409 = vmatpush.bf16.msra.mxu0 %v5445
    %8410 = vmatmul.bf16.gmra.mxu0 %v1772
    %v8411 = vpop.f32.mrf.mxu0
    %v8412 = vadd.f32 %v8368, %v8411
    %v8413 = vpop.f32.mrf.mxu0
    %v8414 = vadd.f32 %v8370, %v8413
    %8415 = vmatmul.bf16.gmra.mxu0 %v1784
    %v8416 = vpop.f32.mrf.mxu0
    %v8417 = vadd.f32 %v8373, %v8416
    %v8418 = vpop.f32.mrf.mxu0
    %v8419 = vadd.f32 %v8375, %v8418
    %8420 = vmatmul.bf16.gmra.mxu0 %v1796
    %v8421 = vpop.f32.mrf.mxu0
    %v8422 = vadd.f32 %v8378, %v8421
    %v8423 = vpop.f32.mrf.mxu0
    %v8424 = vadd.f32 %v8380, %v8423
    %8425 = vmatmul.bf16.gmra.mxu0 %v1808
    %v8426 = vpop.f32.mrf.mxu0
    %v8427 = vadd.f32 %v8383, %v8426
    %v8428 = vpop.f32.mrf.mxu0
    %v8429 = vadd.f32 %v8385, %v8428
    %8430 = vmatmul.bf16.gmra.mxu0 %v1816
    %v8431 = vpop.f32.mrf.mxu0
    %v8432 = vadd.f32 %v8388, %v8431
    %v8433 = vpop.f32.mrf.mxu0
    %v8434 = vadd.f32 %v8390, %v8433
    %8435 = vmatmul.bf16.gmra.mxu0 %v1824
    %v8436 = vpop.f32.mrf.mxu0
    %v8437 = vadd.f32 %v8393, %v8436
    %v8438 = vpop.f32.mrf.mxu0
    %v8439 = vadd.f32 %v8395, %v8438
    %8440 = vmatmul.bf16.gmra.mxu0 %v1836
    %v8441 = vpop.f32.mrf.mxu0
    %v8442 = vadd.f32 %v8398, %v8441
    %v8443 = vpop.f32.mrf.mxu0
    %v8444 = vadd.f32 %v8400, %v8443
    %8445 = vdwg.mxu0
    %8446 = vmatpush.bf16.msra.mxu0 %v5565
    %8447 = vmatpush.bf16.msra.mxu0 %v5557
    %8448 = vmatpush.bf16.msra.mxu0 %v5549
    %8449 = vmatpush.bf16.msra.mxu0 %v5541
    %8450 = vmatpush.bf16.msra.mxu0 %v5533
    %8451 = vmatpush.bf16.msra.mxu0 %v5525
    %8452 = vmatpush.bf16.msra.mxu0 %v5517
    %8453 = vmatpush.bf16.msra.mxu0 %v5509
    %8454 = vmatmul.bf16.gmra.mxu0 %v1773
    %v8455 = vpop.f32.mrf.mxu0
    %v8456 = vadd.f32 %v8412, %v8455
    %v8457 = vpop.f32.mrf.mxu0
    %v8458 = vadd.f32 %v8414, %v8457
    %8459 = vmatmul.bf16.gmra.mxu0 %v1785
    %v8460 = vpop.f32.mrf.mxu0
    %v8461 = vadd.f32 %v8417, %v8460
    %v8462 = vpop.f32.mrf.mxu0
    %v8463 = vadd.f32 %v8419, %v8462
    %8464 = vmatmul.bf16.gmra.mxu0 %v1797
    %v8465 = vpop.f32.mrf.mxu0
    %v8466 = vadd.f32 %v8422, %v8465
    %v8467 = vpop.f32.mrf.mxu0
    %v8468 = vadd.f32 %v8424, %v8467
    %8469 = vmatmul.bf16.gmra.mxu0 %v1809
    %v8470 = vpop.f32.mrf.mxu0
    %v8471 = vadd.f32 %v8427, %v8470
    %v8472 = vpop.f32.mrf.mxu0
    %v8473 = vadd.f32 %v8429, %v8472
    %8474 = vmatmul.bf16.gmra.mxu0 %v1817
    %v8475 = vpop.f32.mrf.mxu0
    %v8476 = vadd.f32 %v8432, %v8475
    %v8477 = vpop.f32.mrf.mxu0
    %v8478 = vadd.f32 %v8434, %v8477
    %8479 = vmatmul.bf16.gmra.mxu0 %v1825
    %v8480 = vpop.f32.mrf.mxu0
    %v8481 = vadd.f32 %v8437, %v8480
    %v8482 = vpop.f32.mrf.mxu0
    %v8483 = vadd.f32 %v8439, %v8482
    %8484 = vmatmul.bf16.gmra.mxu0 %v1837
    %v8485 = vpop.f32.mrf.mxu0
    %v8486 = vadd.f32 %v8442, %v8485
    %v8487 = vpop.f32.mrf.mxu0
    %v8488 = vadd.f32 %v8444, %v8487
    %8489 = vdwg.mxu0
    %8490 = vmatpush.bf16.msra.mxu0 %v5629
    %8491 = vmatpush.bf16.msra.mxu0 %v5621
    %8492 = vmatpush.bf16.msra.mxu0 %v5613
    %8493 = vmatpush.bf16.msra.mxu0 %v5605
    %8494 = vmatpush.bf16.msra.mxu0 %v5597
    %8495 = vmatpush.bf16.msra.mxu0 %v5589
    %8496 = vmatpush.bf16.msra.mxu0 %v5581
    %8497 = vmatpush.bf16.msra.mxu0 %v5573
    %8498 = vmatmul.bf16.gmra.mxu0 %v1774
    %v8499 = vpop.f32.mrf.mxu0
    %v8500 = vadd.f32 %v8456, %v8499
    %v8501 = vpop.f32.mrf.mxu0
    %v8502 = vadd.f32 %v8458, %v8501
    %8503 = vmatmul.bf16.gmra.mxu0 %v1786
    %v8504 = vpop.f32.mrf.mxu0
    %v8505 = vadd.f32 %v8461, %v8504
    %v8506 = vpop.f32.mrf.mxu0
    %v8507 = vadd.f32 %v8463, %v8506
    %8508 = vmatmul.bf16.gmra.mxu0 %v1798
    %v8509 = vpop.f32.mrf.mxu0
    %v8510 = vadd.f32 %v8466, %v8509
    %v8511 = vpop.f32.mrf.mxu0
    %v8512 = vadd.f32 %v8468, %v8511
    %8513 = vmatmul.bf16.gmra.mxu0 %v1810
    %v8514 = vpop.f32.mrf.mxu0
    %v8515 = vadd.f32 %v8471, %v8514
    %v8516 = vpop.f32.mrf.mxu0
    %v8517 = vadd.f32 %v8473, %v8516
    %8518 = vmatmul.bf16.gmra.mxu0 %v1818
    %v8519 = vpop.f32.mrf.mxu0
    %v8520 = vadd.f32 %v8476, %v8519
    %v8521 = vpop.f32.mrf.mxu0
    %v8522 = vadd.f32 %v8478, %v8521
    %8523 = vmatmul.bf16.gmra.mxu0 %v1826
    %v8524 = vpop.f32.mrf.mxu0
    %v8525 = vadd.f32 %v8481, %v8524
    %v8526 = vpop.f32.mrf.mxu0
    %v8527 = vadd.f32 %v8483, %v8526
    %8528 = vmatmul.bf16.gmra.mxu0 %v1838
    %v8529 = vpop.f32.mrf.mxu0
    %v8530 = vadd.f32 %v8486, %v8529
    %v8531 = vpop.f32.mrf.mxu0
    %v8532 = vadd.f32 %v8488, %v8531
    %8533 = vdwg.mxu0
    %8534 = vmatpush.bf16.msra.mxu0 %v5693
    %8535 = vmatpush.bf16.msra.mxu0 %v5685
    %8536 = vmatpush.bf16.msra.mxu0 %v5677
    %8537 = vmatpush.bf16.msra.mxu0 %v5669
    %8538 = vmatpush.bf16.msra.mxu0 %v5661
    %8539 = vmatpush.bf16.msra.mxu0 %v5653
    %8540 = vmatpush.bf16.msra.mxu0 %v5645
    %8541 = vmatpush.bf16.msra.mxu0 %v5637
    %8542 = vmatmul.bf16.gmra.mxu0 %v1775
    %v8543 = vpop.f32.mrf.mxu0
    %v8544 = vadd.f32 %v8500, %v8543
    %v8545 = vpop.f32.mrf.mxu0
    %v8546 = vadd.f32 %v8502, %v8545
    %8547 = vmatmul.bf16.gmra.mxu0 %v1787
    %v8548 = vpop.f32.mrf.mxu0
    %v8549 = vadd.f32 %v8505, %v8548
    %v8550 = vpop.f32.mrf.mxu0
    %v8551 = vadd.f32 %v8507, %v8550
    %8552 = vmatmul.bf16.gmra.mxu0 %v1799
    %v8553 = vpop.f32.mrf.mxu0
    %v8554 = vadd.f32 %v8510, %v8553
    %v8555 = vpop.f32.mrf.mxu0
    %v8556 = vadd.f32 %v8512, %v8555
    %8557 = vmatmul.bf16.gmra.mxu0 %v1811
    %v8558 = vpop.f32.mrf.mxu0
    %v8559 = vadd.f32 %v8515, %v8558
    %v8560 = vpop.f32.mrf.mxu0
    %v8561 = vadd.f32 %v8517, %v8560
    %8562 = vmatmul.bf16.gmra.mxu0 %v1819
    %v8563 = vpop.f32.mrf.mxu0
    %v8564 = vadd.f32 %v8520, %v8563
    %v8565 = vpop.f32.mrf.mxu0
    %v8566 = vadd.f32 %v8522, %v8565
    %8567 = vmatmul.bf16.gmra.mxu0 %v1827
    %v8568 = vpop.f32.mrf.mxu0
    %v8569 = vadd.f32 %v8525, %v8568
    %v8570 = vpop.f32.mrf.mxu0
    %v8571 = vadd.f32 %v8527, %v8570
    %8572 = vmatmul.bf16.gmra.mxu0 %v1839
    %v8573 = vpop.f32.mrf.mxu0
    %v8574 = vadd.f32 %v8530, %v8573
    %v8575 = vpop.f32.mrf.mxu0
    %v8576 = vadd.f32 %v8532, %v8575
    %8577 = vdwg.mxu0
    %8578 = vmatpush.bf16.msra.mxu0 %v4990
    %8579 = vmatpush.bf16.msra.mxu0 %v4982
    %8580 = vmatpush.bf16.msra.mxu0 %v4974
    %8581 = vmatpush.bf16.msra.mxu0 %v4966
    %8582 = vmatpush.bf16.msra.mxu0 %v4958
    %8583 = vmatpush.bf16.msra.mxu0 %v4950
    %8584 = vmatpush.bf16.msra.mxu0 %v4942
    %8585 = vmatpush.bf16.msra.mxu0 %v4934
    %8586 = vmatmul.bf16.gmra.mxu0 %v1764
    %v8587 = vpop.f32.mrf.mxu0
    %v8588 = vadd.f32 %v2614, %v8587
    %v8589 = vpop.f32.mrf.mxu0
    %v8590 = vadd.f32 %v2614, %v8589
    %8591 = vmatmul.bf16.gmra.mxu0 %v1776
    %v8592 = vpop.f32.mrf.mxu0
    %v8593 = vadd.f32 %v2614, %v8592
    %v8594 = vpop.f32.mrf.mxu0
    %v8595 = vadd.f32 %v2614, %v8594
    %8596 = vmatmul.bf16.gmra.mxu0 %v1788
    %v8597 = vpop.f32.mrf.mxu0
    %v8598 = vadd.f32 %v2614, %v8597
    %v8599 = vpop.f32.mrf.mxu0
    %v8600 = vadd.f32 %v2614, %v8599
    %8601 = vmatmul.bf16.gmra.mxu0 %v1800
    %v8602 = vpop.f32.mrf.mxu0
    %v8603 = vadd.f32 %v2614, %v8602
    %v8604 = vpop.f32.mrf.mxu0
    %v8605 = vadd.f32 %v2614, %v8604
    %8606 = vmatmul.bf16.gmra.mxu0 %v1812
    %v8607 = vpop.f32.mrf.mxu0
    %v8608 = vadd.f32 %v2614, %v8607
    %v8609 = vpop.f32.mrf.mxu0
    %v8610 = vadd.f32 %v2614, %v8609
    %8611 = vmatmul.bf16.gmra.mxu0 %v1820
    %v8612 = vpop.f32.mrf.mxu0
    %v8613 = vadd.f32 %v2614, %v8612
    %v8614 = vpop.f32.mrf.mxu0
    %v8615 = vadd.f32 %v2614, %v8614
    %8616 = vmatmul.bf16.gmra.mxu0 %v1828
    %v8617 = vpop.f32.mrf.mxu0
    %v8618 = vadd.f32 %v2614, %v8617
    %v8619 = vpop.f32.mrf.mxu0
    %v8620 = vadd.f32 %v2614, %v8619
    %8621 = vdwg.mxu0
    %8622 = vmatpush.bf16.msra.mxu0 %v5054
    %8623 = vmatpush.bf16.msra.mxu0 %v5046
    %8624 = vmatpush.bf16.msra.mxu0 %v5038
    %8625 = vmatpush.bf16.msra.mxu0 %v5030
    %8626 = vmatpush.bf16.msra.mxu0 %v5022
    %8627 = vmatpush.bf16.msra.mxu0 %v5014
    %8628 = vmatpush.bf16.msra.mxu0 %v5006
    %8629 = vmatpush.bf16.msra.mxu0 %v4998
    %8630 = vmatmul.bf16.gmra.mxu0 %v1765
    %v8631 = vpop.f32.mrf.mxu0
    %v8632 = vadd.f32 %v8588, %v8631
    %v8633 = vpop.f32.mrf.mxu0
    %v8634 = vadd.f32 %v8590, %v8633
    %8635 = vmatmul.bf16.gmra.mxu0 %v1777
    %v8636 = vpop.f32.mrf.mxu0
    %v8637 = vadd.f32 %v8593, %v8636
    %v8638 = vpop.f32.mrf.mxu0
    %v8639 = vadd.f32 %v8595, %v8638
    %8640 = vmatmul.bf16.gmra.mxu0 %v1789
    %v8641 = vpop.f32.mrf.mxu0
    %v8642 = vadd.f32 %v8598, %v8641
    %v8643 = vpop.f32.mrf.mxu0
    %v8644 = vadd.f32 %v8600, %v8643
    %8645 = vmatmul.bf16.gmra.mxu0 %v1801
    %v8646 = vpop.f32.mrf.mxu0
    %v8647 = vadd.f32 %v8603, %v8646
    %v8648 = vpop.f32.mrf.mxu0
    %v8649 = vadd.f32 %v8605, %v8648
    %8650 = vmatmul.bf16.gmra.mxu0 %v1813
    %v8651 = vpop.f32.mrf.mxu0
    %v8652 = vadd.f32 %v8608, %v8651
    %v8653 = vpop.f32.mrf.mxu0
    %v8654 = vadd.f32 %v8610, %v8653
    %8655 = vmatmul.bf16.gmra.mxu0 %v1821
    %v8656 = vpop.f32.mrf.mxu0
    %v8657 = vadd.f32 %v8613, %v8656
    %v8658 = vpop.f32.mrf.mxu0
    %v8659 = vadd.f32 %v8615, %v8658
    %8660 = vmatmul.bf16.gmra.mxu0 %v1829
    %v8661 = vpop.f32.mrf.mxu0
    %v8662 = vadd.f32 %v8618, %v8661
    %v8663 = vpop.f32.mrf.mxu0
    %v8664 = vadd.f32 %v8620, %v8663
    %8665 = vdwg.mxu0
    %8666 = vmatpush.bf16.msra.mxu0 %v5118
    %8667 = vmatpush.bf16.msra.mxu0 %v5110
    %8668 = vmatpush.bf16.msra.mxu0 %v5102
    %8669 = vmatpush.bf16.msra.mxu0 %v5094
    %8670 = vmatpush.bf16.msra.mxu0 %v5086
    %8671 = vmatpush.bf16.msra.mxu0 %v5078
    %8672 = vmatpush.bf16.msra.mxu0 %v5070
    %8673 = vmatpush.bf16.msra.mxu0 %v5062
    %8674 = vmatmul.bf16.gmra.mxu0 %v1766
    %v8675 = vpop.f32.mrf.mxu0
    %v8676 = vadd.f32 %v8632, %v8675
    %v8677 = vpop.f32.mrf.mxu0
    %v8678 = vadd.f32 %v8634, %v8677
    %8679 = vmatmul.bf16.gmra.mxu0 %v1778
    %v8680 = vpop.f32.mrf.mxu0
    %v8681 = vadd.f32 %v8637, %v8680
    %v8682 = vpop.f32.mrf.mxu0
    %v8683 = vadd.f32 %v8639, %v8682
    %8684 = vmatmul.bf16.gmra.mxu0 %v1790
    %v8685 = vpop.f32.mrf.mxu0
    %v8686 = vadd.f32 %v8642, %v8685
    %v8687 = vpop.f32.mrf.mxu0
    %v8688 = vadd.f32 %v8644, %v8687
    %8689 = vmatmul.bf16.gmra.mxu0 %v1802
    %v8690 = vpop.f32.mrf.mxu0
    %v8691 = vadd.f32 %v8647, %v8690
    %v8692 = vpop.f32.mrf.mxu0
    %v8693 = vadd.f32 %v8649, %v8692
    %8694 = vmatmul.bf16.gmra.mxu0 %v1814
    %v8695 = vpop.f32.mrf.mxu0
    %v8696 = vadd.f32 %v8652, %v8695
    %v8697 = vpop.f32.mrf.mxu0
    %v8698 = vadd.f32 %v8654, %v8697
    %8699 = vmatmul.bf16.gmra.mxu0 %v1822
    %v8700 = vpop.f32.mrf.mxu0
    %v8701 = vadd.f32 %v8657, %v8700
    %v8702 = vpop.f32.mrf.mxu0
    %v8703 = vadd.f32 %v8659, %v8702
    %8704 = vmatmul.bf16.gmra.mxu0 %v1830
    %v8705 = vpop.f32.mrf.mxu0
    %v8706 = vadd.f32 %v8662, %v8705
    %v8707 = vpop.f32.mrf.mxu0
    %v8708 = vadd.f32 %v8664, %v8707
    %8709 = vdwg.mxu0
    %8710 = vmatpush.bf16.msra.mxu0 %v5182
    %8711 = vmatpush.bf16.msra.mxu0 %v5174
    %8712 = vmatpush.bf16.msra.mxu0 %v5166
    %8713 = vmatpush.bf16.msra.mxu0 %v5158
    %8714 = vmatpush.bf16.msra.mxu0 %v5150
    %8715 = vmatpush.bf16.msra.mxu0 %v5142
    %8716 = vmatpush.bf16.msra.mxu0 %v5134
    %8717 = vmatpush.bf16.msra.mxu0 %v5126
    %8718 = vmatmul.bf16.gmra.mxu0 %v1767
    %v8719 = vpop.f32.mrf.mxu0
    %v8720 = vadd.f32 %v8676, %v8719
    %v8721 = vpop.f32.mrf.mxu0
    %v8722 = vadd.f32 %v8678, %v8721
    %8723 = vmatmul.bf16.gmra.mxu0 %v1779
    %v8724 = vpop.f32.mrf.mxu0
    %v8725 = vadd.f32 %v8681, %v8724
    %v8726 = vpop.f32.mrf.mxu0
    %v8727 = vadd.f32 %v8683, %v8726
    %8728 = vmatmul.bf16.gmra.mxu0 %v1791
    %v8729 = vpop.f32.mrf.mxu0
    %v8730 = vadd.f32 %v8686, %v8729
    %v8731 = vpop.f32.mrf.mxu0
    %v8732 = vadd.f32 %v8688, %v8731
    %8733 = vmatmul.bf16.gmra.mxu0 %v1803
    %v8734 = vpop.f32.mrf.mxu0
    %v8735 = vadd.f32 %v8691, %v8734
    %v8736 = vpop.f32.mrf.mxu0
    %v8737 = vadd.f32 %v8693, %v8736
    %8738 = vmatmul.bf16.gmra.mxu0 %v1815
    %v8739 = vpop.f32.mrf.mxu0
    %v8740 = vadd.f32 %v8696, %v8739
    %v8741 = vpop.f32.mrf.mxu0
    %v8742 = vadd.f32 %v8698, %v8741
    %8743 = vmatmul.bf16.gmra.mxu0 %v1823
    %v8744 = vpop.f32.mrf.mxu0
    %v8745 = vadd.f32 %v8701, %v8744
    %v8746 = vpop.f32.mrf.mxu0
    %v8747 = vadd.f32 %v8703, %v8746
    %8748 = vmatmul.bf16.gmra.mxu0 %v1831
    %v8749 = vpop.f32.mrf.mxu0
    %v8750 = vadd.f32 %v8706, %v8749
    %v8751 = vpop.f32.mrf.mxu0
    %v8752 = vadd.f32 %v8708, %v8751
    %8753 = vdwg.mxu0
    %8754 = vmatpush.bf16.msra.mxu0 %v5246
    %8755 = vmatpush.bf16.msra.mxu0 %v5238
    %8756 = vmatpush.bf16.msra.mxu0 %v5230
    %8757 = vmatpush.bf16.msra.mxu0 %v5222
    %8758 = vmatpush.bf16.msra.mxu0 %v5214
    %8759 = vmatpush.bf16.msra.mxu0 %v5206
    %8760 = vmatpush.bf16.msra.mxu0 %v5198
    %8761 = vmatpush.bf16.msra.mxu0 %v5190
    %8762 = vmatmul.bf16.gmra.mxu0 %v1768
    %v8763 = vpop.f32.mrf.mxu0
    %v8764 = vadd.f32 %v8720, %v8763
    %v8765 = vpop.f32.mrf.mxu0
    %v8766 = vadd.f32 %v8722, %v8765
    %8767 = vmatmul.bf16.gmra.mxu0 %v1780
    %v8768 = vpop.f32.mrf.mxu0
    %v8769 = vadd.f32 %v8725, %v8768
    %v8770 = vpop.f32.mrf.mxu0
    %v8771 = vadd.f32 %v8727, %v8770
    %8772 = vmatmul.bf16.gmra.mxu0 %v1792
    %v8773 = vpop.f32.mrf.mxu0
    %v8774 = vadd.f32 %v8730, %v8773
    %v8775 = vpop.f32.mrf.mxu0
    %v8776 = vadd.f32 %v8732, %v8775
    %8777 = vmatmul.bf16.gmra.mxu0 %v1804
    %v8778 = vpop.f32.mrf.mxu0
    %v8779 = vadd.f32 %v8735, %v8778
    %v8780 = vpop.f32.mrf.mxu0
    %v8781 = vadd.f32 %v8737, %v8780
    %8782 = vmatmul.bf16.gmra.mxu0 %v1776
    %v8783 = vpop.f32.mrf.mxu0
    %v8784 = vadd.f32 %v8740, %v8783
    %v8785 = vpop.f32.mrf.mxu0
    %v8786 = vadd.f32 %v8742, %v8785
    %8787 = vmatmul.bf16.gmra.mxu0 %v1788
    %v8788 = vpop.f32.mrf.mxu0
    %v8789 = vadd.f32 %v8745, %v8788
    %v8790 = vpop.f32.mrf.mxu0
    %v8791 = vadd.f32 %v8747, %v8790
    %8792 = vmatmul.bf16.gmra.mxu0 %v1832
    %v8793 = vpop.f32.mrf.mxu0
    %v8794 = vadd.f32 %v8750, %v8793
    %v8795 = vpop.f32.mrf.mxu0
    %v8796 = vadd.f32 %v8752, %v8795
    %8797 = vdwg.mxu0
    %8798 = vmatpush.bf16.msra.mxu0 %v5310
    %8799 = vmatpush.bf16.msra.mxu0 %v5302
    %8800 = vmatpush.bf16.msra.mxu0 %v5294
    %8801 = vmatpush.bf16.msra.mxu0 %v5286
    %8802 = vmatpush.bf16.msra.mxu0 %v5278
    %8803 = vmatpush.bf16.msra.mxu0 %v5270
    %8804 = vmatpush.bf16.msra.mxu0 %v5262
    %8805 = vmatpush.bf16.msra.mxu0 %v5254
    %8806 = vmatmul.bf16.gmra.mxu0 %v1769
    %v8807 = vpop.f32.mrf.mxu0
    %v8808 = vadd.f32 %v8764, %v8807
    %v8809 = vpop.f32.mrf.mxu0
    %v8810 = vadd.f32 %v8766, %v8809
    %8811 = vmatmul.bf16.gmra.mxu0 %v1781
    %v8812 = vpop.f32.mrf.mxu0
    %v8813 = vadd.f32 %v8769, %v8812
    %v8814 = vpop.f32.mrf.mxu0
    %v8815 = vadd.f32 %v8771, %v8814
    %8816 = vmatmul.bf16.gmra.mxu0 %v1793
    %v8817 = vpop.f32.mrf.mxu0
    %v8818 = vadd.f32 %v8774, %v8817
    %v8819 = vpop.f32.mrf.mxu0
    %v8820 = vadd.f32 %v8776, %v8819
    %8821 = vmatmul.bf16.gmra.mxu0 %v1805
    %v8822 = vpop.f32.mrf.mxu0
    %v8823 = vadd.f32 %v8779, %v8822
    %v8824 = vpop.f32.mrf.mxu0
    %v8825 = vadd.f32 %v8781, %v8824
    %8826 = vmatmul.bf16.gmra.mxu0 %v1777
    %v8827 = vpop.f32.mrf.mxu0
    %v8828 = vadd.f32 %v8784, %v8827
    %v8829 = vpop.f32.mrf.mxu0
    %v8830 = vadd.f32 %v8786, %v8829
    %8831 = vmatmul.bf16.gmra.mxu0 %v1789
    %v8832 = vpop.f32.mrf.mxu0
    %v8833 = vadd.f32 %v8789, %v8832
    %v8834 = vpop.f32.mrf.mxu0
    %v8835 = vadd.f32 %v8791, %v8834
    %8836 = vmatmul.bf16.gmra.mxu0 %v1833
    %v8837 = vpop.f32.mrf.mxu0
    %v8838 = vadd.f32 %v8794, %v8837
    %v8839 = vpop.f32.mrf.mxu0
    %v8840 = vadd.f32 %v8796, %v8839
    %8841 = vdwg.mxu0
    %8842 = vmatpush.bf16.msra.mxu0 %v5374
    %8843 = vmatpush.bf16.msra.mxu0 %v5366
    %8844 = vmatpush.bf16.msra.mxu0 %v5358
    %8845 = vmatpush.bf16.msra.mxu0 %v5350
    %8846 = vmatpush.bf16.msra.mxu0 %v5342
    %8847 = vmatpush.bf16.msra.mxu0 %v5334
    %8848 = vmatpush.bf16.msra.mxu0 %v5326
    %8849 = vmatpush.bf16.msra.mxu0 %v5318
    %8850 = vmatmul.bf16.gmra.mxu0 %v1770
    %v8851 = vpop.f32.mrf.mxu0
    %v8852 = vadd.f32 %v8808, %v8851
    %v8853 = vpop.f32.mrf.mxu0
    %v8854 = vadd.f32 %v8810, %v8853
    %8855 = vmatmul.bf16.gmra.mxu0 %v1782
    %v8856 = vpop.f32.mrf.mxu0
    %v8857 = vadd.f32 %v8813, %v8856
    %v8858 = vpop.f32.mrf.mxu0
    %v8859 = vadd.f32 %v8815, %v8858
    %8860 = vmatmul.bf16.gmra.mxu0 %v1794
    %v8861 = vpop.f32.mrf.mxu0
    %v8862 = vadd.f32 %v8818, %v8861
    %v8863 = vpop.f32.mrf.mxu0
    %v8864 = vadd.f32 %v8820, %v8863
    %8865 = vmatmul.bf16.gmra.mxu0 %v1806
    %v8866 = vpop.f32.mrf.mxu0
    %v8867 = vadd.f32 %v8823, %v8866
    %v8868 = vpop.f32.mrf.mxu0
    %v8869 = vadd.f32 %v8825, %v8868
    %8870 = vmatmul.bf16.gmra.mxu0 %v1778
    %v8871 = vpop.f32.mrf.mxu0
    %v8872 = vadd.f32 %v8828, %v8871
    %v8873 = vpop.f32.mrf.mxu0
    %v8874 = vadd.f32 %v8830, %v8873
    %8875 = vmatmul.bf16.gmra.mxu0 %v1790
    %v8876 = vpop.f32.mrf.mxu0
    %v8877 = vadd.f32 %v8833, %v8876
    %v8878 = vpop.f32.mrf.mxu0
    %v8879 = vadd.f32 %v8835, %v8878
    %8880 = vmatmul.bf16.gmra.mxu0 %v1834
    %v8881 = vpop.f32.mrf.mxu0
    %v8882 = vadd.f32 %v8838, %v8881
    %v8883 = vpop.f32.mrf.mxu0
    %v8884 = vadd.f32 %v8840, %v8883
    %8885 = vdwg.mxu0
    %8886 = vmatpush.bf16.msra.mxu0 %v5438
    %8887 = vmatpush.bf16.msra.mxu0 %v5430
    %8888 = vmatpush.bf16.msra.mxu0 %v5422
    %8889 = vmatpush.bf16.msra.mxu0 %v5414
    %8890 = vmatpush.bf16.msra.mxu0 %v5406
    %8891 = vmatpush.bf16.msra.mxu0 %v5398
    %8892 = vmatpush.bf16.msra.mxu0 %v5390
    %8893 = vmatpush.bf16.msra.mxu0 %v5382
    %8894 = vmatmul.bf16.gmra.mxu0 %v1771
    %v8895 = vpop.f32.mrf.mxu0
    %v8896 = vadd.f32 %v8852, %v8895
    %v8897 = vpop.f32.mrf.mxu0
    %v8898 = vadd.f32 %v8854, %v8897
    %8899 = vmatmul.bf16.gmra.mxu0 %v1783
    %v8900 = vpop.f32.mrf.mxu0
    %v8901 = vadd.f32 %v8857, %v8900
    %v8902 = vpop.f32.mrf.mxu0
    %v8903 = vadd.f32 %v8859, %v8902
    %8904 = vmatmul.bf16.gmra.mxu0 %v1795
    %v8905 = vpop.f32.mrf.mxu0
    %v8906 = vadd.f32 %v8862, %v8905
    %v8907 = vpop.f32.mrf.mxu0
    %v8908 = vadd.f32 %v8864, %v8907
    %8909 = vmatmul.bf16.gmra.mxu0 %v1807
    %v8910 = vpop.f32.mrf.mxu0
    %v8911 = vadd.f32 %v8867, %v8910
    %v8912 = vpop.f32.mrf.mxu0
    %v8913 = vadd.f32 %v8869, %v8912
    %8914 = vmatmul.bf16.gmra.mxu0 %v1779
    %v8915 = vpop.f32.mrf.mxu0
    %v8916 = vadd.f32 %v8872, %v8915
    %v8917 = vpop.f32.mrf.mxu0
    %v8918 = vadd.f32 %v8874, %v8917
    %8919 = vmatmul.bf16.gmra.mxu0 %v1791
    %v8920 = vpop.f32.mrf.mxu0
    %v8921 = vadd.f32 %v8877, %v8920
    %v8922 = vpop.f32.mrf.mxu0
    %v8923 = vadd.f32 %v8879, %v8922
    %8924 = vmatmul.bf16.gmra.mxu0 %v1835
    %v8925 = vpop.f32.mrf.mxu0
    %v8926 = vadd.f32 %v8882, %v8925
    %v8927 = vpop.f32.mrf.mxu0
    %v8928 = vadd.f32 %v8884, %v8927
    %8929 = vdwg.mxu0
    %8930 = vmatpush.bf16.msra.mxu0 %v5502
    %8931 = vmatpush.bf16.msra.mxu0 %v5494
    %8932 = vmatpush.bf16.msra.mxu0 %v5486
    %8933 = vmatpush.bf16.msra.mxu0 %v5478
    %8934 = vmatpush.bf16.msra.mxu0 %v5470
    %8935 = vmatpush.bf16.msra.mxu0 %v5462
    %8936 = vmatpush.bf16.msra.mxu0 %v5454
    %8937 = vmatpush.bf16.msra.mxu0 %v5446
    %8938 = vmatmul.bf16.gmra.mxu0 %v1772
    %v8939 = vpop.f32.mrf.mxu0
    %v8940 = vadd.f32 %v8896, %v8939
    %v8941 = vpop.f32.mrf.mxu0
    %v8942 = vadd.f32 %v8898, %v8941
    %8943 = vmatmul.bf16.gmra.mxu0 %v1784
    %v8944 = vpop.f32.mrf.mxu0
    %v8945 = vadd.f32 %v8901, %v8944
    %v8946 = vpop.f32.mrf.mxu0
    %v8947 = vadd.f32 %v8903, %v8946
    %8948 = vmatmul.bf16.gmra.mxu0 %v1796
    %v8949 = vpop.f32.mrf.mxu0
    %v8950 = vadd.f32 %v8906, %v8949
    %v8951 = vpop.f32.mrf.mxu0
    %v8952 = vadd.f32 %v8908, %v8951
    %8953 = vmatmul.bf16.gmra.mxu0 %v1808
    %v8954 = vpop.f32.mrf.mxu0
    %v8955 = vadd.f32 %v8911, %v8954
    %v8956 = vpop.f32.mrf.mxu0
    %v8957 = vadd.f32 %v8913, %v8956
    %8958 = vmatmul.bf16.gmra.mxu0 %v1816
    %v8959 = vpop.f32.mrf.mxu0
    %v8960 = vadd.f32 %v8916, %v8959
    %v8961 = vpop.f32.mrf.mxu0
    %v8962 = vadd.f32 %v8918, %v8961
    %8963 = vmatmul.bf16.gmra.mxu0 %v1824
    %v8964 = vpop.f32.mrf.mxu0
    %v8965 = vadd.f32 %v8921, %v8964
    %v8966 = vpop.f32.mrf.mxu0
    %v8967 = vadd.f32 %v8923, %v8966
    %8968 = vmatmul.bf16.gmra.mxu0 %v1836
    %v8969 = vpop.f32.mrf.mxu0
    %v8970 = vadd.f32 %v8926, %v8969
    %v8971 = vpop.f32.mrf.mxu0
    %v8972 = vadd.f32 %v8928, %v8971
    %8973 = vdwg.mxu0
    %8974 = vmatpush.bf16.msra.mxu0 %v5566
    %8975 = vmatpush.bf16.msra.mxu0 %v5558
    %8976 = vmatpush.bf16.msra.mxu0 %v5550
    %8977 = vmatpush.bf16.msra.mxu0 %v5542
    %8978 = vmatpush.bf16.msra.mxu0 %v5534
    %8979 = vmatpush.bf16.msra.mxu0 %v5526
    %8980 = vmatpush.bf16.msra.mxu0 %v5518
    %8981 = vmatpush.bf16.msra.mxu0 %v5510
    %8982 = vmatmul.bf16.gmra.mxu0 %v1773
    %v8983 = vpop.f32.mrf.mxu0
    %v8984 = vadd.f32 %v8940, %v8983
    %v8985 = vpop.f32.mrf.mxu0
    %v8986 = vadd.f32 %v8942, %v8985
    %8987 = vmatmul.bf16.gmra.mxu0 %v1785
    %v8988 = vpop.f32.mrf.mxu0
    %v8989 = vadd.f32 %v8945, %v8988
    %v8990 = vpop.f32.mrf.mxu0
    %v8991 = vadd.f32 %v8947, %v8990
    %8992 = vmatmul.bf16.gmra.mxu0 %v1797
    %v8993 = vpop.f32.mrf.mxu0
    %v8994 = vadd.f32 %v8950, %v8993
    %v8995 = vpop.f32.mrf.mxu0
    %v8996 = vadd.f32 %v8952, %v8995
    %8997 = vmatmul.bf16.gmra.mxu0 %v1809
    %v8998 = vpop.f32.mrf.mxu0
    %v8999 = vadd.f32 %v8955, %v8998
    %v9000 = vpop.f32.mrf.mxu0
    %v9001 = vadd.f32 %v8957, %v9000
    %9002 = vmatmul.bf16.gmra.mxu0 %v1817
    %v9003 = vpop.f32.mrf.mxu0
    %v9004 = vadd.f32 %v8960, %v9003
    %v9005 = vpop.f32.mrf.mxu0
    %v9006 = vadd.f32 %v8962, %v9005
    %9007 = vmatmul.bf16.gmra.mxu0 %v1825
    %v9008 = vpop.f32.mrf.mxu0
    %v9009 = vadd.f32 %v8965, %v9008
    %v9010 = vpop.f32.mrf.mxu0
    %v9011 = vadd.f32 %v8967, %v9010
    %9012 = vmatmul.bf16.gmra.mxu0 %v1837
    %v9013 = vpop.f32.mrf.mxu0
    %v9014 = vadd.f32 %v8970, %v9013
    %v9015 = vpop.f32.mrf.mxu0
    %v9016 = vadd.f32 %v8972, %v9015
    %9017 = vdwg.mxu0
    %9018 = vmatpush.bf16.msra.mxu0 %v5630
    %9019 = vmatpush.bf16.msra.mxu0 %v5622
    %9020 = vmatpush.bf16.msra.mxu0 %v5614
    %9021 = vmatpush.bf16.msra.mxu0 %v5606
    %9022 = vmatpush.bf16.msra.mxu0 %v5598
    %9023 = vmatpush.bf16.msra.mxu0 %v5590
    %9024 = vmatpush.bf16.msra.mxu0 %v5582
    %9025 = vmatpush.bf16.msra.mxu0 %v5574
    %9026 = vmatmul.bf16.gmra.mxu0 %v1774
    %v9027 = vpop.f32.mrf.mxu0
    %v9028 = vadd.f32 %v8984, %v9027
    %v9029 = vpop.f32.mrf.mxu0
    %v9030 = vadd.f32 %v8986, %v9029
    %9031 = vmatmul.bf16.gmra.mxu0 %v1786
    %v9032 = vpop.f32.mrf.mxu0
    %v9033 = vadd.f32 %v8989, %v9032
    %v9034 = vpop.f32.mrf.mxu0
    %v9035 = vadd.f32 %v8991, %v9034
    %9036 = vmatmul.bf16.gmra.mxu0 %v1798
    %v9037 = vpop.f32.mrf.mxu0
    %v9038 = vadd.f32 %v8994, %v9037
    %v9039 = vpop.f32.mrf.mxu0
    %v9040 = vadd.f32 %v8996, %v9039
    %9041 = vmatmul.bf16.gmra.mxu0 %v1810
    %v9042 = vpop.f32.mrf.mxu0
    %v9043 = vadd.f32 %v8999, %v9042
    %v9044 = vpop.f32.mrf.mxu0
    %v9045 = vadd.f32 %v9001, %v9044
    %9046 = vmatmul.bf16.gmra.mxu0 %v1818
    %v9047 = vpop.f32.mrf.mxu0
    %v9048 = vadd.f32 %v9004, %v9047
    %v9049 = vpop.f32.mrf.mxu0
    %v9050 = vadd.f32 %v9006, %v9049
    %9051 = vmatmul.bf16.gmra.mxu0 %v1826
    %v9052 = vpop.f32.mrf.mxu0
    %v9053 = vadd.f32 %v9009, %v9052
    %v9054 = vpop.f32.mrf.mxu0
    %v9055 = vadd.f32 %v9011, %v9054
    %9056 = vmatmul.bf16.gmra.mxu0 %v1838
    %v9057 = vpop.f32.mrf.mxu0
    %v9058 = vadd.f32 %v9014, %v9057
    %v9059 = vpop.f32.mrf.mxu0
    %v9060 = vadd.f32 %v9016, %v9059
    %9061 = vdwg.mxu0
    %9062 = vmatpush.bf16.msra.mxu0 %v5694
    %9063 = vmatpush.bf16.msra.mxu0 %v5686
    %9064 = vmatpush.bf16.msra.mxu0 %v5678
    %9065 = vmatpush.bf16.msra.mxu0 %v5670
    %9066 = vmatpush.bf16.msra.mxu0 %v5662
    %9067 = vmatpush.bf16.msra.mxu0 %v5654
    %9068 = vmatpush.bf16.msra.mxu0 %v5646
    %9069 = vmatpush.bf16.msra.mxu0 %v5638
    %9070 = vmatmul.bf16.gmra.mxu0 %v1775
    %v9071 = vpop.f32.mrf.mxu0
    %v9072 = vadd.f32 %v9028, %v9071
    %v9073 = vpop.f32.mrf.mxu0
    %v9074 = vadd.f32 %v9030, %v9073
    %9075 = vmatmul.bf16.gmra.mxu0 %v1787
    %v9076 = vpop.f32.mrf.mxu0
    %v9077 = vadd.f32 %v9033, %v9076
    %v9078 = vpop.f32.mrf.mxu0
    %v9079 = vadd.f32 %v9035, %v9078
    %9080 = vmatmul.bf16.gmra.mxu0 %v1799
    %v9081 = vpop.f32.mrf.mxu0
    %v9082 = vadd.f32 %v9038, %v9081
    %v9083 = vpop.f32.mrf.mxu0
    %v9084 = vadd.f32 %v9040, %v9083
    %9085 = vmatmul.bf16.gmra.mxu0 %v1811
    %v9086 = vpop.f32.mrf.mxu0
    %v9087 = vadd.f32 %v9043, %v9086
    %v9088 = vpop.f32.mrf.mxu0
    %v9089 = vadd.f32 %v9045, %v9088
    %9090 = vmatmul.bf16.gmra.mxu0 %v1819
    %v9091 = vpop.f32.mrf.mxu0
    %v9092 = vadd.f32 %v9048, %v9091
    %v9093 = vpop.f32.mrf.mxu0
    %v9094 = vadd.f32 %v9050, %v9093
    %9095 = vmatmul.bf16.gmra.mxu0 %v1827
    %v9096 = vpop.f32.mrf.mxu0
    %v9097 = vadd.f32 %v9053, %v9096
    %v9098 = vpop.f32.mrf.mxu0
    %v9099 = vadd.f32 %v9055, %v9098
    %9100 = vmatmul.bf16.gmra.mxu0 %v1839
    %v9101 = vpop.f32.mrf.mxu0
    %v9102 = vadd.f32 %v9058, %v9101
    %v9103 = vpop.f32.mrf.mxu0
    %v9104 = vadd.f32 %v9060, %v9103
    %9105 = vdwg.mxu0
    %9106 = vmatpush.bf16.msra.mxu0 %v4991
    %9107 = vmatpush.bf16.msra.mxu0 %v4983
    %9108 = vmatpush.bf16.msra.mxu0 %v4975
    %9109 = vmatpush.bf16.msra.mxu0 %v4967
    %9110 = vmatpush.bf16.msra.mxu0 %v4959
    %9111 = vmatpush.bf16.msra.mxu0 %v4951
    %9112 = vmatpush.bf16.msra.mxu0 %v4943
    %9113 = vmatpush.bf16.msra.mxu0 %v4935
    %9114 = vmatmul.bf16.gmra.mxu0 %v1764
    %v9115 = vpop.f32.mrf.mxu0
    %v9116 = vadd.f32 %v2615, %v9115
    %v9117 = vpop.f32.mrf.mxu0
    %v9118 = vadd.f32 %v2615, %v9117
    %9119 = vmatmul.bf16.gmra.mxu0 %v1776
    %v9120 = vpop.f32.mrf.mxu0
    %v9121 = vadd.f32 %v2615, %v9120
    %v9122 = vpop.f32.mrf.mxu0
    %v9123 = vadd.f32 %v2615, %v9122
    %9124 = vmatmul.bf16.gmra.mxu0 %v1788
    %v9125 = vpop.f32.mrf.mxu0
    %v9126 = vadd.f32 %v2615, %v9125
    %v9127 = vpop.f32.mrf.mxu0
    %v9128 = vadd.f32 %v2615, %v9127
    %9129 = vmatmul.bf16.gmra.mxu0 %v1800
    %v9130 = vpop.f32.mrf.mxu0
    %v9131 = vadd.f32 %v2615, %v9130
    %v9132 = vpop.f32.mrf.mxu0
    %v9133 = vadd.f32 %v2615, %v9132
    %9134 = vmatmul.bf16.gmra.mxu0 %v1812
    %v9135 = vpop.f32.mrf.mxu0
    %v9136 = vadd.f32 %v2615, %v9135
    %v9137 = vpop.f32.mrf.mxu0
    %v9138 = vadd.f32 %v2615, %v9137
    %9139 = vmatmul.bf16.gmra.mxu0 %v1820
    %v9140 = vpop.f32.mrf.mxu0
    %v9141 = vadd.f32 %v2615, %v9140
    %v9142 = vpop.f32.mrf.mxu0
    %v9143 = vadd.f32 %v2615, %v9142
    %9144 = vmatmul.bf16.gmra.mxu0 %v1828
    %v9145 = vpop.f32.mrf.mxu0
    %v9146 = vadd.f32 %v2615, %v9145
    %v9147 = vpop.f32.mrf.mxu0
    %v9148 = vadd.f32 %v2615, %v9147
    %9149 = vdwg.mxu0
    %9150 = vmatpush.bf16.msra.mxu0 %v5055
    %9151 = vmatpush.bf16.msra.mxu0 %v5047
    %9152 = vmatpush.bf16.msra.mxu0 %v5039
    %9153 = vmatpush.bf16.msra.mxu0 %v5031
    %9154 = vmatpush.bf16.msra.mxu0 %v5023
    %9155 = vmatpush.bf16.msra.mxu0 %v5015
    %9156 = vmatpush.bf16.msra.mxu0 %v5007
    %9157 = vmatpush.bf16.msra.mxu0 %v4999
    %9158 = vmatmul.bf16.gmra.mxu0 %v1765
    %v9159 = vpop.f32.mrf.mxu0
    %v9160 = vadd.f32 %v9116, %v9159
    %v9161 = vpop.f32.mrf.mxu0
    %v9162 = vadd.f32 %v9118, %v9161
    %9163 = vmatmul.bf16.gmra.mxu0 %v1777
    %v9164 = vpop.f32.mrf.mxu0
    %v9165 = vadd.f32 %v9121, %v9164
    %v9166 = vpop.f32.mrf.mxu0
    %v9167 = vadd.f32 %v9123, %v9166
    %9168 = vmatmul.bf16.gmra.mxu0 %v1789
    %v9169 = vpop.f32.mrf.mxu0
    %v9170 = vadd.f32 %v9126, %v9169
    %v9171 = vpop.f32.mrf.mxu0
    %v9172 = vadd.f32 %v9128, %v9171
    %9173 = vmatmul.bf16.gmra.mxu0 %v1801
    %v9174 = vpop.f32.mrf.mxu0
    %v9175 = vadd.f32 %v9131, %v9174
    %v9176 = vpop.f32.mrf.mxu0
    %v9177 = vadd.f32 %v9133, %v9176
    %9178 = vmatmul.bf16.gmra.mxu0 %v1813
    %v9179 = vpop.f32.mrf.mxu0
    %v9180 = vadd.f32 %v9136, %v9179
    %v9181 = vpop.f32.mrf.mxu0
    %v9182 = vadd.f32 %v9138, %v9181
    %9183 = vmatmul.bf16.gmra.mxu0 %v1821
    %v9184 = vpop.f32.mrf.mxu0
    %v9185 = vadd.f32 %v9141, %v9184
    %v9186 = vpop.f32.mrf.mxu0
    %v9187 = vadd.f32 %v9143, %v9186
    %9188 = vmatmul.bf16.gmra.mxu0 %v1829
    %v9189 = vpop.f32.mrf.mxu0
    %v9190 = vadd.f32 %v9146, %v9189
    %v9191 = vpop.f32.mrf.mxu0
    %v9192 = vadd.f32 %v9148, %v9191
    %9193 = vdwg.mxu0
    %9194 = vmatpush.bf16.msra.mxu0 %v5119
    %9195 = vmatpush.bf16.msra.mxu0 %v5111
    %9196 = vmatpush.bf16.msra.mxu0 %v5103
    %9197 = vmatpush.bf16.msra.mxu0 %v5095
    %9198 = vmatpush.bf16.msra.mxu0 %v5087
    %9199 = vmatpush.bf16.msra.mxu0 %v5079
    %9200 = vmatpush.bf16.msra.mxu0 %v5071
    %9201 = vmatpush.bf16.msra.mxu0 %v5063
    %9202 = vmatmul.bf16.gmra.mxu0 %v1766
    %v9203 = vpop.f32.mrf.mxu0
    %v9204 = vadd.f32 %v9160, %v9203
    %v9205 = vpop.f32.mrf.mxu0
    %v9206 = vadd.f32 %v9162, %v9205
    %9207 = vmatmul.bf16.gmra.mxu0 %v1778
    %v9208 = vpop.f32.mrf.mxu0
    %v9209 = vadd.f32 %v9165, %v9208
    %v9210 = vpop.f32.mrf.mxu0
    %v9211 = vadd.f32 %v9167, %v9210
    %9212 = vmatmul.bf16.gmra.mxu0 %v1790
    %v9213 = vpop.f32.mrf.mxu0
    %v9214 = vadd.f32 %v9170, %v9213
    %v9215 = vpop.f32.mrf.mxu0
    %v9216 = vadd.f32 %v9172, %v9215
    %9217 = vmatmul.bf16.gmra.mxu0 %v1802
    %v9218 = vpop.f32.mrf.mxu0
    %v9219 = vadd.f32 %v9175, %v9218
    %v9220 = vpop.f32.mrf.mxu0
    %v9221 = vadd.f32 %v9177, %v9220
    %9222 = vmatmul.bf16.gmra.mxu0 %v1814
    %v9223 = vpop.f32.mrf.mxu0
    %v9224 = vadd.f32 %v9180, %v9223
    %v9225 = vpop.f32.mrf.mxu0
    %v9226 = vadd.f32 %v9182, %v9225
    %9227 = vmatmul.bf16.gmra.mxu0 %v1822
    %v9228 = vpop.f32.mrf.mxu0
    %v9229 = vadd.f32 %v9185, %v9228
    %v9230 = vpop.f32.mrf.mxu0
    %v9231 = vadd.f32 %v9187, %v9230
    %9232 = vmatmul.bf16.gmra.mxu0 %v1830
    %v9233 = vpop.f32.mrf.mxu0
    %v9234 = vadd.f32 %v9190, %v9233
    %v9235 = vpop.f32.mrf.mxu0
    %v9236 = vadd.f32 %v9192, %v9235
    %9237 = vdwg.mxu0
    %9238 = vmatpush.bf16.msra.mxu0 %v5183
    %9239 = vmatpush.bf16.msra.mxu0 %v5175
    %9240 = vmatpush.bf16.msra.mxu0 %v5167
    %9241 = vmatpush.bf16.msra.mxu0 %v5159
    %9242 = vmatpush.bf16.msra.mxu0 %v5151
    %9243 = vmatpush.bf16.msra.mxu0 %v5143
    %9244 = vmatpush.bf16.msra.mxu0 %v5135
    %9245 = vmatpush.bf16.msra.mxu0 %v5127
    %9246 = vmatmul.bf16.gmra.mxu0 %v1767
    %v9247 = vpop.f32.mrf.mxu0
    %v9248 = vadd.f32 %v9204, %v9247
    %v9249 = vpop.f32.mrf.mxu0
    %v9250 = vadd.f32 %v9206, %v9249
    %9251 = vmatmul.bf16.gmra.mxu0 %v1779
    %v9252 = vpop.f32.mrf.mxu0
    %v9253 = vadd.f32 %v9209, %v9252
    %v9254 = vpop.f32.mrf.mxu0
    %v9255 = vadd.f32 %v9211, %v9254
    %9256 = vmatmul.bf16.gmra.mxu0 %v1791
    %v9257 = vpop.f32.mrf.mxu0
    %v9258 = vadd.f32 %v9214, %v9257
    %v9259 = vpop.f32.mrf.mxu0
    %v9260 = vadd.f32 %v9216, %v9259
    %9261 = vmatmul.bf16.gmra.mxu0 %v1803
    %v9262 = vpop.f32.mrf.mxu0
    %v9263 = vadd.f32 %v9219, %v9262
    %v9264 = vpop.f32.mrf.mxu0
    %v9265 = vadd.f32 %v9221, %v9264
    %9266 = vmatmul.bf16.gmra.mxu0 %v1815
    %v9267 = vpop.f32.mrf.mxu0
    %v9268 = vadd.f32 %v9224, %v9267
    %v9269 = vpop.f32.mrf.mxu0
    %v9270 = vadd.f32 %v9226, %v9269
    %9271 = vmatmul.bf16.gmra.mxu0 %v1823
    %v9272 = vpop.f32.mrf.mxu0
    %v9273 = vadd.f32 %v9229, %v9272
    %v9274 = vpop.f32.mrf.mxu0
    %v9275 = vadd.f32 %v9231, %v9274
    %9276 = vmatmul.bf16.gmra.mxu0 %v1831
    %v9277 = vpop.f32.mrf.mxu0
    %v9278 = vadd.f32 %v9234, %v9277
    %v9279 = vpop.f32.mrf.mxu0
    %v9280 = vadd.f32 %v9236, %v9279
    %9281 = vdwg.mxu0
    %9282 = vmatpush.bf16.msra.mxu0 %v5247
    %9283 = vmatpush.bf16.msra.mxu0 %v5239
    %9284 = vmatpush.bf16.msra.mxu0 %v5231
    %9285 = vmatpush.bf16.msra.mxu0 %v5223
    %9286 = vmatpush.bf16.msra.mxu0 %v5215
    %9287 = vmatpush.bf16.msra.mxu0 %v5207
    %9288 = vmatpush.bf16.msra.mxu0 %v5199
    %9289 = vmatpush.bf16.msra.mxu0 %v5191
    %9290 = vmatmul.bf16.gmra.mxu0 %v1768
    %v9291 = vpop.f32.mrf.mxu0
    %v9292 = vadd.f32 %v9248, %v9291
    %v9293 = vpop.f32.mrf.mxu0
    %v9294 = vadd.f32 %v9250, %v9293
    %9295 = vmatmul.bf16.gmra.mxu0 %v1780
    %v9296 = vpop.f32.mrf.mxu0
    %v9297 = vadd.f32 %v9253, %v9296
    %v9298 = vpop.f32.mrf.mxu0
    %v9299 = vadd.f32 %v9255, %v9298
    %9300 = vmatmul.bf16.gmra.mxu0 %v1792
    %v9301 = vpop.f32.mrf.mxu0
    %v9302 = vadd.f32 %v9258, %v9301
    %v9303 = vpop.f32.mrf.mxu0
    %v9304 = vadd.f32 %v9260, %v9303
    %9305 = vmatmul.bf16.gmra.mxu0 %v1804
    %v9306 = vpop.f32.mrf.mxu0
    %v9307 = vadd.f32 %v9263, %v9306
    %v9308 = vpop.f32.mrf.mxu0
    %v9309 = vadd.f32 %v9265, %v9308
    %9310 = vmatmul.bf16.gmra.mxu0 %v1776
    %v9311 = vpop.f32.mrf.mxu0
    %v9312 = vadd.f32 %v9268, %v9311
    %v9313 = vpop.f32.mrf.mxu0
    %v9314 = vadd.f32 %v9270, %v9313
    %9315 = vmatmul.bf16.gmra.mxu0 %v1788
    %v9316 = vpop.f32.mrf.mxu0
    %v9317 = vadd.f32 %v9273, %v9316
    %v9318 = vpop.f32.mrf.mxu0
    %v9319 = vadd.f32 %v9275, %v9318
    %9320 = vmatmul.bf16.gmra.mxu0 %v1832
    %v9321 = vpop.f32.mrf.mxu0
    %v9322 = vadd.f32 %v9278, %v9321
    %v9323 = vpop.f32.mrf.mxu0
    %v9324 = vadd.f32 %v9280, %v9323
    %9325 = vdwg.mxu0
    %9326 = vmatpush.bf16.msra.mxu0 %v5311
    %9327 = vmatpush.bf16.msra.mxu0 %v5303
    %9328 = vmatpush.bf16.msra.mxu0 %v5295
    %9329 = vmatpush.bf16.msra.mxu0 %v5287
    %9330 = vmatpush.bf16.msra.mxu0 %v5279
    %9331 = vmatpush.bf16.msra.mxu0 %v5271
    %9332 = vmatpush.bf16.msra.mxu0 %v5263
    %9333 = vmatpush.bf16.msra.mxu0 %v5255
    %9334 = vmatmul.bf16.gmra.mxu0 %v1769
    %v9335 = vpop.f32.mrf.mxu0
    %v9336 = vadd.f32 %v9292, %v9335
    %v9337 = vpop.f32.mrf.mxu0
    %v9338 = vadd.f32 %v9294, %v9337
    %9339 = vmatmul.bf16.gmra.mxu0 %v1781
    %v9340 = vpop.f32.mrf.mxu0
    %v9341 = vadd.f32 %v9297, %v9340
    %v9342 = vpop.f32.mrf.mxu0
    %v9343 = vadd.f32 %v9299, %v9342
    %9344 = vmatmul.bf16.gmra.mxu0 %v1793
    %v9345 = vpop.f32.mrf.mxu0
    %v9346 = vadd.f32 %v9302, %v9345
    %v9347 = vpop.f32.mrf.mxu0
    %v9348 = vadd.f32 %v9304, %v9347
    %9349 = vmatmul.bf16.gmra.mxu0 %v1805
    %v9350 = vpop.f32.mrf.mxu0
    %v9351 = vadd.f32 %v9307, %v9350
    %v9352 = vpop.f32.mrf.mxu0
    %v9353 = vadd.f32 %v9309, %v9352
    %9354 = vmatmul.bf16.gmra.mxu0 %v1777
    %v9355 = vpop.f32.mrf.mxu0
    %v9356 = vadd.f32 %v9312, %v9355
    %v9357 = vpop.f32.mrf.mxu0
    %v9358 = vadd.f32 %v9314, %v9357
    %9359 = vmatmul.bf16.gmra.mxu0 %v1789
    %v9360 = vpop.f32.mrf.mxu0
    %v9361 = vadd.f32 %v9317, %v9360
    %v9362 = vpop.f32.mrf.mxu0
    %v9363 = vadd.f32 %v9319, %v9362
    %9364 = vmatmul.bf16.gmra.mxu0 %v1833
    %v9365 = vpop.f32.mrf.mxu0
    %v9366 = vadd.f32 %v9322, %v9365
    %v9367 = vpop.f32.mrf.mxu0
    %v9368 = vadd.f32 %v9324, %v9367
    %9369 = vdwg.mxu0
    %9370 = vmatpush.bf16.msra.mxu0 %v5375
    %9371 = vmatpush.bf16.msra.mxu0 %v5367
    %9372 = vmatpush.bf16.msra.mxu0 %v5359
    %9373 = vmatpush.bf16.msra.mxu0 %v5351
    %9374 = vmatpush.bf16.msra.mxu0 %v5343
    %9375 = vmatpush.bf16.msra.mxu0 %v5335
    %9376 = vmatpush.bf16.msra.mxu0 %v5327
    %9377 = vmatpush.bf16.msra.mxu0 %v5319
    %9378 = vmatmul.bf16.gmra.mxu0 %v1770
    %v9379 = vpop.f32.mrf.mxu0
    %v9380 = vadd.f32 %v9336, %v9379
    %v9381 = vpop.f32.mrf.mxu0
    %v9382 = vadd.f32 %v9338, %v9381
    %9383 = vmatmul.bf16.gmra.mxu0 %v1782
    %v9384 = vpop.f32.mrf.mxu0
    %v9385 = vadd.f32 %v9341, %v9384
    %v9386 = vpop.f32.mrf.mxu0
    %v9387 = vadd.f32 %v9343, %v9386
    %9388 = vmatmul.bf16.gmra.mxu0 %v1794
    %v9389 = vpop.f32.mrf.mxu0
    %v9390 = vadd.f32 %v9346, %v9389
    %v9391 = vpop.f32.mrf.mxu0
    %v9392 = vadd.f32 %v9348, %v9391
    %9393 = vmatmul.bf16.gmra.mxu0 %v1806
    %v9394 = vpop.f32.mrf.mxu0
    %v9395 = vadd.f32 %v9351, %v9394
    %v9396 = vpop.f32.mrf.mxu0
    %v9397 = vadd.f32 %v9353, %v9396
    %9398 = vmatmul.bf16.gmra.mxu0 %v1778
    %v9399 = vpop.f32.mrf.mxu0
    %v9400 = vadd.f32 %v9356, %v9399
    %v9401 = vpop.f32.mrf.mxu0
    %v9402 = vadd.f32 %v9358, %v9401
    %9403 = vmatmul.bf16.gmra.mxu0 %v1790
    %v9404 = vpop.f32.mrf.mxu0
    %v9405 = vadd.f32 %v9361, %v9404
    %v9406 = vpop.f32.mrf.mxu0
    %v9407 = vadd.f32 %v9363, %v9406
    %9408 = vmatmul.bf16.gmra.mxu0 %v1834
    %v9409 = vpop.f32.mrf.mxu0
    %v9410 = vadd.f32 %v9366, %v9409
    %v9411 = vpop.f32.mrf.mxu0
    %v9412 = vadd.f32 %v9368, %v9411
    %9413 = vdwg.mxu0
    %9414 = vmatpush.bf16.msra.mxu0 %v5439
    %9415 = vmatpush.bf16.msra.mxu0 %v5431
    %9416 = vmatpush.bf16.msra.mxu0 %v5423
    %9417 = vmatpush.bf16.msra.mxu0 %v5415
    %9418 = vmatpush.bf16.msra.mxu0 %v5407
    %9419 = vmatpush.bf16.msra.mxu0 %v5399
    %9420 = vmatpush.bf16.msra.mxu0 %v5391
    %9421 = vmatpush.bf16.msra.mxu0 %v5383
    %9422 = vmatmul.bf16.gmra.mxu0 %v1771
    %v9423 = vpop.f32.mrf.mxu0
    %v9424 = vadd.f32 %v9380, %v9423
    %v9425 = vpop.f32.mrf.mxu0
    %v9426 = vadd.f32 %v9382, %v9425
    %9427 = vmatmul.bf16.gmra.mxu0 %v1783
    %v9428 = vpop.f32.mrf.mxu0
    %v9429 = vadd.f32 %v9385, %v9428
    %v9430 = vpop.f32.mrf.mxu0
    %v9431 = vadd.f32 %v9387, %v9430
    %9432 = vmatmul.bf16.gmra.mxu0 %v1795
    %v9433 = vpop.f32.mrf.mxu0
    %v9434 = vadd.f32 %v9390, %v9433
    %v9435 = vpop.f32.mrf.mxu0
    %v9436 = vadd.f32 %v9392, %v9435
    %9437 = vmatmul.bf16.gmra.mxu0 %v1807
    %v9438 = vpop.f32.mrf.mxu0
    %v9439 = vadd.f32 %v9395, %v9438
    %v9440 = vpop.f32.mrf.mxu0
    %v9441 = vadd.f32 %v9397, %v9440
    %9442 = vmatmul.bf16.gmra.mxu0 %v1779
    %v9443 = vpop.f32.mrf.mxu0
    %v9444 = vadd.f32 %v9400, %v9443
    %v9445 = vpop.f32.mrf.mxu0
    %v9446 = vadd.f32 %v9402, %v9445
    %9447 = vmatmul.bf16.gmra.mxu0 %v1791
    %v9448 = vpop.f32.mrf.mxu0
    %v9449 = vadd.f32 %v9405, %v9448
    %v9450 = vpop.f32.mrf.mxu0
    %v9451 = vadd.f32 %v9407, %v9450
    %9452 = vmatmul.bf16.gmra.mxu0 %v1835
    %v9453 = vpop.f32.mrf.mxu0
    %v9454 = vadd.f32 %v9410, %v9453
    %v9455 = vpop.f32.mrf.mxu0
    %v9456 = vadd.f32 %v9412, %v9455
    %9457 = vdwg.mxu0
    %9458 = vmatpush.bf16.msra.mxu0 %v5503
    %9459 = vmatpush.bf16.msra.mxu0 %v5495
    %9460 = vmatpush.bf16.msra.mxu0 %v5487
    %9461 = vmatpush.bf16.msra.mxu0 %v5479
    %9462 = vmatpush.bf16.msra.mxu0 %v5471
    %9463 = vmatpush.bf16.msra.mxu0 %v5463
    %9464 = vmatpush.bf16.msra.mxu0 %v5455
    %9465 = vmatpush.bf16.msra.mxu0 %v5447
    %9466 = vmatmul.bf16.gmra.mxu0 %v1772
    %v9467 = vpop.f32.mrf.mxu0
    %v9468 = vadd.f32 %v9424, %v9467
    %v9469 = vpop.f32.mrf.mxu0
    %v9470 = vadd.f32 %v9426, %v9469
    %9471 = vmatmul.bf16.gmra.mxu0 %v1784
    %v9472 = vpop.f32.mrf.mxu0
    %v9473 = vadd.f32 %v9429, %v9472
    %v9474 = vpop.f32.mrf.mxu0
    %v9475 = vadd.f32 %v9431, %v9474
    %9476 = vmatmul.bf16.gmra.mxu0 %v1796
    %v9477 = vpop.f32.mrf.mxu0
    %v9478 = vadd.f32 %v9434, %v9477
    %v9479 = vpop.f32.mrf.mxu0
    %v9480 = vadd.f32 %v9436, %v9479
    %9481 = vmatmul.bf16.gmra.mxu0 %v1808
    %v9482 = vpop.f32.mrf.mxu0
    %v9483 = vadd.f32 %v9439, %v9482
    %v9484 = vpop.f32.mrf.mxu0
    %v9485 = vadd.f32 %v9441, %v9484
    %9486 = vmatmul.bf16.gmra.mxu0 %v1816
    %v9487 = vpop.f32.mrf.mxu0
    %v9488 = vadd.f32 %v9444, %v9487
    %v9489 = vpop.f32.mrf.mxu0
    %v9490 = vadd.f32 %v9446, %v9489
    %9491 = vmatmul.bf16.gmra.mxu0 %v1824
    %v9492 = vpop.f32.mrf.mxu0
    %v9493 = vadd.f32 %v9449, %v9492
    %v9494 = vpop.f32.mrf.mxu0
    %v9495 = vadd.f32 %v9451, %v9494
    %9496 = vmatmul.bf16.gmra.mxu0 %v1836
    %v9497 = vpop.f32.mrf.mxu0
    %v9498 = vadd.f32 %v9454, %v9497
    %v9499 = vpop.f32.mrf.mxu0
    %v9500 = vadd.f32 %v9456, %v9499
    %9501 = vdwg.mxu0
    %9502 = vmatpush.bf16.msra.mxu0 %v5567
    %9503 = vmatpush.bf16.msra.mxu0 %v5559
    %9504 = vmatpush.bf16.msra.mxu0 %v5551
    %9505 = vmatpush.bf16.msra.mxu0 %v5543
    %9506 = vmatpush.bf16.msra.mxu0 %v5535
    %9507 = vmatpush.bf16.msra.mxu0 %v5527
    %9508 = vmatpush.bf16.msra.mxu0 %v5519
    %9509 = vmatpush.bf16.msra.mxu0 %v5511
    %9510 = vmatmul.bf16.gmra.mxu0 %v1773
    %v9511 = vpop.f32.mrf.mxu0
    %v9512 = vadd.f32 %v9468, %v9511
    %v9513 = vpop.f32.mrf.mxu0
    %v9514 = vadd.f32 %v9470, %v9513
    %9515 = vmatmul.bf16.gmra.mxu0 %v1785
    %v9516 = vpop.f32.mrf.mxu0
    %v9517 = vadd.f32 %v9473, %v9516
    %v9518 = vpop.f32.mrf.mxu0
    %v9519 = vadd.f32 %v9475, %v9518
    %9520 = vmatmul.bf16.gmra.mxu0 %v1797
    %v9521 = vpop.f32.mrf.mxu0
    %v9522 = vadd.f32 %v9478, %v9521
    %v9523 = vpop.f32.mrf.mxu0
    %v9524 = vadd.f32 %v9480, %v9523
    %9525 = vmatmul.bf16.gmra.mxu0 %v1809
    %v9526 = vpop.f32.mrf.mxu0
    %v9527 = vadd.f32 %v9483, %v9526
    %v9528 = vpop.f32.mrf.mxu0
    %v9529 = vadd.f32 %v9485, %v9528
    %9530 = vmatmul.bf16.gmra.mxu0 %v1817
    %v9531 = vpop.f32.mrf.mxu0
    %v9532 = vadd.f32 %v9488, %v9531
    %v9533 = vpop.f32.mrf.mxu0
    %v9534 = vadd.f32 %v9490, %v9533
    %9535 = vmatmul.bf16.gmra.mxu0 %v1825
    %v9536 = vpop.f32.mrf.mxu0
    %v9537 = vadd.f32 %v9493, %v9536
    %v9538 = vpop.f32.mrf.mxu0
    %v9539 = vadd.f32 %v9495, %v9538
    %9540 = vmatmul.bf16.gmra.mxu0 %v1837
    %v9541 = vpop.f32.mrf.mxu0
    %v9542 = vadd.f32 %v9498, %v9541
    %v9543 = vpop.f32.mrf.mxu0
    %v9544 = vadd.f32 %v9500, %v9543
    %9545 = vdwg.mxu0
    %9546 = vmatpush.bf16.msra.mxu0 %v5631
    %9547 = vmatpush.bf16.msra.mxu0 %v5623
    %9548 = vmatpush.bf16.msra.mxu0 %v5615
    %9549 = vmatpush.bf16.msra.mxu0 %v5607
    %9550 = vmatpush.bf16.msra.mxu0 %v5599
    %9551 = vmatpush.bf16.msra.mxu0 %v5591
    %9552 = vmatpush.bf16.msra.mxu0 %v5583
    %9553 = vmatpush.bf16.msra.mxu0 %v5575
    %9554 = vmatmul.bf16.gmra.mxu0 %v1774
    %v9555 = vpop.f32.mrf.mxu0
    %v9556 = vadd.f32 %v9512, %v9555
    %v9557 = vpop.f32.mrf.mxu0
    %v9558 = vadd.f32 %v9514, %v9557
    %9559 = vmatmul.bf16.gmra.mxu0 %v1786
    %v9560 = vpop.f32.mrf.mxu0
    %v9561 = vadd.f32 %v9517, %v9560
    %v9562 = vpop.f32.mrf.mxu0
    %v9563 = vadd.f32 %v9519, %v9562
    %9564 = vmatmul.bf16.gmra.mxu0 %v1798
    %v9565 = vpop.f32.mrf.mxu0
    %v9566 = vadd.f32 %v9522, %v9565
    %v9567 = vpop.f32.mrf.mxu0
    %v9568 = vadd.f32 %v9524, %v9567
    %9569 = vmatmul.bf16.gmra.mxu0 %v1810
    %v9570 = vpop.f32.mrf.mxu0
    %v9571 = vadd.f32 %v9527, %v9570
    %v9572 = vpop.f32.mrf.mxu0
    %v9573 = vadd.f32 %v9529, %v9572
    %9574 = vmatmul.bf16.gmra.mxu0 %v1818
    %v9575 = vpop.f32.mrf.mxu0
    %v9576 = vadd.f32 %v9532, %v9575
    %v9577 = vpop.f32.mrf.mxu0
    %v9578 = vadd.f32 %v9534, %v9577
    %9579 = vmatmul.bf16.gmra.mxu0 %v1826
    %v9580 = vpop.f32.mrf.mxu0
    %v9581 = vadd.f32 %v9537, %v9580
    %v9582 = vpop.f32.mrf.mxu0
    %v9583 = vadd.f32 %v9539, %v9582
    %9584 = vmatmul.bf16.gmra.mxu0 %v1838
    %v9585 = vpop.f32.mrf.mxu0
    %v9586 = vadd.f32 %v9542, %v9585
    %v9587 = vpop.f32.mrf.mxu0
    %v9588 = vadd.f32 %v9544, %v9587
    %9589 = vdwg.mxu0
    %9590 = vmatpush.bf16.msra.mxu0 %v5695
    %9591 = vmatpush.bf16.msra.mxu0 %v5687
    %9592 = vmatpush.bf16.msra.mxu0 %v5679
    %9593 = vmatpush.bf16.msra.mxu0 %v5671
    %9594 = vmatpush.bf16.msra.mxu0 %v5663
    %9595 = vmatpush.bf16.msra.mxu0 %v5655
    %9596 = vmatpush.bf16.msra.mxu0 %v5647
    %9597 = vmatpush.bf16.msra.mxu0 %v5639
    %9598 = vmatmul.bf16.gmra.mxu0 %v1775
    %v9599 = vpop.f32.mrf.mxu0
    %v9600 = vadd.f32 %v9556, %v9599
    %v9601 = vpop.f32.mrf.mxu0
    %v9602 = vadd.f32 %v9558, %v9601
    %9603 = vmatmul.bf16.gmra.mxu0 %v1787
    %v9604 = vpop.f32.mrf.mxu0
    %v9605 = vadd.f32 %v9561, %v9604
    %v9606 = vpop.f32.mrf.mxu0
    %v9607 = vadd.f32 %v9563, %v9606
    %9608 = vmatmul.bf16.gmra.mxu0 %v1799
    %v9609 = vpop.f32.mrf.mxu0
    %v9610 = vadd.f32 %v9566, %v9609
    %v9611 = vpop.f32.mrf.mxu0
    %v9612 = vadd.f32 %v9568, %v9611
    %9613 = vmatmul.bf16.gmra.mxu0 %v1811
    %v9614 = vpop.f32.mrf.mxu0
    %v9615 = vadd.f32 %v9571, %v9614
    %v9616 = vpop.f32.mrf.mxu0
    %v9617 = vadd.f32 %v9573, %v9616
    %9618 = vmatmul.bf16.gmra.mxu0 %v1819
    %v9619 = vpop.f32.mrf.mxu0
    %v9620 = vadd.f32 %v9576, %v9619
    %v9621 = vpop.f32.mrf.mxu0
    %v9622 = vadd.f32 %v9578, %v9621
    %9623 = vmatmul.bf16.gmra.mxu0 %v1827
    %v9624 = vpop.f32.mrf.mxu0
    %v9625 = vadd.f32 %v9581, %v9624
    %v9626 = vpop.f32.mrf.mxu0
    %v9627 = vadd.f32 %v9583, %v9626
    %9628 = vmatmul.bf16.gmra.mxu0 %v1839
    %v9629 = vpop.f32.mrf.mxu0
    %v9630 = vadd.f32 %v9586, %v9629
    %v9631 = vpop.f32.mrf.mxu0
    %v9632 = vadd.f32 %v9588, %v9631
    %9633 = vdwg.mxu0
    %9634 = vmatpush.bf16.msra.mxu0 %v4992
    %9635 = vmatpush.bf16.msra.mxu0 %v4984
    %9636 = vmatpush.bf16.msra.mxu0 %v4976
    %9637 = vmatpush.bf16.msra.mxu0 %v4968
    %9638 = vmatpush.bf16.msra.mxu0 %v4960
    %9639 = vmatpush.bf16.msra.mxu0 %v4952
    %9640 = vmatpush.bf16.msra.mxu0 %v4944
    %9641 = vmatpush.bf16.msra.mxu0 %v4936
    %9642 = vmatmul.bf16.gmra.mxu0 %v1764
    %v9643 = vpop.f32.mrf.mxu0
    %v9644 = vadd.f32 %v2616, %v9643
    %v9645 = vpop.f32.mrf.mxu0
    %v9646 = vadd.f32 %v2616, %v9645
    %9647 = vmatmul.bf16.gmra.mxu0 %v1776
    %v9648 = vpop.f32.mrf.mxu0
    %v9649 = vadd.f32 %v2616, %v9648
    %v9650 = vpop.f32.mrf.mxu0
    %v9651 = vadd.f32 %v2616, %v9650
    %9652 = vmatmul.bf16.gmra.mxu0 %v1788
    %v9653 = vpop.f32.mrf.mxu0
    %v9654 = vadd.f32 %v2616, %v9653
    %v9655 = vpop.f32.mrf.mxu0
    %v9656 = vadd.f32 %v2616, %v9655
    %9657 = vmatmul.bf16.gmra.mxu0 %v1800
    %v9658 = vpop.f32.mrf.mxu0
    %v9659 = vadd.f32 %v2616, %v9658
    %v9660 = vpop.f32.mrf.mxu0
    %v9661 = vadd.f32 %v2616, %v9660
    %9662 = vmatmul.bf16.gmra.mxu0 %v1812
    %v9663 = vpop.f32.mrf.mxu0
    %v9664 = vadd.f32 %v2616, %v9663
    %v9665 = vpop.f32.mrf.mxu0
    %v9666 = vadd.f32 %v2616, %v9665
    %9667 = vmatmul.bf16.gmra.mxu0 %v1820
    %v9668 = vpop.f32.mrf.mxu0
    %v9669 = vadd.f32 %v2616, %v9668
    %v9670 = vpop.f32.mrf.mxu0
    %v9671 = vadd.f32 %v2616, %v9670
    %9672 = vmatmul.bf16.gmra.mxu0 %v1828
    %v9673 = vpop.f32.mrf.mxu0
    %v9674 = vadd.f32 %v2616, %v9673
    %v9675 = vpop.f32.mrf.mxu0
    %v9676 = vadd.f32 %v2616, %v9675
    %9677 = vdwg.mxu0
    %9678 = vmatpush.bf16.msra.mxu0 %v5056
    %9679 = vmatpush.bf16.msra.mxu0 %v5048
    %9680 = vmatpush.bf16.msra.mxu0 %v5040
    %9681 = vmatpush.bf16.msra.mxu0 %v5032
    %9682 = vmatpush.bf16.msra.mxu0 %v5024
    %9683 = vmatpush.bf16.msra.mxu0 %v5016
    %9684 = vmatpush.bf16.msra.mxu0 %v5008
    %9685 = vmatpush.bf16.msra.mxu0 %v5000
    %9686 = vmatmul.bf16.gmra.mxu0 %v1765
    %v9687 = vpop.f32.mrf.mxu0
    %v9688 = vadd.f32 %v9644, %v9687
    %v9689 = vpop.f32.mrf.mxu0
    %v9690 = vadd.f32 %v9646, %v9689
    %9691 = vmatmul.bf16.gmra.mxu0 %v1777
    %v9692 = vpop.f32.mrf.mxu0
    %v9693 = vadd.f32 %v9649, %v9692
    %v9694 = vpop.f32.mrf.mxu0
    %v9695 = vadd.f32 %v9651, %v9694
    %9696 = vmatmul.bf16.gmra.mxu0 %v1789
    %v9697 = vpop.f32.mrf.mxu0
    %v9698 = vadd.f32 %v9654, %v9697
    %v9699 = vpop.f32.mrf.mxu0
    %v9700 = vadd.f32 %v9656, %v9699
    %9701 = vmatmul.bf16.gmra.mxu0 %v1801
    %v9702 = vpop.f32.mrf.mxu0
    %v9703 = vadd.f32 %v9659, %v9702
    %v9704 = vpop.f32.mrf.mxu0
    %v9705 = vadd.f32 %v9661, %v9704
    %9706 = vmatmul.bf16.gmra.mxu0 %v1813
    %v9707 = vpop.f32.mrf.mxu0
    %v9708 = vadd.f32 %v9664, %v9707
    %v9709 = vpop.f32.mrf.mxu0
    %v9710 = vadd.f32 %v9666, %v9709
    %9711 = vmatmul.bf16.gmra.mxu0 %v1821
    %v9712 = vpop.f32.mrf.mxu0
    %v9713 = vadd.f32 %v9669, %v9712
    %v9714 = vpop.f32.mrf.mxu0
    %v9715 = vadd.f32 %v9671, %v9714
    %9716 = vmatmul.bf16.gmra.mxu0 %v1829
    %v9717 = vpop.f32.mrf.mxu0
    %v9718 = vadd.f32 %v9674, %v9717
    %v9719 = vpop.f32.mrf.mxu0
    %v9720 = vadd.f32 %v9676, %v9719
    %9721 = vdwg.mxu0
    %9722 = vmatpush.bf16.msra.mxu0 %v5120
    %9723 = vmatpush.bf16.msra.mxu0 %v5112
    %9724 = vmatpush.bf16.msra.mxu0 %v5104
    %9725 = vmatpush.bf16.msra.mxu0 %v5096
    %9726 = vmatpush.bf16.msra.mxu0 %v5088
    %9727 = vmatpush.bf16.msra.mxu0 %v5080
    %9728 = vmatpush.bf16.msra.mxu0 %v5072
    %9729 = vmatpush.bf16.msra.mxu0 %v5064
    %9730 = vmatmul.bf16.gmra.mxu0 %v1766
    %v9731 = vpop.f32.mrf.mxu0
    %v9732 = vadd.f32 %v9688, %v9731
    %v9733 = vpop.f32.mrf.mxu0
    %v9734 = vadd.f32 %v9690, %v9733
    %9735 = vmatmul.bf16.gmra.mxu0 %v1778
    %v9736 = vpop.f32.mrf.mxu0
    %v9737 = vadd.f32 %v9693, %v9736
    %v9738 = vpop.f32.mrf.mxu0
    %v9739 = vadd.f32 %v9695, %v9738
    %9740 = vmatmul.bf16.gmra.mxu0 %v1790
    %v9741 = vpop.f32.mrf.mxu0
    %v9742 = vadd.f32 %v9698, %v9741
    %v9743 = vpop.f32.mrf.mxu0
    %v9744 = vadd.f32 %v9700, %v9743
    %9745 = vmatmul.bf16.gmra.mxu0 %v1802
    %v9746 = vpop.f32.mrf.mxu0
    %v9747 = vadd.f32 %v9703, %v9746
    %v9748 = vpop.f32.mrf.mxu0
    %v9749 = vadd.f32 %v9705, %v9748
    %9750 = vmatmul.bf16.gmra.mxu0 %v1814
    %v9751 = vpop.f32.mrf.mxu0
    %v9752 = vadd.f32 %v9708, %v9751
    %v9753 = vpop.f32.mrf.mxu0
    %v9754 = vadd.f32 %v9710, %v9753
    %9755 = vmatmul.bf16.gmra.mxu0 %v1822
    %v9756 = vpop.f32.mrf.mxu0
    %v9757 = vadd.f32 %v9713, %v9756
    %v9758 = vpop.f32.mrf.mxu0
    %v9759 = vadd.f32 %v9715, %v9758
    %9760 = vmatmul.bf16.gmra.mxu0 %v1830
    %v9761 = vpop.f32.mrf.mxu0
    %v9762 = vadd.f32 %v9718, %v9761
    %v9763 = vpop.f32.mrf.mxu0
    %v9764 = vadd.f32 %v9720, %v9763
    %9765 = vdwg.mxu0
    %9766 = vmatpush.bf16.msra.mxu0 %v5184
    %9767 = vmatpush.bf16.msra.mxu0 %v5176
    %9768 = vmatpush.bf16.msra.mxu0 %v5168
    %9769 = vmatpush.bf16.msra.mxu0 %v5160
    %9770 = vmatpush.bf16.msra.mxu0 %v5152
    %9771 = vmatpush.bf16.msra.mxu0 %v5144
    %9772 = vmatpush.bf16.msra.mxu0 %v5136
    %9773 = vmatpush.bf16.msra.mxu0 %v5128
    %9774 = vmatmul.bf16.gmra.mxu0 %v1767
    %v9775 = vpop.f32.mrf.mxu0
    %v9776 = vadd.f32 %v9732, %v9775
    %v9777 = vpop.f32.mrf.mxu0
    %v9778 = vadd.f32 %v9734, %v9777
    %9779 = vmatmul.bf16.gmra.mxu0 %v1779
    %v9780 = vpop.f32.mrf.mxu0
    %v9781 = vadd.f32 %v9737, %v9780
    %v9782 = vpop.f32.mrf.mxu0
    %v9783 = vadd.f32 %v9739, %v9782
    %9784 = vmatmul.bf16.gmra.mxu0 %v1791
    %v9785 = vpop.f32.mrf.mxu0
    %v9786 = vadd.f32 %v9742, %v9785
    %v9787 = vpop.f32.mrf.mxu0
    %v9788 = vadd.f32 %v9744, %v9787
    %9789 = vmatmul.bf16.gmra.mxu0 %v1803
    %v9790 = vpop.f32.mrf.mxu0
    %v9791 = vadd.f32 %v9747, %v9790
    %v9792 = vpop.f32.mrf.mxu0
    %v9793 = vadd.f32 %v9749, %v9792
    %9794 = vmatmul.bf16.gmra.mxu0 %v1815
    %v9795 = vpop.f32.mrf.mxu0
    %v9796 = vadd.f32 %v9752, %v9795
    %v9797 = vpop.f32.mrf.mxu0
    %v9798 = vadd.f32 %v9754, %v9797
    %9799 = vmatmul.bf16.gmra.mxu0 %v1823
    %v9800 = vpop.f32.mrf.mxu0
    %v9801 = vadd.f32 %v9757, %v9800
    %v9802 = vpop.f32.mrf.mxu0
    %v9803 = vadd.f32 %v9759, %v9802
    %9804 = vmatmul.bf16.gmra.mxu0 %v1831
    %v9805 = vpop.f32.mrf.mxu0
    %v9806 = vadd.f32 %v9762, %v9805
    %v9807 = vpop.f32.mrf.mxu0
    %v9808 = vadd.f32 %v9764, %v9807
    %9809 = vdwg.mxu0
    %9810 = vmatpush.bf16.msra.mxu0 %v5248
    %9811 = vmatpush.bf16.msra.mxu0 %v5240
    %9812 = vmatpush.bf16.msra.mxu0 %v5232
    %9813 = vmatpush.bf16.msra.mxu0 %v5224
    %9814 = vmatpush.bf16.msra.mxu0 %v5216
    %9815 = vmatpush.bf16.msra.mxu0 %v5208
    %9816 = vmatpush.bf16.msra.mxu0 %v5200
    %9817 = vmatpush.bf16.msra.mxu0 %v5192
    %9818 = vmatmul.bf16.gmra.mxu0 %v1768
    %v9819 = vpop.f32.mrf.mxu0
    %v9820 = vadd.f32 %v9776, %v9819
    %v9821 = vpop.f32.mrf.mxu0
    %v9822 = vadd.f32 %v9778, %v9821
    %9823 = vmatmul.bf16.gmra.mxu0 %v1780
    %v9824 = vpop.f32.mrf.mxu0
    %v9825 = vadd.f32 %v9781, %v9824
    %v9826 = vpop.f32.mrf.mxu0
    %v9827 = vadd.f32 %v9783, %v9826
    %9828 = vmatmul.bf16.gmra.mxu0 %v1792
    %v9829 = vpop.f32.mrf.mxu0
    %v9830 = vadd.f32 %v9786, %v9829
    %v9831 = vpop.f32.mrf.mxu0
    %v9832 = vadd.f32 %v9788, %v9831
    %9833 = vmatmul.bf16.gmra.mxu0 %v1804
    %v9834 = vpop.f32.mrf.mxu0
    %v9835 = vadd.f32 %v9791, %v9834
    %v9836 = vpop.f32.mrf.mxu0
    %v9837 = vadd.f32 %v9793, %v9836
    %9838 = vmatmul.bf16.gmra.mxu0 %v1776
    %v9839 = vpop.f32.mrf.mxu0
    %v9840 = vadd.f32 %v9796, %v9839
    %v9841 = vpop.f32.mrf.mxu0
    %v9842 = vadd.f32 %v9798, %v9841
    %9843 = vmatmul.bf16.gmra.mxu0 %v1788
    %v9844 = vpop.f32.mrf.mxu0
    %v9845 = vadd.f32 %v9801, %v9844
    %v9846 = vpop.f32.mrf.mxu0
    %v9847 = vadd.f32 %v9803, %v9846
    %9848 = vmatmul.bf16.gmra.mxu0 %v1832
    %v9849 = vpop.f32.mrf.mxu0
    %v9850 = vadd.f32 %v9806, %v9849
    %v9851 = vpop.f32.mrf.mxu0
    %v9852 = vadd.f32 %v9808, %v9851
    %9853 = vdwg.mxu0
    %9854 = vmatpush.bf16.msra.mxu0 %v5312
    %9855 = vmatpush.bf16.msra.mxu0 %v5304
    %9856 = vmatpush.bf16.msra.mxu0 %v5296
    %9857 = vmatpush.bf16.msra.mxu0 %v5288
    %9858 = vmatpush.bf16.msra.mxu0 %v5280
    %9859 = vmatpush.bf16.msra.mxu0 %v5272
    %9860 = vmatpush.bf16.msra.mxu0 %v5264
    %9861 = vmatpush.bf16.msra.mxu0 %v5256
    %9862 = vmatmul.bf16.gmra.mxu0 %v1769
    %v9863 = vpop.f32.mrf.mxu0
    %v9864 = vadd.f32 %v9820, %v9863
    %v9865 = vpop.f32.mrf.mxu0
    %v9866 = vadd.f32 %v9822, %v9865
    %9867 = vmatmul.bf16.gmra.mxu0 %v1781
    %v9868 = vpop.f32.mrf.mxu0
    %v9869 = vadd.f32 %v9825, %v9868
    %v9870 = vpop.f32.mrf.mxu0
    %v9871 = vadd.f32 %v9827, %v9870
    %9872 = vmatmul.bf16.gmra.mxu0 %v1793
    %v9873 = vpop.f32.mrf.mxu0
    %v9874 = vadd.f32 %v9830, %v9873
    %v9875 = vpop.f32.mrf.mxu0
    %v9876 = vadd.f32 %v9832, %v9875
    %9877 = vmatmul.bf16.gmra.mxu0 %v1805
    %v9878 = vpop.f32.mrf.mxu0
    %v9879 = vadd.f32 %v9835, %v9878
    %v9880 = vpop.f32.mrf.mxu0
    %v9881 = vadd.f32 %v9837, %v9880
    %9882 = vmatmul.bf16.gmra.mxu0 %v1777
    %v9883 = vpop.f32.mrf.mxu0
    %v9884 = vadd.f32 %v9840, %v9883
    %v9885 = vpop.f32.mrf.mxu0
    %v9886 = vadd.f32 %v9842, %v9885
    %9887 = vmatmul.bf16.gmra.mxu0 %v1789
    %v9888 = vpop.f32.mrf.mxu0
    %v9889 = vadd.f32 %v9845, %v9888
    %v9890 = vpop.f32.mrf.mxu0
    %v9891 = vadd.f32 %v9847, %v9890
    %9892 = vmatmul.bf16.gmra.mxu0 %v1833
    %v9893 = vpop.f32.mrf.mxu0
    %v9894 = vadd.f32 %v9850, %v9893
    %v9895 = vpop.f32.mrf.mxu0
    %v9896 = vadd.f32 %v9852, %v9895
    %9897 = vdwg.mxu0
    %9898 = vmatpush.bf16.msra.mxu0 %v5376
    %9899 = vmatpush.bf16.msra.mxu0 %v5368
    %9900 = vmatpush.bf16.msra.mxu0 %v5360
    %9901 = vmatpush.bf16.msra.mxu0 %v5352
    %9902 = vmatpush.bf16.msra.mxu0 %v5344
    %9903 = vmatpush.bf16.msra.mxu0 %v5336
    %9904 = vmatpush.bf16.msra.mxu0 %v5328
    %9905 = vmatpush.bf16.msra.mxu0 %v5320
    %9906 = vmatmul.bf16.gmra.mxu0 %v1770
    %v9907 = vpop.f32.mrf.mxu0
    %v9908 = vadd.f32 %v9864, %v9907
    %v9909 = vpop.f32.mrf.mxu0
    %v9910 = vadd.f32 %v9866, %v9909
    %9911 = vmatmul.bf16.gmra.mxu0 %v1782
    %v9912 = vpop.f32.mrf.mxu0
    %v9913 = vadd.f32 %v9869, %v9912
    %v9914 = vpop.f32.mrf.mxu0
    %v9915 = vadd.f32 %v9871, %v9914
    %9916 = vmatmul.bf16.gmra.mxu0 %v1794
    %v9917 = vpop.f32.mrf.mxu0
    %v9918 = vadd.f32 %v9874, %v9917
    %v9919 = vpop.f32.mrf.mxu0
    %v9920 = vadd.f32 %v9876, %v9919
    %9921 = vmatmul.bf16.gmra.mxu0 %v1806
    %v9922 = vpop.f32.mrf.mxu0
    %v9923 = vadd.f32 %v9879, %v9922
    %v9924 = vpop.f32.mrf.mxu0
    %v9925 = vadd.f32 %v9881, %v9924
    %9926 = vmatmul.bf16.gmra.mxu0 %v1778
    %v9927 = vpop.f32.mrf.mxu0
    %v9928 = vadd.f32 %v9884, %v9927
    %v9929 = vpop.f32.mrf.mxu0
    %v9930 = vadd.f32 %v9886, %v9929
    %9931 = vmatmul.bf16.gmra.mxu0 %v1790
    %v9932 = vpop.f32.mrf.mxu0
    %v9933 = vadd.f32 %v9889, %v9932
    %v9934 = vpop.f32.mrf.mxu0
    %v9935 = vadd.f32 %v9891, %v9934
    %9936 = vmatmul.bf16.gmra.mxu0 %v1834
    %v9937 = vpop.f32.mrf.mxu0
    %v9938 = vadd.f32 %v9894, %v9937
    %v9939 = vpop.f32.mrf.mxu0
    %v9940 = vadd.f32 %v9896, %v9939
    %9941 = vdwg.mxu0
    %9942 = vmatpush.bf16.msra.mxu0 %v5440
    %9943 = vmatpush.bf16.msra.mxu0 %v5432
    %9944 = vmatpush.bf16.msra.mxu0 %v5424
    %9945 = vmatpush.bf16.msra.mxu0 %v5416
    %9946 = vmatpush.bf16.msra.mxu0 %v5408
    %9947 = vmatpush.bf16.msra.mxu0 %v5400
    %9948 = vmatpush.bf16.msra.mxu0 %v5392
    %9949 = vmatpush.bf16.msra.mxu0 %v5384
    %9950 = vmatmul.bf16.gmra.mxu0 %v1771
    %v9951 = vpop.f32.mrf.mxu0
    %v9952 = vadd.f32 %v9908, %v9951
    %v9953 = vpop.f32.mrf.mxu0
    %v9954 = vadd.f32 %v9910, %v9953
    %9955 = vmatmul.bf16.gmra.mxu0 %v1783
    %v9956 = vpop.f32.mrf.mxu0
    %v9957 = vadd.f32 %v9913, %v9956
    %v9958 = vpop.f32.mrf.mxu0
    %v9959 = vadd.f32 %v9915, %v9958
    %9960 = vmatmul.bf16.gmra.mxu0 %v1795
    %v9961 = vpop.f32.mrf.mxu0
    %v9962 = vadd.f32 %v9918, %v9961
    %v9963 = vpop.f32.mrf.mxu0
    %v9964 = vadd.f32 %v9920, %v9963
    %9965 = vmatmul.bf16.gmra.mxu0 %v1807
    %v9966 = vpop.f32.mrf.mxu0
    %v9967 = vadd.f32 %v9923, %v9966
    %v9968 = vpop.f32.mrf.mxu0
    %v9969 = vadd.f32 %v9925, %v9968
    %9970 = vmatmul.bf16.gmra.mxu0 %v1779
    %v9971 = vpop.f32.mrf.mxu0
    %v9972 = vadd.f32 %v9928, %v9971
    %v9973 = vpop.f32.mrf.mxu0
    %v9974 = vadd.f32 %v9930, %v9973
    %9975 = vmatmul.bf16.gmra.mxu0 %v1791
    %v9976 = vpop.f32.mrf.mxu0
    %v9977 = vadd.f32 %v9933, %v9976
    %v9978 = vpop.f32.mrf.mxu0
    %v9979 = vadd.f32 %v9935, %v9978
    %9980 = vmatmul.bf16.gmra.mxu0 %v1835
    %v9981 = vpop.f32.mrf.mxu0
    %v9982 = vadd.f32 %v9938, %v9981
    %v9983 = vpop.f32.mrf.mxu0
    %v9984 = vadd.f32 %v9940, %v9983
    %9985 = vdwg.mxu0
    %9986 = vmatpush.bf16.msra.mxu0 %v5504
    %9987 = vmatpush.bf16.msra.mxu0 %v5496
    %9988 = vmatpush.bf16.msra.mxu0 %v5488
    %9989 = vmatpush.bf16.msra.mxu0 %v5480
    %9990 = vmatpush.bf16.msra.mxu0 %v5472
    %9991 = vmatpush.bf16.msra.mxu0 %v5464
    %9992 = vmatpush.bf16.msra.mxu0 %v5456
    %9993 = vmatpush.bf16.msra.mxu0 %v5448
    %9994 = vmatmul.bf16.gmra.mxu0 %v1772
    %v9995 = vpop.f32.mrf.mxu0
    %v9996 = vadd.f32 %v9952, %v9995
    %v9997 = vpop.f32.mrf.mxu0
    %v9998 = vadd.f32 %v9954, %v9997
    %9999 = vmatmul.bf16.gmra.mxu0 %v1784
    %v10000 = vpop.f32.mrf.mxu0
    %v10001 = vadd.f32 %v9957, %v10000
    %v10002 = vpop.f32.mrf.mxu0
    %v10003 = vadd.f32 %v9959, %v10002
    %10004 = vmatmul.bf16.gmra.mxu0 %v1796
    %v10005 = vpop.f32.mrf.mxu0
    %v10006 = vadd.f32 %v9962, %v10005
    %v10007 = vpop.f32.mrf.mxu0
    %v10008 = vadd.f32 %v9964, %v10007
    %10009 = vmatmul.bf16.gmra.mxu0 %v1808
    %v10010 = vpop.f32.mrf.mxu0
    %v10011 = vadd.f32 %v9967, %v10010
    %v10012 = vpop.f32.mrf.mxu0
    %v10013 = vadd.f32 %v9969, %v10012
    %10014 = vmatmul.bf16.gmra.mxu0 %v1816
    %v10015 = vpop.f32.mrf.mxu0
    %v10016 = vadd.f32 %v9972, %v10015
    %v10017 = vpop.f32.mrf.mxu0
    %v10018 = vadd.f32 %v9974, %v10017
    %10019 = vmatmul.bf16.gmra.mxu0 %v1824
    %v10020 = vpop.f32.mrf.mxu0
    %v10021 = vadd.f32 %v9977, %v10020
    %v10022 = vpop.f32.mrf.mxu0
    %v10023 = vadd.f32 %v9979, %v10022
    %10024 = vmatmul.bf16.gmra.mxu0 %v1836
    %v10025 = vpop.f32.mrf.mxu0
    %v10026 = vadd.f32 %v9982, %v10025
    %v10027 = vpop.f32.mrf.mxu0
    %v10028 = vadd.f32 %v9984, %v10027
    %10029 = vdwg.mxu0
    %10030 = vmatpush.bf16.msra.mxu0 %v5568
    %10031 = vmatpush.bf16.msra.mxu0 %v5560
    %10032 = vmatpush.bf16.msra.mxu0 %v5552
    %10033 = vmatpush.bf16.msra.mxu0 %v5544
    %10034 = vmatpush.bf16.msra.mxu0 %v5536
    %10035 = vmatpush.bf16.msra.mxu0 %v5528
    %10036 = vmatpush.bf16.msra.mxu0 %v5520
    %10037 = vmatpush.bf16.msra.mxu0 %v5512
    %10038 = vmatmul.bf16.gmra.mxu0 %v1773
    %v10039 = vpop.f32.mrf.mxu0
    %v10040 = vadd.f32 %v9996, %v10039
    %v10041 = vpop.f32.mrf.mxu0
    %v10042 = vadd.f32 %v9998, %v10041
    %10043 = vmatmul.bf16.gmra.mxu0 %v1785
    %v10044 = vpop.f32.mrf.mxu0
    %v10045 = vadd.f32 %v10001, %v10044
    %v10046 = vpop.f32.mrf.mxu0
    %v10047 = vadd.f32 %v10003, %v10046
    %10048 = vmatmul.bf16.gmra.mxu0 %v1797
    %v10049 = vpop.f32.mrf.mxu0
    %v10050 = vadd.f32 %v10006, %v10049
    %v10051 = vpop.f32.mrf.mxu0
    %v10052 = vadd.f32 %v10008, %v10051
    %10053 = vmatmul.bf16.gmra.mxu0 %v1809
    %v10054 = vpop.f32.mrf.mxu0
    %v10055 = vadd.f32 %v10011, %v10054
    %v10056 = vpop.f32.mrf.mxu0
    %v10057 = vadd.f32 %v10013, %v10056
    %10058 = vmatmul.bf16.gmra.mxu0 %v1817
    %v10059 = vpop.f32.mrf.mxu0
    %v10060 = vadd.f32 %v10016, %v10059
    %v10061 = vpop.f32.mrf.mxu0
    %v10062 = vadd.f32 %v10018, %v10061
    %10063 = vmatmul.bf16.gmra.mxu0 %v1825
    %v10064 = vpop.f32.mrf.mxu0
    %v10065 = vadd.f32 %v10021, %v10064
    %v10066 = vpop.f32.mrf.mxu0
    %v10067 = vadd.f32 %v10023, %v10066
    %10068 = vmatmul.bf16.gmra.mxu0 %v1837
    %v10069 = vpop.f32.mrf.mxu0
    %v10070 = vadd.f32 %v10026, %v10069
    %v10071 = vpop.f32.mrf.mxu0
    %v10072 = vadd.f32 %v10028, %v10071
    %10073 = vdwg.mxu0
    %10074 = vmatpush.bf16.msra.mxu0 %v5632
    %10075 = vmatpush.bf16.msra.mxu0 %v5624
    %10076 = vmatpush.bf16.msra.mxu0 %v5616
    %10077 = vmatpush.bf16.msra.mxu0 %v5608
    %10078 = vmatpush.bf16.msra.mxu0 %v5600
    %10079 = vmatpush.bf16.msra.mxu0 %v5592
    %10080 = vmatpush.bf16.msra.mxu0 %v5584
    %10081 = vmatpush.bf16.msra.mxu0 %v5576
    %10082 = vmatmul.bf16.gmra.mxu0 %v1774
    %v10083 = vpop.f32.mrf.mxu0
    %v10084 = vadd.f32 %v10040, %v10083
    %v10085 = vpop.f32.mrf.mxu0
    %v10086 = vadd.f32 %v10042, %v10085
    %10087 = vmatmul.bf16.gmra.mxu0 %v1786
    %v10088 = vpop.f32.mrf.mxu0
    %v10089 = vadd.f32 %v10045, %v10088
    %v10090 = vpop.f32.mrf.mxu0
    %v10091 = vadd.f32 %v10047, %v10090
    %10092 = vmatmul.bf16.gmra.mxu0 %v1798
    %v10093 = vpop.f32.mrf.mxu0
    %v10094 = vadd.f32 %v10050, %v10093
    %v10095 = vpop.f32.mrf.mxu0
    %v10096 = vadd.f32 %v10052, %v10095
    %10097 = vmatmul.bf16.gmra.mxu0 %v1810
    %v10098 = vpop.f32.mrf.mxu0
    %v10099 = vadd.f32 %v10055, %v10098
    %v10100 = vpop.f32.mrf.mxu0
    %v10101 = vadd.f32 %v10057, %v10100
    %10102 = vmatmul.bf16.gmra.mxu0 %v1818
    %v10103 = vpop.f32.mrf.mxu0
    %v10104 = vadd.f32 %v10060, %v10103
    %v10105 = vpop.f32.mrf.mxu0
    %v10106 = vadd.f32 %v10062, %v10105
    %10107 = vmatmul.bf16.gmra.mxu0 %v1826
    %v10108 = vpop.f32.mrf.mxu0
    %v10109 = vadd.f32 %v10065, %v10108
    %v10110 = vpop.f32.mrf.mxu0
    %v10111 = vadd.f32 %v10067, %v10110
    %10112 = vmatmul.bf16.gmra.mxu0 %v1838
    %v10113 = vpop.f32.mrf.mxu0
    %v10114 = vadd.f32 %v10070, %v10113
    %v10115 = vpop.f32.mrf.mxu0
    %v10116 = vadd.f32 %v10072, %v10115
    %10117 = vdwg.mxu0
    %10118 = vmatpush.bf16.msra.mxu0 %v5696
    %10119 = vmatpush.bf16.msra.mxu0 %v5688
    %10120 = vmatpush.bf16.msra.mxu0 %v5680
    %10121 = vmatpush.bf16.msra.mxu0 %v5672
    %10122 = vmatpush.bf16.msra.mxu0 %v5664
    %10123 = vmatpush.bf16.msra.mxu0 %v5656
    %10124 = vmatpush.bf16.msra.mxu0 %v5648
    %10125 = vmatpush.bf16.msra.mxu0 %v5640
    %10126 = vmatmul.bf16.gmra.mxu0 %v1775
    %v10127 = vpop.f32.mrf.mxu0
    %v10128 = vadd.f32 %v10084, %v10127
    %v10129 = vpop.f32.mrf.mxu0
    %v10130 = vadd.f32 %v10086, %v10129
    %10131 = vmatmul.bf16.gmra.mxu0 %v1787
    %v10132 = vpop.f32.mrf.mxu0
    %v10133 = vadd.f32 %v10089, %v10132
    %v10134 = vpop.f32.mrf.mxu0
    %v10135 = vadd.f32 %v10091, %v10134
    %10136 = vmatmul.bf16.gmra.mxu0 %v1799
    %v10137 = vpop.f32.mrf.mxu0
    %v10138 = vadd.f32 %v10094, %v10137
    %v10139 = vpop.f32.mrf.mxu0
    %v10140 = vadd.f32 %v10096, %v10139
    %10141 = vmatmul.bf16.gmra.mxu0 %v1811
    %v10142 = vpop.f32.mrf.mxu0
    %v10143 = vadd.f32 %v10099, %v10142
    %v10144 = vpop.f32.mrf.mxu0
    %v10145 = vadd.f32 %v10101, %v10144
    %10146 = vmatmul.bf16.gmra.mxu0 %v1819
    %v10147 = vpop.f32.mrf.mxu0
    %v10148 = vadd.f32 %v10104, %v10147
    %v10149 = vpop.f32.mrf.mxu0
    %v10150 = vadd.f32 %v10106, %v10149
    %10151 = vmatmul.bf16.gmra.mxu0 %v1827
    %v10152 = vpop.f32.mrf.mxu0
    %v10153 = vadd.f32 %v10109, %v10152
    %v10154 = vpop.f32.mrf.mxu0
    %v10155 = vadd.f32 %v10111, %v10154
    %10156 = vmatmul.bf16.gmra.mxu0 %v1839
    %v10157 = vpop.f32.mrf.mxu0
    %v10158 = vadd.f32 %v10114, %v10157
    %v10159 = vpop.f32.mrf.mxu0
    %v10160 = vadd.f32 %v10116, %v10159
    %10161 = vdwg.mxu0
    %10162 = vmatpush.bf16.msra.mxu0 %v4993
    %10163 = vmatpush.bf16.msra.mxu0 %v4985
    %10164 = vmatpush.bf16.msra.mxu0 %v4977
    %10165 = vmatpush.bf16.msra.mxu0 %v4969
    %10166 = vmatpush.bf16.msra.mxu0 %v4961
    %10167 = vmatpush.bf16.msra.mxu0 %v4953
    %10168 = vmatpush.bf16.msra.mxu0 %v4945
    %10169 = vmatpush.bf16.msra.mxu0 %v4937
    %10170 = vmatmul.bf16.gmra.mxu0 %v1764
    %v10171 = vpop.f32.mrf.mxu0
    %v10172 = vadd.f32 %v2617, %v10171
    %v10173 = vpop.f32.mrf.mxu0
    %v10174 = vadd.f32 %v2617, %v10173
    %10175 = vmatmul.bf16.gmra.mxu0 %v1776
    %v10176 = vpop.f32.mrf.mxu0
    %v10177 = vadd.f32 %v2617, %v10176
    %v10178 = vpop.f32.mrf.mxu0
    %v10179 = vadd.f32 %v2617, %v10178
    %10180 = vmatmul.bf16.gmra.mxu0 %v1788
    %v10181 = vpop.f32.mrf.mxu0
    %v10182 = vadd.f32 %v2617, %v10181
    %v10183 = vpop.f32.mrf.mxu0
    %v10184 = vadd.f32 %v2617, %v10183
    %10185 = vmatmul.bf16.gmra.mxu0 %v1800
    %v10186 = vpop.f32.mrf.mxu0
    %v10187 = vadd.f32 %v2617, %v10186
    %v10188 = vpop.f32.mrf.mxu0
    %v10189 = vadd.f32 %v2617, %v10188
    %10190 = vmatmul.bf16.gmra.mxu0 %v1812
    %v10191 = vpop.f32.mrf.mxu0
    %v10192 = vadd.f32 %v2617, %v10191
    %v10193 = vpop.f32.mrf.mxu0
    %v10194 = vadd.f32 %v2617, %v10193
    %10195 = vmatmul.bf16.gmra.mxu0 %v1820
    %v10196 = vpop.f32.mrf.mxu0
    %v10197 = vadd.f32 %v2617, %v10196
    %v10198 = vpop.f32.mrf.mxu0
    %v10199 = vadd.f32 %v2617, %v10198
    %10200 = vmatmul.bf16.gmra.mxu0 %v1828
    %v10201 = vpop.f32.mrf.mxu0
    %v10202 = vadd.f32 %v2617, %v10201
    %v10203 = vpop.f32.mrf.mxu0
    %v10204 = vadd.f32 %v2617, %v10203
    %10205 = vdwg.mxu0
    %10206 = vmatpush.bf16.msra.mxu0 %v5057
    %10207 = vmatpush.bf16.msra.mxu0 %v5049
    %10208 = vmatpush.bf16.msra.mxu0 %v5041
    %10209 = vmatpush.bf16.msra.mxu0 %v5033
    %10210 = vmatpush.bf16.msra.mxu0 %v5025
    %10211 = vmatpush.bf16.msra.mxu0 %v5017
    %10212 = vmatpush.bf16.msra.mxu0 %v5009
    %10213 = vmatpush.bf16.msra.mxu0 %v5001
    %10214 = vmatmul.bf16.gmra.mxu0 %v1765
    %v10215 = vpop.f32.mrf.mxu0
    %v10216 = vadd.f32 %v10172, %v10215
    %v10217 = vpop.f32.mrf.mxu0
    %v10218 = vadd.f32 %v10174, %v10217
    %10219 = vmatmul.bf16.gmra.mxu0 %v1777
    %v10220 = vpop.f32.mrf.mxu0
    %v10221 = vadd.f32 %v10177, %v10220
    %v10222 = vpop.f32.mrf.mxu0
    %v10223 = vadd.f32 %v10179, %v10222
    %10224 = vmatmul.bf16.gmra.mxu0 %v1789
    %v10225 = vpop.f32.mrf.mxu0
    %v10226 = vadd.f32 %v10182, %v10225
    %v10227 = vpop.f32.mrf.mxu0
    %v10228 = vadd.f32 %v10184, %v10227
    %10229 = vmatmul.bf16.gmra.mxu0 %v1801
    %v10230 = vpop.f32.mrf.mxu0
    %v10231 = vadd.f32 %v10187, %v10230
    %v10232 = vpop.f32.mrf.mxu0
    %v10233 = vadd.f32 %v10189, %v10232
    %10234 = vmatmul.bf16.gmra.mxu0 %v1813
    %v10235 = vpop.f32.mrf.mxu0
    %v10236 = vadd.f32 %v10192, %v10235
    %v10237 = vpop.f32.mrf.mxu0
    %v10238 = vadd.f32 %v10194, %v10237
    %10239 = vmatmul.bf16.gmra.mxu0 %v1821
    %v10240 = vpop.f32.mrf.mxu0
    %v10241 = vadd.f32 %v10197, %v10240
    %v10242 = vpop.f32.mrf.mxu0
    %v10243 = vadd.f32 %v10199, %v10242
    %10244 = vmatmul.bf16.gmra.mxu0 %v1829
    %v10245 = vpop.f32.mrf.mxu0
    %v10246 = vadd.f32 %v10202, %v10245
    %v10247 = vpop.f32.mrf.mxu0
    %v10248 = vadd.f32 %v10204, %v10247
    %10249 = vdwg.mxu0
    %10250 = vmatpush.bf16.msra.mxu0 %v5121
    %10251 = vmatpush.bf16.msra.mxu0 %v5113
    %10252 = vmatpush.bf16.msra.mxu0 %v5105
    %10253 = vmatpush.bf16.msra.mxu0 %v5097
    %10254 = vmatpush.bf16.msra.mxu0 %v5089
    %10255 = vmatpush.bf16.msra.mxu0 %v5081
    %10256 = vmatpush.bf16.msra.mxu0 %v5073
    %10257 = vmatpush.bf16.msra.mxu0 %v5065
    %10258 = vmatmul.bf16.gmra.mxu0 %v1766
    %v10259 = vpop.f32.mrf.mxu0
    %v10260 = vadd.f32 %v10216, %v10259
    %v10261 = vpop.f32.mrf.mxu0
    %v10262 = vadd.f32 %v10218, %v10261
    %10263 = vmatmul.bf16.gmra.mxu0 %v1778
    %v10264 = vpop.f32.mrf.mxu0
    %v10265 = vadd.f32 %v10221, %v10264
    %v10266 = vpop.f32.mrf.mxu0
    %v10267 = vadd.f32 %v10223, %v10266
    %10268 = vmatmul.bf16.gmra.mxu0 %v1790
    %v10269 = vpop.f32.mrf.mxu0
    %v10270 = vadd.f32 %v10226, %v10269
    %v10271 = vpop.f32.mrf.mxu0
    %v10272 = vadd.f32 %v10228, %v10271
    %10273 = vmatmul.bf16.gmra.mxu0 %v1802
    %v10274 = vpop.f32.mrf.mxu0
    %v10275 = vadd.f32 %v10231, %v10274
    %v10276 = vpop.f32.mrf.mxu0
    %v10277 = vadd.f32 %v10233, %v10276
    %10278 = vmatmul.bf16.gmra.mxu0 %v1814
    %v10279 = vpop.f32.mrf.mxu0
    %v10280 = vadd.f32 %v10236, %v10279
    %v10281 = vpop.f32.mrf.mxu0
    %v10282 = vadd.f32 %v10238, %v10281
    %10283 = vmatmul.bf16.gmra.mxu0 %v1822
    %v10284 = vpop.f32.mrf.mxu0
    %v10285 = vadd.f32 %v10241, %v10284
    %v10286 = vpop.f32.mrf.mxu0
    %v10287 = vadd.f32 %v10243, %v10286
    %10288 = vmatmul.bf16.gmra.mxu0 %v1830
    %v10289 = vpop.f32.mrf.mxu0
    %v10290 = vadd.f32 %v10246, %v10289
    %v10291 = vpop.f32.mrf.mxu0
    %v10292 = vadd.f32 %v10248, %v10291
    %10293 = vdwg.mxu0
    %10294 = vmatpush.bf16.msra.mxu0 %v5185
    %10295 = vmatpush.bf16.msra.mxu0 %v5177
    %10296 = vmatpush.bf16.msra.mxu0 %v5169
    %10297 = vmatpush.bf16.msra.mxu0 %v5161
    %10298 = vmatpush.bf16.msra.mxu0 %v5153
    %10299 = vmatpush.bf16.msra.mxu0 %v5145
    %10300 = vmatpush.bf16.msra.mxu0 %v5137
    %10301 = vmatpush.bf16.msra.mxu0 %v5129
    %10302 = vmatmul.bf16.gmra.mxu0 %v1767
    %v10303 = vpop.f32.mrf.mxu0
    %v10304 = vadd.f32 %v10260, %v10303
    %v10305 = vpop.f32.mrf.mxu0
    %v10306 = vadd.f32 %v10262, %v10305
    %10307 = vmatmul.bf16.gmra.mxu0 %v1779
    %v10308 = vpop.f32.mrf.mxu0
    %v10309 = vadd.f32 %v10265, %v10308
    %v10310 = vpop.f32.mrf.mxu0
    %v10311 = vadd.f32 %v10267, %v10310
    %10312 = vmatmul.bf16.gmra.mxu0 %v1791
    %v10313 = vpop.f32.mrf.mxu0
    %v10314 = vadd.f32 %v10270, %v10313
    %v10315 = vpop.f32.mrf.mxu0
    %v10316 = vadd.f32 %v10272, %v10315
    %10317 = vmatmul.bf16.gmra.mxu0 %v1803
    %v10318 = vpop.f32.mrf.mxu0
    %v10319 = vadd.f32 %v10275, %v10318
    %v10320 = vpop.f32.mrf.mxu0
    %v10321 = vadd.f32 %v10277, %v10320
    %10322 = vmatmul.bf16.gmra.mxu0 %v1815
    %v10323 = vpop.f32.mrf.mxu0
    %v10324 = vadd.f32 %v10280, %v10323
    %v10325 = vpop.f32.mrf.mxu0
    %v10326 = vadd.f32 %v10282, %v10325
    %10327 = vmatmul.bf16.gmra.mxu0 %v1823
    %v10328 = vpop.f32.mrf.mxu0
    %v10329 = vadd.f32 %v10285, %v10328
    %v10330 = vpop.f32.mrf.mxu0
    %v10331 = vadd.f32 %v10287, %v10330
    %10332 = vmatmul.bf16.gmra.mxu0 %v1831
    %v10333 = vpop.f32.mrf.mxu0
    %v10334 = vadd.f32 %v10290, %v10333
    %v10335 = vpop.f32.mrf.mxu0
    %v10336 = vadd.f32 %v10292, %v10335
    %10337 = vdwg.mxu0
    %10338 = vmatpush.bf16.msra.mxu0 %v5249
    %10339 = vmatpush.bf16.msra.mxu0 %v5241
    %10340 = vmatpush.bf16.msra.mxu0 %v5233
    %10341 = vmatpush.bf16.msra.mxu0 %v5225
    %10342 = vmatpush.bf16.msra.mxu0 %v5217
    %10343 = vmatpush.bf16.msra.mxu0 %v5209
    %10344 = vmatpush.bf16.msra.mxu0 %v5201
    %10345 = vmatpush.bf16.msra.mxu0 %v5193
    %10346 = vmatmul.bf16.gmra.mxu0 %v1768
    %v10347 = vpop.f32.mrf.mxu0
    %v10348 = vadd.f32 %v10304, %v10347
    %v10349 = vpop.f32.mrf.mxu0
    %v10350 = vadd.f32 %v10306, %v10349
    %10351 = vmatmul.bf16.gmra.mxu0 %v1780
    %v10352 = vpop.f32.mrf.mxu0
    %v10353 = vadd.f32 %v10309, %v10352
    %v10354 = vpop.f32.mrf.mxu0
    %v10355 = vadd.f32 %v10311, %v10354
    %10356 = vmatmul.bf16.gmra.mxu0 %v1792
    %v10357 = vpop.f32.mrf.mxu0
    %v10358 = vadd.f32 %v10314, %v10357
    %v10359 = vpop.f32.mrf.mxu0
    %v10360 = vadd.f32 %v10316, %v10359
    %10361 = vmatmul.bf16.gmra.mxu0 %v1804
    %v10362 = vpop.f32.mrf.mxu0
    %v10363 = vadd.f32 %v10319, %v10362
    %v10364 = vpop.f32.mrf.mxu0
    %v10365 = vadd.f32 %v10321, %v10364
    %10366 = vmatmul.bf16.gmra.mxu0 %v1776
    %v10367 = vpop.f32.mrf.mxu0
    %v10368 = vadd.f32 %v10324, %v10367
    %v10369 = vpop.f32.mrf.mxu0
    %v10370 = vadd.f32 %v10326, %v10369
    %10371 = vmatmul.bf16.gmra.mxu0 %v1788
    %v10372 = vpop.f32.mrf.mxu0
    %v10373 = vadd.f32 %v10329, %v10372
    %v10374 = vpop.f32.mrf.mxu0
    %v10375 = vadd.f32 %v10331, %v10374
    %10376 = vmatmul.bf16.gmra.mxu0 %v1832
    %v10377 = vpop.f32.mrf.mxu0
    %v10378 = vadd.f32 %v10334, %v10377
    %v10379 = vpop.f32.mrf.mxu0
    %v10380 = vadd.f32 %v10336, %v10379
    %10381 = vdwg.mxu0
    %10382 = vmatpush.bf16.msra.mxu0 %v5313
    %10383 = vmatpush.bf16.msra.mxu0 %v5305
    %10384 = vmatpush.bf16.msra.mxu0 %v5297
    %10385 = vmatpush.bf16.msra.mxu0 %v5289
    %10386 = vmatpush.bf16.msra.mxu0 %v5281
    %10387 = vmatpush.bf16.msra.mxu0 %v5273
    %10388 = vmatpush.bf16.msra.mxu0 %v5265
    %10389 = vmatpush.bf16.msra.mxu0 %v5257
    %10390 = vmatmul.bf16.gmra.mxu0 %v1769
    %v10391 = vpop.f32.mrf.mxu0
    %v10392 = vadd.f32 %v10348, %v10391
    %v10393 = vpop.f32.mrf.mxu0
    %v10394 = vadd.f32 %v10350, %v10393
    %10395 = vmatmul.bf16.gmra.mxu0 %v1781
    %v10396 = vpop.f32.mrf.mxu0
    %v10397 = vadd.f32 %v10353, %v10396
    %v10398 = vpop.f32.mrf.mxu0
    %v10399 = vadd.f32 %v10355, %v10398
    %10400 = vmatmul.bf16.gmra.mxu0 %v1793
    %v10401 = vpop.f32.mrf.mxu0
    %v10402 = vadd.f32 %v10358, %v10401
    %v10403 = vpop.f32.mrf.mxu0
    %v10404 = vadd.f32 %v10360, %v10403
    %10405 = vmatmul.bf16.gmra.mxu0 %v1805
    %v10406 = vpop.f32.mrf.mxu0
    %v10407 = vadd.f32 %v10363, %v10406
    %v10408 = vpop.f32.mrf.mxu0
    %v10409 = vadd.f32 %v10365, %v10408
    %10410 = vmatmul.bf16.gmra.mxu0 %v1777
    %v10411 = vpop.f32.mrf.mxu0
    %v10412 = vadd.f32 %v10368, %v10411
    %v10413 = vpop.f32.mrf.mxu0
    %v10414 = vadd.f32 %v10370, %v10413
    %10415 = vmatmul.bf16.gmra.mxu0 %v1789
    %v10416 = vpop.f32.mrf.mxu0
    %v10417 = vadd.f32 %v10373, %v10416
    %v10418 = vpop.f32.mrf.mxu0
    %v10419 = vadd.f32 %v10375, %v10418
    %10420 = vmatmul.bf16.gmra.mxu0 %v1833
    %v10421 = vpop.f32.mrf.mxu0
    %v10422 = vadd.f32 %v10378, %v10421
    %v10423 = vpop.f32.mrf.mxu0
    %v10424 = vadd.f32 %v10380, %v10423
    %10425 = vdwg.mxu0
    %10426 = vmatpush.bf16.msra.mxu0 %v5377
    %10427 = vmatpush.bf16.msra.mxu0 %v5369
    %10428 = vmatpush.bf16.msra.mxu0 %v5361
    %10429 = vmatpush.bf16.msra.mxu0 %v5353
    %10430 = vmatpush.bf16.msra.mxu0 %v5345
    %10431 = vmatpush.bf16.msra.mxu0 %v5337
    %10432 = vmatpush.bf16.msra.mxu0 %v5329
    %10433 = vmatpush.bf16.msra.mxu0 %v5321
    %10434 = vmatmul.bf16.gmra.mxu0 %v1770
    %v10435 = vpop.f32.mrf.mxu0
    %v10436 = vadd.f32 %v10392, %v10435
    %v10437 = vpop.f32.mrf.mxu0
    %v10438 = vadd.f32 %v10394, %v10437
    %10439 = vmatmul.bf16.gmra.mxu0 %v1782
    %v10440 = vpop.f32.mrf.mxu0
    %v10441 = vadd.f32 %v10397, %v10440
    %v10442 = vpop.f32.mrf.mxu0
    %v10443 = vadd.f32 %v10399, %v10442
    %10444 = vmatmul.bf16.gmra.mxu0 %v1794
    %v10445 = vpop.f32.mrf.mxu0
    %v10446 = vadd.f32 %v10402, %v10445
    %v10447 = vpop.f32.mrf.mxu0
    %v10448 = vadd.f32 %v10404, %v10447
    %10449 = vmatmul.bf16.gmra.mxu0 %v1806
    %v10450 = vpop.f32.mrf.mxu0
    %v10451 = vadd.f32 %v10407, %v10450
    %v10452 = vpop.f32.mrf.mxu0
    %v10453 = vadd.f32 %v10409, %v10452
    %10454 = vmatmul.bf16.gmra.mxu0 %v1778
    %v10455 = vpop.f32.mrf.mxu0
    %v10456 = vadd.f32 %v10412, %v10455
    %v10457 = vpop.f32.mrf.mxu0
    %v10458 = vadd.f32 %v10414, %v10457
    %10459 = vmatmul.bf16.gmra.mxu0 %v1790
    %v10460 = vpop.f32.mrf.mxu0
    %v10461 = vadd.f32 %v10417, %v10460
    %v10462 = vpop.f32.mrf.mxu0
    %v10463 = vadd.f32 %v10419, %v10462
    %10464 = vmatmul.bf16.gmra.mxu0 %v1834
    %v10465 = vpop.f32.mrf.mxu0
    %v10466 = vadd.f32 %v10422, %v10465
    %v10467 = vpop.f32.mrf.mxu0
    %v10468 = vadd.f32 %v10424, %v10467
    %10469 = vdwg.mxu0
    %10470 = vmatpush.bf16.msra.mxu0 %v5441
    %10471 = vmatpush.bf16.msra.mxu0 %v5433
    %10472 = vmatpush.bf16.msra.mxu0 %v5425
    %10473 = vmatpush.bf16.msra.mxu0 %v5417
    %10474 = vmatpush.bf16.msra.mxu0 %v5409
    %10475 = vmatpush.bf16.msra.mxu0 %v5401
    %10476 = vmatpush.bf16.msra.mxu0 %v5393
    %10477 = vmatpush.bf16.msra.mxu0 %v5385
    %10478 = vmatmul.bf16.gmra.mxu0 %v1771
    %v10479 = vpop.f32.mrf.mxu0
    %v10480 = vadd.f32 %v10436, %v10479
    %v10481 = vpop.f32.mrf.mxu0
    %v10482 = vadd.f32 %v10438, %v10481
    %10483 = vmatmul.bf16.gmra.mxu0 %v1783
    %v10484 = vpop.f32.mrf.mxu0
    %v10485 = vadd.f32 %v10441, %v10484
    %v10486 = vpop.f32.mrf.mxu0
    %v10487 = vadd.f32 %v10443, %v10486
    %10488 = vmatmul.bf16.gmra.mxu0 %v1795
    %v10489 = vpop.f32.mrf.mxu0
    %v10490 = vadd.f32 %v10446, %v10489
    %v10491 = vpop.f32.mrf.mxu0
    %v10492 = vadd.f32 %v10448, %v10491
    %10493 = vmatmul.bf16.gmra.mxu0 %v1807
    %v10494 = vpop.f32.mrf.mxu0
    %v10495 = vadd.f32 %v10451, %v10494
    %v10496 = vpop.f32.mrf.mxu0
    %v10497 = vadd.f32 %v10453, %v10496
    %10498 = vmatmul.bf16.gmra.mxu0 %v1779
    %v10499 = vpop.f32.mrf.mxu0
    %v10500 = vadd.f32 %v10456, %v10499
    %v10501 = vpop.f32.mrf.mxu0
    %v10502 = vadd.f32 %v10458, %v10501
    %10503 = vmatmul.bf16.gmra.mxu0 %v1791
    %v10504 = vpop.f32.mrf.mxu0
    %v10505 = vadd.f32 %v10461, %v10504
    %v10506 = vpop.f32.mrf.mxu0
    %v10507 = vadd.f32 %v10463, %v10506
    %10508 = vmatmul.bf16.gmra.mxu0 %v1835
    %v10509 = vpop.f32.mrf.mxu0
    %v10510 = vadd.f32 %v10466, %v10509
    %v10511 = vpop.f32.mrf.mxu0
    %v10512 = vadd.f32 %v10468, %v10511
    %10513 = vdwg.mxu0
    %10514 = vmatpush.bf16.msra.mxu0 %v5505
    %10515 = vmatpush.bf16.msra.mxu0 %v5497
    %10516 = vmatpush.bf16.msra.mxu0 %v5489
    %10517 = vmatpush.bf16.msra.mxu0 %v5481
    %10518 = vmatpush.bf16.msra.mxu0 %v5473
    %10519 = vmatpush.bf16.msra.mxu0 %v5465
    %10520 = vmatpush.bf16.msra.mxu0 %v5457
    %10521 = vmatpush.bf16.msra.mxu0 %v5449
    %10522 = vmatmul.bf16.gmra.mxu0 %v1772
    %v10523 = vpop.f32.mrf.mxu0
    %v10524 = vadd.f32 %v10480, %v10523
    %v10525 = vpop.f32.mrf.mxu0
    %v10526 = vadd.f32 %v10482, %v10525
    %10527 = vmatmul.bf16.gmra.mxu0 %v1784
    %v10528 = vpop.f32.mrf.mxu0
    %v10529 = vadd.f32 %v10485, %v10528
    %v10530 = vpop.f32.mrf.mxu0
    %v10531 = vadd.f32 %v10487, %v10530
    %10532 = vmatmul.bf16.gmra.mxu0 %v1796
    %v10533 = vpop.f32.mrf.mxu0
    %v10534 = vadd.f32 %v10490, %v10533
    %v10535 = vpop.f32.mrf.mxu0
    %v10536 = vadd.f32 %v10492, %v10535
    %10537 = vmatmul.bf16.gmra.mxu0 %v1808
    %v10538 = vpop.f32.mrf.mxu0
    %v10539 = vadd.f32 %v10495, %v10538
    %v10540 = vpop.f32.mrf.mxu0
    %v10541 = vadd.f32 %v10497, %v10540
    %10542 = vmatmul.bf16.gmra.mxu0 %v1816
    %v10543 = vpop.f32.mrf.mxu0
    %v10544 = vadd.f32 %v10500, %v10543
    %v10545 = vpop.f32.mrf.mxu0
    %v10546 = vadd.f32 %v10502, %v10545
    %10547 = vmatmul.bf16.gmra.mxu0 %v1824
    %v10548 = vpop.f32.mrf.mxu0
    %v10549 = vadd.f32 %v10505, %v10548
    %v10550 = vpop.f32.mrf.mxu0
    %v10551 = vadd.f32 %v10507, %v10550
    %10552 = vmatmul.bf16.gmra.mxu0 %v1836
    %v10553 = vpop.f32.mrf.mxu0
    %v10554 = vadd.f32 %v10510, %v10553
    %v10555 = vpop.f32.mrf.mxu0
    %v10556 = vadd.f32 %v10512, %v10555
    %10557 = vdwg.mxu0
    %10558 = vmatpush.bf16.msra.mxu0 %v5569
    %10559 = vmatpush.bf16.msra.mxu0 %v5561
    %10560 = vmatpush.bf16.msra.mxu0 %v5553
    %10561 = vmatpush.bf16.msra.mxu0 %v5545
    %10562 = vmatpush.bf16.msra.mxu0 %v5537
    %10563 = vmatpush.bf16.msra.mxu0 %v5529
    %10564 = vmatpush.bf16.msra.mxu0 %v5521
    %10565 = vmatpush.bf16.msra.mxu0 %v5513
    %10566 = vmatmul.bf16.gmra.mxu0 %v1773
    %v10567 = vpop.f32.mrf.mxu0
    %v10568 = vadd.f32 %v10524, %v10567
    %v10569 = vpop.f32.mrf.mxu0
    %v10570 = vadd.f32 %v10526, %v10569
    %10571 = vmatmul.bf16.gmra.mxu0 %v1785
    %v10572 = vpop.f32.mrf.mxu0
    %v10573 = vadd.f32 %v10529, %v10572
    %v10574 = vpop.f32.mrf.mxu0
    %v10575 = vadd.f32 %v10531, %v10574
    %10576 = vmatmul.bf16.gmra.mxu0 %v1797
    %v10577 = vpop.f32.mrf.mxu0
    %v10578 = vadd.f32 %v10534, %v10577
    %v10579 = vpop.f32.mrf.mxu0
    %v10580 = vadd.f32 %v10536, %v10579
    %10581 = vmatmul.bf16.gmra.mxu0 %v1809
    %v10582 = vpop.f32.mrf.mxu0
    %v10583 = vadd.f32 %v10539, %v10582
    %v10584 = vpop.f32.mrf.mxu0
    %v10585 = vadd.f32 %v10541, %v10584
    %10586 = vmatmul.bf16.gmra.mxu0 %v1817
    %v10587 = vpop.f32.mrf.mxu0
    %v10588 = vadd.f32 %v10544, %v10587
    %v10589 = vpop.f32.mrf.mxu0
    %v10590 = vadd.f32 %v10546, %v10589
    %10591 = vmatmul.bf16.gmra.mxu0 %v1825
    %v10592 = vpop.f32.mrf.mxu0
    %v10593 = vadd.f32 %v10549, %v10592
    %v10594 = vpop.f32.mrf.mxu0
    %v10595 = vadd.f32 %v10551, %v10594
    %10596 = vmatmul.bf16.gmra.mxu0 %v1837
    %v10597 = vpop.f32.mrf.mxu0
    %v10598 = vadd.f32 %v10554, %v10597
    %v10599 = vpop.f32.mrf.mxu0
    %v10600 = vadd.f32 %v10556, %v10599
    %10601 = vdwg.mxu0
    %10602 = vmatpush.bf16.msra.mxu0 %v5633
    %10603 = vmatpush.bf16.msra.mxu0 %v5625
    %10604 = vmatpush.bf16.msra.mxu0 %v5617
    %10605 = vmatpush.bf16.msra.mxu0 %v5609
    %10606 = vmatpush.bf16.msra.mxu0 %v5601
    %10607 = vmatpush.bf16.msra.mxu0 %v5593
    %10608 = vmatpush.bf16.msra.mxu0 %v5585
    %10609 = vmatpush.bf16.msra.mxu0 %v5577
    %10610 = vmatmul.bf16.gmra.mxu0 %v1774
    %v10611 = vpop.f32.mrf.mxu0
    %v10612 = vadd.f32 %v10568, %v10611
    %v10613 = vpop.f32.mrf.mxu0
    %v10614 = vadd.f32 %v10570, %v10613
    %10615 = vmatmul.bf16.gmra.mxu0 %v1786
    %v10616 = vpop.f32.mrf.mxu0
    %v10617 = vadd.f32 %v10573, %v10616
    %v10618 = vpop.f32.mrf.mxu0
    %v10619 = vadd.f32 %v10575, %v10618
    %10620 = vmatmul.bf16.gmra.mxu0 %v1798
    %v10621 = vpop.f32.mrf.mxu0
    %v10622 = vadd.f32 %v10578, %v10621
    %v10623 = vpop.f32.mrf.mxu0
    %v10624 = vadd.f32 %v10580, %v10623
    %10625 = vmatmul.bf16.gmra.mxu0 %v1810
    %v10626 = vpop.f32.mrf.mxu0
    %v10627 = vadd.f32 %v10583, %v10626
    %v10628 = vpop.f32.mrf.mxu0
    %v10629 = vadd.f32 %v10585, %v10628
    %10630 = vmatmul.bf16.gmra.mxu0 %v1818
    %v10631 = vpop.f32.mrf.mxu0
    %v10632 = vadd.f32 %v10588, %v10631
    %v10633 = vpop.f32.mrf.mxu0
    %v10634 = vadd.f32 %v10590, %v10633
    %10635 = vmatmul.bf16.gmra.mxu0 %v1826
    %v10636 = vpop.f32.mrf.mxu0
    %v10637 = vadd.f32 %v10593, %v10636
    %v10638 = vpop.f32.mrf.mxu0
    %v10639 = vadd.f32 %v10595, %v10638
    %10640 = vmatmul.bf16.gmra.mxu0 %v1838
    %v10641 = vpop.f32.mrf.mxu0
    %v10642 = vadd.f32 %v10598, %v10641
    %v10643 = vpop.f32.mrf.mxu0
    %v10644 = vadd.f32 %v10600, %v10643
    %10645 = vdwg.mxu0
    %10646 = vmatpush.bf16.msra.mxu0 %v5697
    %10647 = vmatpush.bf16.msra.mxu0 %v5689
    %10648 = vmatpush.bf16.msra.mxu0 %v5681
    %10649 = vmatpush.bf16.msra.mxu0 %v5673
    %10650 = vmatpush.bf16.msra.mxu0 %v5665
    %10651 = vmatpush.bf16.msra.mxu0 %v5657
    %10652 = vmatpush.bf16.msra.mxu0 %v5649
    %10653 = vmatpush.bf16.msra.mxu0 %v5641
    %10654 = vmatmul.bf16.gmra.mxu0 %v1775
    %v10655 = vpop.f32.mrf.mxu0
    %v10656 = vadd.f32 %v10612, %v10655
    %v10657 = vpop.f32.mrf.mxu0
    %v10658 = vadd.f32 %v10614, %v10657
    %10659 = vmatmul.bf16.gmra.mxu0 %v1787
    %v10660 = vpop.f32.mrf.mxu0
    %v10661 = vadd.f32 %v10617, %v10660
    %v10662 = vpop.f32.mrf.mxu0
    %v10663 = vadd.f32 %v10619, %v10662
    %10664 = vmatmul.bf16.gmra.mxu0 %v1799
    %v10665 = vpop.f32.mrf.mxu0
    %v10666 = vadd.f32 %v10622, %v10665
    %v10667 = vpop.f32.mrf.mxu0
    %v10668 = vadd.f32 %v10624, %v10667
    %10669 = vmatmul.bf16.gmra.mxu0 %v1811
    %v10670 = vpop.f32.mrf.mxu0
    %v10671 = vadd.f32 %v10627, %v10670
    %v10672 = vpop.f32.mrf.mxu0
    %v10673 = vadd.f32 %v10629, %v10672
    %10674 = vmatmul.bf16.gmra.mxu0 %v1819
    %v10675 = vpop.f32.mrf.mxu0
    %v10676 = vadd.f32 %v10632, %v10675
    %v10677 = vpop.f32.mrf.mxu0
    %v10678 = vadd.f32 %v10634, %v10677
    %10679 = vmatmul.bf16.gmra.mxu0 %v1827
    %v10680 = vpop.f32.mrf.mxu0
    %v10681 = vadd.f32 %v10637, %v10680
    %v10682 = vpop.f32.mrf.mxu0
    %v10683 = vadd.f32 %v10639, %v10682
    %10684 = vmatmul.bf16.gmra.mxu0 %v1839
    %v10685 = vpop.f32.mrf.mxu0
    %v10686 = vadd.f32 %v10642, %v10685
    %v10687 = vpop.f32.mrf.mxu0
    %v10688 = vadd.f32 %v10644, %v10687
    %10689 = vdwg.mxu0
    %v10690 = vmax.f32 %v6960, %v6977
    %v10691 = vmax.f32 %v7488, %v7505
    %v10692 = vmax.f32 %v8016, %v8033
    %v10693 = vmax.f32 %v8544, %v8561
    %v10694 = vmax.f32 %v9072, %v9089
    %v10695 = vmax.f32 %v9600, %v9617
    %v10696 = vmax.f32 %v10128, %v10145
    %v10697 = vmax.f32 %v10656, %v10673
    %v10698 = vmax.f32 %v6962, %v6980
    %v10699 = vmax.f32 %v7490, %v7508
    %v10700 = vmax.f32 %v8018, %v8036
    %v10701 = vmax.f32 %v8546, %v8564
    %v10702 = vmax.f32 %v9074, %v9092
    %v10703 = vmax.f32 %v9602, %v9620
    %v10704 = vmax.f32 %v10130, %v10148
    %v10705 = vmax.f32 %v10658, %v10676
    %v10706 = vmax.f32 %v6965, %v6982
    %v10707 = vmax.f32 %v7493, %v7510
    %v10708 = vmax.f32 %v8021, %v8038
    %v10709 = vmax.f32 %v8549, %v8566
    %v10710 = vmax.f32 %v9077, %v9094
    %v10711 = vmax.f32 %v9605, %v9622
    %v10712 = vmax.f32 %v10133, %v10150
    %v10713 = vmax.f32 %v10661, %v10678
    %v10714 = vmax.f32 %v6967, %v6985
    %v10715 = vmax.f32 %v7495, %v7513
    %v10716 = vmax.f32 %v8023, %v8041
    %v10717 = vmax.f32 %v8551, %v8569
    %v10718 = vmax.f32 %v9079, %v9097
    %v10719 = vmax.f32 %v9607, %v9625
    %v10720 = vmax.f32 %v10135, %v10153
    %v10721 = vmax.f32 %v10663, %v10681
    %v10722 = vmax.f32 %v6970, %v6987
    %v10723 = vmax.f32 %v7498, %v7515
    %v10724 = vmax.f32 %v8026, %v8043
    %v10725 = vmax.f32 %v8554, %v8571
    %v10726 = vmax.f32 %v9082, %v9099
    %v10727 = vmax.f32 %v9610, %v9627
    %v10728 = vmax.f32 %v10138, %v10155
    %v10729 = vmax.f32 %v10666, %v10683
    %v10730 = vmax.f32 %v6972, %v6990
    %v10731 = vmax.f32 %v7500, %v7518
    %v10732 = vmax.f32 %v8028, %v8046
    %v10733 = vmax.f32 %v8556, %v8574
    %v10734 = vmax.f32 %v9084, %v9102
    %v10735 = vmax.f32 %v9612, %v9630
    %v10736 = vmax.f32 %v10140, %v10158
    %v10737 = vmax.f32 %v10668, %v10686
    %v10738 = vmax.f32 %v6975, %v6992
    %v10739 = vmax.f32 %v7503, %v7520
    %v10740 = vmax.f32 %v8031, %v8048
    %v10741 = vmax.f32 %v8559, %v8576
    %v10742 = vmax.f32 %v9087, %v9104
    %v10743 = vmax.f32 %v9615, %v9632
    %v10744 = vmax.f32 %v10143, %v10160
    %v10745 = vmax.f32 %v10671, %v10688
    %v10746 = vmax.f32 %v10690, %v10694
    %v10747 = vmax.f32 %v10691, %v10695
    %v10748 = vmax.f32 %v10692, %v10696
    %v10749 = vmax.f32 %v10693, %v10697
    %v10750 = vmax.f32 %v10698, %v10702
    %v10751 = vmax.f32 %v10699, %v10703
    %v10752 = vmax.f32 %v10700, %v10704
    %v10753 = vmax.f32 %v10701, %v10705
    %v10754 = vmax.f32 %v10706, %v10710
    %v10755 = vmax.f32 %v10707, %v10711
    %v10756 = vmax.f32 %v10708, %v10712
    %v10757 = vmax.f32 %v10709, %v10713
    %v10758 = vmax.f32 %v10714, %v10718
    %v10759 = vmax.f32 %v10715, %v10719
    %v10760 = vmax.f32 %v10716, %v10720
    %v10761 = vmax.f32 %v10717, %v10721
    %v10762 = vmax.f32 %v10722, %v10726
    %v10763 = vmax.f32 %v10723, %v10727
    %v10764 = vmax.f32 %v10724, %v10728
    %v10765 = vmax.f32 %v10725, %v10729
    %v10766 = vmax.f32 %v10730, %v10734
    %v10767 = vmax.f32 %v10731, %v10735
    %v10768 = vmax.f32 %v10732, %v10736
    %v10769 = vmax.f32 %v10733, %v10737
    %v10770 = vmax.f32 %v10738, %v10742
    %v10771 = vmax.f32 %v10739, %v10743
    %v10772 = vmax.f32 %v10740, %v10744
    %v10773 = vmax.f32 %v10741, %v10745
    %v10774 = vmax.f32 %v10746, 0.0
    %v10775 = vmax.f32 %v10747, 0.0
    %v10776 = vmax.f32 %v10748, 0.0
    %v10777 = vmax.f32 %v10749, 0.0
    %v10778 = vmax.f32 %v10750, 0.0
    %v10779 = vmax.f32 %v10751, 0.0
    %v10780 = vmax.f32 %v10752, 0.0
    %v10781 = vmax.f32 %v10753, 0.0
    %v10782 = vmax.f32 %v10754, 0.0
    %v10783 = vmax.f32 %v10755, 0.0
    %v10784 = vmax.f32 %v10756, 0.0
    %v10785 = vmax.f32 %v10757, 0.0
    %v10786 = vmax.f32 %v10758, 0.0
    %v10787 = vmax.f32 %v10759, 0.0
    %v10788 = vmax.f32 %v10760, 0.0
    %v10789 = vmax.f32 %v10761, 0.0
    %v10790 = vmax.f32 %v10762, 0.0
    %v10791 = vmax.f32 %v10763, 0.0
    %v10792 = vmax.f32 %v10764, 0.0
    %v10793 = vmax.f32 %v10765, 0.0
    %v10794 = vmax.f32 %v10766, 0.0
    %v10795 = vmax.f32 %v10767, 0.0
    %v10796 = vmax.f32 %v10768, 0.0
    %v10797 = vmax.f32 %v10769, 0.0
    %v10798 = vmax.f32 %v10770, 0.0
    %v10799 = vmax.f32 %v10771, 0.0
    %v10800 = vmax.f32 %v10772, 0.0
    %v10801 = vmax.f32 %v10773, 0.0
    %v10802 = vpack.c.bf16 %v10775, %v10774
    %v10803 = vpack.c.bf16 %v10777, %v10776
    %10804 = vst [vmem:[#allocation3] sm:$0xff] %v10802
    %10805 = vst [vmem:[#allocation3 + $0x8] sm:$0xff] %v10803
    %v10806 = vpack.c.bf16 %v10779, %v10778
    %v10807 = vpack.c.bf16 %v10781, %v10780
    %10808 = vst [vmem:[#allocation3 + $0x10] sm:$0xff] %v10806
    %10809 = vst [vmem:[#allocation3 + $0x18] sm:$0xff] %v10807
    %v10810 = vpack.c.bf16 %v10783, %v10782
    %v10811 = vpack.c.bf16 %v10785, %v10784
    %10812 = vst [vmem:[#allocation3 + $0x20] sm:$0xff] %v10810
    %10813 = vst [vmem:[#allocation3 + $0x28] sm:$0xff] %v10811
    %v10814 = vpack.c.bf16 %v10787, %v10786
    %v10815 = vpack.c.bf16 %v10789, %v10788
    %10816 = vst [vmem:[#allocation3 + $0x30] sm:$0xff] %v10814
    %10817 = vst [vmem:[#allocation3 + $0x38] sm:$0xff] %v10815
    %v10818 = vpack.c.bf16 %v10791, %v10790
    %v10819 = vpack.c.bf16 %v10793, %v10792
    %10820 = vst [vmem:[#allocation3 + $0x40] sm:$0xff] %v10818
    %10821 = vst [vmem:[#allocation3 + $0x48] sm:$0xff] %v10819
    %v10822 = vpack.c.bf16 %v10795, %v10794
    %v10823 = vpack.c.bf16 %v10797, %v10796
    %10824 = vst [vmem:[#allocation3 + $0x50] sm:$0xff] %v10822
    %10825 = vst [vmem:[#allocation3 + $0x58] sm:$0xff] %v10823
    %v10826 = vpack.c.bf16 %v10799, %v10798
    %v10827 = vpack.c.bf16 %v10801, %v10800
    %10828 = vst [vmem:[#allocation3 + $0x60] sm:$0xff] %v10826
    %10829 = vst [vmem:[#allocation3 + $0x68] sm:$0xff] %v10827
    %v10830 = vld [vmem:[#allocation3] sm:$0xff]
    %v10831 = vld [vmem:[#allocation3 + $0x8] sm:$0xff]
    %v10832 = vld [vmem:[#allocation3 + $0x10] sm:$0xff]
    %v10833 = vld [vmem:[#allocation3 + $0x18] sm:$0xff]
    %v10834 = vld [vmem:[#allocation3 + $0x20] sm:$0xff]
    %v10835 = vld [vmem:[#allocation3 + $0x28] sm:$0xff]
    %v10836 = vld [vmem:[#allocation3 + $0x30] sm:$0xff]
    %v10837 = vld [vmem:[#allocation3 + $0x38] sm:$0xff]
    %v10838 = vld [vmem:[#allocation3 + $0x40] sm:$0xff]
    %v10839 = vld [vmem:[#allocation3 + $0x48] sm:$0xff]
    %v10840 = vld [vmem:[#allocation3 + $0x50] sm:$0xff]
    %v10841 = vld [vmem:[#allocation3 + $0x58] sm:$0xff]
    %v10842 = vld [vmem:[#allocation3 + $0x60] sm:$0xff]
    %v10843 = vld [vmem:[#allocation3 + $0x68] sm:$0xff]
    %v10844 = vld [vmem:[#allocation9] sm:$0xf]
    %v10845 = vld [vmem:[#allocation9 + $0x4] sm:$0xf]
    %v10846 = vld [vmem:[#allocation9 + $0x8] sm:$0xf]
    %v10847 = vld [vmem:[#allocation9 + $0xc] sm:$0xf]
    %v10848 = vld [vmem:[#allocation9 + $0x10] sm:$0xf]
    %v10849 = vld [vmem:[#allocation9 + $0x14] sm:$0xf]
    %v10850 = vld [vmem:[#allocation9 + $0x18] sm:$0xf]
    %v10851 = vld [vmem:[#allocation9 + $0x1c] sm:$0xf]
    %v10852 = vld [vmem:[#allocation9 + $0x20] sm:$0xf]
    %v10853 = vld [vmem:[#allocation9 + $0x24] sm:$0xf]
    %v10854 = vld [vmem:[#allocation9 + $0x28] sm:$0xf]
    %v10855 = vld [vmem:[#allocation9 + $0x2c] sm:$0xf]
    %v10856 = vld [vmem:[#allocation9 + $0x30] sm:$0xf]
    %v10857 = vld [vmem:[#allocation9 + $0x34] sm:$0xf]
    %v10858 = vld [vmem:[#allocation9 + $0x38] sm:$0xf]
    %v10859 = vld [vmem:[#allocation9 + $0x3c] sm:$0xf]
    %v10860 = vld [vmem:[#allocation9 + $0x40] sm:$0xf]
    %v10861 = vld [vmem:[#allocation9 + $0x44] sm:$0xf]
    %v10862 = vld [vmem:[#allocation9 + $0x48] sm:$0xf]
    %v10863 = vld [vmem:[#allocation9 + $0x4c] sm:$0xf]
    %v10864 = vld [vmem:[#allocation9 + $0x50] sm:$0xf]
    %v10865 = vld [vmem:[#allocation9 + $0x54] sm:$0xf]
    %v10866 = vld [vmem:[#allocation9 + $0x58] sm:$0xf]
    %v10867 = vld [vmem:[#allocation9 + $0x5c] sm:$0xf]
    %v10868 = vld [vmem:[#allocation9 + $0x60] sm:$0xf]
    %v10869 = vld [vmem:[#allocation9 + $0x64] sm:$0xf]
    %v10870 = vld [vmem:[#allocation9 + $0x68] sm:$0xf]
    %v10871 = vld [vmem:[#allocation9 + $0x6c] sm:$0xf]
    %v10872 = vld [vmem:[#allocation9 + $0x70] sm:$0xf]
    %v10873 = vld [vmem:[#allocation9 + $0x74] sm:$0xf]
    %v10874 = vld [vmem:[#allocation9 + $0x78] sm:$0xf]
    %v10875 = vld [vmem:[#allocation9 + $0x7c] sm:$0xf]
    %v10876 = vld [vmem:[#allocation9 + $0x80] sm:$0xf]
    %v10877 = vld [vmem:[#allocation9 + $0x84] sm:$0xf]
    %v10878 = vld [vmem:[#allocation9 + $0x88] sm:$0xf]
    %v10879 = vld [vmem:[#allocation9 + $0x8c] sm:$0xf]
    %v10880 = vld [vmem:[#allocation9 + $0x90] sm:$0xf]
    %v10881 = vld [vmem:[#allocation9 + $0x94] sm:$0xf]
    %v10882 = vld [vmem:[#allocation9 + $0x98] sm:$0xf]
    %v10883 = vld [vmem:[#allocation9 + $0x9c] sm:$0xf]
    %v10884 = vld [vmem:[#allocation9 + $0xa0] sm:$0xf]
    %v10885 = vld [vmem:[#allocation9 + $0xa4] sm:$0xf]
    %v10886 = vld [vmem:[#allocation9 + $0xa8] sm:$0xf]
    %v10887 = vld [vmem:[#allocation9 + $0xac] sm:$0xf]
    %v10888 = vld [vmem:[#allocation9 + $0xb0] sm:$0xf]
    %v10889 = vld [vmem:[#allocation9 + $0xb4] sm:$0xf]
    %v10890 = vld [vmem:[#allocation9 + $0xb8] sm:$0xf]
    %v10891 = vld [vmem:[#allocation9 + $0xbc] sm:$0xf]
    %v10892 = vld [vmem:[#allocation9 + $0xc0] sm:$0xf]
    %v10893 = vld [vmem:[#allocation9 + $0xc4] sm:$0xf]
    %v10894 = vld [vmem:[#allocation9 + $0xc8] sm:$0xf]
    %v10895 = vld [vmem:[#allocation9 + $0xcc] sm:$0xf]
    %v10896 = vld [vmem:[#allocation9 + $0xd0] sm:$0xf]
    %v10897 = vld [vmem:[#allocation9 + $0xd4] sm:$0xf]
    %v10898 = vld [vmem:[#allocation9 + $0xd8] sm:$0xf]
    %v10899 = vld [vmem:[#allocation9 + $0xdc] sm:$0xf]
    %v10900 = vld [vmem:[#allocation9 + $0xe0] sm:$0xf]
    %v10901 = vld [vmem:[#allocation9 + $0xe4] sm:$0xf]
    %v10902 = vld [vmem:[#allocation9 + $0xe8] sm:$0xf]
    %v10903 = vld [vmem:[#allocation9 + $0xec] sm:$0xf]
    %v10904 = vld [vmem:[#allocation9 + $0xf0] sm:$0xf]
    %v10905 = vld [vmem:[#allocation9 + $0xf4] sm:$0xf]
    %v10906 = vld [vmem:[#allocation9 + $0xf8] sm:$0xf]
    %v10907 = vld [vmem:[#allocation9 + $0xfc] sm:$0xf]
    %v10908 = vld [vmem:[#allocation9 + $0x100] sm:$0xf]
    %v10909 = vld [vmem:[#allocation9 + $0x104] sm:$0xf]
    %v10910 = vld [vmem:[#allocation9 + $0x108] sm:$0xf]
    %v10911 = vld [vmem:[#allocation9 + $0x10c] sm:$0xf]
    %v10912 = vld [vmem:[#allocation9 + $0x110] sm:$0xf]
    %v10913 = vld [vmem:[#allocation9 + $0x114] sm:$0xf]
    %v10914 = vld [vmem:[#allocation9 + $0x118] sm:$0xf]
    %v10915 = vld [vmem:[#allocation9 + $0x11c] sm:$0xf]
    %v10916 = vld [vmem:[#allocation9 + $0x120] sm:$0xf]
    %v10917 = vld [vmem:[#allocation9 + $0x124] sm:$0xf]
    %v10918 = vld [vmem:[#allocation9 + $0x128] sm:$0xf]
    %v10919 = vld [vmem:[#allocation9 + $0x12c] sm:$0xf]
    %v10920 = vld [vmem:[#allocation9 + $0x130] sm:$0xf]
    %v10921 = vld [vmem:[#allocation9 + $0x134] sm:$0xf]
    %v10922 = vld [vmem:[#allocation9 + $0x138] sm:$0xf]
    %v10923 = vld [vmem:[#allocation9 + $0x13c] sm:$0xf]
    %v10924 = vld [vmem:[#allocation9 + $0x140] sm:$0xf]
    %v10925 = vld [vmem:[#allocation9 + $0x144] sm:$0xf]
    %v10926 = vld [vmem:[#allocation9 + $0x148] sm:$0xf]
    %v10927 = vld [vmem:[#allocation9 + $0x14c] sm:$0xf]
    %v10928 = vld [vmem:[#allocation9 + $0x150] sm:$0xf]
    %v10929 = vld [vmem:[#allocation9 + $0x154] sm:$0xf]
    %v10930 = vld [vmem:[#allocation9 + $0x158] sm:$0xf]
    %v10931 = vld [vmem:[#allocation9 + $0x15c] sm:$0xf]
    %v10932 = vld [vmem:[#allocation9 + $0x160] sm:$0xf]
    %v10933 = vld [vmem:[#allocation9 + $0x164] sm:$0xf]
    %v10934 = vld [vmem:[#allocation9 + $0x168] sm:$0xf]
    %v10935 = vld [vmem:[#allocation9 + $0x16c] sm:$0xf]
    %v10936 = vld [vmem:[#allocation9 + $0x170] sm:$0xf]
    %v10937 = vld [vmem:[#allocation9 + $0x174] sm:$0xf]
    %v10938 = vld [vmem:[#allocation9 + $0x178] sm:$0xf]
    %v10939 = vld [vmem:[#allocation9 + $0x17c] sm:$0xf]
    %v10940 = vld [vmem:[#allocation9 + $0x180] sm:$0xf]
    %v10941 = vld [vmem:[#allocation9 + $0x184] sm:$0xf]
    %v10942 = vld [vmem:[#allocation9 + $0x188] sm:$0xf]
    %v10943 = vld [vmem:[#allocation9 + $0x18c] sm:$0xf]
    %v10944 = vld [vmem:[#allocation9 + $0x190] sm:$0xf]
    %v10945 = vld [vmem:[#allocation9 + $0x194] sm:$0xf]
    %v10946 = vld [vmem:[#allocation9 + $0x198] sm:$0xf]
    %v10947 = vld [vmem:[#allocation9 + $0x19c] sm:$0xf]
    %v10948 = vld [vmem:[#allocation9 + $0x1a0] sm:$0xf]
    %v10949 = vld [vmem:[#allocation9 + $0x1a4] sm:$0xf]
    %v10950 = vld [vmem:[#allocation9 + $0x1a8] sm:$0xf]
    %v10951 = vld [vmem:[#allocation9 + $0x1ac] sm:$0xf]
    %v10952 = vld [vmem:[#allocation9 + $0x1b0] sm:$0xf]
    %v10953 = vld [vmem:[#allocation9 + $0x1b4] sm:$0xf]
    %v10954 = vld [vmem:[#allocation9 + $0x1b8] sm:$0xf]
    %v10955 = vld [vmem:[#allocation9 + $0x1bc] sm:$0xf]
    %v10956 = vld [vmem:[#allocation9 + $0x1c0] sm:$0xf]
    %v10957 = vld [vmem:[#allocation9 + $0x1c4] sm:$0xf]
    %v10958 = vld [vmem:[#allocation9 + $0x1c8] sm:$0xf]
    %v10959 = vld [vmem:[#allocation9 + $0x1cc] sm:$0xf]
    %v10960 = vld [vmem:[#allocation9 + $0x1d0] sm:$0xf]
    %v10961 = vld [vmem:[#allocation9 + $0x1d4] sm:$0xf]
    %v10962 = vld [vmem:[#allocation9 + $0x1d8] sm:$0xf]
    %v10963 = vld [vmem:[#allocation9 + $0x1dc] sm:$0xf]
    %v10964 = vld [vmem:[#allocation9 + $0x1e0] sm:$0xf]
    %v10965 = vld [vmem:[#allocation9 + $0x1e4] sm:$0xf]
    %v10966 = vld [vmem:[#allocation9 + $0x1e8] sm:$0xf]
    %v10967 = vld [vmem:[#allocation9 + $0x1ec] sm:$0xf]
    %v10968 = vld [vmem:[#allocation9 + $0x1f0] sm:$0xf]
    %v10969 = vld [vmem:[#allocation9 + $0x1f4] sm:$0xf]
    %v10970 = vld [vmem:[#allocation9 + $0x1f8] sm:$0xf]
    %v10971 = vld [vmem:[#allocation9 + $0x1fc] sm:$0xf]
    %v10972 = vld [vmem:[#allocation9 + $0x200] sm:$0xf]
    %v10973 = vld [vmem:[#allocation9 + $0x204] sm:$0xf]
    %v10974 = vld [vmem:[#allocation9 + $0x208] sm:$0xf]
    %v10975 = vld [vmem:[#allocation9 + $0x20c] sm:$0xf]
    %v10976 = vld [vmem:[#allocation9 + $0x210] sm:$0xf]
    %v10977 = vld [vmem:[#allocation9 + $0x214] sm:$0xf]
    %v10978 = vld [vmem:[#allocation9 + $0x218] sm:$0xf]
    %v10979 = vld [vmem:[#allocation9 + $0x21c] sm:$0xf]
    %v10980 = vld [vmem:[#allocation9 + $0x220] sm:$0xf]
    %v10981 = vld [vmem:[#allocation9 + $0x224] sm:$0xf]
    %v10982 = vld [vmem:[#allocation9 + $0x228] sm:$0xf]
    %v10983 = vld [vmem:[#allocation9 + $0x22c] sm:$0xf]
    %v10984 = vld [vmem:[#allocation9 + $0x230] sm:$0xf]
    %v10985 = vld [vmem:[#allocation9 + $0x234] sm:$0xf]
    %v10986 = vld [vmem:[#allocation9 + $0x238] sm:$0xf]
    %v10987 = vld [vmem:[#allocation9 + $0x23c] sm:$0xf]
    %v10988 = vld [vmem:[#allocation9 + $0x240] sm:$0xf]
    %v10989 = vld [vmem:[#allocation9 + $0x244] sm:$0xf]
    %v10990 = vld [vmem:[#allocation9 + $0x248] sm:$0xf]
    %v10991 = vld [vmem:[#allocation9 + $0x24c] sm:$0xf]
    %v10992 = vld [vmem:[#allocation9 + $0x250] sm:$0xf]
    %v10993 = vld [vmem:[#allocation9 + $0x254] sm:$0xf]
    %v10994 = vld [vmem:[#allocation9 + $0x258] sm:$0xf]
    %v10995 = vld [vmem:[#allocation9 + $0x25c] sm:$0xf]
    %v10996 = vld [vmem:[#allocation9 + $0x260] sm:$0xf]
    %v10997 = vld [vmem:[#allocation9 + $0x264] sm:$0xf]
    %v10998 = vld [vmem:[#allocation9 + $0x268] sm:$0xf]
    %v10999 = vld [vmem:[#allocation9 + $0x26c] sm:$0xf]
    %v11000 = vld [vmem:[#allocation9 + $0x270] sm:$0xf]
    %v11001 = vld [vmem:[#allocation9 + $0x274] sm:$0xf]
    %v11002 = vld [vmem:[#allocation9 + $0x278] sm:$0xf]
    %v11003 = vld [vmem:[#allocation9 + $0x27c] sm:$0xf]
    %v11004 = vld [vmem:[#allocation9 + $0x280] sm:$0xf]
    %v11005 = vld [vmem:[#allocation9 + $0x284] sm:$0xf]
    %v11006 = vld [vmem:[#allocation9 + $0x288] sm:$0xf]
    %v11007 = vld [vmem:[#allocation9 + $0x28c] sm:$0xf]
    %v11008 = vld [vmem:[#allocation9 + $0x290] sm:$0xf]
    %v11009 = vld [vmem:[#allocation9 + $0x294] sm:$0xf]
    %v11010 = vld [vmem:[#allocation9 + $0x298] sm:$0xf]
    %v11011 = vld [vmem:[#allocation9 + $0x29c] sm:$0xf]
    %v11012 = vld [vmem:[#allocation9 + $0x2a0] sm:$0xf]
    %v11013 = vld [vmem:[#allocation9 + $0x2a4] sm:$0xf]
    %v11014 = vld [vmem:[#allocation9 + $0x2a8] sm:$0xf]
    %v11015 = vld [vmem:[#allocation9 + $0x2ac] sm:$0xf]
    %v11016 = vld [vmem:[#allocation9 + $0x2b0] sm:$0xf]
    %v11017 = vld [vmem:[#allocation9 + $0x2b4] sm:$0xf]
    %v11018 = vld [vmem:[#allocation9 + $0x2b8] sm:$0xf]
    %v11019 = vld [vmem:[#allocation9 + $0x2bc] sm:$0xf]
    %v11020 = vld [vmem:[#allocation9 + $0x2c0] sm:$0xf]
    %v11021 = vld [vmem:[#allocation9 + $0x2c4] sm:$0xf]
    %v11022 = vld [vmem:[#allocation9 + $0x2c8] sm:$0xf]
    %v11023 = vld [vmem:[#allocation9 + $0x2cc] sm:$0xf]
    %v11024 = vld [vmem:[#allocation9 + $0x2d0] sm:$0xf]
    %v11025 = vld [vmem:[#allocation9 + $0x2d4] sm:$0xf]
    %v11026 = vld [vmem:[#allocation9 + $0x2d8] sm:$0xf]
    %v11027 = vld [vmem:[#allocation9 + $0x2dc] sm:$0xf]
    %v11028 = vld [vmem:[#allocation9 + $0x2e0] sm:$0xf]
    %v11029 = vld [vmem:[#allocation9 + $0x2e4] sm:$0xf]
    %v11030 = vld [vmem:[#allocation9 + $0x2e8] sm:$0xf]
    %v11031 = vld [vmem:[#allocation9 + $0x2ec] sm:$0xf]
    %v11032 = vld [vmem:[#allocation9 + $0x2f0] sm:$0xf]
    %v11033 = vld [vmem:[#allocation9 + $0x2f4] sm:$0xf]
    %v11034 = vld [vmem:[#allocation9 + $0x2f8] sm:$0xf]
    %v11035 = vld [vmem:[#allocation9 + $0x2fc] sm:$0xf]
    %v11036 = vld [vmem:[#allocation9 + $0x300] sm:$0xf]
    %v11037 = vld [vmem:[#allocation9 + $0x304] sm:$0xf]
    %v11038 = vld [vmem:[#allocation9 + $0x308] sm:$0xf]
    %v11039 = vld [vmem:[#allocation9 + $0x30c] sm:$0xf]
    %v11040 = vld [vmem:[#allocation9 + $0x310] sm:$0xf]
    %v11041 = vld [vmem:[#allocation9 + $0x314] sm:$0xf]
    %v11042 = vld [vmem:[#allocation9 + $0x318] sm:$0xf]
    %v11043 = vld [vmem:[#allocation9 + $0x31c] sm:$0xf]
    %v11044 = vld [vmem:[#allocation9 + $0x320] sm:$0xf]
    %v11045 = vld [vmem:[#allocation9 + $0x324] sm:$0xf]
    %v11046 = vld [vmem:[#allocation9 + $0x328] sm:$0xf]
    %v11047 = vld [vmem:[#allocation9 + $0x32c] sm:$0xf]
    %v11048 = vld [vmem:[#allocation9 + $0x330] sm:$0xf]
    %v11049 = vld [vmem:[#allocation9 + $0x334] sm:$0xf]
    %v11050 = vld [vmem:[#allocation9 + $0x338] sm:$0xf]
    %v11051 = vld [vmem:[#allocation9 + $0x33c] sm:$0xf]
    %v11052 = vld [vmem:[#allocation9 + $0x340] sm:$0xf]
    %v11053 = vld [vmem:[#allocation9 + $0x344] sm:$0xf]
    %v11054 = vld [vmem:[#allocation9 + $0x348] sm:$0xf]
    %v11055 = vld [vmem:[#allocation9 + $0x34c] sm:$0xf]
    %v11056 = vld [vmem:[#allocation9 + $0x350] sm:$0xf]
    %v11057 = vld [vmem:[#allocation9 + $0x354] sm:$0xf]
    %v11058 = vld [vmem:[#allocation9 + $0x358] sm:$0xf]
    %v11059 = vld [vmem:[#allocation9 + $0x35c] sm:$0xf]
    %v11060 = vld [vmem:[#allocation9 + $0x360] sm:$0xf]
    %v11061 = vld [vmem:[#allocation9 + $0x364] sm:$0xf]
    %v11062 = vld [vmem:[#allocation9 + $0x368] sm:$0xf]
    %v11063 = vld [vmem:[#allocation9 + $0x36c] sm:$0xf]
    %v11064 = vld [vmem:[#allocation9 + $0x370] sm:$0xf]
    %v11065 = vld [vmem:[#allocation9 + $0x374] sm:$0xf]
    %v11066 = vld [vmem:[#allocation9 + $0x378] sm:$0xf]
    %v11067 = vld [vmem:[#allocation9 + $0x37c] sm:$0xf]
    %v11068 = vld [vmem:[#allocation9 + $0x380] sm:$0xf]
    %v11069 = vld [vmem:[#allocation9 + $0x384] sm:$0xf]
    %v11070 = vld [vmem:[#allocation9 + $0x388] sm:$0xf]
    %v11071 = vld [vmem:[#allocation9 + $0x38c] sm:$0xf]
    %v11072 = vld [vmem:[#allocation9 + $0x390] sm:$0xf]
    %v11073 = vld [vmem:[#allocation9 + $0x394] sm:$0xf]
    %v11074 = vld [vmem:[#allocation9 + $0x398] sm:$0xf]
    %v11075 = vld [vmem:[#allocation9 + $0x39c] sm:$0xf]
    %v11076 = vld [vmem:[#allocation9 + $0x3a0] sm:$0xf]
    %v11077 = vld [vmem:[#allocation9 + $0x3a4] sm:$0xf]
    %v11078 = vld [vmem:[#allocation9 + $0x3a8] sm:$0xf]
    %v11079 = vld [vmem:[#allocation9 + $0x3ac] sm:$0xf]
    %v11080 = vld [vmem:[#allocation9 + $0x3b0] sm:$0xf]
    %v11081 = vld [vmem:[#allocation9 + $0x3b4] sm:$0xf]
    %v11082 = vld [vmem:[#allocation9 + $0x3b8] sm:$0xf]
    %v11083 = vld [vmem:[#allocation9 + $0x3bc] sm:$0xf]
    %v11084 = vld [vmem:[#allocation9 + $0x3c0] sm:$0xf]
    %v11085 = vld [vmem:[#allocation9 + $0x3c4] sm:$0xf]
    %v11086 = vld [vmem:[#allocation9 + $0x3c8] sm:$0xf]
    %v11087 = vld [vmem:[#allocation9 + $0x3cc] sm:$0xf]
    %v11088 = vld [vmem:[#allocation9 + $0x3d0] sm:$0xf]
    %v11089 = vld [vmem:[#allocation9 + $0x3d4] sm:$0xf]
    %v11090 = vld [vmem:[#allocation9 + $0x3d8] sm:$0xf]
    %v11091 = vld [vmem:[#allocation9 + $0x3dc] sm:$0xf]
    %v11092 = vld [vmem:[#allocation9 + $0x3e0] sm:$0xf]
    %v11093 = vld [vmem:[#allocation9 + $0x3e4] sm:$0xf]
    %v11094 = vld [vmem:[#allocation9 + $0x3e8] sm:$0xf]
    %v11095 = vld [vmem:[#allocation9 + $0x3ec] sm:$0xf]
    %v11096 = vld [vmem:[#allocation9 + $0x3f0] sm:$0xf]
    %v11097 = vld [vmem:[#allocation9 + $0x3f4] sm:$0xf]
    %v11098 = vld [vmem:[#allocation9 + $0x3f8] sm:$0xf]
    %v11099 = vld [vmem:[#allocation9 + $0x3fc] sm:$0xf]
    %v11100 = vld [vmem:[#allocation9 + $0x400] sm:$0xf]
    %v11101 = vld [vmem:[#allocation9 + $0x404] sm:$0xf]
    %v11102 = vld [vmem:[#allocation9 + $0x408] sm:$0xf]
    %v11103 = vld [vmem:[#allocation9 + $0x40c] sm:$0xf]
    %v11104 = vld [vmem:[#allocation9 + $0x410] sm:$0xf]
    %v11105 = vld [vmem:[#allocation9 + $0x414] sm:$0xf]
    %v11106 = vld [vmem:[#allocation9 + $0x418] sm:$0xf]
    %v11107 = vld [vmem:[#allocation9 + $0x41c] sm:$0xf]
    %v11108 = vld [vmem:[#allocation9 + $0x420] sm:$0xf]
    %v11109 = vld [vmem:[#allocation9 + $0x424] sm:$0xf]
    %v11110 = vld [vmem:[#allocation9 + $0x428] sm:$0xf]
    %v11111 = vld [vmem:[#allocation9 + $0x42c] sm:$0xf]
    %v11112 = vld [vmem:[#allocation9 + $0x430] sm:$0xf]
    %v11113 = vld [vmem:[#allocation9 + $0x434] sm:$0xf]
    %v11114 = vld [vmem:[#allocation9 + $0x438] sm:$0xf]
    %v11115 = vld [vmem:[#allocation9 + $0x43c] sm:$0xf]
    %v11116 = vld [vmem:[#allocation9 + $0x440] sm:$0xf]
    %v11117 = vld [vmem:[#allocation9 + $0x444] sm:$0xf]
    %v11118 = vld [vmem:[#allocation9 + $0x448] sm:$0xf]
    %v11119 = vld [vmem:[#allocation9 + $0x44c] sm:$0xf]
    %v11120 = vld [vmem:[#allocation9 + $0x450] sm:$0xf]
    %v11121 = vld [vmem:[#allocation9 + $0x454] sm:$0xf]
    %v11122 = vld [vmem:[#allocation9 + $0x458] sm:$0xf]
    %v11123 = vld [vmem:[#allocation9 + $0x45c] sm:$0xf]
    %v11124 = vld [vmem:[#allocation9 + $0x460] sm:$0xf]
    %v11125 = vld [vmem:[#allocation9 + $0x464] sm:$0xf]
    %v11126 = vld [vmem:[#allocation9 + $0x468] sm:$0xf]
    %v11127 = vld [vmem:[#allocation9 + $0x46c] sm:$0xf]
    %v11128 = vld [vmem:[#allocation9 + $0x470] sm:$0xf]
    %v11129 = vld [vmem:[#allocation9 + $0x474] sm:$0xf]
    %v11130 = vld [vmem:[#allocation9 + $0x478] sm:$0xf]
    %v11131 = vld [vmem:[#allocation9 + $0x47c] sm:$0xf]
    %v11132 = vld [vmem:[#allocation9 + $0x480] sm:$0xf]
    %v11133 = vld [vmem:[#allocation9 + $0x484] sm:$0xf]
    %v11134 = vld [vmem:[#allocation9 + $0x488] sm:$0xf]
    %v11135 = vld [vmem:[#allocation9 + $0x48c] sm:$0xf]
    %v11136 = vld [vmem:[#allocation9 + $0x490] sm:$0xf]
    %v11137 = vld [vmem:[#allocation9 + $0x494] sm:$0xf]
    %v11138 = vld [vmem:[#allocation9 + $0x498] sm:$0xf]
    %v11139 = vld [vmem:[#allocation9 + $0x49c] sm:$0xf]
    %v11140 = vld [vmem:[#allocation9 + $0x4a0] sm:$0xf]
    %v11141 = vld [vmem:[#allocation9 + $0x4a4] sm:$0xf]
    %v11142 = vld [vmem:[#allocation9 + $0x4a8] sm:$0xf]
    %v11143 = vld [vmem:[#allocation9 + $0x4ac] sm:$0xf]
    %v11144 = vld [vmem:[#allocation9 + $0x4b0] sm:$0xf]
    %v11145 = vld [vmem:[#allocation9 + $0x4b4] sm:$0xf]
    %v11146 = vld [vmem:[#allocation9 + $0x4b8] sm:$0xf]
    %v11147 = vld [vmem:[#allocation9 + $0x4bc] sm:$0xf]
    %v11148 = vld [vmem:[#allocation9 + $0x4c0] sm:$0xf]
    %v11149 = vld [vmem:[#allocation9 + $0x4c4] sm:$0xf]
    %v11150 = vld [vmem:[#allocation9 + $0x4c8] sm:$0xf]
    %v11151 = vld [vmem:[#allocation9 + $0x4cc] sm:$0xf]
    %v11152 = vld [vmem:[#allocation9 + $0x4d0] sm:$0xf]
    %v11153 = vld [vmem:[#allocation9 + $0x4d4] sm:$0xf]
    %v11154 = vld [vmem:[#allocation9 + $0x4d8] sm:$0xf]
    %v11155 = vld [vmem:[#allocation9 + $0x4dc] sm:$0xf]
    %v11156 = vld [vmem:[#allocation9 + $0x4e0] sm:$0xf]
    %v11157 = vld [vmem:[#allocation9 + $0x4e4] sm:$0xf]
    %v11158 = vld [vmem:[#allocation9 + $0x4e8] sm:$0xf]
    %v11159 = vld [vmem:[#allocation9 + $0x4ec] sm:$0xf]
    %v11160 = vld [vmem:[#allocation9 + $0x4f0] sm:$0xf]
    %v11161 = vld [vmem:[#allocation9 + $0x4f4] sm:$0xf]
    %v11162 = vld [vmem:[#allocation9 + $0x4f8] sm:$0xf]
    %v11163 = vld [vmem:[#allocation9 + $0x4fc] sm:$0xf]
    %v11164 = vld [vmem:[#allocation9 + $0x500] sm:$0xf]
    %v11165 = vld [vmem:[#allocation9 + $0x504] sm:$0xf]
    %v11166 = vld [vmem:[#allocation9 + $0x508] sm:$0xf]
    %v11167 = vld [vmem:[#allocation9 + $0x50c] sm:$0xf]
    %v11168 = vld [vmem:[#allocation9 + $0x510] sm:$0xf]
    %v11169 = vld [vmem:[#allocation9 + $0x514] sm:$0xf]
    %v11170 = vld [vmem:[#allocation9 + $0x518] sm:$0xf]
    %v11171 = vld [vmem:[#allocation9 + $0x51c] sm:$0xf]
    %v11172 = vld [vmem:[#allocation9 + $0x520] sm:$0xf]
    %v11173 = vld [vmem:[#allocation9 + $0x524] sm:$0xf]
    %v11174 = vld [vmem:[#allocation9 + $0x528] sm:$0xf]
    %v11175 = vld [vmem:[#allocation9 + $0x52c] sm:$0xf]
    %v11176 = vld [vmem:[#allocation9 + $0x530] sm:$0xf]
    %v11177 = vld [vmem:[#allocation9 + $0x534] sm:$0xf]
    %v11178 = vld [vmem:[#allocation9 + $0x538] sm:$0xf]
    %v11179 = vld [vmem:[#allocation9 + $0x53c] sm:$0xf]
    %v11180 = vld [vmem:[#allocation9 + $0x540] sm:$0xf]
    %v11181 = vld [vmem:[#allocation9 + $0x544] sm:$0xf]
    %v11182 = vld [vmem:[#allocation9 + $0x548] sm:$0xf]
    %v11183 = vld [vmem:[#allocation9 + $0x54c] sm:$0xf]
    %v11184 = vld [vmem:[#allocation9 + $0x550] sm:$0xf]
    %v11185 = vld [vmem:[#allocation9 + $0x554] sm:$0xf]
    %v11186 = vld [vmem:[#allocation9 + $0x558] sm:$0xf]
    %v11187 = vld [vmem:[#allocation9 + $0x55c] sm:$0xf]
    %v11188 = vld [vmem:[#allocation9 + $0x560] sm:$0xf]
    %v11189 = vld [vmem:[#allocation9 + $0x564] sm:$0xf]
    %v11190 = vld [vmem:[#allocation9 + $0x568] sm:$0xf]
    %v11191 = vld [vmem:[#allocation9 + $0x56c] sm:$0xf]
    %v11192 = vld [vmem:[#allocation9 + $0x570] sm:$0xf]
    %v11193 = vld [vmem:[#allocation9 + $0x574] sm:$0xf]
    %v11194 = vld [vmem:[#allocation9 + $0x578] sm:$0xf]
    %v11195 = vld [vmem:[#allocation9 + $0x57c] sm:$0xf]
    %v11196 = vld [vmem:[#allocation9 + $0x580] sm:$0xf]
    %v11197 = vld [vmem:[#allocation9 + $0x584] sm:$0xf]
    %v11198 = vld [vmem:[#allocation9 + $0x588] sm:$0xf]
    %v11199 = vld [vmem:[#allocation9 + $0x58c] sm:$0xf]
    %v11200 = vld [vmem:[#allocation9 + $0x590] sm:$0xf]
    %v11201 = vld [vmem:[#allocation9 + $0x594] sm:$0xf]
    %v11202 = vld [vmem:[#allocation9 + $0x598] sm:$0xf]
    %v11203 = vld [vmem:[#allocation9 + $0x59c] sm:$0xf]
    %v11204 = vld [vmem:[#allocation9 + $0x5a0] sm:$0xf]
    %v11205 = vld [vmem:[#allocation9 + $0x5a4] sm:$0xf]
    %v11206 = vld [vmem:[#allocation9 + $0x5a8] sm:$0xf]
    %v11207 = vld [vmem:[#allocation9 + $0x5ac] sm:$0xf]
    %v11208 = vld [vmem:[#allocation9 + $0x5b0] sm:$0xf]
    %v11209 = vld [vmem:[#allocation9 + $0x5b4] sm:$0xf]
    %v11210 = vld [vmem:[#allocation9 + $0x5b8] sm:$0xf]
    %v11211 = vld [vmem:[#allocation9 + $0x5bc] sm:$0xf]
    %v11212 = vld [vmem:[#allocation9 + $0x5c0] sm:$0xf]
    %v11213 = vld [vmem:[#allocation9 + $0x5c4] sm:$0xf]
    %v11214 = vld [vmem:[#allocation9 + $0x5c8] sm:$0xf]
    %v11215 = vld [vmem:[#allocation9 + $0x5cc] sm:$0xf]
    %v11216 = vld [vmem:[#allocation9 + $0x5d0] sm:$0xf]
    %v11217 = vld [vmem:[#allocation9 + $0x5d4] sm:$0xf]
    %v11218 = vld [vmem:[#allocation9 + $0x5d8] sm:$0xf]
    %v11219 = vld [vmem:[#allocation9 + $0x5dc] sm:$0xf]
    %v11220 = vld [vmem:[#allocation9 + $0x5e0] sm:$0xf]
    %v11221 = vld [vmem:[#allocation9 + $0x5e4] sm:$0xf]
    %v11222 = vld [vmem:[#allocation9 + $0x5e8] sm:$0xf]
    %v11223 = vld [vmem:[#allocation9 + $0x5ec] sm:$0xf]
    %v11224 = vld [vmem:[#allocation9 + $0x5f0] sm:$0xf]
    %v11225 = vld [vmem:[#allocation9 + $0x5f4] sm:$0xf]
    %v11226 = vld [vmem:[#allocation9 + $0x5f8] sm:$0xf]
    %v11227 = vld [vmem:[#allocation9 + $0x5fc] sm:$0xf]
    %v11228 = vld [vmem:[#allocation9 + $0x600] sm:$0xf]
    %v11229 = vld [vmem:[#allocation9 + $0x604] sm:$0xf]
    %v11230 = vld [vmem:[#allocation9 + $0x608] sm:$0xf]
    %v11231 = vld [vmem:[#allocation9 + $0x60c] sm:$0xf]
    %v11232 = vld [vmem:[#allocation9 + $0x610] sm:$0xf]
    %v11233 = vld [vmem:[#allocation9 + $0x614] sm:$0xf]
    %v11234 = vld [vmem:[#allocation9 + $0x618] sm:$0xf]
    %v11235 = vld [vmem:[#allocation9 + $0x61c] sm:$0xf]
    %v11236 = vld [vmem:[#allocation9 + $0x620] sm:$0xf]
    %v11237 = vld [vmem:[#allocation9 + $0x624] sm:$0xf]
    %v11238 = vld [vmem:[#allocation9 + $0x628] sm:$0xf]
    %v11239 = vld [vmem:[#allocation9 + $0x62c] sm:$0xf]
    %v11240 = vld [vmem:[#allocation9 + $0x630] sm:$0xf]
    %v11241 = vld [vmem:[#allocation9 + $0x634] sm:$0xf]
    %v11242 = vld [vmem:[#allocation9 + $0x638] sm:$0xf]
    %v11243 = vld [vmem:[#allocation9 + $0x63c] sm:$0xf]
    %v11244 = vld [vmem:[#allocation9 + $0x640] sm:$0xf]
    %v11245 = vld [vmem:[#allocation9 + $0x644] sm:$0xf]
    %v11246 = vld [vmem:[#allocation9 + $0x648] sm:$0xf]
    %v11247 = vld [vmem:[#allocation9 + $0x64c] sm:$0xf]
    %v11248 = vld [vmem:[#allocation9 + $0x650] sm:$0xf]
    %v11249 = vld [vmem:[#allocation9 + $0x654] sm:$0xf]
    %v11250 = vld [vmem:[#allocation9 + $0x658] sm:$0xf]
    %v11251 = vld [vmem:[#allocation9 + $0x65c] sm:$0xf]
    %v11252 = vld [vmem:[#allocation9 + $0x660] sm:$0xf]
    %v11253 = vld [vmem:[#allocation9 + $0x664] sm:$0xf]
    %v11254 = vld [vmem:[#allocation9 + $0x668] sm:$0xf]
    %v11255 = vld [vmem:[#allocation9 + $0x66c] sm:$0xf]
    %v11256 = vld [vmem:[#allocation9 + $0x670] sm:$0xf]
    %v11257 = vld [vmem:[#allocation9 + $0x674] sm:$0xf]
    %v11258 = vld [vmem:[#allocation9 + $0x678] sm:$0xf]
    %v11259 = vld [vmem:[#allocation9 + $0x67c] sm:$0xf]
    %v11260 = vld [vmem:[#allocation9 + $0x680] sm:$0xf]
    %v11261 = vld [vmem:[#allocation9 + $0x684] sm:$0xf]
    %v11262 = vld [vmem:[#allocation9 + $0x688] sm:$0xf]
    %v11263 = vld [vmem:[#allocation9 + $0x68c] sm:$0xf]
    %v11264 = vld [vmem:[#allocation9 + $0x690] sm:$0xf]
    %v11265 = vld [vmem:[#allocation9 + $0x694] sm:$0xf]
    %v11266 = vld [vmem:[#allocation9 + $0x698] sm:$0xf]
    %v11267 = vld [vmem:[#allocation9 + $0x69c] sm:$0xf]
    %v11268 = vld [vmem:[#allocation9 + $0x6a0] sm:$0xf]
    %v11269 = vld [vmem:[#allocation9 + $0x6a4] sm:$0xf]
    %v11270 = vld [vmem:[#allocation9 + $0x6a8] sm:$0xf]
    %v11271 = vld [vmem:[#allocation9 + $0x6ac] sm:$0xf]
    %v11272 = vld [vmem:[#allocation9 + $0x6b0] sm:$0xf]
    %v11273 = vld [vmem:[#allocation9 + $0x6b4] sm:$0xf]
    %v11274 = vld [vmem:[#allocation9 + $0x6b8] sm:$0xf]
    %v11275 = vld [vmem:[#allocation9 + $0x6bc] sm:$0xf]
    %v11276 = vld [vmem:[#allocation9 + $0x6c0] sm:$0xf]
    %v11277 = vld [vmem:[#allocation9 + $0x6c4] sm:$0xf]
    %v11278 = vld [vmem:[#allocation9 + $0x6c8] sm:$0xf]
    %v11279 = vld [vmem:[#allocation9 + $0x6cc] sm:$0xf]
    %v11280 = vld [vmem:[#allocation9 + $0x6d0] sm:$0xf]
    %v11281 = vld [vmem:[#allocation9 + $0x6d4] sm:$0xf]
    %v11282 = vld [vmem:[#allocation9 + $0x6d8] sm:$0xf]
    %v11283 = vld [vmem:[#allocation9 + $0x6dc] sm:$0xf]
    %v11284 = vld [vmem:[#allocation9 + $0x6e0] sm:$0xf]
    %v11285 = vld [vmem:[#allocation9 + $0x6e4] sm:$0xf]
    %v11286 = vld [vmem:[#allocation9 + $0x6e8] sm:$0xf]
    %v11287 = vld [vmem:[#allocation9 + $0x6ec] sm:$0xf]
    %v11288 = vld [vmem:[#allocation9 + $0x6f0] sm:$0xf]
    %v11289 = vld [vmem:[#allocation9 + $0x6f4] sm:$0xf]
    %v11290 = vld [vmem:[#allocation9 + $0x6f8] sm:$0xf]
    %v11291 = vld [vmem:[#allocation9 + $0x6fc] sm:$0xf]
    %v11292 = vld [vmem:[#allocation11] sm:$0x1]
    %v11294 = vperm.slane %v11292, 0
    %v11310 = vunpack.c.l.b16 %v10830
    %v11311 = vunpack.c.h.b16 %v10830
    %v11312 = vunpack.c.l.b16 %v10831
    %v11313 = vunpack.c.h.b16 %v10831
    %v11314 = vunpack.c.l.b16 %v10832
    %v11315 = vunpack.c.h.b16 %v10832
    %v11316 = vunpack.c.l.b16 %v10833
    %v11317 = vunpack.c.h.b16 %v10833
    %v11318 = vunpack.c.l.b16 %v10834
    %v11319 = vunpack.c.h.b16 %v10834
    %v11320 = vunpack.c.l.b16 %v10835
    %v11321 = vunpack.c.h.b16 %v10835
    %v11322 = vunpack.c.l.b16 %v10836
    %v11323 = vunpack.c.h.b16 %v10836
    %v11324 = vunpack.c.l.b16 %v10837
    %v11325 = vunpack.c.h.b16 %v10837
    %v11326 = vunpack.c.l.b16 %v10838
    %v11327 = vunpack.c.h.b16 %v10838
    %v11328 = vunpack.c.l.b16 %v10839
    %v11329 = vunpack.c.h.b16 %v10839
    %v11330 = vunpack.c.l.b16 %v10840
    %v11331 = vunpack.c.h.b16 %v10840
    %v11332 = vunpack.c.l.b16 %v10841
    %v11333 = vunpack.c.h.b16 %v10841
    %v11334 = vunpack.c.l.b16 %v10842
    %v11335 = vunpack.c.h.b16 %v10842
    %v11336 = vunpack.c.l.b16 %v10843
    %v11337 = vunpack.c.h.b16 %v10843
    %v11338 = vpack.c.b16 %v11310, %v11310
    %v11339 = vpack.c.b16 %v11311, %v11311
    %v11340 = vpack.c.b16 %v11312, %v11312
    %v11341 = vpack.c.b16 %v11313, %v11313
    %v11342 = vpack.c.b16 %v11314, %v11314
    %v11343 = vpack.c.b16 %v11315, %v11315
    %v11344 = vpack.c.b16 %v11316, %v11316
    %v11345 = vpack.c.b16 %v11317, %v11317
    %v11346 = vpack.c.b16 %v11318, %v11318
    %v11347 = vpack.c.b16 %v11319, %v11319
    %v11348 = vpack.c.b16 %v11320, %v11320
    %v11349 = vpack.c.b16 %v11321, %v11321
    %v11350 = vpack.c.b16 %v11322, %v11322
    %v11351 = vpack.c.b16 %v11323, %v11323
    %v11352 = vpack.c.b16 %v11324, %v11324
    %v11353 = vpack.c.b16 %v11325, %v11325
    %v11354 = vpack.c.b16 %v11326, %v11326
    %v11355 = vpack.c.b16 %v11327, %v11327
    %v11356 = vpack.c.b16 %v11328, %v11328
    %v11357 = vpack.c.b16 %v11329, %v11329
    %v11358 = vpack.c.b16 %v11330, %v11330
    %v11359 = vpack.c.b16 %v11331, %v11331
    %v11360 = vpack.c.b16 %v11332, %v11332
    %v11361 = vpack.c.b16 %v11333, %v11333
    %v11362 = vpack.c.b16 %v11334, %v11334
    %v11363 = vpack.c.b16 %v11335, %v11335
    %v11364 = vpack.c.b16 %v11336, %v11336
    %v11365 = vpack.c.b16 %v11337, %v11337
    %v11842 = vunpack.c.l.b16 %v10844
    %v11843 = vunpack.c.l.b16 %v10845
    %v11844 = vunpack.c.l.b16 %v10846
    %v11845 = vunpack.c.l.b16 %v10847
    %v11846 = vunpack.c.l.b16 %v10848
    %v11847 = vunpack.c.l.b16 %v10849
    %v11848 = vunpack.c.l.b16 %v10850
    %v11849 = vunpack.c.l.b16 %v10851
    %v11850 = vunpack.c.l.b16 %v10852
    %v11851 = vunpack.c.l.b16 %v10853
    %v11852 = vunpack.c.l.b16 %v10854
    %v11853 = vunpack.c.l.b16 %v10855
    %v11854 = vunpack.c.l.b16 %v10856
    %v11855 = vunpack.c.l.b16 %v10857
    %v11856 = vunpack.c.l.b16 %v10858
    %v11857 = vunpack.c.l.b16 %v10859
    %v11858 = vunpack.c.l.b16 %v10860
    %v11859 = vunpack.c.l.b16 %v10861
    %v11860 = vunpack.c.l.b16 %v10862
    %v11861 = vunpack.c.l.b16 %v10863
    %v11862 = vunpack.c.l.b16 %v10864
    %v11863 = vunpack.c.l.b16 %v10865
    %v11864 = vunpack.c.l.b16 %v10866
    %v11865 = vunpack.c.l.b16 %v10867
    %v11866 = vunpack.c.l.b16 %v10868
    %v11867 = vunpack.c.l.b16 %v10869
    %v11868 = vunpack.c.l.b16 %v10870
    %v11869 = vunpack.c.l.b16 %v10871
    %v11870 = vunpack.c.l.b16 %v10872
    %v11871 = vunpack.c.l.b16 %v10873
    %v11872 = vunpack.c.l.b16 %v10874
    %v11873 = vunpack.c.l.b16 %v10875
    %v11874 = vunpack.c.l.b16 %v10876
    %v11875 = vunpack.c.l.b16 %v10877
    %v11876 = vunpack.c.l.b16 %v10878
    %v11877 = vunpack.c.l.b16 %v10879
    %v11878 = vunpack.c.l.b16 %v10880
    %v11879 = vunpack.c.l.b16 %v10881
    %v11880 = vunpack.c.l.b16 %v10882
    %v11881 = vunpack.c.l.b16 %v10883
    %v11882 = vunpack.c.l.b16 %v10884
    %v11883 = vunpack.c.l.b16 %v10885
    %v11884 = vunpack.c.l.b16 %v10886
    %v11885 = vunpack.c.l.b16 %v10887
    %v11886 = vunpack.c.l.b16 %v10888
    %v11887 = vunpack.c.l.b16 %v10889
    %v11888 = vunpack.c.l.b16 %v10890
    %v11889 = vunpack.c.l.b16 %v10891
    %v11890 = vunpack.c.l.b16 %v10892
    %v11891 = vunpack.c.l.b16 %v10893
    %v11892 = vunpack.c.l.b16 %v10894
    %v11893 = vunpack.c.l.b16 %v10895
    %v11894 = vunpack.c.l.b16 %v10896
    %v11895 = vunpack.c.l.b16 %v10897
    %v11896 = vunpack.c.l.b16 %v10898
    %v11897 = vunpack.c.l.b16 %v10899
    %v11898 = vunpack.c.l.b16 %v10900
    %v11899 = vunpack.c.l.b16 %v10901
    %v11900 = vunpack.c.l.b16 %v10902
    %v11901 = vunpack.c.l.b16 %v10903
    %v11902 = vunpack.c.l.b16 %v10904
    %v11903 = vunpack.c.l.b16 %v10905
    %v11904 = vunpack.c.l.b16 %v10906
    %v11905 = vunpack.c.l.b16 %v10907
    %v11906 = vunpack.c.l.b16 %v10908
    %v11907 = vunpack.c.l.b16 %v10909
    %v11908 = vunpack.c.l.b16 %v10910
    %v11909 = vunpack.c.l.b16 %v10911
    %v11910 = vunpack.c.l.b16 %v10912
    %v11911 = vunpack.c.l.b16 %v10913
    %v11912 = vunpack.c.l.b16 %v10914
    %v11913 = vunpack.c.l.b16 %v10915
    %v11914 = vunpack.c.l.b16 %v10916
    %v11915 = vunpack.c.l.b16 %v10917
    %v11916 = vunpack.c.l.b16 %v10918
    %v11917 = vunpack.c.l.b16 %v10919
    %v11918 = vunpack.c.l.b16 %v10920
    %v11919 = vunpack.c.l.b16 %v10921
    %v11920 = vunpack.c.l.b16 %v10922
    %v11921 = vunpack.c.l.b16 %v10923
    %v11922 = vunpack.c.l.b16 %v10924
    %v11923 = vunpack.c.l.b16 %v10925
    %v11924 = vunpack.c.l.b16 %v10926
    %v11925 = vunpack.c.l.b16 %v10927
    %v11926 = vunpack.c.l.b16 %v10928
    %v11927 = vunpack.c.l.b16 %v10929
    %v11928 = vunpack.c.l.b16 %v10930
    %v11929 = vunpack.c.l.b16 %v10931
    %v11930 = vunpack.c.l.b16 %v10932
    %v11931 = vunpack.c.l.b16 %v10933
    %v11932 = vunpack.c.l.b16 %v10934
    %v11933 = vunpack.c.l.b16 %v10935
    %v11934 = vunpack.c.l.b16 %v10936
    %v11935 = vunpack.c.l.b16 %v10937
    %v11936 = vunpack.c.l.b16 %v10938
    %v11937 = vunpack.c.l.b16 %v10939
    %v11938 = vunpack.c.l.b16 %v10940
    %v11939 = vunpack.c.l.b16 %v10941
    %v11940 = vunpack.c.l.b16 %v10942
    %v11941 = vunpack.c.l.b16 %v10943
    %v11942 = vunpack.c.l.b16 %v10944
    %v11943 = vunpack.c.l.b16 %v10945
    %v11944 = vunpack.c.l.b16 %v10946
    %v11945 = vunpack.c.l.b16 %v10947
    %v11946 = vunpack.c.l.b16 %v10948
    %v11947 = vunpack.c.l.b16 %v10949
    %v11948 = vunpack.c.l.b16 %v10950
    %v11949 = vunpack.c.l.b16 %v10951
    %v11950 = vunpack.c.l.b16 %v10952
    %v11951 = vunpack.c.l.b16 %v10953
    %v11952 = vunpack.c.l.b16 %v10954
    %v11953 = vunpack.c.l.b16 %v10955
    %v11954 = vunpack.c.l.b16 %v10956
    %v11955 = vunpack.c.l.b16 %v10957
    %v11956 = vunpack.c.l.b16 %v10958
    %v11957 = vunpack.c.l.b16 %v10959
    %v11958 = vunpack.c.l.b16 %v10960
    %v11959 = vunpack.c.l.b16 %v10961
    %v11960 = vunpack.c.l.b16 %v10962
    %v11961 = vunpack.c.l.b16 %v10963
    %v11962 = vunpack.c.l.b16 %v10964
    %v11963 = vunpack.c.l.b16 %v10965
    %v11964 = vunpack.c.l.b16 %v10966
    %v11965 = vunpack.c.l.b16 %v10967
    %v11966 = vunpack.c.l.b16 %v10968
    %v11967 = vunpack.c.l.b16 %v10969
    %v11968 = vunpack.c.l.b16 %v10970
    %v11969 = vunpack.c.l.b16 %v10971
    %v11970 = vunpack.c.l.b16 %v10972
    %v11971 = vunpack.c.l.b16 %v10973
    %v11972 = vunpack.c.l.b16 %v10974
    %v11973 = vunpack.c.l.b16 %v10975
    %v11974 = vunpack.c.l.b16 %v10976
    %v11975 = vunpack.c.l.b16 %v10977
    %v11976 = vunpack.c.l.b16 %v10978
    %v11977 = vunpack.c.l.b16 %v10979
    %v11978 = vunpack.c.l.b16 %v10980
    %v11979 = vunpack.c.l.b16 %v10981
    %v11980 = vunpack.c.l.b16 %v10982
    %v11981 = vunpack.c.l.b16 %v10983
    %v11982 = vunpack.c.l.b16 %v10984
    %v11983 = vunpack.c.l.b16 %v10985
    %v11984 = vunpack.c.l.b16 %v10986
    %v11985 = vunpack.c.l.b16 %v10987
    %v11986 = vunpack.c.l.b16 %v10988
    %v11987 = vunpack.c.l.b16 %v10989
    %v11988 = vunpack.c.l.b16 %v10990
    %v11989 = vunpack.c.l.b16 %v10991
    %v11990 = vunpack.c.l.b16 %v10992
    %v11991 = vunpack.c.l.b16 %v10993
    %v11992 = vunpack.c.l.b16 %v10994
    %v11993 = vunpack.c.l.b16 %v10995
    %v11994 = vunpack.c.l.b16 %v10996
    %v11995 = vunpack.c.l.b16 %v10997
    %v11996 = vunpack.c.l.b16 %v10998
    %v11997 = vunpack.c.l.b16 %v10999
    %v11998 = vunpack.c.l.b16 %v11000
    %v11999 = vunpack.c.l.b16 %v11001
    %v12000 = vunpack.c.l.b16 %v11002
    %v12001 = vunpack.c.l.b16 %v11003
    %v12002 = vunpack.c.l.b16 %v11004
    %v12003 = vunpack.c.l.b16 %v11005
    %v12004 = vunpack.c.l.b16 %v11006
    %v12005 = vunpack.c.l.b16 %v11007
    %v12006 = vunpack.c.l.b16 %v11008
    %v12007 = vunpack.c.l.b16 %v11009
    %v12008 = vunpack.c.l.b16 %v11010
    %v12009 = vunpack.c.l.b16 %v11011
    %v12010 = vunpack.c.l.b16 %v11012
    %v12011 = vunpack.c.l.b16 %v11013
    %v12012 = vunpack.c.l.b16 %v11014
    %v12013 = vunpack.c.l.b16 %v11015
    %v12014 = vunpack.c.l.b16 %v11016
    %v12015 = vunpack.c.l.b16 %v11017
    %v12016 = vunpack.c.l.b16 %v11018
    %v12017 = vunpack.c.l.b16 %v11019
    %v12018 = vunpack.c.l.b16 %v11020
    %v12019 = vunpack.c.l.b16 %v11021
    %v12020 = vunpack.c.l.b16 %v11022
    %v12021 = vunpack.c.l.b16 %v11023
    %v12022 = vunpack.c.l.b16 %v11024
    %v12023 = vunpack.c.l.b16 %v11025
    %v12024 = vunpack.c.l.b16 %v11026
    %v12025 = vunpack.c.l.b16 %v11027
    %v12026 = vunpack.c.l.b16 %v11028
    %v12027 = vunpack.c.l.b16 %v11029
    %v12028 = vunpack.c.l.b16 %v11030
    %v12029 = vunpack.c.l.b16 %v11031
    %v12030 = vunpack.c.l.b16 %v11032
    %v12031 = vunpack.c.l.b16 %v11033
    %v12032 = vunpack.c.l.b16 %v11034
    %v12033 = vunpack.c.l.b16 %v11035
    %v12034 = vunpack.c.l.b16 %v11036
    %v12035 = vunpack.c.l.b16 %v11037
    %v12036 = vunpack.c.l.b16 %v11038
    %v12037 = vunpack.c.l.b16 %v11039
    %v12038 = vunpack.c.l.b16 %v11040
    %v12039 = vunpack.c.l.b16 %v11041
    %v12040 = vunpack.c.l.b16 %v11042
    %v12041 = vunpack.c.l.b16 %v11043
    %v12042 = vunpack.c.l.b16 %v11044
    %v12043 = vunpack.c.l.b16 %v11045
    %v12044 = vunpack.c.l.b16 %v11046
    %v12045 = vunpack.c.l.b16 %v11047
    %v12046 = vunpack.c.l.b16 %v11048
    %v12047 = vunpack.c.l.b16 %v11049
    %v12048 = vunpack.c.l.b16 %v11050
    %v12049 = vunpack.c.l.b16 %v11051
    %v12050 = vunpack.c.l.b16 %v11052
    %v12051 = vunpack.c.l.b16 %v11053
    %v12052 = vunpack.c.l.b16 %v11054
    %v12053 = vunpack.c.l.b16 %v11055
    %v12054 = vunpack.c.l.b16 %v11056
    %v12055 = vunpack.c.l.b16 %v11057
    %v12056 = vunpack.c.l.b16 %v11058
    %v12057 = vunpack.c.l.b16 %v11059
    %v12058 = vunpack.c.l.b16 %v11060
    %v12059 = vunpack.c.l.b16 %v11061
    %v12060 = vunpack.c.l.b16 %v11062
    %v12061 = vunpack.c.l.b16 %v11063
    %v12062 = vunpack.c.l.b16 %v11064
    %v12063 = vunpack.c.l.b16 %v11065
    %v12064 = vunpack.c.l.b16 %v11066
    %v12065 = vunpack.c.l.b16 %v11067
    %v12066 = vunpack.c.l.b16 %v11068
    %v12067 = vunpack.c.l.b16 %v11069
    %v12068 = vunpack.c.l.b16 %v11070
    %v12069 = vunpack.c.l.b16 %v11071
    %v12070 = vunpack.c.l.b16 %v11072
    %v12071 = vunpack.c.l.b16 %v11073
    %v12072 = vunpack.c.l.b16 %v11074
    %v12073 = vunpack.c.l.b16 %v11075
    %v12074 = vunpack.c.l.b16 %v11076
    %v12075 = vunpack.c.l.b16 %v11077
    %v12076 = vunpack.c.l.b16 %v11078
    %v12077 = vunpack.c.l.b16 %v11079
    %v12078 = vunpack.c.l.b16 %v11080
    %v12079 = vunpack.c.l.b16 %v11081
    %v12080 = vunpack.c.l.b16 %v11082
    %v12081 = vunpack.c.l.b16 %v11083
    %v12082 = vunpack.c.l.b16 %v11084
    %v12083 = vunpack.c.l.b16 %v11085
    %v12084 = vunpack.c.l.b16 %v11086
    %v12085 = vunpack.c.l.b16 %v11087
    %v12086 = vunpack.c.l.b16 %v11088
    %v12087 = vunpack.c.l.b16 %v11089
    %v12088 = vunpack.c.l.b16 %v11090
    %v12089 = vunpack.c.l.b16 %v11091
    %v12090 = vunpack.c.l.b16 %v11092
    %v12091 = vunpack.c.l.b16 %v11093
    %v12092 = vunpack.c.l.b16 %v11094
    %v12093 = vunpack.c.l.b16 %v11095
    %v12094 = vunpack.c.l.b16 %v11096
    %v12095 = vunpack.c.l.b16 %v11097
    %v12096 = vunpack.c.l.b16 %v11098
    %v12097 = vunpack.c.l.b16 %v11099
    %v12098 = vunpack.c.l.b16 %v11100
    %v12099 = vunpack.c.l.b16 %v11101
    %v12100 = vunpack.c.l.b16 %v11102
    %v12101 = vunpack.c.l.b16 %v11103
    %v12102 = vunpack.c.l.b16 %v11104
    %v12103 = vunpack.c.l.b16 %v11105
    %v12104 = vunpack.c.l.b16 %v11106
    %v12105 = vunpack.c.l.b16 %v11107
    %v12106 = vunpack.c.l.b16 %v11108
    %v12107 = vunpack.c.l.b16 %v11109
    %v12108 = vunpack.c.l.b16 %v11110
    %v12109 = vunpack.c.l.b16 %v11111
    %v12110 = vunpack.c.l.b16 %v11112
    %v12111 = vunpack.c.l.b16 %v11113
    %v12112 = vunpack.c.l.b16 %v11114
    %v12113 = vunpack.c.l.b16 %v11115
    %v12114 = vunpack.c.l.b16 %v11116
    %v12115 = vunpack.c.l.b16 %v11117
    %v12116 = vunpack.c.l.b16 %v11118
    %v12117 = vunpack.c.l.b16 %v11119
    %v12118 = vunpack.c.l.b16 %v11120
    %v12119 = vunpack.c.l.b16 %v11121
    %v12120 = vunpack.c.l.b16 %v11122
    %v12121 = vunpack.c.l.b16 %v11123
    %v12122 = vunpack.c.l.b16 %v11124
    %v12123 = vunpack.c.l.b16 %v11125
    %v12124 = vunpack.c.l.b16 %v11126
    %v12125 = vunpack.c.l.b16 %v11127
    %v12126 = vunpack.c.l.b16 %v11128
    %v12127 = vunpack.c.l.b16 %v11129
    %v12128 = vunpack.c.l.b16 %v11130
    %v12129 = vunpack.c.l.b16 %v11131
    %v12130 = vunpack.c.l.b16 %v11132
    %v12131 = vunpack.c.l.b16 %v11133
    %v12132 = vunpack.c.l.b16 %v11134
    %v12133 = vunpack.c.l.b16 %v11135
    %v12134 = vunpack.c.l.b16 %v11136
    %v12135 = vunpack.c.l.b16 %v11137
    %v12136 = vunpack.c.l.b16 %v11138
    %v12137 = vunpack.c.l.b16 %v11139
    %v12138 = vunpack.c.l.b16 %v11140
    %v12139 = vunpack.c.l.b16 %v11141
    %v12140 = vunpack.c.l.b16 %v11142
    %v12141 = vunpack.c.l.b16 %v11143
    %v12142 = vunpack.c.l.b16 %v11144
    %v12143 = vunpack.c.l.b16 %v11145
    %v12144 = vunpack.c.l.b16 %v11146
    %v12145 = vunpack.c.l.b16 %v11147
    %v12146 = vunpack.c.l.b16 %v11148
    %v12147 = vunpack.c.l.b16 %v11149
    %v12148 = vunpack.c.l.b16 %v11150
    %v12149 = vunpack.c.l.b16 %v11151
    %v12150 = vunpack.c.l.b16 %v11152
    %v12151 = vunpack.c.l.b16 %v11153
    %v12152 = vunpack.c.l.b16 %v11154
    %v12153 = vunpack.c.l.b16 %v11155
    %v12154 = vunpack.c.l.b16 %v11156
    %v12155 = vunpack.c.l.b16 %v11157
    %v12156 = vunpack.c.l.b16 %v11158
    %v12157 = vunpack.c.l.b16 %v11159
    %v12158 = vunpack.c.l.b16 %v11160
    %v12159 = vunpack.c.l.b16 %v11161
    %v12160 = vunpack.c.l.b16 %v11162
    %v12161 = vunpack.c.l.b16 %v11163
    %v12162 = vunpack.c.l.b16 %v11164
    %v12163 = vunpack.c.l.b16 %v11165
    %v12164 = vunpack.c.l.b16 %v11166
    %v12165 = vunpack.c.l.b16 %v11167
    %v12166 = vunpack.c.l.b16 %v11168
    %v12167 = vunpack.c.l.b16 %v11169
    %v12168 = vunpack.c.l.b16 %v11170
    %v12169 = vunpack.c.l.b16 %v11171
    %v12170 = vunpack.c.l.b16 %v11172
    %v12171 = vunpack.c.l.b16 %v11173
    %v12172 = vunpack.c.l.b16 %v11174
    %v12173 = vunpack.c.l.b16 %v11175
    %v12174 = vunpack.c.l.b16 %v11176
    %v12175 = vunpack.c.l.b16 %v11177
    %v12176 = vunpack.c.l.b16 %v11178
    %v12177 = vunpack.c.l.b16 %v11179
    %v12178 = vunpack.c.l.b16 %v11180
    %v12179 = vunpack.c.l.b16 %v11181
    %v12180 = vunpack.c.l.b16 %v11182
    %v12181 = vunpack.c.l.b16 %v11183
    %v12182 = vunpack.c.l.b16 %v11184
    %v12183 = vunpack.c.l.b16 %v11185
    %v12184 = vunpack.c.l.b16 %v11186
    %v12185 = vunpack.c.l.b16 %v11187
    %v12186 = vunpack.c.l.b16 %v11188
    %v12187 = vunpack.c.l.b16 %v11189
    %v12188 = vunpack.c.l.b16 %v11190
    %v12189 = vunpack.c.l.b16 %v11191
    %v12190 = vunpack.c.l.b16 %v11192
    %v12191 = vunpack.c.l.b16 %v11193
    %v12192 = vunpack.c.l.b16 %v11194
    %v12193 = vunpack.c.l.b16 %v11195
    %v12194 = vunpack.c.l.b16 %v11196
    %v12195 = vunpack.c.l.b16 %v11197
    %v12196 = vunpack.c.l.b16 %v11198
    %v12197 = vunpack.c.l.b16 %v11199
    %v12198 = vunpack.c.l.b16 %v11200
    %v12199 = vunpack.c.l.b16 %v11201
    %v12200 = vunpack.c.l.b16 %v11202
    %v12201 = vunpack.c.l.b16 %v11203
    %v12202 = vunpack.c.l.b16 %v11204
    %v12203 = vunpack.c.l.b16 %v11205
    %v12204 = vunpack.c.l.b16 %v11206
    %v12205 = vunpack.c.l.b16 %v11207
    %v12206 = vunpack.c.l.b16 %v11208
    %v12207 = vunpack.c.l.b16 %v11209
    %v12208 = vunpack.c.l.b16 %v11210
    %v12209 = vunpack.c.l.b16 %v11211
    %v12210 = vunpack.c.l.b16 %v11212
    %v12211 = vunpack.c.l.b16 %v11213
    %v12212 = vunpack.c.l.b16 %v11214
    %v12213 = vunpack.c.l.b16 %v11215
    %v12214 = vunpack.c.l.b16 %v11216
    %v12215 = vunpack.c.l.b16 %v11217
    %v12216 = vunpack.c.l.b16 %v11218
    %v12217 = vunpack.c.l.b16 %v11219
    %v12218 = vunpack.c.l.b16 %v11220
    %v12219 = vunpack.c.l.b16 %v11221
    %v12220 = vunpack.c.l.b16 %v11222
    %v12221 = vunpack.c.l.b16 %v11223
    %v12222 = vunpack.c.l.b16 %v11224
    %v12223 = vunpack.c.l.b16 %v11225
    %v12224 = vunpack.c.l.b16 %v11226
    %v12225 = vunpack.c.l.b16 %v11227
    %v12226 = vunpack.c.l.b16 %v11228
    %v12227 = vunpack.c.l.b16 %v11229
    %v12228 = vunpack.c.l.b16 %v11230
    %v12229 = vunpack.c.l.b16 %v11231
    %v12230 = vunpack.c.l.b16 %v11232
    %v12231 = vunpack.c.l.b16 %v11233
    %v12232 = vunpack.c.l.b16 %v11234
    %v12233 = vunpack.c.l.b16 %v11235
    %v12234 = vunpack.c.l.b16 %v11236
    %v12235 = vunpack.c.l.b16 %v11237
    %v12236 = vunpack.c.l.b16 %v11238
    %v12237 = vunpack.c.l.b16 %v11239
    %v12238 = vunpack.c.l.b16 %v11240
    %v12239 = vunpack.c.l.b16 %v11241
    %v12240 = vunpack.c.l.b16 %v11242
    %v12241 = vunpack.c.l.b16 %v11243
    %v12242 = vunpack.c.l.b16 %v11244
    %v12243 = vunpack.c.l.b16 %v11245
    %v12244 = vunpack.c.l.b16 %v11246
    %v12245 = vunpack.c.l.b16 %v11247
    %v12246 = vunpack.c.l.b16 %v11248
    %v12247 = vunpack.c.l.b16 %v11249
    %v12248 = vunpack.c.l.b16 %v11250
    %v12249 = vunpack.c.l.b16 %v11251
    %v12250 = vunpack.c.l.b16 %v11252
    %v12251 = vunpack.c.l.b16 %v11253
    %v12252 = vunpack.c.l.b16 %v11254
    %v12253 = vunpack.c.l.b16 %v11255
    %v12254 = vunpack.c.l.b16 %v11256
    %v12255 = vunpack.c.l.b16 %v11257
    %v12256 = vunpack.c.l.b16 %v11258
    %v12257 = vunpack.c.l.b16 %v11259
    %v12258 = vunpack.c.l.b16 %v11260
    %v12259 = vunpack.c.l.b16 %v11261
    %v12260 = vunpack.c.l.b16 %v11262
    %v12261 = vunpack.c.l.b16 %v11263
    %v12262 = vunpack.c.l.b16 %v11264
    %v12263 = vunpack.c.l.b16 %v11265
    %v12264 = vunpack.c.l.b16 %v11266
    %v12265 = vunpack.c.l.b16 %v11267
    %v12266 = vunpack.c.l.b16 %v11268
    %v12267 = vunpack.c.l.b16 %v11269
    %v12268 = vunpack.c.l.b16 %v11270
    %v12269 = vunpack.c.l.b16 %v11271
    %v12270 = vunpack.c.l.b16 %v11272
    %v12271 = vunpack.c.l.b16 %v11273
    %v12272 = vunpack.c.l.b16 %v11274
    %v12273 = vunpack.c.l.b16 %v11275
    %v12274 = vunpack.c.l.b16 %v11276
    %v12275 = vunpack.c.l.b16 %v11277
    %v12276 = vunpack.c.l.b16 %v11278
    %v12277 = vunpack.c.l.b16 %v11279
    %v12278 = vunpack.c.l.b16 %v11280
    %v12279 = vunpack.c.l.b16 %v11281
    %v12280 = vunpack.c.l.b16 %v11282
    %v12281 = vunpack.c.l.b16 %v11283
    %v12282 = vunpack.c.l.b16 %v11284
    %v12283 = vunpack.c.l.b16 %v11285
    %v12284 = vunpack.c.l.b16 %v11286
    %v12285 = vunpack.c.l.b16 %v11287
    %v12286 = vunpack.c.l.b16 %v11288
    %v12287 = vunpack.c.l.b16 %v11289
    %v12288 = vunpack.c.l.b16 %v11290
    %v12289 = vunpack.c.l.b16 %v11291
    %v12290 = vpack.c.b16 %v11843, %v11842
    %v12291 = vpack.c.b16 %v11845, %v11844
    %v12292 = vpack.c.b16 %v11847, %v11846
    %v12293 = vpack.c.b16 %v11849, %v11848
    %v12294 = vpack.c.b16 %v11851, %v11850
    %v12295 = vpack.c.b16 %v11853, %v11852
    %v12296 = vpack.c.b16 %v11855, %v11854
    %v12297 = vpack.c.b16 %v11857, %v11856
    %v12298 = vpack.c.b16 %v11859, %v11858
    %v12299 = vpack.c.b16 %v11861, %v11860
    %v12300 = vpack.c.b16 %v11863, %v11862
    %v12301 = vpack.c.b16 %v11865, %v11864
    %v12302 = vpack.c.b16 %v11867, %v11866
    %v12303 = vpack.c.b16 %v11869, %v11868
    %v12304 = vpack.c.b16 %v11871, %v11870
    %v12305 = vpack.c.b16 %v11873, %v11872
    %v12306 = vpack.c.b16 %v11875, %v11874
    %v12307 = vpack.c.b16 %v11877, %v11876
    %v12308 = vpack.c.b16 %v11879, %v11878
    %v12309 = vpack.c.b16 %v11881, %v11880
    %v12310 = vpack.c.b16 %v11883, %v11882
    %v12311 = vpack.c.b16 %v11885, %v11884
    %v12312 = vpack.c.b16 %v11887, %v11886
    %v12313 = vpack.c.b16 %v11889, %v11888
    %v12314 = vpack.c.b16 %v11891, %v11890
    %v12315 = vpack.c.b16 %v11893, %v11892
    %v12316 = vpack.c.b16 %v11895, %v11894
    %v12317 = vpack.c.b16 %v11897, %v11896
    %v12318 = vpack.c.b16 %v11899, %v11898
    %v12319 = vpack.c.b16 %v11901, %v11900
    %v12320 = vpack.c.b16 %v11903, %v11902
    %v12321 = vpack.c.b16 %v11905, %v11904
    %v12322 = vpack.c.b16 %v11907, %v11906
    %v12323 = vpack.c.b16 %v11909, %v11908
    %v12324 = vpack.c.b16 %v11911, %v11910
    %v12325 = vpack.c.b16 %v11913, %v11912
    %v12326 = vpack.c.b16 %v11915, %v11914
    %v12327 = vpack.c.b16 %v11917, %v11916
    %v12328 = vpack.c.b16 %v11919, %v11918
    %v12329 = vpack.c.b16 %v11921, %v11920
    %v12330 = vpack.c.b16 %v11923, %v11922
    %v12331 = vpack.c.b16 %v11925, %v11924
    %v12332 = vpack.c.b16 %v11927, %v11926
    %v12333 = vpack.c.b16 %v11929, %v11928
    %v12334 = vpack.c.b16 %v11931, %v11930
    %v12335 = vpack.c.b16 %v11933, %v11932
    %v12336 = vpack.c.b16 %v11935, %v11934
    %v12337 = vpack.c.b16 %v11937, %v11936
    %v12338 = vpack.c.b16 %v11939, %v11938
    %v12339 = vpack.c.b16 %v11941, %v11940
    %v12340 = vpack.c.b16 %v11943, %v11942
    %v12341 = vpack.c.b16 %v11945, %v11944
    %v12342 = vpack.c.b16 %v11947, %v11946
    %v12343 = vpack.c.b16 %v11949, %v11948
    %v12344 = vpack.c.b16 %v11951, %v11950
    %v12345 = vpack.c.b16 %v11953, %v11952
    %v12346 = vpack.c.b16 %v11955, %v11954
    %v12347 = vpack.c.b16 %v11957, %v11956
    %v12348 = vpack.c.b16 %v11959, %v11958
    %v12349 = vpack.c.b16 %v11961, %v11960
    %v12350 = vpack.c.b16 %v11963, %v11962
    %v12351 = vpack.c.b16 %v11965, %v11964
    %v12352 = vpack.c.b16 %v11967, %v11966
    %v12353 = vpack.c.b16 %v11969, %v11968
    %v12354 = vpack.c.b16 %v11971, %v11970
    %v12355 = vpack.c.b16 %v11973, %v11972
    %v12356 = vpack.c.b16 %v11975, %v11974
    %v12357 = vpack.c.b16 %v11977, %v11976
    %v12358 = vpack.c.b16 %v11979, %v11978
    %v12359 = vpack.c.b16 %v11981, %v11980
    %v12360 = vpack.c.b16 %v11983, %v11982
    %v12361 = vpack.c.b16 %v11985, %v11984
    %v12362 = vpack.c.b16 %v11987, %v11986
    %v12363 = vpack.c.b16 %v11989, %v11988
    %v12364 = vpack.c.b16 %v11991, %v11990
    %v12365 = vpack.c.b16 %v11993, %v11992
    %v12366 = vpack.c.b16 %v11995, %v11994
    %v12367 = vpack.c.b16 %v11997, %v11996
    %v12368 = vpack.c.b16 %v11999, %v11998
    %v12369 = vpack.c.b16 %v12001, %v12000
    %v12370 = vpack.c.b16 %v12003, %v12002
    %v12371 = vpack.c.b16 %v12005, %v12004
    %v12372 = vpack.c.b16 %v12007, %v12006
    %v12373 = vpack.c.b16 %v12009, %v12008
    %v12374 = vpack.c.b16 %v12011, %v12010
    %v12375 = vpack.c.b16 %v12013, %v12012
    %v12376 = vpack.c.b16 %v12015, %v12014
    %v12377 = vpack.c.b16 %v12017, %v12016
    %v12378 = vpack.c.b16 %v12019, %v12018
    %v12379 = vpack.c.b16 %v12021, %v12020
    %v12380 = vpack.c.b16 %v12023, %v12022
    %v12381 = vpack.c.b16 %v12025, %v12024
    %v12382 = vpack.c.b16 %v12027, %v12026
    %v12383 = vpack.c.b16 %v12029, %v12028
    %v12384 = vpack.c.b16 %v12031, %v12030
    %v12385 = vpack.c.b16 %v12033, %v12032
    %v12386 = vpack.c.b16 %v12035, %v12034
    %v12387 = vpack.c.b16 %v12037, %v12036
    %v12388 = vpack.c.b16 %v12039, %v12038
    %v12389 = vpack.c.b16 %v12041, %v12040
    %v12390 = vpack.c.b16 %v12043, %v12042
    %v12391 = vpack.c.b16 %v12045, %v12044
    %v12392 = vpack.c.b16 %v12047, %v12046
    %v12393 = vpack.c.b16 %v12049, %v12048
    %v12394 = vpack.c.b16 %v12051, %v12050
    %v12395 = vpack.c.b16 %v12053, %v12052
    %v12396 = vpack.c.b16 %v12055, %v12054
    %v12397 = vpack.c.b16 %v12057, %v12056
    %v12398 = vpack.c.b16 %v12059, %v12058
    %v12399 = vpack.c.b16 %v12061, %v12060
    %v12400 = vpack.c.b16 %v12063, %v12062
    %v12401 = vpack.c.b16 %v12065, %v12064
    %v12402 = vpack.c.b16 %v12067, %v12066
    %v12403 = vpack.c.b16 %v12069, %v12068
    %v12404 = vpack.c.b16 %v12071, %v12070
    %v12405 = vpack.c.b16 %v12073, %v12072
    %v12406 = vpack.c.b16 %v12075, %v12074
    %v12407 = vpack.c.b16 %v12077, %v12076
    %v12408 = vpack.c.b16 %v12079, %v12078
    %v12409 = vpack.c.b16 %v12081, %v12080
    %v12410 = vpack.c.b16 %v12083, %v12082
    %v12411 = vpack.c.b16 %v12085, %v12084
    %v12412 = vpack.c.b16 %v12087, %v12086
    %v12413 = vpack.c.b16 %v12089, %v12088
    %v12414 = vpack.c.b16 %v12091, %v12090
    %v12415 = vpack.c.b16 %v12093, %v12092
    %v12416 = vpack.c.b16 %v12095, %v12094
    %v12417 = vpack.c.b16 %v12097, %v12096
    %v12418 = vpack.c.b16 %v12099, %v12098
    %v12419 = vpack.c.b16 %v12101, %v12100
    %v12420 = vpack.c.b16 %v12103, %v12102
    %v12421 = vpack.c.b16 %v12105, %v12104
    %v12422 = vpack.c.b16 %v12107, %v12106
    %v12423 = vpack.c.b16 %v12109, %v12108
    %v12424 = vpack.c.b16 %v12111, %v12110
    %v12425 = vpack.c.b16 %v12113, %v12112
    %v12426 = vpack.c.b16 %v12115, %v12114
    %v12427 = vpack.c.b16 %v12117, %v12116
    %v12428 = vpack.c.b16 %v12119, %v12118
    %v12429 = vpack.c.b16 %v12121, %v12120
    %v12430 = vpack.c.b16 %v12123, %v12122
    %v12431 = vpack.c.b16 %v12125, %v12124
    %v12432 = vpack.c.b16 %v12127, %v12126
    %v12433 = vpack.c.b16 %v12129, %v12128
    %v12434 = vpack.c.b16 %v12131, %v12130
    %v12435 = vpack.c.b16 %v12133, %v12132
    %v12436 = vpack.c.b16 %v12135, %v12134
    %v12437 = vpack.c.b16 %v12137, %v12136
    %v12438 = vpack.c.b16 %v12139, %v12138
    %v12439 = vpack.c.b16 %v12141, %v12140
    %v12440 = vpack.c.b16 %v12143, %v12142
    %v12441 = vpack.c.b16 %v12145, %v12144
    %v12442 = vpack.c.b16 %v12147, %v12146
    %v12443 = vpack.c.b16 %v12149, %v12148
    %v12444 = vpack.c.b16 %v12151, %v12150
    %v12445 = vpack.c.b16 %v12153, %v12152
    %v12446 = vpack.c.b16 %v12155, %v12154
    %v12447 = vpack.c.b16 %v12157, %v12156
    %v12448 = vpack.c.b16 %v12159, %v12158
    %v12449 = vpack.c.b16 %v12161, %v12160
    %v12450 = vpack.c.b16 %v12163, %v12162
    %v12451 = vpack.c.b16 %v12165, %v12164
    %v12452 = vpack.c.b16 %v12167, %v12166
    %v12453 = vpack.c.b16 %v12169, %v12168
    %v12454 = vpack.c.b16 %v12171, %v12170
    %v12455 = vpack.c.b16 %v12173, %v12172
    %v12456 = vpack.c.b16 %v12175, %v12174
    %v12457 = vpack.c.b16 %v12177, %v12176
    %v12458 = vpack.c.b16 %v12179, %v12178
    %v12459 = vpack.c.b16 %v12181, %v12180
    %v12460 = vpack.c.b16 %v12183, %v12182
    %v12461 = vpack.c.b16 %v12185, %v12184
    %v12462 = vpack.c.b16 %v12187, %v12186
    %v12463 = vpack.c.b16 %v12189, %v12188
    %v12464 = vpack.c.b16 %v12191, %v12190
    %v12465 = vpack.c.b16 %v12193, %v12192
    %v12466 = vpack.c.b16 %v12195, %v12194
    %v12467 = vpack.c.b16 %v12197, %v12196
    %v12468 = vpack.c.b16 %v12199, %v12198
    %v12469 = vpack.c.b16 %v12201, %v12200
    %v12470 = vpack.c.b16 %v12203, %v12202
    %v12471 = vpack.c.b16 %v12205, %v12204
    %v12472 = vpack.c.b16 %v12207, %v12206
    %v12473 = vpack.c.b16 %v12209, %v12208
    %v12474 = vpack.c.b16 %v12211, %v12210
    %v12475 = vpack.c.b16 %v12213, %v12212
    %v12476 = vpack.c.b16 %v12215, %v12214
    %v12477 = vpack.c.b16 %v12217, %v12216
    %v12478 = vpack.c.b16 %v12219, %v12218
    %v12479 = vpack.c.b16 %v12221, %v12220
    %v12480 = vpack.c.b16 %v12223, %v12222
    %v12481 = vpack.c.b16 %v12225, %v12224
    %v12482 = vpack.c.b16 %v12227, %v12226
    %v12483 = vpack.c.b16 %v12229, %v12228
    %v12484 = vpack.c.b16 %v12231, %v12230
    %v12485 = vpack.c.b16 %v12233, %v12232
    %v12486 = vpack.c.b16 %v12235, %v12234
    %v12487 = vpack.c.b16 %v12237, %v12236
    %v12488 = vpack.c.b16 %v12239, %v12238
    %v12489 = vpack.c.b16 %v12241, %v12240
    %v12490 = vpack.c.b16 %v12243, %v12242
    %v12491 = vpack.c.b16 %v12245, %v12244
    %v12492 = vpack.c.b16 %v12247, %v12246
    %v12493 = vpack.c.b16 %v12249, %v12248
    %v12494 = vpack.c.b16 %v12251, %v12250
    %v12495 = vpack.c.b16 %v12253, %v12252
    %v12496 = vpack.c.b16 %v12255, %v12254
    %v12497 = vpack.c.b16 %v12257, %v12256
    %v12498 = vpack.c.b16 %v12259, %v12258
    %v12499 = vpack.c.b16 %v12261, %v12260
    %v12500 = vpack.c.b16 %v12263, %v12262
    %v12501 = vpack.c.b16 %v12265, %v12264
    %v12502 = vpack.c.b16 %v12267, %v12266
    %v12503 = vpack.c.b16 %v12269, %v12268
    %v12504 = vpack.c.b16 %v12271, %v12270
    %v12505 = vpack.c.b16 %v12273, %v12272
    %v12506 = vpack.c.b16 %v12275, %v12274
    %v12507 = vpack.c.b16 %v12277, %v12276
    %v12508 = vpack.c.b16 %v12279, %v12278
    %v12509 = vpack.c.b16 %v12281, %v12280
    %v12510 = vpack.c.b16 %v12283, %v12282
    %v12511 = vpack.c.b16 %v12285, %v12284
    %v12512 = vpack.c.b16 %v12287, %v12286
    %v12513 = vpack.c.b16 %v12289, %v12288
    %12738 = vmatpush.bf16.msra.mxu0 %v12297
    %12739 = vmatpush.bf16.msra.mxu0 %v12296
    %12740 = vmatpush.bf16.msra.mxu0 %v12295
    %12741 = vmatpush.bf16.msra.mxu0 %v12294
    %12742 = vmatpush.bf16.msra.mxu0 %v12293
    %12743 = vmatpush.bf16.msra.mxu0 %v12292
    %12744 = vmatpush.bf16.msra.mxu0 %v12291
    %12745 = vmatpush.bf16.msra.mxu0 %v12290
    %12746 = vmatmul.bf16.gmra.mxu0 %v11338
    %v12747 = vpop.f32.mrf.mxu0
    %v12748 = vadd.f32 %v11294, %v12747
    %v12749 = vpop.f32.mrf.mxu0
    %12750 = vdwg.mxu0
    %12751 = vmatpush.bf16.msra.mxu0 %v12305
    %12752 = vmatpush.bf16.msra.mxu0 %v12304
    %12753 = vmatpush.bf16.msra.mxu0 %v12303
    %12754 = vmatpush.bf16.msra.mxu0 %v12302
    %12755 = vmatpush.bf16.msra.mxu0 %v12301
    %12756 = vmatpush.bf16.msra.mxu0 %v12300
    %12757 = vmatpush.bf16.msra.mxu0 %v12299
    %12758 = vmatpush.bf16.msra.mxu0 %v12298
    %12759 = vmatmul.bf16.gmra.mxu0 %v11339
    %v12760 = vpop.f32.mrf.mxu0
    %v12761 = vadd.f32 %v12748, %v12760
    %v12762 = vpop.f32.mrf.mxu0
    %12763 = vdwg.mxu0
    %12764 = vmatpush.bf16.msra.mxu0 %v12313
    %12765 = vmatpush.bf16.msra.mxu0 %v12312
    %12766 = vmatpush.bf16.msra.mxu0 %v12311
    %12767 = vmatpush.bf16.msra.mxu0 %v12310
    %12768 = vmatpush.bf16.msra.mxu0 %v12309
    %12769 = vmatpush.bf16.msra.mxu0 %v12308
    %12770 = vmatpush.bf16.msra.mxu0 %v12307
    %12771 = vmatpush.bf16.msra.mxu0 %v12306
    %12772 = vmatmul.bf16.gmra.mxu0 %v11340
    %v12773 = vpop.f32.mrf.mxu0
    %v12774 = vadd.f32 %v12761, %v12773
    %v12775 = vpop.f32.mrf.mxu0
    %12776 = vdwg.mxu0
    %12777 = vmatpush.bf16.msra.mxu0 %v12321
    %12778 = vmatpush.bf16.msra.mxu0 %v12320
    %12779 = vmatpush.bf16.msra.mxu0 %v12319
    %12780 = vmatpush.bf16.msra.mxu0 %v12318
    %12781 = vmatpush.bf16.msra.mxu0 %v12317
    %12782 = vmatpush.bf16.msra.mxu0 %v12316
    %12783 = vmatpush.bf16.msra.mxu0 %v12315
    %12784 = vmatpush.bf16.msra.mxu0 %v12314
    %12785 = vmatmul.bf16.gmra.mxu0 %v11341
    %v12786 = vpop.f32.mrf.mxu0
    %v12787 = vadd.f32 %v12774, %v12786
    %v12788 = vpop.f32.mrf.mxu0
    %12789 = vdwg.mxu0
    %12790 = vmatpush.bf16.msra.mxu0 %v12329
    %12791 = vmatpush.bf16.msra.mxu0 %v12328
    %12792 = vmatpush.bf16.msra.mxu0 %v12327
    %12793 = vmatpush.bf16.msra.mxu0 %v12326
    %12794 = vmatpush.bf16.msra.mxu0 %v12325
    %12795 = vmatpush.bf16.msra.mxu0 %v12324
    %12796 = vmatpush.bf16.msra.mxu0 %v12323
    %12797 = vmatpush.bf16.msra.mxu0 %v12322
    %12798 = vmatmul.bf16.gmra.mxu0 %v11342
    %v12799 = vpop.f32.mrf.mxu0
    %v12800 = vadd.f32 %v12787, %v12799
    %v12801 = vpop.f32.mrf.mxu0
    %12802 = vdwg.mxu0
    %12803 = vmatpush.bf16.msra.mxu0 %v12337
    %12804 = vmatpush.bf16.msra.mxu0 %v12336
    %12805 = vmatpush.bf16.msra.mxu0 %v12335
    %12806 = vmatpush.bf16.msra.mxu0 %v12334
    %12807 = vmatpush.bf16.msra.mxu0 %v12333
    %12808 = vmatpush.bf16.msra.mxu0 %v12332
    %12809 = vmatpush.bf16.msra.mxu0 %v12331
    %12810 = vmatpush.bf16.msra.mxu0 %v12330
    %12811 = vmatmul.bf16.gmra.mxu0 %v11343
    %v12812 = vpop.f32.mrf.mxu0
    %v12813 = vadd.f32 %v12800, %v12812
    %v12814 = vpop.f32.mrf.mxu0
    %12815 = vdwg.mxu0
    %12816 = vmatpush.bf16.msra.mxu0 %v12345
    %12817 = vmatpush.bf16.msra.mxu0 %v12344
    %12818 = vmatpush.bf16.msra.mxu0 %v12343
    %12819 = vmatpush.bf16.msra.mxu0 %v12342
    %12820 = vmatpush.bf16.msra.mxu0 %v12341
    %12821 = vmatpush.bf16.msra.mxu0 %v12340
    %12822 = vmatpush.bf16.msra.mxu0 %v12339
    %12823 = vmatpush.bf16.msra.mxu0 %v12338
    %12824 = vmatmul.bf16.gmra.mxu0 %v11344
    %v12825 = vpop.f32.mrf.mxu0
    %v12826 = vadd.f32 %v12813, %v12825
    %v12827 = vpop.f32.mrf.mxu0
    %12828 = vdwg.mxu0
    %12829 = vmatpush.bf16.msra.mxu0 %v12353
    %12830 = vmatpush.bf16.msra.mxu0 %v12352
    %12831 = vmatpush.bf16.msra.mxu0 %v12351
    %12832 = vmatpush.bf16.msra.mxu0 %v12350
    %12833 = vmatpush.bf16.msra.mxu0 %v12349
    %12834 = vmatpush.bf16.msra.mxu0 %v12348
    %12835 = vmatpush.bf16.msra.mxu0 %v12347
    %12836 = vmatpush.bf16.msra.mxu0 %v12346
    %12837 = vmatmul.bf16.gmra.mxu0 %v11345
    %v12838 = vpop.f32.mrf.mxu0
    %v12839 = vadd.f32 %v12826, %v12838
    %v12840 = vpop.f32.mrf.mxu0
    %12841 = vdwg.mxu0
    %12842 = vmatpush.bf16.msra.mxu0 %v12361
    %12843 = vmatpush.bf16.msra.mxu0 %v12360
    %12844 = vmatpush.bf16.msra.mxu0 %v12359
    %12845 = vmatpush.bf16.msra.mxu0 %v12358
    %12846 = vmatpush.bf16.msra.mxu0 %v12357
    %12847 = vmatpush.bf16.msra.mxu0 %v12356
    %12848 = vmatpush.bf16.msra.mxu0 %v12355
    %12849 = vmatpush.bf16.msra.mxu0 %v12354
    %12850 = vmatmul.bf16.gmra.mxu0 %v11346
    %v12851 = vpop.f32.mrf.mxu0
    %v12852 = vadd.f32 %v12839, %v12851
    %v12853 = vpop.f32.mrf.mxu0
    %12854 = vdwg.mxu0
    %12855 = vmatpush.bf16.msra.mxu0 %v12369
    %12856 = vmatpush.bf16.msra.mxu0 %v12368
    %12857 = vmatpush.bf16.msra.mxu0 %v12367
    %12858 = vmatpush.bf16.msra.mxu0 %v12366
    %12859 = vmatpush.bf16.msra.mxu0 %v12365
    %12860 = vmatpush.bf16.msra.mxu0 %v12364
    %12861 = vmatpush.bf16.msra.mxu0 %v12363
    %12862 = vmatpush.bf16.msra.mxu0 %v12362
    %12863 = vmatmul.bf16.gmra.mxu0 %v11347
    %v12864 = vpop.f32.mrf.mxu0
    %v12865 = vadd.f32 %v12852, %v12864
    %v12866 = vpop.f32.mrf.mxu0
    %12867 = vdwg.mxu0
    %12868 = vmatpush.bf16.msra.mxu0 %v12377
    %12869 = vmatpush.bf16.msra.mxu0 %v12376
    %12870 = vmatpush.bf16.msra.mxu0 %v12375
    %12871 = vmatpush.bf16.msra.mxu0 %v12374
    %12872 = vmatpush.bf16.msra.mxu0 %v12373
    %12873 = vmatpush.bf16.msra.mxu0 %v12372
    %12874 = vmatpush.bf16.msra.mxu0 %v12371
    %12875 = vmatpush.bf16.msra.mxu0 %v12370
    %12876 = vmatmul.bf16.gmra.mxu0 %v11348
    %v12877 = vpop.f32.mrf.mxu0
    %v12878 = vadd.f32 %v12865, %v12877
    %v12879 = vpop.f32.mrf.mxu0
    %12880 = vdwg.mxu0
    %12881 = vmatpush.bf16.msra.mxu0 %v12385
    %12882 = vmatpush.bf16.msra.mxu0 %v12384
    %12883 = vmatpush.bf16.msra.mxu0 %v12383
    %12884 = vmatpush.bf16.msra.mxu0 %v12382
    %12885 = vmatpush.bf16.msra.mxu0 %v12381
    %12886 = vmatpush.bf16.msra.mxu0 %v12380
    %12887 = vmatpush.bf16.msra.mxu0 %v12379
    %12888 = vmatpush.bf16.msra.mxu0 %v12378
    %12889 = vmatmul.bf16.gmra.mxu0 %v11349
    %v12890 = vpop.f32.mrf.mxu0
    %v12891 = vadd.f32 %v12878, %v12890
    %v12892 = vpop.f32.mrf.mxu0
    %12893 = vdwg.mxu0
    %12894 = vmatpush.bf16.msra.mxu0 %v12393
    %12895 = vmatpush.bf16.msra.mxu0 %v12392
    %12896 = vmatpush.bf16.msra.mxu0 %v12391
    %12897 = vmatpush.bf16.msra.mxu0 %v12390
    %12898 = vmatpush.bf16.msra.mxu0 %v12389
    %12899 = vmatpush.bf16.msra.mxu0 %v12388
    %12900 = vmatpush.bf16.msra.mxu0 %v12387
    %12901 = vmatpush.bf16.msra.mxu0 %v12386
    %12902 = vmatmul.bf16.gmra.mxu0 %v11350
    %v12903 = vpop.f32.mrf.mxu0
    %v12904 = vadd.f32 %v12891, %v12903
    %v12905 = vpop.f32.mrf.mxu0
    %12906 = vdwg.mxu0
    %12907 = vmatpush.bf16.msra.mxu0 %v12401
    %12908 = vmatpush.bf16.msra.mxu0 %v12400
    %12909 = vmatpush.bf16.msra.mxu0 %v12399
    %12910 = vmatpush.bf16.msra.mxu0 %v12398
    %12911 = vmatpush.bf16.msra.mxu0 %v12397
    %12912 = vmatpush.bf16.msra.mxu0 %v12396
    %12913 = vmatpush.bf16.msra.mxu0 %v12395
    %12914 = vmatpush.bf16.msra.mxu0 %v12394
    %12915 = vmatmul.bf16.gmra.mxu0 %v11351
    %v12916 = vpop.f32.mrf.mxu0
    %v12917 = vadd.f32 %v12904, %v12916
    %v12918 = vpop.f32.mrf.mxu0
    %12919 = vdwg.mxu0
    %12920 = vmatpush.bf16.msra.mxu0 %v12409
    %12921 = vmatpush.bf16.msra.mxu0 %v12408
    %12922 = vmatpush.bf16.msra.mxu0 %v12407
    %12923 = vmatpush.bf16.msra.mxu0 %v12406
    %12924 = vmatpush.bf16.msra.mxu0 %v12405
    %12925 = vmatpush.bf16.msra.mxu0 %v12404
    %12926 = vmatpush.bf16.msra.mxu0 %v12403
    %12927 = vmatpush.bf16.msra.mxu0 %v12402
    %12928 = vmatmul.bf16.gmra.mxu0 %v11352
    %v12929 = vpop.f32.mrf.mxu0
    %v12930 = vadd.f32 %v12917, %v12929
    %v12931 = vpop.f32.mrf.mxu0
    %12932 = vdwg.mxu0
    %12933 = vmatpush.bf16.msra.mxu0 %v12417
    %12934 = vmatpush.bf16.msra.mxu0 %v12416
    %12935 = vmatpush.bf16.msra.mxu0 %v12415
    %12936 = vmatpush.bf16.msra.mxu0 %v12414
    %12937 = vmatpush.bf16.msra.mxu0 %v12413
    %12938 = vmatpush.bf16.msra.mxu0 %v12412
    %12939 = vmatpush.bf16.msra.mxu0 %v12411
    %12940 = vmatpush.bf16.msra.mxu0 %v12410
    %12941 = vmatmul.bf16.gmra.mxu0 %v11353
    %v12942 = vpop.f32.mrf.mxu0
    %v12943 = vadd.f32 %v12930, %v12942
    %v12944 = vpop.f32.mrf.mxu0
    %12945 = vdwg.mxu0
    %12946 = vmatpush.bf16.msra.mxu0 %v12425
    %12947 = vmatpush.bf16.msra.mxu0 %v12424
    %12948 = vmatpush.bf16.msra.mxu0 %v12423
    %12949 = vmatpush.bf16.msra.mxu0 %v12422
    %12950 = vmatpush.bf16.msra.mxu0 %v12421
    %12951 = vmatpush.bf16.msra.mxu0 %v12420
    %12952 = vmatpush.bf16.msra.mxu0 %v12419
    %12953 = vmatpush.bf16.msra.mxu0 %v12418
    %12954 = vmatmul.bf16.gmra.mxu0 %v11354
    %v12955 = vpop.f32.mrf.mxu0
    %v12956 = vadd.f32 %v12943, %v12955
    %v12957 = vpop.f32.mrf.mxu0
    %12958 = vdwg.mxu0
    %12959 = vmatpush.bf16.msra.mxu0 %v12433
    %12960 = vmatpush.bf16.msra.mxu0 %v12432
    %12961 = vmatpush.bf16.msra.mxu0 %v12431
    %12962 = vmatpush.bf16.msra.mxu0 %v12430
    %12963 = vmatpush.bf16.msra.mxu0 %v12429
    %12964 = vmatpush.bf16.msra.mxu0 %v12428
    %12965 = vmatpush.bf16.msra.mxu0 %v12427
    %12966 = vmatpush.bf16.msra.mxu0 %v12426
    %12967 = vmatmul.bf16.gmra.mxu0 %v11355
    %v12968 = vpop.f32.mrf.mxu0
    %v12969 = vadd.f32 %v12956, %v12968
    %v12970 = vpop.f32.mrf.mxu0
    %12971 = vdwg.mxu0
    %12972 = vmatpush.bf16.msra.mxu0 %v12441
    %12973 = vmatpush.bf16.msra.mxu0 %v12440
    %12974 = vmatpush.bf16.msra.mxu0 %v12439
    %12975 = vmatpush.bf16.msra.mxu0 %v12438
    %12976 = vmatpush.bf16.msra.mxu0 %v12437
    %12977 = vmatpush.bf16.msra.mxu0 %v12436
    %12978 = vmatpush.bf16.msra.mxu0 %v12435
    %12979 = vmatpush.bf16.msra.mxu0 %v12434
    %12980 = vmatmul.bf16.gmra.mxu0 %v11356
    %v12981 = vpop.f32.mrf.mxu0
    %v12982 = vadd.f32 %v12969, %v12981
    %v12983 = vpop.f32.mrf.mxu0
    %12984 = vdwg.mxu0
    %12985 = vmatpush.bf16.msra.mxu0 %v12449
    %12986 = vmatpush.bf16.msra.mxu0 %v12448
    %12987 = vmatpush.bf16.msra.mxu0 %v12447
    %12988 = vmatpush.bf16.msra.mxu0 %v12446
    %12989 = vmatpush.bf16.msra.mxu0 %v12445
    %12990 = vmatpush.bf16.msra.mxu0 %v12444
    %12991 = vmatpush.bf16.msra.mxu0 %v12443
    %12992 = vmatpush.bf16.msra.mxu0 %v12442
    %12993 = vmatmul.bf16.gmra.mxu0 %v11357
    %v12994 = vpop.f32.mrf.mxu0
    %v12995 = vadd.f32 %v12982, %v12994
    %v12996 = vpop.f32.mrf.mxu0
    %12997 = vdwg.mxu0
    %12998 = vmatpush.bf16.msra.mxu0 %v12457
    %12999 = vmatpush.bf16.msra.mxu0 %v12456
    %13000 = vmatpush.bf16.msra.mxu0 %v12455
    %13001 = vmatpush.bf16.msra.mxu0 %v12454
    %13002 = vmatpush.bf16.msra.mxu0 %v12453
    %13003 = vmatpush.bf16.msra.mxu0 %v12452
    %13004 = vmatpush.bf16.msra.mxu0 %v12451
    %13005 = vmatpush.bf16.msra.mxu0 %v12450
    %13006 = vmatmul.bf16.gmra.mxu0 %v11358
    %v13007 = vpop.f32.mrf.mxu0
    %v13008 = vadd.f32 %v12995, %v13007
    %v13009 = vpop.f32.mrf.mxu0
    %13010 = vdwg.mxu0
    %13011 = vmatpush.bf16.msra.mxu0 %v12465
    %13012 = vmatpush.bf16.msra.mxu0 %v12464
    %13013 = vmatpush.bf16.msra.mxu0 %v12463
    %13014 = vmatpush.bf16.msra.mxu0 %v12462
    %13015 = vmatpush.bf16.msra.mxu0 %v12461
    %13016 = vmatpush.bf16.msra.mxu0 %v12460
    %13017 = vmatpush.bf16.msra.mxu0 %v12459
    %13018 = vmatpush.bf16.msra.mxu0 %v12458
    %13019 = vmatmul.bf16.gmra.mxu0 %v11359
    %v13020 = vpop.f32.mrf.mxu0
    %v13021 = vadd.f32 %v13008, %v13020
    %v13022 = vpop.f32.mrf.mxu0
    %13023 = vdwg.mxu0
    %13024 = vmatpush.bf16.msra.mxu0 %v12473
    %13025 = vmatpush.bf16.msra.mxu0 %v12472
    %13026 = vmatpush.bf16.msra.mxu0 %v12471
    %13027 = vmatpush.bf16.msra.mxu0 %v12470
    %13028 = vmatpush.bf16.msra.mxu0 %v12469
    %13029 = vmatpush.bf16.msra.mxu0 %v12468
    %13030 = vmatpush.bf16.msra.mxu0 %v12467
    %13031 = vmatpush.bf16.msra.mxu0 %v12466
    %13032 = vmatmul.bf16.gmra.mxu0 %v11360
    %v13033 = vpop.f32.mrf.mxu0
    %v13034 = vadd.f32 %v13021, %v13033
    %v13035 = vpop.f32.mrf.mxu0
    %13036 = vdwg.mxu0
    %13037 = vmatpush.bf16.msra.mxu0 %v12481
    %13038 = vmatpush.bf16.msra.mxu0 %v12480
    %13039 = vmatpush.bf16.msra.mxu0 %v12479
    %13040 = vmatpush.bf16.msra.mxu0 %v12478
    %13041 = vmatpush.bf16.msra.mxu0 %v12477
    %13042 = vmatpush.bf16.msra.mxu0 %v12476
    %13043 = vmatpush.bf16.msra.mxu0 %v12475
    %13044 = vmatpush.bf16.msra.mxu0 %v12474
    %13045 = vmatmul.bf16.gmra.mxu0 %v11361
    %v13046 = vpop.f32.mrf.mxu0
    %v13047 = vadd.f32 %v13034, %v13046
    %v13048 = vpop.f32.mrf.mxu0
    %13049 = vdwg.mxu0
    %13050 = vmatpush.bf16.msra.mxu0 %v12489
    %13051 = vmatpush.bf16.msra.mxu0 %v12488
    %13052 = vmatpush.bf16.msra.mxu0 %v12487
    %13053 = vmatpush.bf16.msra.mxu0 %v12486
    %13054 = vmatpush.bf16.msra.mxu0 %v12485
    %13055 = vmatpush.bf16.msra.mxu0 %v12484
    %13056 = vmatpush.bf16.msra.mxu0 %v12483
    %13057 = vmatpush.bf16.msra.mxu0 %v12482
    %13058 = vmatmul.bf16.gmra.mxu0 %v11362
    %v13059 = vpop.f32.mrf.mxu0
    %v13060 = vadd.f32 %v13047, %v13059
    %v13061 = vpop.f32.mrf.mxu0
    %13062 = vdwg.mxu0
    %13063 = vmatpush.bf16.msra.mxu0 %v12497
    %13064 = vmatpush.bf16.msra.mxu0 %v12496
    %13065 = vmatpush.bf16.msra.mxu0 %v12495
    %13066 = vmatpush.bf16.msra.mxu0 %v12494
    %13067 = vmatpush.bf16.msra.mxu0 %v12493
    %13068 = vmatpush.bf16.msra.mxu0 %v12492
    %13069 = vmatpush.bf16.msra.mxu0 %v12491
    %13070 = vmatpush.bf16.msra.mxu0 %v12490
    %13071 = vmatmul.bf16.gmra.mxu0 %v11363
    %v13072 = vpop.f32.mrf.mxu0
    %v13073 = vadd.f32 %v13060, %v13072
    %v13074 = vpop.f32.mrf.mxu0
    %13075 = vdwg.mxu0
    %13076 = vmatpush.bf16.msra.mxu0 %v12505
    %13077 = vmatpush.bf16.msra.mxu0 %v12504
    %13078 = vmatpush.bf16.msra.mxu0 %v12503
    %13079 = vmatpush.bf16.msra.mxu0 %v12502
    %13080 = vmatpush.bf16.msra.mxu0 %v12501
    %13081 = vmatpush.bf16.msra.mxu0 %v12500
    %13082 = vmatpush.bf16.msra.mxu0 %v12499
    %13083 = vmatpush.bf16.msra.mxu0 %v12498
    %13084 = vmatmul.bf16.gmra.mxu0 %v11364
    %v13085 = vpop.f32.mrf.mxu0
    %v13086 = vadd.f32 %v13073, %v13085
    %v13087 = vpop.f32.mrf.mxu0
    %13088 = vdwg.mxu0
    %13089 = vmatpush.bf16.msra.mxu0 %v12513
    %13090 = vmatpush.bf16.msra.mxu0 %v12512
    %13091 = vmatpush.bf16.msra.mxu0 %v12511
    %13092 = vmatpush.bf16.msra.mxu0 %v12510
    %13093 = vmatpush.bf16.msra.mxu0 %v12509
    %13094 = vmatpush.bf16.msra.mxu0 %v12508
    %13095 = vmatpush.bf16.msra.mxu0 %v12507
    %13096 = vmatpush.bf16.msra.mxu0 %v12506
    %13097 = vmatmul.bf16.gmra.mxu0 %v11365
    %v13098 = vpop.f32.mrf.mxu0
    %v13099 = vadd.f32 %v13086, %v13098
    %v13100 = vpop.f32.mrf.mxu0
    %13101 = vdwg.mxu0
    %v13102 = vmax.f32 %v13099, 0.0
    %v13103 = vpack.c.bf16 %v13102, %v13102
    %v13104 = vld [vmem:[#allocation12] sm:$0xf]
    %v13105 = vld [vmem:[#allocation12 + $0x4] sm:$0xf]
    %v13106 = vld [vmem:[#allocation12 + $0x8] sm:$0xf]
    %v13107 = vld [vmem:[#allocation12 + $0xc] sm:$0xf]
    %v13108 = vld [vmem:[#allocation12 + $0x10] sm:$0xf]
    %v13109 = vld [vmem:[#allocation12 + $0x14] sm:$0xf]
    %v13110 = vld [vmem:[#allocation12 + $0x18] sm:$0xf]
    %v13111 = vld [vmem:[#allocation12 + $0x1c] sm:$0xf]
    %v13112 = vld [vmem:[#allocation12 + $0x20] sm:$0xf]
    %v13113 = vld [vmem:[#allocation12 + $0x24] sm:$0xf]
    %v13114 = vld [vmem:[#allocation12 + $0x28] sm:$0xf]
    %v13115 = vld [vmem:[#allocation12 + $0x2c] sm:$0xf]
    %v13116 = vld [vmem:[#allocation12 + $0x30] sm:$0xf]
    %v13117 = vld [vmem:[#allocation12 + $0x34] sm:$0xf]
    %v13118 = vld [vmem:[#allocation12 + $0x38] sm:$0xf]
    %v13119 = vld [vmem:[#allocation12 + $0x3c] sm:$0xf]
    %v13120 = vld [vmem:[#allocation14] sm:$0x1]
    %v13122 = vperm.slane %v13120, 0
    %v13140 = vunpack.c.l.b16 %v13104
    %v13141 = vunpack.c.l.b16 %v13105
    %v13142 = vunpack.c.l.b16 %v13106
    %v13143 = vunpack.c.l.b16 %v13107
    %v13144 = vunpack.c.l.b16 %v13108
    %v13145 = vunpack.c.l.b16 %v13109
    %v13146 = vunpack.c.l.b16 %v13110
    %v13147 = vunpack.c.l.b16 %v13111
    %v13148 = vunpack.c.l.b16 %v13112
    %v13149 = vunpack.c.l.b16 %v13113
    %v13150 = vunpack.c.l.b16 %v13114
    %v13151 = vunpack.c.l.b16 %v13115
    %v13152 = vunpack.c.l.b16 %v13116
    %v13153 = vunpack.c.l.b16 %v13117
    %v13154 = vunpack.c.l.b16 %v13118
    %v13155 = vunpack.c.l.b16 %v13119
    %v13156 = vpack.c.b16 %v13141, %v13140
    %v13157 = vpack.c.b16 %v13143, %v13142
    %v13158 = vpack.c.b16 %v13145, %v13144
    %v13159 = vpack.c.b16 %v13147, %v13146
    %v13160 = vpack.c.b16 %v13149, %v13148
    %v13161 = vpack.c.b16 %v13151, %v13150
    %v13162 = vpack.c.b16 %v13153, %v13152
    %v13163 = vpack.c.b16 %v13155, %v13154
    %13172 = vmatpush.bf16.msra.mxu0 %v13163
    %13173 = vmatpush.bf16.msra.mxu0 %v13162
    %13174 = vmatpush.bf16.msra.mxu0 %v13161
    %13175 = vmatpush.bf16.msra.mxu0 %v13160
    %13176 = vmatpush.bf16.msra.mxu0 %v13159
    %13177 = vmatpush.bf16.msra.mxu0 %v13158
    %13178 = vmatpush.bf16.msra.mxu0 %v13157
    %13179 = vmatpush.bf16.msra.mxu0 %v13156
    %13180 = vmatmul.bf16.gmra.mxu0 %v13103
    %v13181 = vpop.f32.mrf.mxu0
    %v13182 = vadd.f32 %v13122, %v13181
    %v13183 = vpop.f32.mrf.mxu0
    %13184 = vdwg.mxu0
    %13185 = vst [vmem:[%s8] sm:$0xff] %v13182
    // Predicated region
    $region62: #{convnet_forward.1} parent=1 // pred_check
      _
    $region63: #{convnet_forward.1} parent=1 // pred_check_branch
      %13187 = sbr.rel (0) target = $region65
    $region64: #{convnet_forward.1} parent=1 // pred_region
      _
    $region65: #{convnet_forward.1} parent=1 // pred_fallthru
      _
    // Predicated region
    $region66: #{convnet_forward.1} parent=1 // pred_check
      _
    $region67: #{convnet_forward.1} parent=1 // pred_check_branch
      %13189 = sbr.rel (0) target = $region69
    $region68: #{convnet_forward.1} parent=1 // pred_region
      _
    $region69: #{convnet_forward.1} parent=1 // pred_fallthru
      _
    %13190 = vsyncpa [#allocation5], 1
    %13191 = vsyncpa [#allocation7], 1
    %13192 = vsyncpa [#allocation10], 1
    %13193 = vsyncpa [#allocation13], 1

</llo_original>
